<compile_context>
chip_gen: v7x
topology: tpu7x:2x2x1
jax: 0.10.0
libtpu: 0.0.40
codegen_flags: <defaults>
</compile_context>

<pallas_src>
import functools

import jax
import jax.numpy as jnp
from jax.experimental import pallas as pl
from jax.experimental.pallas import tpu as pltpu


# ---------------------------------------------------------------------------
# Fused kernel
# ---------------------------------------------------------------------------
def _d_convlayer_kernel(x_ref, w1_ref, b1_ref, w2_ref, b2_ref,
                        caw1_ref, caw2_ref, saw_ref, m3_ref, m7_ref,
                        o_ref, *, H, W, Nb):
    HW = H * W
    f32 = jnp.float32
    bf16 = jnp.bfloat16

    # Static (dh, dw, lane-roll) tables for the 3x3 and 7x7 stencils.
    def tap_list(ksize):
        r = ksize // 2
        taps = []
        for dh in range(-r, r + 1):
            for dw in range(-r, r + 1):
                taps.append((dh, dw, (-(dh * W + dw)) % HW))
        return taps

    taps3 = tap_list(3)
    taps7 = tap_list(7)

    # Small tensors, loaded once and reused for all Nb images in this step.
    w1 = w1_ref[...]          # (9, C1, Cin)  bf16  (BN scale already folded in)
    w2 = w2_ref[...]          # (9, Cout, C1) bf16
    b1 = b1_ref[...]          # (C1, 1)  f32  (BN-folded bias)
    b2 = b2_ref[...]          # (Cout, 1) f32
    caw1 = caw1_ref[...]      # (Ch, Cout) f32
    caw2 = caw2_ref[...]      # (Cout, Ch) f32
    m3 = m3_ref[...]          # (9,  HW) f32 precomputed tap validity masks
    m7 = m7_ref[...]          # (49, HW) f32

    def conv3_bn_relu(v, w, b):
        # 9 per-tap accumulating matmuls: acc = sum_k w[k] @ (roll(v) * mask_k).
        # No patch matrix is ever materialized; acc lives in vregs.
        acc = None
        for k, (dh, dw, s) in enumerate(taps3):
            tap = pltpu.roll(v, s, axis=1) if s else v
            if dh or dw:                       # center tap needs no mask
                tap = tap * m3[k:k + 1, :]     # zero padding via mask (f32)
            d = jnp.dot(w[k], tap.astype(bf16), preferred_element_type=f32)
            acc = d if acc is None else acc + d
        return jnp.maximum(acc + b, 0.0)

    for i in range(Nb):                        # unrolled per-image loop
        x = x_ref[i]                           # (Cin, HW) f32

        # ---- conv1 + BN + ReLU, conv2 + BN + ReLU --------------------------
        y1 = conv3_bn_relu(x, w1, b1)          # (C1,   HW)
        x2 = conv3_bn_relu(y1, w2, b2)         # (Cout, HW)

        # ---- Channel attention: sigmoid(MLP(avg) + MLP(max)) * x2 ----------
        pooled = jnp.concatenate([jnp.mean(x2, axis=1, keepdims=True),
                                  jnp.max(x2, axis=1, keepdims=True)],
                                 axis=1)                                   # (Cout, 2)
        hid = jnp.maximum(jnp.dot(caw1, pooled,
                                  preferred_element_type=f32), 0.0)       # (Ch, 2)
        mo = jnp.dot(caw2, hid, preferred_element_type=f32)               # (Cout, 2)
        ca = jax.nn.sigmoid(mo[:, 0:1] + mo[:, 1:2])                      # (Cout, 1)
        y = x2 * ca                                                        # (Cout, HW)

        # ---- Spatial attention: 7x7 conv over [mean_c(y), max_c(y)] --------
        # Per-tap VPU accumulation with scalar weights read from SMEM; no patch
        # matrix, no VMEM stores.
        sm = jnp.concatenate([jnp.mean(y, axis=0, keepdims=True),
                              jnp.max(y, axis=0, keepdims=True)], axis=0)  # (2, HW)
        sa_acc = jnp.zeros((1, HW), f32)
        for k, (dh, dw, s) in enumerate(taps7):
            tap = pltpu.roll(sm, s, axis=1) if s else sm
            if dh or dw:
                tap = tap * m7[k:k + 1, :]
            sa_acc = (sa_acc
                      + saw_ref[2 * k] * tap[0:1, :]        # mean-channel weight
                      + saw_ref[2 * k + 1] * tap[1:2, :])   # max-channel weight
        sa = jax.nn.sigmoid(sa_acc)                                        # (1, HW)

        # ---- CBAM output: sa(ca(x) * x) * x  (matches the PyTorch module) --
        o_ref[i] = y * sa * x2


# ---------------------------------------------------------------------------
# Host-side helpers
# ---------------------------------------------------------------------------
def _tap_masks(H, W, ksize):
    """(k*k, H*W) f32 validity masks for zero padding, tap order (dh, dw)."""
    HW = H * W
    row = jnp.arange(HW, dtype=jnp.int32) // W
    col = jnp.arange(HW, dtype=jnp.int32) % W
    r = ksize // 2
    rows = []
    for dh in range(-r, r + 1):
        for dw in range(-r, r + 1):
            valid = ((row + dh >= 0) & (row + dh < H) &
                     (col + dw >= 0) & (col + dw < W))
            rows.append(valid.astype(jnp.float32))
    return jnp.stack(rows, axis=0)


def _pick_nb(n, cap=4):
    nb = min(n, cap)
    while n % nb:
        nb -= 1
    return nb


# ---------------------------------------------------------------------------
# Wrapper
# ---------------------------------------------------------------------------
def d_convlayer_forward(x_nchw, params, images_per_step=None):
    N, Cin, H, W = x_nchw.shape
    HW = H * W
    C1 = params["w1"].shape[1]        # first conv: in_ch -> in_ch
    Cout = params["w2"].shape[1]
    Ch = params["ca_w1"].shape[0]
    assert C1 == Cin and params["w1"].shape[2] == Cin

    Nb = images_per_step or _pick_nb(N)
    assert N % Nb == 0, "batch must be divisible by images_per_step"

    mask3 = _tap_masks(H, W, 3)       # (9,  HW) f32
    mask7 = _tap_masks(H, W, 7)       # (49, HW) f32

    x_flat = x_nchw.reshape(N, Cin, HW)      # free reshape: lane dim = H*W

    kernel = functools.partial(_d_convlayer_kernel, H=H, W=W, Nb=Nb)
    out = pl.pallas_call(
        kernel,
        out_shape=jax.ShapeDtypeStruct((N, Cout, HW), jnp.float32),
        grid_spec=pltpu.PrefetchScalarGridSpec(
            num_scalar_prefetch=0,
            grid=(N // Nb,),
            in_specs=[
                pl.BlockSpec((Nb, Cin, HW), lambda n: (n, 0, 0)),    # x
                pl.BlockSpec((9, C1, Cin), lambda n: (0, 0, 0)),     # conv1 w (bf16)
                pl.BlockSpec((C1, 1), lambda n: (0, 0)),             # conv1 bias
                pl.BlockSpec((9, Cout, C1), lambda n: (0, 0, 0)),    # conv2 w (bf16)
                pl.BlockSpec((Cout, 1), lambda n: (0, 0)),           # conv2 bias
                pl.BlockSpec((Ch, Cout), lambda n: (0, 0)),          # CA MLP w1
                pl.BlockSpec((Cout, Ch), lambda n: (0, 0)),          # CA MLP w2
                pl.BlockSpec(memory_space=pltpu.MemorySpace.SMEM),   # SA 7x7 weights
                pl.BlockSpec((9, HW), lambda n: (0, 0)),             # 3x3 tap masks
                pl.BlockSpec((49, HW), lambda n: (0, 0)),            # 7x7 tap masks
            ],
            out_specs=pl.BlockSpec((Nb, Cout, HW), lambda n: (n, 0, 0)),
        ),
        compiler_params=pltpu.CompilerParams(
            dimension_semantics=("parallel",),
            vmem_limit_bytes=32 * 1024 * 1024),   # raises v5e's 16 MiB scoped default
    )(x_flat, params["w1"], params["b1"], params["w2"], params["b2"],
      params["ca_w1"], params["ca_w2"], params["sa_w"], mask3, mask7)

    return out.reshape(N, Cout, H, W)


# ---------------------------------------------------------------------------
# Parameter packing (PyTorch layouts -> kernel layouts)
# ---------------------------------------------------------------------------
def _fold_bn_into_conv(w, b, gamma, beta, mean, var, eps=1e-5):
    scale = gamma / jnp.sqrt(var + eps)                       # (Cout,)
    w_f = w * scale[:, None, None, None]                      # scale folded into w
    b_f = (b - mean) * scale + beta
    return w_f, b_f


def _conv_w_to_taps(w):
    # (Cout, Cin, k, k) -> (k*k, Cout, Cin), tap order (kh, kw) row-major.
    Cout, Cin, kh, kw = w.shape
    return jnp.transpose(w, (2, 3, 0, 1)).reshape(kh * kw, Cout, Cin)


def pack_params(raw, eps=1e-5, matmul_dtype=jnp.bfloat16):
    w1f, b1f = _fold_bn_into_conv(raw["conv1_w"], raw["conv1_b"], raw["bn1_g"],
                                  raw["bn1_b"], raw["bn1_m"], raw["bn1_v"], eps)
    w2f, b2f = _fold_bn_into_conv(raw["conv2_w"], raw["conv2_b"], raw["bn2_g"],
                                  raw["bn2_b"], raw["bn2_m"], raw["bn2_v"], eps)
    return {
        "w1": _conv_w_to_taps(w1f).astype(matmul_dtype),      # (9, C1, Cin)
        "b1": b1f[:, None].astype(jnp.float32),                # (C1, 1)
        "w2": _conv_w_to_taps(w2f).astype(matmul_dtype),      # (9, Cout, C1)
        "b2": b2f[:, None].astype(jnp.float32),                # (Cout, 1)
        "ca_w1": raw["ca_w1_t"][:, :, 0, 0].astype(jnp.float32),   # (Ch, Cout)
        "ca_w2": raw["ca_w2_t"][:, :, 0, 0].astype(jnp.float32),   # (Cout, Ch)
        # (kh, kw, channel) flattened -> index 2*k + ch, matching the kernel.
        "sa_w": jnp.transpose(raw["sa_w_t"][0], (1, 2, 0)).reshape(98)
                .astype(jnp.float32),
    }


# ---------------------------------------------------------------------------
# Pure-JAX reference (inference-mode BN).
#   conv_dtype=float32  -> exact module semantics.
#   conv_dtype=bfloat16 -> models the kernel's bf16 conv-matmul operands exactly
#                          (BN-folded weights rounded to bf16, f32 accumulation),
#                          enabling a tight correctness tolerance.
# ---------------------------------------------------------------------------
def _reference_forward(x, raw, eps=1e-5, conv_dtype=jnp.float32):
    hp = jax.lax.Precision.HIGHEST

    def conv_bn_relu(h, w, b, g, beta, mean, var):
        wf, bf = _fold_bn_into_conv(w, b, g, beta, mean, var, eps)
        wf = wf.astype(conv_dtype).astype(jnp.float32)
        hc = h.astype(conv_dtype).astype(jnp.float32)
        y = jax.lax.conv_general_dilated(
            hc, wf, window_strides=(1, 1), padding=((1, 1), (1, 1)),
            dimension_numbers=("NCHW", "OIHW", "NCHW"), precision=hp)
        return jax.nn.relu(y + bf[None, :, None, None])

    h = conv_bn_relu(x, raw["conv1_w"], raw["conv1_b"], raw["bn1_g"], raw["bn1_b"],
                     raw["bn1_m"], raw["bn1_v"])
    h = conv_bn_relu(h, raw["conv2_w"], raw["conv2_b"], raw["bn2_g"], raw["bn2_b"],
                     raw["bn2_m"], raw["bn2_v"])

    w1 = raw["ca_w1_t"][:, :, 0, 0]
    w2 = raw["ca_w2_t"][:, :, 0, 0]
    avg = jnp.mean(h, axis=(2, 3))
    mx = jnp.max(h, axis=(2, 3))

    def mlp(v):
        hid = jax.nn.relu(jnp.einsum("nc,hc->nh", v, w1, precision=hp))
        return jnp.einsum("nh,ch->nc", hid, w2, precision=hp)

    ca = jax.nn.sigmoid(mlp(avg) + mlp(mx))[:, :, None, None]
    y = h * ca

    cat = jnp.concatenate([jnp.mean(y, axis=1, keepdims=True),
                           jnp.max(y, axis=1, keepdims=True)], axis=1)
    att = jax.nn.sigmoid(jax.lax.conv_general_dilated(
        cat, raw["sa_w_t"], window_strides=(1, 1), padding=((3, 3), (3, 3)),
        dimension_numbers=("NCHW", "OIHW", "NCHW"), precision=hp))
    return y * att * h


# ---------------------------------------------------------------------------
if __name__ == "__main__":
    key = jax.random.PRNGKey(0)
    N, in_ch, out_ch, H, W = 2, 4, 8, 16, 16
    hidden = max(1, out_ch // 8)
    ks = jax.random.split(key, 16)

    x = jax.random.normal(ks[0], (N, in_ch, H, W), jnp.float32)

    raw = dict(
        conv1_w=jax.random.normal(ks[1], (in_ch, in_ch, 3, 3), jnp.float32) * 0.2,
        conv1_b=jax.random.normal(ks[2], (in_ch,), jnp.float32) * 0.1,
        bn1_g=1.0 + 0.1 * jax.random.normal(ks[3], (in_ch,), jnp.float32),
        bn1_b=0.1 * jax.random.normal(ks[4], (in_ch,), jnp.float32),
        bn1_m=0.1 * jax.random.normal(ks[5], (in_ch,), jnp.float32),
        bn1_v=0.5 + jax.random.uniform(ks[6], (in_ch,), jnp.float32),
        conv2_w=jax.random.normal(ks[7], (out_ch, in_ch, 3, 3), jnp.float32) * 0.2,
        conv2_b=jax.random.normal(ks[8], (out_ch,), jnp.float32) * 0.1,
        bn2_g=1.0 + 0.1 * jax.random.normal(ks[9], (out_ch,), jnp.float32),
        bn2_b=0.1 * jax.random.normal(ks[10], (out_ch,), jnp.float32),
        bn2_m=0.1 * jax.random.normal(ks[11], (out_ch,), jnp.float32),
        bn2_v=0.5 + jax.random.uniform(ks[12], (out_ch,), jnp.float32),
        ca_w1_t=jax.random.normal(ks[13], (hidden, out_ch, 1, 1), jnp.float32) * 0.3,
        ca_w2_t=jax.random.normal(ks[14], (out_ch, hidden, 1, 1), jnp.float32) * 0.3,
        sa_w_t=jax.random.normal(ks[15], (1, 2, 7, 7), jnp.float32) * 0.1,
    )

    params = pack_params(raw)

    out = jax.block_until_ready(d_convlayer_forward(x, params))
    assert out.shape == (N, out_ch, H, W)

    # Tight check against a reference that models the kernel's bf16 matmul
    # operands exactly (catches layout/indexing regressions), plus a looser
    # sanity check against the pure-f32 module semantics.
    ref_f32 = jax.block_until_ready(_reference_forward(x, raw))
    ref_bf16 = jax.block_until_ready(
        _reference_forward(x, raw, conv_dtype=jnp.bfloat16))
    scale = max(1.0, float(jnp.max(jnp.abs(ref_f32))))

    err_tight = float(jnp.max(jnp.abs(out - ref_bf16)))
    assert err_tight <= 5e-3 * scale, \
        f"kernel vs bf16-matched reference: max_err={err_tight}, scale={scale}"

    err_loose = float(jnp.max(jnp.abs(out - ref_f32)))
    assert err_loose <= 5e-2 * scale, \
        f"kernel vs f32 module reference: max_err={err_loose}, scale={scale}"

    print("KERNEL_OK")
</pallas_src>

<mosaic_0001>
module attributes {stable_mosaic.version = 11 : i64} {
  func.func @_d_convlayer_kernel(%arg0: i32, %arg1: memref<2x4x256xf32, #tpu.memory_space<vmem>>, %arg2: memref<9x4x4xbf16, #tpu.memory_space<vmem>>, %arg3: memref<4x1xf32, #tpu.memory_space<vmem>>, %arg4: memref<9x8x4xbf16, #tpu.memory_space<vmem>>, %arg5: memref<8x1xf32, #tpu.memory_space<vmem>>, %arg6: memref<1x8xf32, #tpu.memory_space<vmem>>, %arg7: memref<8x1xf32, #tpu.memory_space<vmem>>, %arg8: memref<98xf32, #tpu.memory_space<smem>>, %arg9: memref<9x256xf32, #tpu.memory_space<vmem>>, %arg10: memref<49x256xf32, #tpu.memory_space<vmem>>, %arg11: memref<2x8x256xf32, #tpu.memory_space<vmem>>) attributes {dimension_semantics = [#tpu.dimension_semantics<parallel>], iteration_bounds = array<i64: 1>, scalar_prefetch = 0 : i64, scratch_operands = 0 : i64, tpu.core_type = #tpu.core_type<tc>, window_params = [{transform_indices = @transform_0, window_bounds = array<i64: 2, 4, 256>}, {pipeline_mode = #tpu.pipeline_mode<synchronous>, transform_indices = @transform_1, window_bounds = array<i64: 9, 4, 4>}, {pipeline_mode = #tpu.pipeline_mode<synchronous>, transform_indices = @transform_2, window_bounds = array<i64: 4, 1>}, {pipeline_mode = #tpu.pipeline_mode<synchronous>, transform_indices = @transform_3, window_bounds = array<i64: 9, 8, 4>}, {pipeline_mode = #tpu.pipeline_mode<synchronous>, transform_indices = @transform_4, window_bounds = array<i64: 8, 1>}, {pipeline_mode = #tpu.pipeline_mode<synchronous>, transform_indices = @transform_5, window_bounds = array<i64: 1, 8>}, {pipeline_mode = #tpu.pipeline_mode<synchronous>, transform_indices = @transform_6, window_bounds = array<i64: 8, 1>}, {transform_indices = @transform_7, window_bounds = array<i64: 98>}, {pipeline_mode = #tpu.pipeline_mode<synchronous>, transform_indices = @transform_8, window_bounds = array<i64: 9, 256>}, {pipeline_mode = #tpu.pipeline_mode<synchronous>, transform_indices = @transform_9, window_bounds = array<i64: 49, 256>}, {transform_indices = @transform_10, window_bounds = array<i64: 2, 8, 256>}]} {
    %c0 = arith.constant 0 : index
    %c0_0 = arith.constant 0 : index
    %c0_1 = arith.constant 0 : index
    %0 = vector.load %arg2[%c0, %c0_0, %c0_1] : memref<9x4x4xbf16, #tpu.memory_space<vmem>>, vector<9x4x4xbf16>
    %c0_2 = arith.constant 0 : index
    %c0_3 = arith.constant 0 : index
    %c0_4 = arith.constant 0 : index
    %1 = vector.load %arg4[%c0_2, %c0_3, %c0_4] : memref<9x8x4xbf16, #tpu.memory_space<vmem>>, vector<9x8x4xbf16>
    %c0_5 = arith.constant 0 : index
    %c0_6 = arith.constant 0 : index
    %2 = vector.load %arg3[%c0_5, %c0_6] : memref<4x1xf32, #tpu.memory_space<vmem>>, vector<4x1xf32>
    %c0_7 = arith.constant 0 : index
    %c0_8 = arith.constant 0 : index
    %3 = vector.load %arg5[%c0_7, %c0_8] : memref<8x1xf32, #tpu.memory_space<vmem>>, vector<8x1xf32>
    %c0_9 = arith.constant 0 : index
    %c0_10 = arith.constant 0 : index
    %4 = vector.load %arg6[%c0_9, %c0_10] : memref<1x8xf32, #tpu.memory_space<vmem>>, vector<1x8xf32>
    %c0_11 = arith.constant 0 : index
    %c0_12 = arith.constant 0 : index
    %5 = vector.load %arg7[%c0_11, %c0_12] : memref<8x1xf32, #tpu.memory_space<vmem>>, vector<8x1xf32>
    %c0_13 = arith.constant 0 : index
    %c0_14 = arith.constant 0 : index
    %6 = vector.load %arg9[%c0_13, %c0_14] : memref<9x256xf32, #tpu.memory_space<vmem>>, vector<9x256xf32>
    %c0_15 = arith.constant 0 : index
    %c0_16 = arith.constant 0 : index
    %7 = vector.load %arg10[%c0_15, %c0_16] : memref<49x256xf32, #tpu.memory_space<vmem>>, vector<49x256xf32>
    %c0_17 = arith.constant 0 : index
    %c0_18 = arith.constant 0 : index
    %c0_19 = arith.constant 0 : index
    %8 = vector.load %arg1[%c0_17, %c0_18, %c0_19] : memref<2x4x256xf32, #tpu.memory_space<vmem>>, vector<1x4x256xf32>
    %9 = vector.shape_cast %8 : vector<1x4x256xf32> to vector<4x256xf32>
    %c17_i32 = arith.constant 17 : i32
    %10 = tpu.dynamic_rotate %9 by %c17_i32 dim 1 : vector<4x256xf32>, i32 -> vector<4x256xf32>
    %11 = vector.extract_strided_slice %6 {offsets = [0, 0], sizes = [1, 256], strides = [1, 1]} : vector<9x256xf32> to vector<1x256xf32>
    %12 = vector.broadcast %11 : vector<1x256xf32> to vector<4x256xf32>
    %13 = arith.mulf %10, %12 : vector<4x256xf32>
    %14 = vector.extract_strided_slice %0 {offsets = [0, 0, 0], sizes = [1, 4, 4], strides = [1, 1, 1]} : vector<9x4x4xbf16> to vector<1x4x4xbf16>
    %15 = vector.shape_cast %14 : vector<1x4x4xbf16> to vector<4x4xbf16>
    %16 = arith.truncf %13 : vector<4x256xf32> to vector<4x256xbf16>
    %cst = arith.constant dense<0.000000e+00> : vector<4x256xf32>
    %17 = tpu.matmul %15, %16, %cst {dimension_numbers = #tpu.dot_dimension_numbers<[1], [0], [0], [1], [0, 0, 1, 1], [], []>} : vector<4x4xbf16>, vector<4x256xbf16>, vector<4x256xf32> -> vector<4x256xf32>
    %c16_i32 = arith.constant 16 : i32
    %18 = tpu.dynamic_rotate %9 by %c16_i32 dim 1 : vector<4x256xf32>, i32 -> vector<4x256xf32>
    %19 = vector.extract_strided_slice %6 {offsets = [1, 0], sizes = [1, 256], strides = [1, 1]} : vector<9x256xf32> to vector<1x256xf32>
    %20 = vector.broadcast %19 : vector<1x256xf32> to vector<4x256xf32>
    %21 = arith.mulf %18, %20 : vector<4x256xf32>
    %22 = vector.extract_strided_slice %0 {offsets = [1, 0, 0], sizes = [1, 4, 4], strides = [1, 1, 1]} : vector<9x4x4xbf16> to vector<1x4x4xbf16>
    %23 = vector.shape_cast %22 : vector<1x4x4xbf16> to vector<4x4xbf16>
    %24 = arith.truncf %21 : vector<4x256xf32> to vector<4x256xbf16>
    %cst_20 = arith.constant dense<0.000000e+00> : vector<4x256xf32>
    %25 = tpu.matmul %23, %24, %cst_20 {dimension_numbers = #tpu.dot_dimension_numbers<[1], [0], [0], [1], [0, 0, 1, 1], [], []>} : vector<4x4xbf16>, vector<4x256xbf16>, vector<4x256xf32> -> vector<4x256xf32>
    %26 = arith.addf %17, %25 : vector<4x256xf32>
    %c15_i32 = arith.constant 15 : i32
    %27 = tpu.dynamic_rotate %9 by %c15_i32 dim 1 : vector<4x256xf32>, i32 -> vector<4x256xf32>
    %28 = vector.extract_strided_slice %6 {offsets = [2, 0], sizes = [1, 256], strides = [1, 1]} : vector<9x256xf32> to vector<1x256xf32>
    %29 = vector.broadcast %28 : vector<1x256xf32> to vector<4x256xf32>
    %30 = arith.mulf %27, %29 : vector<4x256xf32>
    %31 = vector.extract_strided_slice %0 {offsets = [2, 0, 0], sizes = [1, 4, 4], strides = [1, 1, 1]} : vector<9x4x4xbf16> to vector<1x4x4xbf16>
    %32 = vector.shape_cast %31 : vector<1x4x4xbf16> to vector<4x4xbf16>
    %33 = arith.truncf %30 : vector<4x256xf32> to vector<4x256xbf16>
    %cst_21 = arith.constant dense<0.000000e+00> : vector<4x256xf32>
    %34 = tpu.matmul %32, %33, %cst_21 {dimension_numbers = #tpu.dot_dimension_numbers<[1], [0], [0], [1], [0, 0, 1, 1], [], []>} : vector<4x4xbf16>, vector<4x256xbf16>, vector<4x256xf32> -> vector<4x256xf32>
    %35 = arith.addf %26, %34 : vector<4x256xf32>
    %c1_i32 = arith.constant 1 : i32
    %36 = tpu.dynamic_rotate %9 by %c1_i32 dim 1 : vector<4x256xf32>, i32 -> vector<4x256xf32>
    %37 = vector.extract_strided_slice %6 {offsets = [3, 0], sizes = [1, 256], strides = [1, 1]} : vector<9x256xf32> to vector<1x256xf32>
    %38 = vector.broadcast %37 : vector<1x256xf32> to vector<4x256xf32>
    %39 = arith.mulf %36, %38 : vector<4x256xf32>
    %40 = vector.extract_strided_slice %0 {offsets = [3, 0, 0], sizes = [1, 4, 4], strides = [1, 1, 1]} : vector<9x4x4xbf16> to vector<1x4x4xbf16>
    %41 = vector.shape_cast %40 : vector<1x4x4xbf16> to vector<4x4xbf16>
    %42 = arith.truncf %39 : vector<4x256xf32> to vector<4x256xbf16>
    %cst_22 = arith.constant dense<0.000000e+00> : vector<4x256xf32>
    %43 = tpu.matmul %41, %42, %cst_22 {dimension_numbers = #tpu.dot_dimension_numbers<[1], [0], [0], [1], [0, 0, 1, 1], [], []>} : vector<4x4xbf16>, vector<4x256xbf16>, vector<4x256xf32> -> vector<4x256xf32>
    %44 = arith.addf %35, %43 : vector<4x256xf32>
    %45 = vector.extract_strided_slice %0 {offsets = [4, 0, 0], sizes = [1, 4, 4], strides = [1, 1, 1]} : vector<9x4x4xbf16> to vector<1x4x4xbf16>
    %46 = vector.shape_cast %45 : vector<1x4x4xbf16> to vector<4x4xbf16>
    %47 = arith.truncf %9 : vector<4x256xf32> to vector<4x256xbf16>
    %cst_23 = arith.constant dense<0.000000e+00> : vector<4x256xf32>
    %48 = tpu.matmul %46, %47, %cst_23 {dimension_numbers = #tpu.dot_dimension_numbers<[1], [0], [0], [1], [0, 0, 1, 1], [], []>} : vector<4x4xbf16>, vector<4x256xbf16>, vector<4x256xf32> -> vector<4x256xf32>
    %49 = arith.addf %44, %48 : vector<4x256xf32>
    %c255_i32 = arith.constant 255 : i32
    %50 = tpu.dynamic_rotate %9 by %c255_i32 dim 1 : vector<4x256xf32>, i32 -> vector<4x256xf32>
    %51 = vector.extract_strided_slice %6 {offsets = [5, 0], sizes = [1, 256], strides = [1, 1]} : vector<9x256xf32> to vector<1x256xf32>
    %52 = vector.broadcast %51 : vector<1x256xf32> to vector<4x256xf32>
    %53 = arith.mulf %50, %52 : vector<4x256xf32>
    %54 = vector.extract_strided_slice %0 {offsets = [5, 0, 0], sizes = [1, 4, 4], strides = [1, 1, 1]} : vector<9x4x4xbf16> to vector<1x4x4xbf16>
    %55 = vector.shape_cast %54 : vector<1x4x4xbf16> to vector<4x4xbf16>
    %56 = arith.truncf %53 : vector<4x256xf32> to vector<4x256xbf16>
    %cst_24 = arith.constant dense<0.000000e+00> : vector<4x256xf32>
    %57 = tpu.matmul %55, %56, %cst_24 {dimension_numbers = #tpu.dot_dimension_numbers<[1], [0], [0], [1], [0, 0, 1, 1], [], []>} : vector<4x4xbf16>, vector<4x256xbf16>, vector<4x256xf32> -> vector<4x256xf32>
    %58 = arith.addf %49, %57 : vector<4x256xf32>
    %c241_i32 = arith.constant 241 : i32
    %59 = tpu.dynamic_rotate %9 by %c241_i32 dim 1 : vector<4x256xf32>, i32 -> vector<4x256xf32>
    %60 = vector.extract_strided_slice %6 {offsets = [6, 0], sizes = [1, 256], strides = [1, 1]} : vector<9x256xf32> to vector<1x256xf32>
    %61 = vector.broadcast %60 : vector<1x256xf32> to vector<4x256xf32>
    %62 = arith.mulf %59, %61 : vector<4x256xf32>
    %63 = vector.extract_strided_slice %0 {offsets = [6, 0, 0], sizes = [1, 4, 4], strides = [1, 1, 1]} : vector<9x4x4xbf16> to vector<1x4x4xbf16>
    %64 = vector.shape_cast %63 : vector<1x4x4xbf16> to vector<4x4xbf16>
    %65 = arith.truncf %62 : vector<4x256xf32> to vector<4x256xbf16>
    %cst_25 = arith.constant dense<0.000000e+00> : vector<4x256xf32>
    %66 = tpu.matmul %64, %65, %cst_25 {dimension_numbers = #tpu.dot_dimension_numbers<[1], [0], [0], [1], [0, 0, 1, 1], [], []>} : vector<4x4xbf16>, vector<4x256xbf16>, vector<4x256xf32> -> vector<4x256xf32>
    %67 = arith.addf %58, %66 : vector<4x256xf32>
    %c240_i32 = arith.constant 240 : i32
    %68 = tpu.dynamic_rotate %9 by %c240_i32 dim 1 : vector<4x256xf32>, i32 -> vector<4x256xf32>
    %69 = vector.extract_strided_slice %6 {offsets = [7, 0], sizes = [1, 256], strides = [1, 1]} : vector<9x256xf32> to vector<1x256xf32>
    %70 = vector.broadcast %69 : vector<1x256xf32> to vector<4x256xf32>
    %71 = arith.mulf %68, %70 : vector<4x256xf32>
    %72 = vector.extract_strided_slice %0 {offsets = [7, 0, 0], sizes = [1, 4, 4], strides = [1, 1, 1]} : vector<9x4x4xbf16> to vector<1x4x4xbf16>
    %73 = vector.shape_cast %72 : vector<1x4x4xbf16> to vector<4x4xbf16>
    %74 = arith.truncf %71 : vector<4x256xf32> to vector<4x256xbf16>
    %cst_26 = arith.constant dense<0.000000e+00> : vector<4x256xf32>
    %75 = tpu.matmul %73, %74, %cst_26 {dimension_numbers = #tpu.dot_dimension_numbers<[1], [0], [0], [1], [0, 0, 1, 1], [], []>} : vector<4x4xbf16>, vector<4x256xbf16>, vector<4x256xf32> -> vector<4x256xf32>
    %76 = arith.addf %67, %75 : vector<4x256xf32>
    %c239_i32 = arith.constant 239 : i32
    %77 = tpu.dynamic_rotate %9 by %c239_i32 dim 1 : vector<4x256xf32>, i32 -> vector<4x256xf32>
    %78 = vector.extract_strided_slice %6 {offsets = [8, 0], sizes = [1, 256], strides = [1, 1]} : vector<9x256xf32> to vector<1x256xf32>
    %79 = vector.broadcast %78 : vector<1x256xf32> to vector<4x256xf32>
    %80 = arith.mulf %77, %79 : vector<4x256xf32>
    %81 = vector.extract_strided_slice %0 {offsets = [8, 0, 0], sizes = [1, 4, 4], strides = [1, 1, 1]} : vector<9x4x4xbf16> to vector<1x4x4xbf16>
    %82 = vector.shape_cast %81 : vector<1x4x4xbf16> to vector<4x4xbf16>
    %83 = arith.truncf %80 : vector<4x256xf32> to vector<4x256xbf16>
    %cst_27 = arith.constant dense<0.000000e+00> : vector<4x256xf32>
    %84 = tpu.matmul %82, %83, %cst_27 {dimension_numbers = #tpu.dot_dimension_numbers<[1], [0], [0], [1], [0, 0, 1, 1], [], []>} : vector<4x4xbf16>, vector<4x256xbf16>, vector<4x256xf32> -> vector<4x256xf32>
    %85 = arith.addf %76, %84 : vector<4x256xf32>
    %86 = vector.broadcast %2 : vector<4x1xf32> to vector<4x256xf32>
    %87 = arith.addf %85, %86 : vector<4x256xf32>
    %cst_28 = arith.constant 0.000000e+00 : f32
    %88 = vector.broadcast %cst_28 : f32 to vector<4x256xf32>
    %89 = arith.maximumf %87, %88 : vector<4x256xf32>
    %c17_i32_29 = arith.constant 17 : i32
    %90 = tpu.dynamic_rotate %89 by %c17_i32_29 dim 1 : vector<4x256xf32>, i32 -> vector<4x256xf32>
    %91 = vector.extract_strided_slice %6 {offsets = [0, 0], sizes = [1, 256], strides = [1, 1]} : vector<9x256xf32> to vector<1x256xf32>
    %92 = vector.broadcast %91 : vector<1x256xf32> to vector<4x256xf32>
    %93 = arith.mulf %90, %92 : vector<4x256xf32>
    %94 = vector.extract_strided_slice %1 {offsets = [0, 0, 0], sizes = [1, 8, 4], strides = [1, 1, 1]} : vector<9x8x4xbf16> to vector<1x8x4xbf16>
    %95 = vector.shape_cast %94 : vector<1x8x4xbf16> to vector<8x4xbf16>
    %96 = arith.truncf %93 : vector<4x256xf32> to vector<4x256xbf16>
    %cst_30 = arith.constant dense<0.000000e+00> : vector<8x256xf32>
    %97 = tpu.matmul %95, %96, %cst_30 {dimension_numbers = #tpu.dot_dimension_numbers<[1], [0], [0], [1], [0, 0, 1, 1], [], []>} : vector<8x4xbf16>, vector<4x256xbf16>, vector<8x256xf32> -> vector<8x256xf32>
    %c16_i32_31 = arith.constant 16 : i32
    %98 = tpu.dynamic_rotate %89 by %c16_i32_31 dim 1 : vector<4x256xf32>, i32 -> vector<4x256xf32>
    %99 = vector.extract_strided_slice %6 {offsets = [1, 0], sizes = [1, 256], strides = [1, 1]} : vector<9x256xf32> to vector<1x256xf32>
    %100 = vector.broadcast %99 : vector<1x256xf32> to vector<4x256xf32>
    %101 = arith.mulf %98, %100 : vector<4x256xf32>
    %102 = vector.extract_strided_slice %1 {offsets = [1, 0, 0], sizes = [1, 8, 4], strides = [1, 1, 1]} : vector<9x8x4xbf16> to vector<1x8x4xbf16>
    %103 = vector.shape_cast %102 : vector<1x8x4xbf16> to vector<8x4xbf16>
    %104 = arith.truncf %101 : vector<4x256xf32> to vector<4x256xbf16>
    %cst_32 = arith.constant dense<0.000000e+00> : vector<8x256xf32>
    %105 = tpu.matmul %103, %104, %cst_32 {dimension_numbers = #tpu.dot_dimension_numbers<[1], [0], [0], [1], [0, 0, 1, 1], [], []>} : vector<8x4xbf16>, vector<4x256xbf16>, vector<8x256xf32> -> vector<8x256xf32>
    %106 = arith.addf %97, %105 : vector<8x256xf32>
    %c15_i32_33 = arith.constant 15 : i32
    %107 = tpu.dynamic_rotate %89 by %c15_i32_33 dim 1 : vector<4x256xf32>, i32 -> vector<4x256xf32>
    %108 = vector.extract_strided_slice %6 {offsets = [2, 0], sizes = [1, 256], strides = [1, 1]} : vector<9x256xf32> to vector<1x256xf32>
    %109 = vector.broadcast %108 : vector<1x256xf32> to vector<4x256xf32>
    %110 = arith.mulf %107, %109 : vector<4x256xf32>
    %111 = vector.extract_strided_slice %1 {offsets = [2, 0, 0], sizes = [1, 8, 4], strides = [1, 1, 1]} : vector<9x8x4xbf16> to vector<1x8x4xbf16>
    %112 = vector.shape_cast %111 : vector<1x8x4xbf16> to vector<8x4xbf16>
    %113 = arith.truncf %110 : vector<4x256xf32> to vector<4x256xbf16>
    %cst_34 = arith.constant dense<0.000000e+00> : vector<8x256xf32>
    %114 = tpu.matmul %112, %113, %cst_34 {dimension_numbers = #tpu.dot_dimension_numbers<[1], [0], [0], [1], [0, 0, 1, 1], [], []>} : vector<8x4xbf16>, vector<4x256xbf16>, vector<8x256xf32> -> vector<8x256xf32>
    %115 = arith.addf %106, %114 : vector<8x256xf32>
    %c1_i32_35 = arith.constant 1 : i32
    %116 = tpu.dynamic_rotate %89 by %c1_i32_35 dim 1 : vector<4x256xf32>, i32 -> vector<4x256xf32>
    %117 = vector.extract_strided_slice %6 {offsets = [3, 0], sizes = [1, 256], strides = [1, 1]} : vector<9x256xf32> to vector<1x256xf32>
    %118 = vector.broadcast %117 : vector<1x256xf32> to vector<4x256xf32>
    %119 = arith.mulf %116, %118 : vector<4x256xf32>
    %120 = vector.extract_strided_slice %1 {offsets = [3, 0, 0], sizes = [1, 8, 4], strides = [1, 1, 1]} : vector<9x8x4xbf16> to vector<1x8x4xbf16>
    %121 = vector.shape_cast %120 : vector<1x8x4xbf16> to vector<8x4xbf16>
    %122 = arith.truncf %119 : vector<4x256xf32> to vector<4x256xbf16>
    %cst_36 = arith.constant dense<0.000000e+00> : vector<8x256xf32>
    %123 = tpu.matmul %121, %122, %cst_36 {dimension_numbers = #tpu.dot_dimension_numbers<[1], [0], [0], [1], [0, 0, 1, 1], [], []>} : vector<8x4xbf16>, vector<4x256xbf16>, vector<8x256xf32> -> vector<8x256xf32>
    %124 = arith.addf %115, %123 : vector<8x256xf32>
    %125 = vector.extract_strided_slice %1 {offsets = [4, 0, 0], sizes = [1, 8, 4], strides = [1, 1, 1]} : vector<9x8x4xbf16> to vector<1x8x4xbf16>
    %126 = vector.shape_cast %125 : vector<1x8x4xbf16> to vector<8x4xbf16>
    %127 = arith.truncf %89 : vector<4x256xf32> to vector<4x256xbf16>
    %cst_37 = arith.constant dense<0.000000e+00> : vector<8x256xf32>
    %128 = tpu.matmul %126, %127, %cst_37 {dimension_numbers = #tpu.dot_dimension_numbers<[1], [0], [0], [1], [0, 0, 1, 1], [], []>} : vector<8x4xbf16>, vector<4x256xbf16>, vector<8x256xf32> -> vector<8x256xf32>
    %129 = arith.addf %124, %128 : vector<8x256xf32>
    %c255_i32_38 = arith.constant 255 : i32
    %130 = tpu.dynamic_rotate %89 by %c255_i32_38 dim 1 : vector<4x256xf32>, i32 -> vector<4x256xf32>
    %131 = vector.extract_strided_slice %6 {offsets = [5, 0], sizes = [1, 256], strides = [1, 1]} : vector<9x256xf32> to vector<1x256xf32>
    %132 = vector.broadcast %131 : vector<1x256xf32> to vector<4x256xf32>
    %133 = arith.mulf %130, %132 : vector<4x256xf32>
    %134 = vector.extract_strided_slice %1 {offsets = [5, 0, 0], sizes = [1, 8, 4], strides = [1, 1, 1]} : vector<9x8x4xbf16> to vector<1x8x4xbf16>
    %135 = vector.shape_cast %134 : vector<1x8x4xbf16> to vector<8x4xbf16>
    %136 = arith.truncf %133 : vector<4x256xf32> to vector<4x256xbf16>
    %cst_39 = arith.constant dense<0.000000e+00> : vector<8x256xf32>
    %137 = tpu.matmul %135, %136, %cst_39 {dimension_numbers = #tpu.dot_dimension_numbers<[1], [0], [0], [1], [0, 0, 1, 1], [], []>} : vector<8x4xbf16>, vector<4x256xbf16>, vector<8x256xf32> -> vector<8x256xf32>
    %138 = arith.addf %129, %137 : vector<8x256xf32>
    %c241_i32_40 = arith.constant 241 : i32
    %139 = tpu.dynamic_rotate %89 by %c241_i32_40 dim 1 : vector<4x256xf32>, i32 -> vector<4x256xf32>
    %140 = vector.extract_strided_slice %6 {offsets = [6, 0], sizes = [1, 256], strides = [1, 1]} : vector<9x256xf32> to vector<1x256xf32>
    %141 = vector.broadcast %140 : vector<1x256xf32> to vector<4x256xf32>
    %142 = arith.mulf %139, %141 : vector<4x256xf32>
    %143 = vector.extract_strided_slice %1 {offsets = [6, 0, 0], sizes = [1, 8, 4], strides = [1, 1, 1]} : vector<9x8x4xbf16> to vector<1x8x4xbf16>
    %144 = vector.shape_cast %143 : vector<1x8x4xbf16> to vector<8x4xbf16>
    %145 = arith.truncf %142 : vector<4x256xf32> to vector<4x256xbf16>
    %cst_41 = arith.constant dense<0.000000e+00> : vector<8x256xf32>
    %146 = tpu.matmul %144, %145, %cst_41 {dimension_numbers = #tpu.dot_dimension_numbers<[1], [0], [0], [1], [0, 0, 1, 1], [], []>} : vector<8x4xbf16>, vector<4x256xbf16>, vector<8x256xf32> -> vector<8x256xf32>
    %147 = arith.addf %138, %146 : vector<8x256xf32>
    %c240_i32_42 = arith.constant 240 : i32
    %148 = tpu.dynamic_rotate %89 by %c240_i32_42 dim 1 : vector<4x256xf32>, i32 -> vector<4x256xf32>
    %149 = vector.extract_strided_slice %6 {offsets = [7, 0], sizes = [1, 256], strides = [1, 1]} : vector<9x256xf32> to vector<1x256xf32>
    %150 = vector.broadcast %149 : vector<1x256xf32> to vector<4x256xf32>
    %151 = arith.mulf %148, %150 : vector<4x256xf32>
    %152 = vector.extract_strided_slice %1 {offsets = [7, 0, 0], sizes = [1, 8, 4], strides = [1, 1, 1]} : vector<9x8x4xbf16> to vector<1x8x4xbf16>
    %153 = vector.shape_cast %152 : vector<1x8x4xbf16> to vector<8x4xbf16>
    %154 = arith.truncf %151 : vector<4x256xf32> to vector<4x256xbf16>
    %cst_43 = arith.constant dense<0.000000e+00> : vector<8x256xf32>
    %155 = tpu.matmul %153, %154, %cst_43 {dimension_numbers = #tpu.dot_dimension_numbers<[1], [0], [0], [1], [0, 0, 1, 1], [], []>} : vector<8x4xbf16>, vector<4x256xbf16>, vector<8x256xf32> -> vector<8x256xf32>
    %156 = arith.addf %147, %155 : vector<8x256xf32>
    %c239_i32_44 = arith.constant 239 : i32
    %157 = tpu.dynamic_rotate %89 by %c239_i32_44 dim 1 : vector<4x256xf32>, i32 -> vector<4x256xf32>
    %158 = vector.extract_strided_slice %6 {offsets = [8, 0], sizes = [1, 256], strides = [1, 1]} : vector<9x256xf32> to vector<1x256xf32>
    %159 = vector.broadcast %158 : vector<1x256xf32> to vector<4x256xf32>
    %160 = arith.mulf %157, %159 : vector<4x256xf32>
    %161 = vector.extract_strided_slice %1 {offsets = [8, 0, 0], sizes = [1, 8, 4], strides = [1, 1, 1]} : vector<9x8x4xbf16> to vector<1x8x4xbf16>
    %162 = vector.shape_cast %161 : vector<1x8x4xbf16> to vector<8x4xbf16>
    %163 = arith.truncf %160 : vector<4x256xf32> to vector<4x256xbf16>
    %cst_45 = arith.constant dense<0.000000e+00> : vector<8x256xf32>
    %164 = tpu.matmul %162, %163, %cst_45 {dimension_numbers = #tpu.dot_dimension_numbers<[1], [0], [0], [1], [0, 0, 1, 1], [], []>} : vector<8x4xbf16>, vector<4x256xbf16>, vector<8x256xf32> -> vector<8x256xf32>
    %165 = arith.addf %156, %164 : vector<8x256xf32>
    %166 = vector.broadcast %3 : vector<8x1xf32> to vector<8x256xf32>
    %167 = arith.addf %165, %166 : vector<8x256xf32>
    %cst_46 = arith.constant 0.000000e+00 : f32
    %168 = vector.broadcast %cst_46 : f32 to vector<8x256xf32>
    %169 = arith.maximumf %167, %168 : vector<8x256xf32>
    %cst_47 = arith.constant dense<0.000000e+00> : vector<8xf32>
    %170 = vector.multi_reduction <add>, %169, %cst_47 [1] : vector<8x256xf32> to vector<8xf32>
    %171 = vector.shape_cast %170 : vector<8xf32> to vector<8x1xf32>
    %cst_48 = arith.constant 2.560000e+02 : f32
    %172 = vector.broadcast %cst_48 : f32 to vector<8x1xf32>
    %173 = arith.divf %171, %172 : vector<8x1xf32>
    %cst_49 = arith.constant dense<0xFF800000> : vector<8xf32>
    %174 = vector.multi_reduction <maximumf>, %169, %cst_49 [1] : vector<8x256xf32> to vector<8xf32>
    %175 = vector.shape_cast %174 : vector<8xf32> to vector<8x1xf32>
    %176 = tpu.concatenate %173, %175 in 1 : vector<8x1xf32>, vector<8x1xf32> -> vector<8x2xf32>
    %cst_50 = arith.constant dense<0.000000e+00> : vector<1x2xf32>
    %177 = tpu.matmul %4, %176, %cst_50 {dimension_numbers = #tpu.dot_dimension_numbers<[1], [0], [0], [1], [0, 0, 1, 1], [], []>} : vector<1x8xf32>, vector<8x2xf32>, vector<1x2xf32> -> vector<1x2xf32>
    %cst_51 = arith.constant 0.000000e+00 : f32
    %178 = vector.broadcast %cst_51 : f32 to vector<1x2xf32>
    %179 = arith.maximumf %177, %178 : vector<1x2xf32>
    %cst_52 = arith.constant dense<0.000000e+00> : vector<8x2xf32>
    %180 = tpu.matmul %5, %179, %cst_52 {dimension_numbers = #tpu.dot_dimension_numbers<[1], [0], [0], [1], [0, 0, 1, 1], [], []>} : vector<8x1xf32>, vector<1x2xf32>, vector<8x2xf32> -> vector<8x2xf32>
    %181 = vector.extract_strided_slice %180 {offsets = [0, 0], sizes = [8, 1], strides = [1, 1]} : vector<8x2xf32> to vector<8x1xf32>
    %182 = vector.extract_strided_slice %180 {offsets = [0, 1], sizes = [8, 1], strides = [1, 1]} : vector<8x2xf32> to vector<8x1xf32>
    %183 = arith.addf %181, %182 : vector<8x1xf32>
    %184 = arith.negf %183 : vector<8x1xf32>
    %185 = math.exp %184 : vector<8x1xf32>
    %cst_53 = arith.constant 1.000000e+00 : f32
    %186 = vector.broadcast %cst_53 : f32 to vector<8x1xf32>
    %187 = arith.addf %186, %185 : vector<8x1xf32>
    %188 = arith.divf %186, %187 : vector<8x1xf32>
    %189 = vector.broadcast %188 : vector<8x1xf32> to vector<8x256xf32>
    %190 = arith.mulf %169, %189 : vector<8x256xf32>
    %cst_54 = arith.constant dense<0.000000e+00> : vector<256xf32>
    %191 = vector.multi_reduction <add>, %190, %cst_54 [0] : vector<8x256xf32> to vector<256xf32>
    %192 = vector.shape_cast %191 : vector<256xf32> to vector<1x256xf32>
    %cst_55 = arith.constant 8.000000e+00 : f32
    %193 = vector.broadcast %cst_55 : f32 to vector<1x256xf32>
    %194 = arith.divf %192, %193 : vector<1x256xf32>
    %cst_56 = arith.constant dense<0xFF800000> : vector<256xf32>
    %195 = vector.multi_reduction <maximumf>, %190, %cst_56 [0] : vector<8x256xf32> to vector<256xf32>
    %196 = vector.shape_cast %195 : vector<256xf32> to vector<1x256xf32>
    %197 = tpu.concatenate %194, %196 in 0 : vector<1x256xf32>, vector<1x256xf32> -> vector<2x256xf32>
    %cst_57 = arith.constant 0.000000e+00 : f32
    %198 = vector.broadcast %cst_57 : f32 to vector<1x256xf32>
    %c51_i32 = arith.constant 51 : i32
    %199 = tpu.dynamic_rotate %197 by %c51_i32 dim 1 : vector<2x256xf32>, i32 -> vector<2x256xf32>
    %200 = vector.extract_strided_slice %7 {offsets = [0, 0], sizes = [1, 256], strides = [1, 1]} : vector<49x256xf32> to vector<1x256xf32>
    %201 = vector.broadcast %200 : vector<1x256xf32> to vector<2x256xf32>
    %202 = arith.mulf %199, %201 : vector<2x256xf32>
    %c0_58 = arith.constant 0 : index
    %203 = memref.load %arg8[%c0_58] : memref<98xf32, #tpu.memory_space<smem>>
    %204 = vector.extract_strided_slice %202 {offsets = [0, 0], sizes = [1, 256], strides = [1, 1]} : vector<2x256xf32> to vector<1x256xf32>
    %205 = vector.broadcast %203 : f32 to vector<1x256xf32>
    %206 = arith.mulf %205, %204 : vector<1x256xf32>
    %207 = arith.addf %198, %206 : vector<1x256xf32>
    %c1 = arith.constant 1 : index
    %208 = memref.load %arg8[%c1] : memref<98xf32, #tpu.memory_space<smem>>
    %209 = vector.extract_strided_slice %202 {offsets = [1, 0], sizes = [1, 256], strides = [1, 1]} : vector<2x256xf32> to vector<1x256xf32>
    %210 = vector.broadcast %208 : f32 to vector<1x256xf32>
    %211 = arith.mulf %210, %209 : vector<1x256xf32>
    %212 = arith.addf %207, %211 : vector<1x256xf32>
    %c50_i32 = arith.constant 50 : i32
    %213 = tpu.dynamic_rotate %197 by %c50_i32 dim 1 : vector<2x256xf32>, i32 -> vector<2x256xf32>
    %214 = vector.extract_strided_slice %7 {offsets = [1, 0], sizes = [1, 256], strides = [1, 1]} : vector<49x256xf32> to vector<1x256xf32>
    %215 = vector.broadcast %214 : vector<1x256xf32> to vector<2x256xf32>
    %216 = arith.mulf %213, %215 : vector<2x256xf32>
    %c2 = arith.constant 2 : index
    %217 = memref.load %arg8[%c2] : memref<98xf32, #tpu.memory_space<smem>>
    %218 = vector.extract_strided_slice %216 {offsets = [0, 0], sizes = [1, 256], strides = [1, 1]} : vector<2x256xf32> to vector<1x256xf32>
    %219 = vector.broadcast %217 : f32 to vector<1x256xf32>
    %220 = arith.mulf %219, %218 : vector<1x256xf32>
    %221 = arith.addf %212, %220 : vector<1x256xf32>
    %c3 = arith.constant 3 : index
    %222 = memref.load %arg8[%c3] : memref<98xf32, #tpu.memory_space<smem>>
    %223 = vector.extract_strided_slice %216 {offsets = [1, 0], sizes = [1, 256], strides = [1, 1]} : vector<2x256xf32> to vector<1x256xf32>
    %224 = vector.broadcast %222 : f32 to vector<1x256xf32>
    %225 = arith.mulf %224, %223 : vector<1x256xf32>
    %226 = arith.addf %221, %225 : vector<1x256xf32>
    %c49_i32 = arith.constant 49 : i32
    %227 = tpu.dynamic_rotate %197 by %c49_i32 dim 1 : vector<2x256xf32>, i32 -> vector<2x256xf32>
    %228 = vector.extract_strided_slice %7 {offsets = [2, 0], sizes = [1, 256], strides = [1, 1]} : vector<49x256xf32> to vector<1x256xf32>
    %229 = vector.broadcast %228 : vector<1x256xf32> to vector<2x256xf32>
    %230 = arith.mulf %227, %229 : vector<2x256xf32>
    %c4 = arith.constant 4 : index
    %231 = memref.load %arg8[%c4] : memref<98xf32, #tpu.memory_space<smem>>
    %232 = vector.extract_strided_slice %230 {offsets = [0, 0], sizes = [1, 256], strides = [1, 1]} : vector<2x256xf32> to vector<1x256xf32>
    %233 = vector.broadcast %231 : f32 to vector<1x256xf32>
    %234 = arith.mulf %233, %232 : vector<1x256xf32>
    %235 = arith.addf %226, %234 : vector<1x256xf32>
    %c5 = arith.constant 5 : index
    %236 = memref.load %arg8[%c5] : memref<98xf32, #tpu.memory_space<smem>>
    %237 = vector.extract_strided_slice %230 {offsets = [1, 0], sizes = [1, 256], strides = [1, 1]} : vector<2x256xf32> to vector<1x256xf32>
    %238 = vector.broadcast %236 : f32 to vector<1x256xf32>
    %239 = arith.mulf %238, %237 : vector<1x256xf32>
    %240 = arith.addf %235, %239 : vector<1x256xf32>
    %c48_i32 = arith.constant 48 : i32
    %241 = tpu.dynamic_rotate %197 by %c48_i32 dim 1 : vector<2x256xf32>, i32 -> vector<2x256xf32>
    %242 = vector.extract_strided_slice %7 {offsets = [3, 0], sizes = [1, 256], strides = [1, 1]} : vector<49x256xf32> to vector<1x256xf32>
    %243 = vector.broadcast %242 : vector<1x256xf32> to vector<2x256xf32>
    %244 = arith.mulf %241, %243 : vector<2x256xf32>
    %c6 = arith.constant 6 : index
    %245 = memref.load %arg8[%c6] : memref<98xf32, #tpu.memory_space<smem>>
    %246 = vector.extract_strided_slice %244 {offsets = [0, 0], sizes = [1, 256], strides = [1, 1]} : vector<2x256xf32> to vector<1x256xf32>
    %247 = vector.broadcast %245 : f32 to vector<1x256xf32>
    %248 = arith.mulf %247, %246 : vector<1x256xf32>
    %249 = arith.addf %240, %248 : vector<1x256xf32>
    %c7 = arith.constant 7 : index
    %250 = memref.load %arg8[%c7] : memref<98xf32, #tpu.memory_space<smem>>
    %251 = vector.extract_strided_slice %244 {offsets = [1, 0], sizes = [1, 256], strides = [1, 1]} : vector<2x256xf32> to vector<1x256xf32>
    %252 = vector.broadcast %250 : f32 to vector<1x256xf32>
    %253 = arith.mulf %252, %251 : vector<1x256xf32>
    %254 = arith.addf %249, %253 : vector<1x256xf32>
    %c47_i32 = arith.constant 47 : i32
    %255 = tpu.dynamic_rotate %197 by %c47_i32 dim 1 : vector<2x256xf32>, i32 -> vector<2x256xf32>
    %256 = vector.extract_strided_slice %7 {offsets = [4, 0], sizes = [1, 256], strides = [1, 1]} : vector<49x256xf32> to vector<1x256xf32>
    %257 = vector.broadcast %256 : vector<1x256xf32> to vector<2x256xf32>
    %258 = arith.mulf %255, %257 : vector<2x256xf32>
    %c8 = arith.constant 8 : index
    %259 = memref.load %arg8[%c8] : memref<98xf32, #tpu.memory_space<smem>>
    %260 = vector.extract_strided_slice %258 {offsets = [0, 0], sizes = [1, 256], strides = [1, 1]} : vector<2x256xf32> to vector<1x256xf32>
    %261 = vector.broadcast %259 : f32 to vector<1x256xf32>
    %262 = arith.mulf %261, %260 : vector<1x256xf32>
    %263 = arith.addf %254, %262 : vector<1x256xf32>
    %c9 = arith.constant 9 : index
    %264 = memref.load %arg8[%c9] : memref<98xf32, #tpu.memory_space<smem>>
    %265 = vector.extract_strided_slice %258 {offsets = [1, 0], sizes = [1, 256], strides = [1, 1]} : vector<2x256xf32> to vector<1x256xf32>
    %266 = vector.broadcast %264 : f32 to vector<1x256xf32>
    %267 = arith.mulf %266, %265 : vector<1x256xf32>
    %268 = arith.addf %263, %267 : vector<1x256xf32>
    %c46_i32 = arith.constant 46 : i32
    %269 = tpu.dynamic_rotate %197 by %c46_i32 dim 1 : vector<2x256xf32>, i32 -> vector<2x256xf32>
    %270 = vector.extract_strided_slice %7 {offsets = [5, 0], sizes = [1, 256], strides = [1, 1]} : vector<49x256xf32> to vector<1x256xf32>
    %271 = vector.broadcast %270 : vector<1x256xf32> to vector<2x256xf32>
    %272 = arith.mulf %269, %271 : vector<2x256xf32>
    %c10 = arith.constant 10 : index
    %273 = memref.load %arg8[%c10] : memref<98xf32, #tpu.memory_space<smem>>
    %274 = vector.extract_strided_slice %272 {offsets = [0, 0], sizes = [1, 256], strides = [1, 1]} : vector<2x256xf32> to vector<1x256xf32>
    %275 = vector.broadcast %273 : f32 to vector<1x256xf32>
    %276 = arith.mulf %275, %274 : vector<1x256xf32>
    %277 = arith.addf %268, %276 : vector<1x256xf32>
    %c11 = arith.constant 11 : index
    %278 = memref.load %arg8[%c11] : memref<98xf32, #tpu.memory_space<smem>>
    %279 = vector.extract_strided_slice %272 {offsets = [1, 0], sizes = [1, 256], strides = [1, 1]} : vector<2x256xf32> to vector<1x256xf32>
    %280 = vector.broadcast %278 : f32 to vector<1x256xf32>
    %281 = arith.mulf %280, %279 : vector<1x256xf32>
    %282 = arith.addf %277, %281 : vector<1x256xf32>
    %c45_i32 = arith.constant 45 : i32
    %283 = tpu.dynamic_rotate %197 by %c45_i32 dim 1 : vector<2x256xf32>, i32 -> vector<2x256xf32>
    %284 = vector.extract_strided_slice %7 {offsets = [6, 0], sizes = [1, 256], strides = [1, 1]} : vector<49x256xf32> to vector<1x256xf32>
    %285 = vector.broadcast %284 : vector<1x256xf32> to vector<2x256xf32>
    %286 = arith.mulf %283, %285 : vector<2x256xf32>
    %c12 = arith.constant 12 : index
    %287 = memref.load %arg8[%c12] : memref<98xf32, #tpu.memory_space<smem>>
    %288 = vector.extract_strided_slice %286 {offsets = [0, 0], sizes = [1, 256], strides = [1, 1]} : vector<2x256xf32> to vector<1x256xf32>
    %289 = vector.broadcast %287 : f32 to vector<1x256xf32>
    %290 = arith.mulf %289, %288 : vector<1x256xf32>
    %291 = arith.addf %282, %290 : vector<1x256xf32>
    %c13 = arith.constant 13 : index
    %292 = memref.load %arg8[%c13] : memref<98xf32, #tpu.memory_space<smem>>
    %293 = vector.extract_strided_slice %286 {offsets = [1, 0], sizes = [1, 256], strides = [1, 1]} : vector<2x256xf32> to vector<1x256xf32>
    %294 = vector.broadcast %292 : f32 to vector<1x256xf32>
    %295 = arith.mulf %294, %293 : vector<1x256xf32>
    %296 = arith.addf %291, %295 : vector<1x256xf32>
    %c35_i32 = arith.constant 35 : i32
    %297 = tpu.dynamic_rotate %197 by %c35_i32 dim 1 : vector<2x256xf32>, i32 -> vector<2x256xf32>
    %298 = vector.extract_strided_slice %7 {offsets = [7, 0], sizes = [1, 256], strides = [1, 1]} : vector<49x256xf32> to vector<1x256xf32>
    %299 = vector.broadcast %298 : vector<1x256xf32> to vector<2x256xf32>
    %300 = arith.mulf %297, %299 : vector<2x256xf32>
    %c14 = arith.constant 14 : index
    %301 = memref.load %arg8[%c14] : memref<98xf32, #tpu.memory_space<smem>>
    %302 = vector.extract_strided_slice %300 {offsets = [0, 0], sizes = [1, 256], strides = [1, 1]} : vector<2x256xf32> to vector<1x256xf32>
    %303 = vector.broadcast %301 : f32 to vector<1x256xf32>
    %304 = arith.mulf %303, %302 : vector<1x256xf32>
    %305 = arith.addf %296, %304 : vector<1x256xf32>
    %c15 = arith.constant 15 : index
    %306 = memref.load %arg8[%c15] : memref<98xf32, #tpu.memory_space<smem>>
    %307 = vector.extract_strided_slice %300 {offsets = [1, 0], sizes = [1, 256], strides = [1, 1]} : vector<2x256xf32> to vector<1x256xf32>
    %308 = vector.broadcast %306 : f32 to vector<1x256xf32>
    %309 = arith.mulf %308, %307 : vector<1x256xf32>
    %310 = arith.addf %305, %309 : vector<1x256xf32>
    %c34_i32 = arith.constant 34 : i32
    %311 = tpu.dynamic_rotate %197 by %c34_i32 dim 1 : vector<2x256xf32>, i32 -> vector<2x256xf32>
    %312 = vector.extract_strided_slice %7 {offsets = [8, 0], sizes = [1, 256], strides = [1, 1]} : vector<49x256xf32> to vector<1x256xf32>
    %313 = vector.broadcast %312 : vector<1x256xf32> to vector<2x256xf32>
    %314 = arith.mulf %311, %313 : vector<2x256xf32>
    %c16 = arith.constant 16 : index
    %315 = memref.load %arg8[%c16] : memref<98xf32, #tpu.memory_space<smem>>
    %316 = vector.extract_strided_slice %314 {offsets = [0, 0], sizes = [1, 256], strides = [1, 1]} : vector<2x256xf32> to vector<1x256xf32>
    %317 = vector.broadcast %315 : f32 to vector<1x256xf32>
    %318 = arith.mulf %317, %316 : vector<1x256xf32>
    %319 = arith.addf %310, %318 : vector<1x256xf32>
    %c17 = arith.constant 17 : index
    %320 = memref.load %arg8[%c17] : memref<98xf32, #tpu.memory_space<smem>>
    %321 = vector.extract_strided_slice %314 {offsets = [1, 0], sizes = [1, 256], strides = [1, 1]} : vector<2x256xf32> to vector<1x256xf32>
    %322 = vector.broadcast %320 : f32 to vector<1x256xf32>
    %323 = arith.mulf %322, %321 : vector<1x256xf32>
    %324 = arith.addf %319, %323 : vector<1x256xf32>
    %c33_i32 = arith.constant 33 : i32
    %325 = tpu.dynamic_rotate %197 by %c33_i32 dim 1 : vector<2x256xf32>, i32 -> vector<2x256xf32>
    %326 = vector.extract_strided_slice %7 {offsets = [9, 0], sizes = [1, 256], strides = [1, 1]} : vector<49x256xf32> to vector<1x256xf32>
    %327 = vector.broadcast %326 : vector<1x256xf32> to vector<2x256xf32>
    %328 = arith.mulf %325, %327 : vector<2x256xf32>
    %c18 = arith.constant 18 : index
    %329 = memref.load %arg8[%c18] : memref<98xf32, #tpu.memory_space<smem>>
    %330 = vector.extract_strided_slice %328 {offsets = [0, 0], sizes = [1, 256], strides = [1, 1]} : vector<2x256xf32> to vector<1x256xf32>
    %331 = vector.broadcast %329 : f32 to vector<1x256xf32>
    %332 = arith.mulf %331, %330 : vector<1x256xf32>
    %333 = arith.addf %324, %332 : vector<1x256xf32>
    %c19 = arith.constant 19 : index
    %334 = memref.load %arg8[%c19] : memref<98xf32, #tpu.memory_space<smem>>
    %335 = vector.extract_strided_slice %328 {offsets = [1, 0], sizes = [1, 256], strides = [1, 1]} : vector<2x256xf32> to vector<1x256xf32>
    %336 = vector.broadcast %334 : f32 to vector<1x256xf32>
    %337 = arith.mulf %336, %335 : vector<1x256xf32>
    %338 = arith.addf %333, %337 : vector<1x256xf32>
    %c32_i32 = arith.constant 32 : i32
    %339 = tpu.dynamic_rotate %197 by %c32_i32 dim 1 : vector<2x256xf32>, i32 -> vector<2x256xf32>
    %340 = vector.extract_strided_slice %7 {offsets = [10, 0], sizes = [1, 256], strides = [1, 1]} : vector<49x256xf32> to vector<1x256xf32>
    %341 = vector.broadcast %340 : vector<1x256xf32> to vector<2x256xf32>
    %342 = arith.mulf %339, %341 : vector<2x256xf32>
    %c20 = arith.constant 20 : index
    %343 = memref.load %arg8[%c20] : memref<98xf32, #tpu.memory_space<smem>>
    %344 = vector.extract_strided_slice %342 {offsets = [0, 0], sizes = [1, 256], strides = [1, 1]} : vector<2x256xf32> to vector<1x256xf32>
    %345 = vector.broadcast %343 : f32 to vector<1x256xf32>
    %346 = arith.mulf %345, %344 : vector<1x256xf32>
    %347 = arith.addf %338, %346 : vector<1x256xf32>
    %c21 = arith.constant 21 : index
    %348 = memref.load %arg8[%c21] : memref<98xf32, #tpu.memory_space<smem>>
    %349 = vector.extract_strided_slice %342 {offsets = [1, 0], sizes = [1, 256], strides = [1, 1]} : vector<2x256xf32> to vector<1x256xf32>
    %350 = vector.broadcast %348 : f32 to vector<1x256xf32>
    %351 = arith.mulf %350, %349 : vector<1x256xf32>
    %352 = arith.addf %347, %351 : vector<1x256xf32>
    %c31_i32 = arith.constant 31 : i32
    %353 = tpu.dynamic_rotate %197 by %c31_i32 dim 1 : vector<2x256xf32>, i32 -> vector<2x256xf32>
    %354 = vector.extract_strided_slice %7 {offsets = [11, 0], sizes = [1, 256], strides = [1, 1]} : vector<49x256xf32> to vector<1x256xf32>
    %355 = vector.broadcast %354 : vector<1x256xf32> to vector<2x256xf32>
    %356 = arith.mulf %353, %355 : vector<2x256xf32>
    %c22 = arith.constant 22 : index
    %357 = memref.load %arg8[%c22] : memref<98xf32, #tpu.memory_space<smem>>
    %358 = vector.extract_strided_slice %356 {offsets = [0, 0], sizes = [1, 256], strides = [1, 1]} : vector<2x256xf32> to vector<1x256xf32>
    %359 = vector.broadcast %357 : f32 to vector<1x256xf32>
    %360 = arith.mulf %359, %358 : vector<1x256xf32>
    %361 = arith.addf %352, %360 : vector<1x256xf32>
    %c23 = arith.constant 23 : index
    %362 = memref.load %arg8[%c23] : memref<98xf32, #tpu.memory_space<smem>>
    %363 = vector.extract_strided_slice %356 {offsets = [1, 0], sizes = [1, 256], strides = [1, 1]} : vector<2x256xf32> to vector<1x256xf32>
    %364 = vector.broadcast %362 : f32 to vector<1x256xf32>
    %365 = arith.mulf %364, %363 : vector<1x256xf32>
    %366 = arith.addf %361, %365 : vector<1x256xf32>
    %c30_i32 = arith.constant 30 : i32
    %367 = tpu.dynamic_rotate %197 by %c30_i32 dim 1 : vector<2x256xf32>, i32 -> vector<2x256xf32>
    %368 = vector.extract_strided_slice %7 {offsets = [12, 0], sizes = [1, 256], strides = [1, 1]} : vector<49x256xf32> to vector<1x256xf32>
    %369 = vector.broadcast %368 : vector<1x256xf32> to vector<2x256xf32>
    %370 = arith.mulf %367, %369 : vector<2x256xf32>
    %c24 = arith.constant 24 : index
    %371 = memref.load %arg8[%c24] : memref<98xf32, #tpu.memory_space<smem>>
    %372 = vector.extract_strided_slice %370 {offsets = [0, 0], sizes = [1, 256], strides = [1, 1]} : vector<2x256xf32> to vector<1x256xf32>
    %373 = vector.broadcast %371 : f32 to vector<1x256xf32>
    %374 = arith.mulf %373, %372 : vector<1x256xf32>
    %375 = arith.addf %366, %374 : vector<1x256xf32>
    %c25 = arith.constant 25 : index
    %376 = memref.load %arg8[%c25] : memref<98xf32, #tpu.memory_space<smem>>
    %377 = vector.extract_strided_slice %370 {offsets = [1, 0], sizes = [1, 256], strides = [1, 1]} : vector<2x256xf32> to vector<1x256xf32>
    %378 = vector.broadcast %376 : f32 to vector<1x256xf32>
    %379 = arith.mulf %378, %377 : vector<1x256xf32>
    %380 = arith.addf %375, %379 : vector<1x256xf32>
    %c29_i32 = arith.constant 29 : i32
    %381 = tpu.dynamic_rotate %197 by %c29_i32 dim 1 : vector<2x256xf32>, i32 -> vector<2x256xf32>
    %382 = vector.extract_strided_slice %7 {offsets = [13, 0], sizes = [1, 256], strides = [1, 1]} : vector<49x256xf32> to vector<1x256xf32>
    %383 = vector.broadcast %382 : vector<1x256xf32> to vector<2x256xf32>
    %384 = arith.mulf %381, %383 : vector<2x256xf32>
    %c26 = arith.constant 26 : index
    %385 = memref.load %arg8[%c26] : memref<98xf32, #tpu.memory_space<smem>>
    %386 = vector.extract_strided_slice %384 {offsets = [0, 0], sizes = [1, 256], strides = [1, 1]} : vector<2x256xf32> to vector<1x256xf32>
    %387 = vector.broadcast %385 : f32 to vector<1x256xf32>
    %388 = arith.mulf %387, %386 : vector<1x256xf32>
    %389 = arith.addf %380, %388 : vector<1x256xf32>
    %c27 = arith.constant 27 : index
    %390 = memref.load %arg8[%c27] : memref<98xf32, #tpu.memory_space<smem>>
    %391 = vector.extract_strided_slice %384 {offsets = [1, 0], sizes = [1, 256], strides = [1, 1]} : vector<2x256xf32> to vector<1x256xf32>
    %392 = vector.broadcast %390 : f32 to vector<1x256xf32>
    %393 = arith.mulf %392, %391 : vector<1x256xf32>
    %394 = arith.addf %389, %393 : vector<1x256xf32>
    %c19_i32 = arith.constant 19 : i32
    %395 = tpu.dynamic_rotate %197 by %c19_i32 dim 1 : vector<2x256xf32>, i32 -> vector<2x256xf32>
    %396 = vector.extract_strided_slice %7 {offsets = [14, 0], sizes = [1, 256], strides = [1, 1]} : vector<49x256xf32> to vector<1x256xf32>
    %397 = vector.broadcast %396 : vector<1x256xf32> to vector<2x256xf32>
    %398 = arith.mulf %395, %397 : vector<2x256xf32>
    %c28 = arith.constant 28 : index
    %399 = memref.load %arg8[%c28] : memref<98xf32, #tpu.memory_space<smem>>
    %400 = vector.extract_strided_slice %398 {offsets = [0, 0], sizes = [1, 256], strides = [1, 1]} : vector<2x256xf32> to vector<1x256xf32>
    %401 = vector.broadcast %399 : f32 to vector<1x256xf32>
    %402 = arith.mulf %401, %400 : vector<1x256xf32>
    %403 = arith.addf %394, %402 : vector<1x256xf32>
    %c29 = arith.constant 29 : index
    %404 = memref.load %arg8[%c29] : memref<98xf32, #tpu.memory_space<smem>>
    %405 = vector.extract_strided_slice %398 {offsets = [1, 0], sizes = [1, 256], strides = [1, 1]} : vector<2x256xf32> to vector<1x256xf32>
    %406 = vector.broadcast %404 : f32 to vector<1x256xf32>
    %407 = arith.mulf %406, %405 : vector<1x256xf32>
    %408 = arith.addf %403, %407 : vector<1x256xf32>
    %c18_i32 = arith.constant 18 : i32
    %409 = tpu.dynamic_rotate %197 by %c18_i32 dim 1 : vector<2x256xf32>, i32 -> vector<2x256xf32>
    %410 = vector.extract_strided_slice %7 {offsets = [15, 0], sizes = [1, 256], strides = [1, 1]} : vector<49x256xf32> to vector<1x256xf32>
    %411 = vector.broadcast %410 : vector<1x256xf32> to vector<2x256xf32>
    %412 = arith.mulf %409, %411 : vector<2x256xf32>
    %c30 = arith.constant 30 : index
    %413 = memref.load %arg8[%c30] : memref<98xf32, #tpu.memory_space<smem>>
    %414 = vector.extract_strided_slice %412 {offsets = [0, 0], sizes = [1, 256], strides = [1, 1]} : vector<2x256xf32> to vector<1x256xf32>
    %415 = vector.broadcast %413 : f32 to vector<1x256xf32>
    %416 = arith.mulf %415, %414 : vector<1x256xf32>
    %417 = arith.addf %408, %416 : vector<1x256xf32>
    %c31 = arith.constant 31 : index
    %418 = memref.load %arg8[%c31] : memref<98xf32, #tpu.memory_space<smem>>
    %419 = vector.extract_strided_slice %412 {offsets = [1, 0], sizes = [1, 256], strides = [1, 1]} : vector<2x256xf32> to vector<1x256xf32>
    %420 = vector.broadcast %418 : f32 to vector<1x256xf32>
    %421 = arith.mulf %420, %419 : vector<1x256xf32>
    %422 = arith.addf %417, %421 : vector<1x256xf32>
    %c17_i32_59 = arith.constant 17 : i32
    %423 = tpu.dynamic_rotate %197 by %c17_i32_59 dim 1 : vector<2x256xf32>, i32 -> vector<2x256xf32>
    %424 = vector.extract_strided_slice %7 {offsets = [16, 0], sizes = [1, 256], strides = [1, 1]} : vector<49x256xf32> to vector<1x256xf32>
    %425 = vector.broadcast %424 : vector<1x256xf32> to vector<2x256xf32>
    %426 = arith.mulf %423, %425 : vector<2x256xf32>
    %c32 = arith.constant 32 : index
    %427 = memref.load %arg8[%c32] : memref<98xf32, #tpu.memory_space<smem>>
    %428 = vector.extract_strided_slice %426 {offsets = [0, 0], sizes = [1, 256], strides = [1, 1]} : vector<2x256xf32> to vector<1x256xf32>
    %429 = vector.broadcast %427 : f32 to vector<1x256xf32>
    %430 = arith.mulf %429, %428 : vector<1x256xf32>
    %431 = arith.addf %422, %430 : vector<1x256xf32>
    %c33 = arith.constant 33 : index
    %432 = memref.load %arg8[%c33] : memref<98xf32, #tpu.memory_space<smem>>
    %433 = vector.extract_strided_slice %426 {offsets = [1, 0], sizes = [1, 256], strides = [1, 1]} : vector<2x256xf32> to vector<1x256xf32>
    %434 = vector.broadcast %432 : f32 to vector<1x256xf32>
    %435 = arith.mulf %434, %433 : vector<1x256xf32>
    %436 = arith.addf %431, %435 : vector<1x256xf32>
    %c16_i32_60 = arith.constant 16 : i32
    %437 = tpu.dynamic_rotate %197 by %c16_i32_60 dim 1 : vector<2x256xf32>, i32 -> vector<2x256xf32>
    %438 = vector.extract_strided_slice %7 {offsets = [17, 0], sizes = [1, 256], strides = [1, 1]} : vector<49x256xf32> to vector<1x256xf32>
    %439 = vector.broadcast %438 : vector<1x256xf32> to vector<2x256xf32>
    %440 = arith.mulf %437, %439 : vector<2x256xf32>
    %c34 = arith.constant 34 : index
    %441 = memref.load %arg8[%c34] : memref<98xf32, #tpu.memory_space<smem>>
    %442 = vector.extract_strided_slice %440 {offsets = [0, 0], sizes = [1, 256], strides = [1, 1]} : vector<2x256xf32> to vector<1x256xf32>
    %443 = vector.broadcast %441 : f32 to vector<1x256xf32>
    %444 = arith.mulf %443, %442 : vector<1x256xf32>
    %445 = arith.addf %436, %444 : vector<1x256xf32>
    %c35 = arith.constant 35 : index
    %446 = memref.load %arg8[%c35] : memref<98xf32, #tpu.memory_space<smem>>
    %447 = vector.extract_strided_slice %440 {offsets = [1, 0], sizes = [1, 256], strides = [1, 1]} : vector<2x256xf32> to vector<1x256xf32>
    %448 = vector.broadcast %446 : f32 to vector<1x256xf32>
    %449 = arith.mulf %448, %447 : vector<1x256xf32>
    %450 = arith.addf %445, %449 : vector<1x256xf32>
    %c15_i32_61 = arith.constant 15 : i32
    %451 = tpu.dynamic_rotate %197 by %c15_i32_61 dim 1 : vector<2x256xf32>, i32 -> vector<2x256xf32>
    %452 = vector.extract_strided_slice %7 {offsets = [18, 0], sizes = [1, 256], strides = [1, 1]} : vector<49x256xf32> to vector<1x256xf32>
    %453 = vector.broadcast %452 : vector<1x256xf32> to vector<2x256xf32>
    %454 = arith.mulf %451, %453 : vector<2x256xf32>
    %c36 = arith.constant 36 : index
    %455 = memref.load %arg8[%c36] : memref<98xf32, #tpu.memory_space<smem>>
    %456 = vector.extract_strided_slice %454 {offsets = [0, 0], sizes = [1, 256], strides = [1, 1]} : vector<2x256xf32> to vector<1x256xf32>
    %457 = vector.broadcast %455 : f32 to vector<1x256xf32>
    %458 = arith.mulf %457, %456 : vector<1x256xf32>
    %459 = arith.addf %450, %458 : vector<1x256xf32>
    %c37 = arith.constant 37 : index
    %460 = memref.load %arg8[%c37] : memref<98xf32, #tpu.memory_space<smem>>
    %461 = vector.extract_strided_slice %454 {offsets = [1, 0], sizes = [1, 256], strides = [1, 1]} : vector<2x256xf32> to vector<1x256xf32>
    %462 = vector.broadcast %460 : f32 to vector<1x256xf32>
    %463 = arith.mulf %462, %461 : vector<1x256xf32>
    %464 = arith.addf %459, %463 : vector<1x256xf32>
    %c14_i32 = arith.constant 14 : i32
    %465 = tpu.dynamic_rotate %197 by %c14_i32 dim 1 : vector<2x256xf32>, i32 -> vector<2x256xf32>
    %466 = vector.extract_strided_slice %7 {offsets = [19, 0], sizes = [1, 256], strides = [1, 1]} : vector<49x256xf32> to vector<1x256xf32>
    %467 = vector.broadcast %466 : vector<1x256xf32> to vector<2x256xf32>
    %468 = arith.mulf %465, %467 : vector<2x256xf32>
    %c38 = arith.constant 38 : index
    %469 = memref.load %arg8[%c38] : memref<98xf32, #tpu.memory_space<smem>>
    %470 = vector.extract_strided_slice %468 {offsets = [0, 0], sizes = [1, 256], strides = [1, 1]} : vector<2x256xf32> to vector<1x256xf32>
    %471 = vector.broadcast %469 : f32 to vector<1x256xf32>
    %472 = arith.mulf %471, %470 : vector<1x256xf32>
    %473 = arith.addf %464, %472 : vector<1x256xf32>
    %c39 = arith.constant 39 : index
    %474 = memref.load %arg8[%c39] : memref<98xf32, #tpu.memory_space<smem>>
    %475 = vector.extract_strided_slice %468 {offsets = [1, 0], sizes = [1, 256], strides = [1, 1]} : vector<2x256xf32> to vector<1x256xf32>
    %476 = vector.broadcast %474 : f32 to vector<1x256xf32>
    %477 = arith.mulf %476, %475 : vector<1x256xf32>
    %478 = arith.addf %473, %477 : vector<1x256xf32>
    %c13_i32 = arith.constant 13 : i32
    %479 = tpu.dynamic_rotate %197 by %c13_i32 dim 1 : vector<2x256xf32>, i32 -> vector<2x256xf32>
    %480 = vector.extract_strided_slice %7 {offsets = [20, 0], sizes = [1, 256], strides = [1, 1]} : vector<49x256xf32> to vector<1x256xf32>
    %481 = vector.broadcast %480 : vector<1x256xf32> to vector<2x256xf32>
    %482 = arith.mulf %479, %481 : vector<2x256xf32>
    %c40 = arith.constant 40 : index
    %483 = memref.load %arg8[%c40] : memref<98xf32, #tpu.memory_space<smem>>
    %484 = vector.extract_strided_slice %482 {offsets = [0, 0], sizes = [1, 256], strides = [1, 1]} : vector<2x256xf32> to vector<1x256xf32>
    %485 = vector.broadcast %483 : f32 to vector<1x256xf32>
    %486 = arith.mulf %485, %484 : vector<1x256xf32>
    %487 = arith.addf %478, %486 : vector<1x256xf32>
    %c41 = arith.constant 41 : index
    %488 = memref.load %arg8[%c41] : memref<98xf32, #tpu.memory_space<smem>>
    %489 = vector.extract_strided_slice %482 {offsets = [1, 0], sizes = [1, 256], strides = [1, 1]} : vector<2x256xf32> to vector<1x256xf32>
    %490 = vector.broadcast %488 : f32 to vector<1x256xf32>
    %491 = arith.mulf %490, %489 : vector<1x256xf32>
    %492 = arith.addf %487, %491 : vector<1x256xf32>
    %c3_i32 = arith.constant 3 : i32
    %493 = tpu.dynamic_rotate %197 by %c3_i32 dim 1 : vector<2x256xf32>, i32 -> vector<2x256xf32>
    %494 = vector.extract_strided_slice %7 {offsets = [21, 0], sizes = [1, 256], strides = [1, 1]} : vector<49x256xf32> to vector<1x256xf32>
    %495 = vector.broadcast %494 : vector<1x256xf32> to vector<2x256xf32>
    %496 = arith.mulf %493, %495 : vector<2x256xf32>
    %c42 = arith.constant 42 : index
    %497 = memref.load %arg8[%c42] : memref<98xf32, #tpu.memory_space<smem>>
    %498 = vector.extract_strided_slice %496 {offsets = [0, 0], sizes = [1, 256], strides = [1, 1]} : vector<2x256xf32> to vector<1x256xf32>
    %499 = vector.broadcast %497 : f32 to vector<1x256xf32>
    %500 = arith.mulf %499, %498 : vector<1x256xf32>
    %501 = arith.addf %492, %500 : vector<1x256xf32>
    %c43 = arith.constant 43 : index
    %502 = memref.load %arg8[%c43] : memref<98xf32, #tpu.memory_space<smem>>
    %503 = vector.extract_strided_slice %496 {offsets = [1, 0], sizes = [1, 256], strides = [1, 1]} : vector<2x256xf32> to vector<1x256xf32>
    %504 = vector.broadcast %502 : f32 to vector<1x256xf32>
    %505 = arith.mulf %504, %503 : vector<1x256xf32>
    %506 = arith.addf %501, %505 : vector<1x256xf32>
    %c2_i32 = arith.constant 2 : i32
    %507 = tpu.dynamic_rotate %197 by %c2_i32 dim 1 : vector<2x256xf32>, i32 -> vector<2x256xf32>
    %508 = vector.extract_strided_slice %7 {offsets = [22, 0], sizes = [1, 256], strides = [1, 1]} : vector<49x256xf32> to vector<1x256xf32>
    %509 = vector.broadcast %508 : vector<1x256xf32> to vector<2x256xf32>
    %510 = arith.mulf %507, %509 : vector<2x256xf32>
    %c44 = arith.constant 44 : index
    %511 = memref.load %arg8[%c44] : memref<98xf32, #tpu.memory_space<smem>>
    %512 = vector.extract_strided_slice %510 {offsets = [0, 0], sizes = [1, 256], strides = [1, 1]} : vector<2x256xf32> to vector<1x256xf32>
    %513 = vector.broadcast %511 : f32 to vector<1x256xf32>
    %514 = arith.mulf %513, %512 : vector<1x256xf32>
    %515 = arith.addf %506, %514 : vector<1x256xf32>
    %c45 = arith.constant 45 : index
    %516 = memref.load %arg8[%c45] : memref<98xf32, #tpu.memory_space<smem>>
    %517 = vector.extract_strided_slice %510 {offsets = [1, 0], sizes = [1, 256], strides = [1, 1]} : vector<2x256xf32> to vector<1x256xf32>
    %518 = vector.broadcast %516 : f32 to vector<1x256xf32>
    %519 = arith.mulf %518, %517 : vector<1x256xf32>
    %520 = arith.addf %515, %519 : vector<1x256xf32>
    %c1_i32_62 = arith.constant 1 : i32
    %521 = tpu.dynamic_rotate %197 by %c1_i32_62 dim 1 : vector<2x256xf32>, i32 -> vector<2x256xf32>
    %522 = vector.extract_strided_slice %7 {offsets = [23, 0], sizes = [1, 256], strides = [1, 1]} : vector<49x256xf32> to vector<1x256xf32>
    %523 = vector.broadcast %522 : vector<1x256xf32> to vector<2x256xf32>
    %524 = arith.mulf %521, %523 : vector<2x256xf32>
    %c46 = arith.constant 46 : index
    %525 = memref.load %arg8[%c46] : memref<98xf32, #tpu.memory_space<smem>>
    %526 = vector.extract_strided_slice %524 {offsets = [0, 0], sizes = [1, 256], strides = [1, 1]} : vector<2x256xf32> to vector<1x256xf32>
    %527 = vector.broadcast %525 : f32 to vector<1x256xf32>
    %528 = arith.mulf %527, %526 : vector<1x256xf32>
    %529 = arith.addf %520, %528 : vector<1x256xf32>
    %c47 = arith.constant 47 : index
    %530 = memref.load %arg8[%c47] : memref<98xf32, #tpu.memory_space<smem>>
    %531 = vector.extract_strided_slice %524 {offsets = [1, 0], sizes = [1, 256], strides = [1, 1]} : vector<2x256xf32> to vector<1x256xf32>
    %532 = vector.broadcast %530 : f32 to vector<1x256xf32>
    %533 = arith.mulf %532, %531 : vector<1x256xf32>
    %534 = arith.addf %529, %533 : vector<1x256xf32>
    %c48 = arith.constant 48 : index
    %535 = memref.load %arg8[%c48] : memref<98xf32, #tpu.memory_space<smem>>
    %536 = vector.extract_strided_slice %197 {offsets = [0, 0], sizes = [1, 256], strides = [1, 1]} : vector<2x256xf32> to vector<1x256xf32>
    %537 = vector.broadcast %535 : f32 to vector<1x256xf32>
    %538 = arith.mulf %537, %536 : vector<1x256xf32>
    %539 = arith.addf %534, %538 : vector<1x256xf32>
    %c49 = arith.constant 49 : index
    %540 = memref.load %arg8[%c49] : memref<98xf32, #tpu.memory_space<smem>>
    %541 = vector.extract_strided_slice %197 {offsets = [1, 0], sizes = [1, 256], strides = [1, 1]} : vector<2x256xf32> to vector<1x256xf32>
    %542 = vector.broadcast %540 : f32 to vector<1x256xf32>
    %543 = arith.mulf %542, %541 : vector<1x256xf32>
    %544 = arith.addf %539, %543 : vector<1x256xf32>
    %c255_i32_63 = arith.constant 255 : i32
    %545 = tpu.dynamic_rotate %197 by %c255_i32_63 dim 1 : vector<2x256xf32>, i32 -> vector<2x256xf32>
    %546 = vector.extract_strided_slice %7 {offsets = [25, 0], sizes = [1, 256], strides = [1, 1]} : vector<49x256xf32> to vector<1x256xf32>
    %547 = vector.broadcast %546 : vector<1x256xf32> to vector<2x256xf32>
    %548 = arith.mulf %545, %547 : vector<2x256xf32>
    %c50 = arith.constant 50 : index
    %549 = memref.load %arg8[%c50] : memref<98xf32, #tpu.memory_space<smem>>
    %550 = vector.extract_strided_slice %548 {offsets = [0, 0], sizes = [1, 256], strides = [1, 1]} : vector<2x256xf32> to vector<1x256xf32>
    %551 = vector.broadcast %549 : f32 to vector<1x256xf32>
    %552 = arith.mulf %551, %550 : vector<1x256xf32>
    %553 = arith.addf %544, %552 : vector<1x256xf32>
    %c51 = arith.constant 51 : index
    %554 = memref.load %arg8[%c51] : memref<98xf32, #tpu.memory_space<smem>>
    %555 = vector.extract_strided_slice %548 {offsets = [1, 0], sizes = [1, 256], strides = [1, 1]} : vector<2x256xf32> to vector<1x256xf32>
    %556 = vector.broadcast %554 : f32 to vector<1x256xf32>
    %557 = arith.mulf %556, %555 : vector<1x256xf32>
    %558 = arith.addf %553, %557 : vector<1x256xf32>
    %c254_i32 = arith.constant 254 : i32
    %559 = tpu.dynamic_rotate %197 by %c254_i32 dim 1 : vector<2x256xf32>, i32 -> vector<2x256xf32>
    %560 = vector.extract_strided_slice %7 {offsets = [26, 0], sizes = [1, 256], strides = [1, 1]} : vector<49x256xf32> to vector<1x256xf32>
    %561 = vector.broadcast %560 : vector<1x256xf32> to vector<2x256xf32>
    %562 = arith.mulf %559, %561 : vector<2x256xf32>
    %c52 = arith.constant 52 : index
    %563 = memref.load %arg8[%c52] : memref<98xf32, #tpu.memory_space<smem>>
    %564 = vector.extract_strided_slice %562 {offsets = [0, 0], sizes = [1, 256], strides = [1, 1]} : vector<2x256xf32> to vector<1x256xf32>
    %565 = vector.broadcast %563 : f32 to vector<1x256xf32>
    %566 = arith.mulf %565, %564 : vector<1x256xf32>
    %567 = arith.addf %558, %566 : vector<1x256xf32>
    %c53 = arith.constant 53 : index
    %568 = memref.load %arg8[%c53] : memref<98xf32, #tpu.memory_space<smem>>
    %569 = vector.extract_strided_slice %562 {offsets = [1, 0], sizes = [1, 256], strides = [1, 1]} : vector<2x256xf32> to vector<1x256xf32>
    %570 = vector.broadcast %568 : f32 to vector<1x256xf32>
    %571 = arith.mulf %570, %569 : vector<1x256xf32>
    %572 = arith.addf %567, %571 : vector<1x256xf32>
    %c253_i32 = arith.constant 253 : i32
    %573 = tpu.dynamic_rotate %197 by %c253_i32 dim 1 : vector<2x256xf32>, i32 -> vector<2x256xf32>
    %574 = vector.extract_strided_slice %7 {offsets = [27, 0], sizes = [1, 256], strides = [1, 1]} : vector<49x256xf32> to vector<1x256xf32>
    %575 = vector.broadcast %574 : vector<1x256xf32> to vector<2x256xf32>
    %576 = arith.mulf %573, %575 : vector<2x256xf32>
    %c54 = arith.constant 54 : index
    %577 = memref.load %arg8[%c54] : memref<98xf32, #tpu.memory_space<smem>>
    %578 = vector.extract_strided_slice %576 {offsets = [0, 0], sizes = [1, 256], strides = [1, 1]} : vector<2x256xf32> to vector<1x256xf32>
    %579 = vector.broadcast %577 : f32 to vector<1x256xf32>
    %580 = arith.mulf %579, %578 : vector<1x256xf32>
    %581 = arith.addf %572, %580 : vector<1x256xf32>
    %c55 = arith.constant 55 : index
    %582 = memref.load %arg8[%c55] : memref<98xf32, #tpu.memory_space<smem>>
    %583 = vector.extract_strided_slice %576 {offsets = [1, 0], sizes = [1, 256], strides = [1, 1]} : vector<2x256xf32> to vector<1x256xf32>
    %584 = vector.broadcast %582 : f32 to vector<1x256xf32>
    %585 = arith.mulf %584, %583 : vector<1x256xf32>
    %586 = arith.addf %581, %585 : vector<1x256xf32>
    %c243_i32 = arith.constant 243 : i32
    %587 = tpu.dynamic_rotate %197 by %c243_i32 dim 1 : vector<2x256xf32>, i32 -> vector<2x256xf32>
    %588 = vector.extract_strided_slice %7 {offsets = [28, 0], sizes = [1, 256], strides = [1, 1]} : vector<49x256xf32> to vector<1x256xf32>
    %589 = vector.broadcast %588 : vector<1x256xf32> to vector<2x256xf32>
    %590 = arith.mulf %587, %589 : vector<2x256xf32>
    %c56 = arith.constant 56 : index
    %591 = memref.load %arg8[%c56] : memref<98xf32, #tpu.memory_space<smem>>
    %592 = vector.extract_strided_slice %590 {offsets = [0, 0], sizes = [1, 256], strides = [1, 1]} : vector<2x256xf32> to vector<1x256xf32>
    %593 = vector.broadcast %591 : f32 to vector<1x256xf32>
    %594 = arith.mulf %593, %592 : vector<1x256xf32>
    %595 = arith.addf %586, %594 : vector<1x256xf32>
    %c57 = arith.constant 57 : index
    %596 = memref.load %arg8[%c57] : memref<98xf32, #tpu.memory_space<smem>>
    %597 = vector.extract_strided_slice %590 {offsets = [1, 0], sizes = [1, 256], strides = [1, 1]} : vector<2x256xf32> to vector<1x256xf32>
    %598 = vector.broadcast %596 : f32 to vector<1x256xf32>
    %599 = arith.mulf %598, %597 : vector<1x256xf32>
    %600 = arith.addf %595, %599 : vector<1x256xf32>
    %c242_i32 = arith.constant 242 : i32
    %601 = tpu.dynamic_rotate %197 by %c242_i32 dim 1 : vector<2x256xf32>, i32 -> vector<2x256xf32>
    %602 = vector.extract_strided_slice %7 {offsets = [29, 0], sizes = [1, 256], strides = [1, 1]} : vector<49x256xf32> to vector<1x256xf32>
    %603 = vector.broadcast %602 : vector<1x256xf32> to vector<2x256xf32>
    %604 = arith.mulf %601, %603 : vector<2x256xf32>
    %c58 = arith.constant 58 : index
    %605 = memref.load %arg8[%c58] : memref<98xf32, #tpu.memory_space<smem>>
    %606 = vector.extract_strided_slice %604 {offsets = [0, 0], sizes = [1, 256], strides = [1, 1]} : vector<2x256xf32> to vector<1x256xf32>
    %607 = vector.broadcast %605 : f32 to vector<1x256xf32>
    %608 = arith.mulf %607, %606 : vector<1x256xf32>
    %609 = arith.addf %600, %608 : vector<1x256xf32>
    %c59 = arith.constant 59 : index
    %610 = memref.load %arg8[%c59] : memref<98xf32, #tpu.memory_space<smem>>
    %611 = vector.extract_strided_slice %604 {offsets = [1, 0], sizes = [1, 256], strides = [1, 1]} : vector<2x256xf32> to vector<1x256xf32>
    %612 = vector.broadcast %610 : f32 to vector<1x256xf32>
    %613 = arith.mulf %612, %611 : vector<1x256xf32>
    %614 = arith.addf %609, %613 : vector<1x256xf32>
    %c241_i32_64 = arith.constant 241 : i32
    %615 = tpu.dynamic_rotate %197 by %c241_i32_64 dim 1 : vector<2x256xf32>, i32 -> vector<2x256xf32>
    %616 = vector.extract_strided_slice %7 {offsets = [30, 0], sizes = [1, 256], strides = [1, 1]} : vector<49x256xf32> to vector<1x256xf32>
    %617 = vector.broadcast %616 : vector<1x256xf32> to vector<2x256xf32>
    %618 = arith.mulf %615, %617 : vector<2x256xf32>
    %c60 = arith.constant 60 : index
    %619 = memref.load %arg8[%c60] : memref<98xf32, #tpu.memory_space<smem>>
    %620 = vector.extract_strided_slice %618 {offsets = [0, 0], sizes = [1, 256], strides = [1, 1]} : vector<2x256xf32> to vector<1x256xf32>
    %621 = vector.broadcast %619 : f32 to vector<1x256xf32>
    %622 = arith.mulf %621, %620 : vector<1x256xf32>
    %623 = arith.addf %614, %622 : vector<1x256xf32>
    %c61 = arith.constant 61 : index
    %624 = memref.load %arg8[%c61] : memref<98xf32, #tpu.memory_space<smem>>
    %625 = vector.extract_strided_slice %618 {offsets = [1, 0], sizes = [1, 256], strides = [1, 1]} : vector<2x256xf32> to vector<1x256xf32>
    %626 = vector.broadcast %624 : f32 to vector<1x256xf32>
    %627 = arith.mulf %626, %625 : vector<1x256xf32>
    %628 = arith.addf %623, %627 : vector<1x256xf32>
    %c240_i32_65 = arith.constant 240 : i32
    %629 = tpu.dynamic_rotate %197 by %c240_i32_65 dim 1 : vector<2x256xf32>, i32 -> vector<2x256xf32>
    %630 = vector.extract_strided_slice %7 {offsets = [31, 0], sizes = [1, 256], strides = [1, 1]} : vector<49x256xf32> to vector<1x256xf32>
    %631 = vector.broadcast %630 : vector<1x256xf32> to vector<2x256xf32>
    %632 = arith.mulf %629, %631 : vector<2x256xf32>
    %c62 = arith.constant 62 : index
    %633 = memref.load %arg8[%c62] : memref<98xf32, #tpu.memory_space<smem>>
    %634 = vector.extract_strided_slice %632 {offsets = [0, 0], sizes = [1, 256], strides = [1, 1]} : vector<2x256xf32> to vector<1x256xf32>
    %635 = vector.broadcast %633 : f32 to vector<1x256xf32>
    %636 = arith.mulf %635, %634 : vector<1x256xf32>
    %637 = arith.addf %628, %636 : vector<1x256xf32>
    %c63 = arith.constant 63 : index
    %638 = memref.load %arg8[%c63] : memref<98xf32, #tpu.memory_space<smem>>
    %639 = vector.extract_strided_slice %632 {offsets = [1, 0], sizes = [1, 256], strides = [1, 1]} : vector<2x256xf32> to vector<1x256xf32>
    %640 = vector.broadcast %638 : f32 to vector<1x256xf32>
    %641 = arith.mulf %640, %639 : vector<1x256xf32>
    %642 = arith.addf %637, %641 : vector<1x256xf32>
    %c239_i32_66 = arith.constant 239 : i32
    %643 = tpu.dynamic_rotate %197 by %c239_i32_66 dim 1 : vector<2x256xf32>, i32 -> vector<2x256xf32>
    %644 = vector.extract_strided_slice %7 {offsets = [32, 0], sizes = [1, 256], strides = [1, 1]} : vector<49x256xf32> to vector<1x256xf32>
    %645 = vector.broadcast %644 : vector<1x256xf32> to vector<2x256xf32>
    %646 = arith.mulf %643, %645 : vector<2x256xf32>
    %c64 = arith.constant 64 : index
    %647 = memref.load %arg8[%c64] : memref<98xf32, #tpu.memory_space<smem>>
    %648 = vector.extract_strided_slice %646 {offsets = [0, 0], sizes = [1, 256], strides = [1, 1]} : vector<2x256xf32> to vector<1x256xf32>
    %649 = vector.broadcast %647 : f32 to vector<1x256xf32>
    %650 = arith.mulf %649, %648 : vector<1x256xf32>
    %651 = arith.addf %642, %650 : vector<1x256xf32>
    %c65 = arith.constant 65 : index
    %652 = memref.load %arg8[%c65] : memref<98xf32, #tpu.memory_space<smem>>
    %653 = vector.extract_strided_slice %646 {offsets = [1, 0], sizes = [1, 256], strides = [1, 1]} : vector<2x256xf32> to vector<1x256xf32>
    %654 = vector.broadcast %652 : f32 to vector<1x256xf32>
    %655 = arith.mulf %654, %653 : vector<1x256xf32>
    %656 = arith.addf %651, %655 : vector<1x256xf32>
    %c238_i32 = arith.constant 238 : i32
    %657 = tpu.dynamic_rotate %197 by %c238_i32 dim 1 : vector<2x256xf32>, i32 -> vector<2x256xf32>
    %658 = vector.extract_strided_slice %7 {offsets = [33, 0], sizes = [1, 256], strides = [1, 1]} : vector<49x256xf32> to vector<1x256xf32>
    %659 = vector.broadcast %658 : vector<1x256xf32> to vector<2x256xf32>
    %660 = arith.mulf %657, %659 : vector<2x256xf32>
    %c66 = arith.constant 66 : index
    %661 = memref.load %arg8[%c66] : memref<98xf32, #tpu.memory_space<smem>>
    %662 = vector.extract_strided_slice %660 {offsets = [0, 0], sizes = [1, 256], strides = [1, 1]} : vector<2x256xf32> to vector<1x256xf32>
    %663 = vector.broadcast %661 : f32 to vector<1x256xf32>
    %664 = arith.mulf %663, %662 : vector<1x256xf32>
    %665 = arith.addf %656, %664 : vector<1x256xf32>
    %c67 = arith.constant 67 : index
    %666 = memref.load %arg8[%c67] : memref<98xf32, #tpu.memory_space<smem>>
    %667 = vector.extract_strided_slice %660 {offsets = [1, 0], sizes = [1, 256], strides = [1, 1]} : vector<2x256xf32> to vector<1x256xf32>
    %668 = vector.broadcast %666 : f32 to vector<1x256xf32>
    %669 = arith.mulf %668, %667 : vector<1x256xf32>
    %670 = arith.addf %665, %669 : vector<1x256xf32>
    %c237_i32 = arith.constant 237 : i32
    %671 = tpu.dynamic_rotate %197 by %c237_i32 dim 1 : vector<2x256xf32>, i32 -> vector<2x256xf32>
    %672 = vector.extract_strided_slice %7 {offsets = [34, 0], sizes = [1, 256], strides = [1, 1]} : vector<49x256xf32> to vector<1x256xf32>
    %673 = vector.broadcast %672 : vector<1x256xf32> to vector<2x256xf32>
    %674 = arith.mulf %671, %673 : vector<2x256xf32>
    %c68 = arith.constant 68 : index
    %675 = memref.load %arg8[%c68] : memref<98xf32, #tpu.memory_space<smem>>
    %676 = vector.extract_strided_slice %674 {offsets = [0, 0], sizes = [1, 256], strides = [1, 1]} : vector<2x256xf32> to vector<1x256xf32>
    %677 = vector.broadcast %675 : f32 to vector<1x256xf32>
    %678 = arith.mulf %677, %676 : vector<1x256xf32>
    %679 = arith.addf %670, %678 : vector<1x256xf32>
    %c69 = arith.constant 69 : index
    %680 = memref.load %arg8[%c69] : memref<98xf32, #tpu.memory_space<smem>>
    %681 = vector.extract_strided_slice %674 {offsets = [1, 0], sizes = [1, 256], strides = [1, 1]} : vector<2x256xf32> to vector<1x256xf32>
    %682 = vector.broadcast %680 : f32 to vector<1x256xf32>
    %683 = arith.mulf %682, %681 : vector<1x256xf32>
    %684 = arith.addf %679, %683 : vector<1x256xf32>
    %c227_i32 = arith.constant 227 : i32
    %685 = tpu.dynamic_rotate %197 by %c227_i32 dim 1 : vector<2x256xf32>, i32 -> vector<2x256xf32>
    %686 = vector.extract_strided_slice %7 {offsets = [35, 0], sizes = [1, 256], strides = [1, 1]} : vector<49x256xf32> to vector<1x256xf32>
    %687 = vector.broadcast %686 : vector<1x256xf32> to vector<2x256xf32>
    %688 = arith.mulf %685, %687 : vector<2x256xf32>
    %c70 = arith.constant 70 : index
    %689 = memref.load %arg8[%c70] : memref<98xf32, #tpu.memory_space<smem>>
    %690 = vector.extract_strided_slice %688 {offsets = [0, 0], sizes = [1, 256], strides = [1, 1]} : vector<2x256xf32> to vector<1x256xf32>
    %691 = vector.broadcast %689 : f32 to vector<1x256xf32>
    %692 = arith.mulf %691, %690 : vector<1x256xf32>
    %693 = arith.addf %684, %692 : vector<1x256xf32>
    %c71 = arith.constant 71 : index
    %694 = memref.load %arg8[%c71] : memref<98xf32, #tpu.memory_space<smem>>
    %695 = vector.extract_strided_slice %688 {offsets = [1, 0], sizes = [1, 256], strides = [1, 1]} : vector<2x256xf32> to vector<1x256xf32>
    %696 = vector.broadcast %694 : f32 to vector<1x256xf32>
    %697 = arith.mulf %696, %695 : vector<1x256xf32>
    %698 = arith.addf %693, %697 : vector<1x256xf32>
    %c226_i32 = arith.constant 226 : i32
    %699 = tpu.dynamic_rotate %197 by %c226_i32 dim 1 : vector<2x256xf32>, i32 -> vector<2x256xf32>
    %700 = vector.extract_strided_slice %7 {offsets = [36, 0], sizes = [1, 256], strides = [1, 1]} : vector<49x256xf32> to vector<1x256xf32>
    %701 = vector.broadcast %700 : vector<1x256xf32> to vector<2x256xf32>
    %702 = arith.mulf %699, %701 : vector<2x256xf32>
    %c72 = arith.constant 72 : index
    %703 = memref.load %arg8[%c72] : memref<98xf32, #tpu.memory_space<smem>>
    %704 = vector.extract_strided_slice %702 {offsets = [0, 0], sizes = [1, 256], strides = [1, 1]} : vector<2x256xf32> to vector<1x256xf32>
    %705 = vector.broadcast %703 : f32 to vector<1x256xf32>
    %706 = arith.mulf %705, %704 : vector<1x256xf32>
    %707 = arith.addf %698, %706 : vector<1x256xf32>
    %c73 = arith.constant 73 : index
    %708 = memref.load %arg8[%c73] : memref<98xf32, #tpu.memory_space<smem>>
    %709 = vector.extract_strided_slice %702 {offsets = [1, 0], sizes = [1, 256], strides = [1, 1]} : vector<2x256xf32> to vector<1x256xf32>
    %710 = vector.broadcast %708 : f32 to vector<1x256xf32>
    %711 = arith.mulf %710, %709 : vector<1x256xf32>
    %712 = arith.addf %707, %711 : vector<1x256xf32>
    %c225_i32 = arith.constant 225 : i32
    %713 = tpu.dynamic_rotate %197 by %c225_i32 dim 1 : vector<2x256xf32>, i32 -> vector<2x256xf32>
    %714 = vector.extract_strided_slice %7 {offsets = [37, 0], sizes = [1, 256], strides = [1, 1]} : vector<49x256xf32> to vector<1x256xf32>
    %715 = vector.broadcast %714 : vector<1x256xf32> to vector<2x256xf32>
    %716 = arith.mulf %713, %715 : vector<2x256xf32>
    %c74 = arith.constant 74 : index
    %717 = memref.load %arg8[%c74] : memref<98xf32, #tpu.memory_space<smem>>
    %718 = vector.extract_strided_slice %716 {offsets = [0, 0], sizes = [1, 256], strides = [1, 1]} : vector<2x256xf32> to vector<1x256xf32>
    %719 = vector.broadcast %717 : f32 to vector<1x256xf32>
    %720 = arith.mulf %719, %718 : vector<1x256xf32>
    %721 = arith.addf %712, %720 : vector<1x256xf32>
    %c75 = arith.constant 75 : index
    %722 = memref.load %arg8[%c75] : memref<98xf32, #tpu.memory_space<smem>>
    %723 = vector.extract_strided_slice %716 {offsets = [1, 0], sizes = [1, 256], strides = [1, 1]} : vector<2x256xf32> to vector<1x256xf32>
    %724 = vector.broadcast %722 : f32 to vector<1x256xf32>
    %725 = arith.mulf %724, %723 : vector<1x256xf32>
    %726 = arith.addf %721, %725 : vector<1x256xf32>
    %c224_i32 = arith.constant 224 : i32
    %727 = tpu.dynamic_rotate %197 by %c224_i32 dim 1 : vector<2x256xf32>, i32 -> vector<2x256xf32>
    %728 = vector.extract_strided_slice %7 {offsets = [38, 0], sizes = [1, 256], strides = [1, 1]} : vector<49x256xf32> to vector<1x256xf32>
    %729 = vector.broadcast %728 : vector<1x256xf32> to vector<2x256xf32>
    %730 = arith.mulf %727, %729 : vector<2x256xf32>
    %c76 = arith.constant 76 : index
    %731 = memref.load %arg8[%c76] : memref<98xf32, #tpu.memory_space<smem>>
    %732 = vector.extract_strided_slice %730 {offsets = [0, 0], sizes = [1, 256], strides = [1, 1]} : vector<2x256xf32> to vector<1x256xf32>
    %733 = vector.broadcast %731 : f32 to vector<1x256xf32>
    %734 = arith.mulf %733, %732 : vector<1x256xf32>
    %735 = arith.addf %726, %734 : vector<1x256xf32>
    %c77 = arith.constant 77 : index
    %736 = memref.load %arg8[%c77] : memref<98xf32, #tpu.memory_space<smem>>
    %737 = vector.extract_strided_slice %730 {offsets = [1, 0], sizes = [1, 256], strides = [1, 1]} : vector<2x256xf32> to vector<1x256xf32>
    %738 = vector.broadcast %736 : f32 to vector<1x256xf32>
    %739 = arith.mulf %738, %737 : vector<1x256xf32>
    %740 = arith.addf %735, %739 : vector<1x256xf32>
    %c223_i32 = arith.constant 223 : i32
    %741 = tpu.dynamic_rotate %197 by %c223_i32 dim 1 : vector<2x256xf32>, i32 -> vector<2x256xf32>
    %742 = vector.extract_strided_slice %7 {offsets = [39, 0], sizes = [1, 256], strides = [1, 1]} : vector<49x256xf32> to vector<1x256xf32>
    %743 = vector.broadcast %742 : vector<1x256xf32> to vector<2x256xf32>
    %744 = arith.mulf %741, %743 : vector<2x256xf32>
    %c78 = arith.constant 78 : index
    %745 = memref.load %arg8[%c78] : memref<98xf32, #tpu.memory_space<smem>>
    %746 = vector.extract_strided_slice %744 {offsets = [0, 0], sizes = [1, 256], strides = [1, 1]} : vector<2x256xf32> to vector<1x256xf32>
    %747 = vector.broadcast %745 : f32 to vector<1x256xf32>
    %748 = arith.mulf %747, %746 : vector<1x256xf32>
    %749 = arith.addf %740, %748 : vector<1x256xf32>
    %c79 = arith.constant 79 : index
    %750 = memref.load %arg8[%c79] : memref<98xf32, #tpu.memory_space<smem>>
    %751 = vector.extract_strided_slice %744 {offsets = [1, 0], sizes = [1, 256], strides = [1, 1]} : vector<2x256xf32> to vector<1x256xf32>
    %752 = vector.broadcast %750 : f32 to vector<1x256xf32>
    %753 = arith.mulf %752, %751 : vector<1x256xf32>
    %754 = arith.addf %749, %753 : vector<1x256xf32>
    %c222_i32 = arith.constant 222 : i32
    %755 = tpu.dynamic_rotate %197 by %c222_i32 dim 1 : vector<2x256xf32>, i32 -> vector<2x256xf32>
    %756 = vector.extract_strided_slice %7 {offsets = [40, 0], sizes = [1, 256], strides = [1, 1]} : vector<49x256xf32> to vector<1x256xf32>
    %757 = vector.broadcast %756 : vector<1x256xf32> to vector<2x256xf32>
    %758 = arith.mulf %755, %757 : vector<2x256xf32>
    %c80 = arith.constant 80 : index
    %759 = memref.load %arg8[%c80] : memref<98xf32, #tpu.memory_space<smem>>
    %760 = vector.extract_strided_slice %758 {offsets = [0, 0], sizes = [1, 256], strides = [1, 1]} : vector<2x256xf32> to vector<1x256xf32>
    %761 = vector.broadcast %759 : f32 to vector<1x256xf32>
    %762 = arith.mulf %761, %760 : vector<1x256xf32>
    %763 = arith.addf %754, %762 : vector<1x256xf32>
    %c81 = arith.constant 81 : index
    %764 = memref.load %arg8[%c81] : memref<98xf32, #tpu.memory_space<smem>>
    %765 = vector.extract_strided_slice %758 {offsets = [1, 0], sizes = [1, 256], strides = [1, 1]} : vector<2x256xf32> to vector<1x256xf32>
    %766 = vector.broadcast %764 : f32 to vector<1x256xf32>
    %767 = arith.mulf %766, %765 : vector<1x256xf32>
    %768 = arith.addf %763, %767 : vector<1x256xf32>
    %c221_i32 = arith.constant 221 : i32
    %769 = tpu.dynamic_rotate %197 by %c221_i32 dim 1 : vector<2x256xf32>, i32 -> vector<2x256xf32>
    %770 = vector.extract_strided_slice %7 {offsets = [41, 0], sizes = [1, 256], strides = [1, 1]} : vector<49x256xf32> to vector<1x256xf32>
    %771 = vector.broadcast %770 : vector<1x256xf32> to vector<2x256xf32>
    %772 = arith.mulf %769, %771 : vector<2x256xf32>
    %c82 = arith.constant 82 : index
    %773 = memref.load %arg8[%c82] : memref<98xf32, #tpu.memory_space<smem>>
    %774 = vector.extract_strided_slice %772 {offsets = [0, 0], sizes = [1, 256], strides = [1, 1]} : vector<2x256xf32> to vector<1x256xf32>
    %775 = vector.broadcast %773 : f32 to vector<1x256xf32>
    %776 = arith.mulf %775, %774 : vector<1x256xf32>
    %777 = arith.addf %768, %776 : vector<1x256xf32>
    %c83 = arith.constant 83 : index
    %778 = memref.load %arg8[%c83] : memref<98xf32, #tpu.memory_space<smem>>
    %779 = vector.extract_strided_slice %772 {offsets = [1, 0], sizes = [1, 256], strides = [1, 1]} : vector<2x256xf32> to vector<1x256xf32>
    %780 = vector.broadcast %778 : f32 to vector<1x256xf32>
    %781 = arith.mulf %780, %779 : vector<1x256xf32>
    %782 = arith.addf %777, %781 : vector<1x256xf32>
    %c211_i32 = arith.constant 211 : i32
    %783 = tpu.dynamic_rotate %197 by %c211_i32 dim 1 : vector<2x256xf32>, i32 -> vector<2x256xf32>
    %784 = vector.extract_strided_slice %7 {offsets = [42, 0], sizes = [1, 256], strides = [1, 1]} : vector<49x256xf32> to vector<1x256xf32>
    %785 = vector.broadcast %784 : vector<1x256xf32> to vector<2x256xf32>
    %786 = arith.mulf %783, %785 : vector<2x256xf32>
    %c84 = arith.constant 84 : index
    %787 = memref.load %arg8[%c84] : memref<98xf32, #tpu.memory_space<smem>>
    %788 = vector.extract_strided_slice %786 {offsets = [0, 0], sizes = [1, 256], strides = [1, 1]} : vector<2x256xf32> to vector<1x256xf32>
    %789 = vector.broadcast %787 : f32 to vector<1x256xf32>
    %790 = arith.mulf %789, %788 : vector<1x256xf32>
    %791 = arith.addf %782, %790 : vector<1x256xf32>
    %c85 = arith.constant 85 : index
    %792 = memref.load %arg8[%c85] : memref<98xf32, #tpu.memory_space<smem>>
    %793 = vector.extract_strided_slice %786 {offsets = [1, 0], sizes = [1, 256], strides = [1, 1]} : vector<2x256xf32> to vector<1x256xf32>
    %794 = vector.broadcast %792 : f32 to vector<1x256xf32>
    %795 = arith.mulf %794, %793 : vector<1x256xf32>
    %796 = arith.addf %791, %795 : vector<1x256xf32>
    %c210_i32 = arith.constant 210 : i32
    %797 = tpu.dynamic_rotate %197 by %c210_i32 dim 1 : vector<2x256xf32>, i32 -> vector<2x256xf32>
    %798 = vector.extract_strided_slice %7 {offsets = [43, 0], sizes = [1, 256], strides = [1, 1]} : vector<49x256xf32> to vector<1x256xf32>
    %799 = vector.broadcast %798 : vector<1x256xf32> to vector<2x256xf32>
    %800 = arith.mulf %797, %799 : vector<2x256xf32>
    %c86 = arith.constant 86 : index
    %801 = memref.load %arg8[%c86] : memref<98xf32, #tpu.memory_space<smem>>
    %802 = vector.extract_strided_slice %800 {offsets = [0, 0], sizes = [1, 256], strides = [1, 1]} : vector<2x256xf32> to vector<1x256xf32>
    %803 = vector.broadcast %801 : f32 to vector<1x256xf32>
    %804 = arith.mulf %803, %802 : vector<1x256xf32>
    %805 = arith.addf %796, %804 : vector<1x256xf32>
    %c87 = arith.constant 87 : index
    %806 = memref.load %arg8[%c87] : memref<98xf32, #tpu.memory_space<smem>>
    %807 = vector.extract_strided_slice %800 {offsets = [1, 0], sizes = [1, 256], strides = [1, 1]} : vector<2x256xf32> to vector<1x256xf32>
    %808 = vector.broadcast %806 : f32 to vector<1x256xf32>
    %809 = arith.mulf %808, %807 : vector<1x256xf32>
    %810 = arith.addf %805, %809 : vector<1x256xf32>
    %c209_i32 = arith.constant 209 : i32
    %811 = tpu.dynamic_rotate %197 by %c209_i32 dim 1 : vector<2x256xf32>, i32 -> vector<2x256xf32>
    %812 = vector.extract_strided_slice %7 {offsets = [44, 0], sizes = [1, 256], strides = [1, 1]} : vector<49x256xf32> to vector<1x256xf32>
    %813 = vector.broadcast %812 : vector<1x256xf32> to vector<2x256xf32>
    %814 = arith.mulf %811, %813 : vector<2x256xf32>
    %c88 = arith.constant 88 : index
    %815 = memref.load %arg8[%c88] : memref<98xf32, #tpu.memory_space<smem>>
    %816 = vector.extract_strided_slice %814 {offsets = [0, 0], sizes = [1, 256], strides = [1, 1]} : vector<2x256xf32> to vector<1x256xf32>
    %817 = vector.broadcast %815 : f32 to vector<1x256xf32>
    %818 = arith.mulf %817, %816 : vector<1x256xf32>
    %819 = arith.addf %810, %818 : vector<1x256xf32>
    %c89 = arith.constant 89 : index
    %820 = memref.load %arg8[%c89] : memref<98xf32, #tpu.memory_space<smem>>
    %821 = vector.extract_strided_slice %814 {offsets = [1, 0], sizes = [1, 256], strides = [1, 1]} : vector<2x256xf32> to vector<1x256xf32>
    %822 = vector.broadcast %820 : f32 to vector<1x256xf32>
    %823 = arith.mulf %822, %821 : vector<1x256xf32>
    %824 = arith.addf %819, %823 : vector<1x256xf32>
    %c208_i32 = arith.constant 208 : i32
    %825 = tpu.dynamic_rotate %197 by %c208_i32 dim 1 : vector<2x256xf32>, i32 -> vector<2x256xf32>
    %826 = vector.extract_strided_slice %7 {offsets = [45, 0], sizes = [1, 256], strides = [1, 1]} : vector<49x256xf32> to vector<1x256xf32>
    %827 = vector.broadcast %826 : vector<1x256xf32> to vector<2x256xf32>
    %828 = arith.mulf %825, %827 : vector<2x256xf32>
    %c90 = arith.constant 90 : index
    %829 = memref.load %arg8[%c90] : memref<98xf32, #tpu.memory_space<smem>>
    %830 = vector.extract_strided_slice %828 {offsets = [0, 0], sizes = [1, 256], strides = [1, 1]} : vector<2x256xf32> to vector<1x256xf32>
    %831 = vector.broadcast %829 : f32 to vector<1x256xf32>
    %832 = arith.mulf %831, %830 : vector<1x256xf32>
    %833 = arith.addf %824, %832 : vector<1x256xf32>
    %c91 = arith.constant 91 : index
    %834 = memref.load %arg8[%c91] : memref<98xf32, #tpu.memory_space<smem>>
    %835 = vector.extract_strided_slice %828 {offsets = [1, 0], sizes = [1, 256], strides = [1, 1]} : vector<2x256xf32> to vector<1x256xf32>
    %836 = vector.broadcast %834 : f32 to vector<1x256xf32>
    %837 = arith.mulf %836, %835 : vector<1x256xf32>
    %838 = arith.addf %833, %837 : vector<1x256xf32>
    %c207_i32 = arith.constant 207 : i32
    %839 = tpu.dynamic_rotate %197 by %c207_i32 dim 1 : vector<2x256xf32>, i32 -> vector<2x256xf32>
    %840 = vector.extract_strided_slice %7 {offsets = [46, 0], sizes = [1, 256], strides = [1, 1]} : vector<49x256xf32> to vector<1x256xf32>
    %841 = vector.broadcast %840 : vector<1x256xf32> to vector<2x256xf32>
    %842 = arith.mulf %839, %841 : vector<2x256xf32>
    %c92 = arith.constant 92 : index
    %843 = memref.load %arg8[%c92] : memref<98xf32, #tpu.memory_space<smem>>
    %844 = vector.extract_strided_slice %842 {offsets = [0, 0], sizes = [1, 256], strides = [1, 1]} : vector<2x256xf32> to vector<1x256xf32>
    %845 = vector.broadcast %843 : f32 to vector<1x256xf32>
    %846 = arith.mulf %845, %844 : vector<1x256xf32>
    %847 = arith.addf %838, %846 : vector<1x256xf32>
    %c93 = arith.constant 93 : index
    %848 = memref.load %arg8[%c93] : memref<98xf32, #tpu.memory_space<smem>>
    %849 = vector.extract_strided_slice %842 {offsets = [1, 0], sizes = [1, 256], strides = [1, 1]} : vector<2x256xf32> to vector<1x256xf32>
    %850 = vector.broadcast %848 : f32 to vector<1x256xf32>
    %851 = arith.mulf %850, %849 : vector<1x256xf32>
    %852 = arith.addf %847, %851 : vector<1x256xf32>
    %c206_i32 = arith.constant 206 : i32
    %853 = tpu.dynamic_rotate %197 by %c206_i32 dim 1 : vector<2x256xf32>, i32 -> vector<2x256xf32>
    %854 = vector.extract_strided_slice %7 {offsets = [47, 0], sizes = [1, 256], strides = [1, 1]} : vector<49x256xf32> to vector<1x256xf32>
    %855 = vector.broadcast %854 : vector<1x256xf32> to vector<2x256xf32>
    %856 = arith.mulf %853, %855 : vector<2x256xf32>
    %c94 = arith.constant 94 : index
    %857 = memref.load %arg8[%c94] : memref<98xf32, #tpu.memory_space<smem>>
    %858 = vector.extract_strided_slice %856 {offsets = [0, 0], sizes = [1, 256], strides = [1, 1]} : vector<2x256xf32> to vector<1x256xf32>
    %859 = vector.broadcast %857 : f32 to vector<1x256xf32>
    %860 = arith.mulf %859, %858 : vector<1x256xf32>
    %861 = arith.addf %852, %860 : vector<1x256xf32>
    %c95 = arith.constant 95 : index
    %862 = memref.load %arg8[%c95] : memref<98xf32, #tpu.memory_space<smem>>
    %863 = vector.extract_strided_slice %856 {offsets = [1, 0], sizes = [1, 256], strides = [1, 1]} : vector<2x256xf32> to vector<1x256xf32>
    %864 = vector.broadcast %862 : f32 to vector<1x256xf32>
    %865 = arith.mulf %864, %863 : vector<1x256xf32>
    %866 = arith.addf %861, %865 : vector<1x256xf32>
    %c205_i32 = arith.constant 205 : i32
    %867 = tpu.dynamic_rotate %197 by %c205_i32 dim 1 : vector<2x256xf32>, i32 -> vector<2x256xf32>
    %868 = vector.extract_strided_slice %7 {offsets = [48, 0], sizes = [1, 256], strides = [1, 1]} : vector<49x256xf32> to vector<1x256xf32>
    %869 = vector.broadcast %868 : vector<1x256xf32> to vector<2x256xf32>
    %870 = arith.mulf %867, %869 : vector<2x256xf32>
    %c96 = arith.constant 96 : index
    %871 = memref.load %arg8[%c96] : memref<98xf32, #tpu.memory_space<smem>>
    %872 = vector.extract_strided_slice %870 {offsets = [0, 0], sizes = [1, 256], strides = [1, 1]} : vector<2x256xf32> to vector<1x256xf32>
    %873 = vector.broadcast %871 : f32 to vector<1x256xf32>
    %874 = arith.mulf %873, %872 : vector<1x256xf32>
    %875 = arith.addf %866, %874 : vector<1x256xf32>
    %c97 = arith.constant 97 : index
    %876 = memref.load %arg8[%c97] : memref<98xf32, #tpu.memory_space<smem>>
    %877 = vector.extract_strided_slice %870 {offsets = [1, 0], sizes = [1, 256], strides = [1, 1]} : vector<2x256xf32> to vector<1x256xf32>
    %878 = vector.broadcast %876 : f32 to vector<1x256xf32>
    %879 = arith.mulf %878, %877 : vector<1x256xf32>
    %880 = arith.addf %875, %879 : vector<1x256xf32>
    %881 = arith.negf %880 : vector<1x256xf32>
    %882 = math.exp %881 : vector<1x256xf32>
    %cst_67 = arith.constant 1.000000e+00 : f32
    %883 = vector.broadcast %cst_67 : f32 to vector<1x256xf32>
    %884 = arith.addf %883, %882 : vector<1x256xf32>
    %885 = arith.divf %883, %884 : vector<1x256xf32>
    %886 = vector.broadcast %885 : vector<1x256xf32> to vector<8x256xf32>
    %887 = arith.mulf %190, %886 : vector<8x256xf32>
    %888 = arith.mulf %887, %169 : vector<8x256xf32>
    %c0_68 = arith.constant 0 : index
    %c0_69 = arith.constant 0 : index
    %c0_70 = arith.constant 0 : index
    %889 = vector.load %arg11[%c0_68, %c0_69, %c0_70] : memref<2x8x256xf32, #tpu.memory_space<vmem>>, vector<1x8x256xf32>
    %890 = vector.shape_cast %889 : vector<1x8x256xf32> to vector<8x256xf32>
    %891 = vector.shape_cast %888 : vector<8x256xf32> to vector<1x8x256xf32>
    tpu.vector_store %arg11[%c0_68, %c0_69, %c0_70], %891 {strides = array<i32>} : memref<2x8x256xf32, #tpu.memory_space<vmem>>, vector<1x8x256xf32>,
    %c1_71 = arith.constant 1 : index
    %c0_72 = arith.constant 0 : index
    %c0_73 = arith.constant 0 : index
    %892 = vector.load %arg1[%c1_71, %c0_72, %c0_73] : memref<2x4x256xf32, #tpu.memory_space<vmem>>, vector<1x4x256xf32>
    %893 = vector.shape_cast %892 : vector<1x4x256xf32> to vector<4x256xf32>
    %c17_i32_74 = arith.constant 17 : i32
    %894 = tpu.dynamic_rotate %893 by %c17_i32_74 dim 1 : vector<4x256xf32>, i32 -> vector<4x256xf32>
    %895 = vector.extract_strided_slice %6 {offsets = [0, 0], sizes = [1, 256], strides = [1, 1]} : vector<9x256xf32> to vector<1x256xf32>
    %896 = vector.broadcast %895 : vector<1x256xf32> to vector<4x256xf32>
    %897 = arith.mulf %894, %896 : vector<4x256xf32>
    %898 = vector.extract_strided_slice %0 {offsets = [0, 0, 0], sizes = [1, 4, 4], strides = [1, 1, 1]} : vector<9x4x4xbf16> to vector<1x4x4xbf16>
    %899 = vector.shape_cast %898 : vector<1x4x4xbf16> to vector<4x4xbf16>
    %900 = arith.truncf %897 : vector<4x256xf32> to vector<4x256xbf16>
    %cst_75 = arith.constant dense<0.000000e+00> : vector<4x256xf32>
    %901 = tpu.matmul %899, %900, %cst_75 {dimension_numbers = #tpu.dot_dimension_numbers<[1], [0], [0], [1], [0, 0, 1, 1], [], []>} : vector<4x4xbf16>, vector<4x256xbf16>, vector<4x256xf32> -> vector<4x256xf32>
    %c16_i32_76 = arith.constant 16 : i32
    %902 = tpu.dynamic_rotate %893 by %c16_i32_76 dim 1 : vector<4x256xf32>, i32 -> vector<4x256xf32>
    %903 = vector.extract_strided_slice %6 {offsets = [1, 0], sizes = [1, 256], strides = [1, 1]} : vector<9x256xf32> to vector<1x256xf32>
    %904 = vector.broadcast %903 : vector<1x256xf32> to vector<4x256xf32>
    %905 = arith.mulf %902, %904 : vector<4x256xf32>
    %906 = vector.extract_strided_slice %0 {offsets = [1, 0, 0], sizes = [1, 4, 4], strides = [1, 1, 1]} : vector<9x4x4xbf16> to vector<1x4x4xbf16>
    %907 = vector.shape_cast %906 : vector<1x4x4xbf16> to vector<4x4xbf16>
    %908 = arith.truncf %905 : vector<4x256xf32> to vector<4x256xbf16>
    %cst_77 = arith.constant dense<0.000000e+00> : vector<4x256xf32>
    %909 = tpu.matmul %907, %908, %cst_77 {dimension_numbers = #tpu.dot_dimension_numbers<[1], [0], [0], [1], [0, 0, 1, 1], [], []>} : vector<4x4xbf16>, vector<4x256xbf16>, vector<4x256xf32> -> vector<4x256xf32>
    %910 = arith.addf %901, %909 : vector<4x256xf32>
    %c15_i32_78 = arith.constant 15 : i32
    %911 = tpu.dynamic_rotate %893 by %c15_i32_78 dim 1 : vector<4x256xf32>, i32 -> vector<4x256xf32>
    %912 = vector.extract_strided_slice %6 {offsets = [2, 0], sizes = [1, 256], strides = [1, 1]} : vector<9x256xf32> to vector<1x256xf32>
    %913 = vector.broadcast %912 : vector<1x256xf32> to vector<4x256xf32>
    %914 = arith.mulf %911, %913 : vector<4x256xf32>
    %915 = vector.extract_strided_slice %0 {offsets = [2, 0, 0], sizes = [1, 4, 4], strides = [1, 1, 1]} : vector<9x4x4xbf16> to vector<1x4x4xbf16>
    %916 = vector.shape_cast %915 : vector<1x4x4xbf16> to vector<4x4xbf16>
    %917 = arith.truncf %914 : vector<4x256xf32> to vector<4x256xbf16>
    %cst_79 = arith.constant dense<0.000000e+00> : vector<4x256xf32>
    %918 = tpu.matmul %916, %917, %cst_79 {dimension_numbers = #tpu.dot_dimension_numbers<[1], [0], [0], [1], [0, 0, 1, 1], [], []>} : vector<4x4xbf16>, vector<4x256xbf16>, vector<4x256xf32> -> vector<4x256xf32>
    %919 = arith.addf %910, %918 : vector<4x256xf32>
    %c1_i32_80 = arith.constant 1 : i32
    %920 = tpu.dynamic_rotate %893 by %c1_i32_80 dim 1 : vector<4x256xf32>, i32 -> vector<4x256xf32>
    %921 = vector.extract_strided_slice %6 {offsets = [3, 0], sizes = [1, 256], strides = [1, 1]} : vector<9x256xf32> to vector<1x256xf32>
    %922 = vector.broadcast %921 : vector<1x256xf32> to vector<4x256xf32>
    %923 = arith.mulf %920, %922 : vector<4x256xf32>
    %924 = vector.extract_strided_slice %0 {offsets = [3, 0, 0], sizes = [1, 4, 4], strides = [1, 1, 1]} : vector<9x4x4xbf16> to vector<1x4x4xbf16>
    %925 = vector.shape_cast %924 : vector<1x4x4xbf16> to vector<4x4xbf16>
    %926 = arith.truncf %923 : vector<4x256xf32> to vector<4x256xbf16>
    %cst_81 = arith.constant dense<0.000000e+00> : vector<4x256xf32>
    %927 = tpu.matmul %925, %926, %cst_81 {dimension_numbers = #tpu.dot_dimension_numbers<[1], [0], [0], [1], [0, 0, 1, 1], [], []>} : vector<4x4xbf16>, vector<4x256xbf16>, vector<4x256xf32> -> vector<4x256xf32>
    %928 = arith.addf %919, %927 : vector<4x256xf32>
    %929 = vector.extract_strided_slice %0 {offsets = [4, 0, 0], sizes = [1, 4, 4], strides = [1, 1, 1]} : vector<9x4x4xbf16> to vector<1x4x4xbf16>
    %930 = vector.shape_cast %929 : vector<1x4x4xbf16> to vector<4x4xbf16>
    %931 = arith.truncf %893 : vector<4x256xf32> to vector<4x256xbf16>
    %cst_82 = arith.constant dense<0.000000e+00> : vector<4x256xf32>
    %932 = tpu.matmul %930, %931, %cst_82 {dimension_numbers = #tpu.dot_dimension_numbers<[1], [0], [0], [1], [0, 0, 1, 1], [], []>} : vector<4x4xbf16>, vector<4x256xbf16>, vector<4x256xf32> -> vector<4x256xf32>
    %933 = arith.addf %928, %932 : vector<4x256xf32>
    %c255_i32_83 = arith.constant 255 : i32
    %934 = tpu.dynamic_rotate %893 by %c255_i32_83 dim 1 : vector<4x256xf32>, i32 -> vector<4x256xf32>
    %935 = vector.extract_strided_slice %6 {offsets = [5, 0], sizes = [1, 256], strides = [1, 1]} : vector<9x256xf32> to vector<1x256xf32>
    %936 = vector.broadcast %935 : vector<1x256xf32> to vector<4x256xf32>
    %937 = arith.mulf %934, %936 : vector<4x256xf32>
    %938 = vector.extract_strided_slice %0 {offsets = [5, 0, 0], sizes = [1, 4, 4], strides = [1, 1, 1]} : vector<9x4x4xbf16> to vector<1x4x4xbf16>
    %939 = vector.shape_cast %938 : vector<1x4x4xbf16> to vector<4x4xbf16>
    %940 = arith.truncf %937 : vector<4x256xf32> to vector<4x256xbf16>
    %cst_84 = arith.constant dense<0.000000e+00> : vector<4x256xf32>
    %941 = tpu.matmul %939, %940, %cst_84 {dimension_numbers = #tpu.dot_dimension_numbers<[1], [0], [0], [1], [0, 0, 1, 1], [], []>} : vector<4x4xbf16>, vector<4x256xbf16>, vector<4x256xf32> -> vector<4x256xf32>
    %942 = arith.addf %933, %941 : vector<4x256xf32>
    %c241_i32_85 = arith.constant 241 : i32
    %943 = tpu.dynamic_rotate %893 by %c241_i32_85 dim 1 : vector<4x256xf32>, i32 -> vector<4x256xf32>
    %944 = vector.extract_strided_slice %6 {offsets = [6, 0], sizes = [1, 256], strides = [1, 1]} : vector<9x256xf32> to vector<1x256xf32>
    %945 = vector.broadcast %944 : vector<1x256xf32> to vector<4x256xf32>
    %946 = arith.mulf %943, %945 : vector<4x256xf32>
    %947 = vector.extract_strided_slice %0 {offsets = [6, 0, 0], sizes = [1, 4, 4], strides = [1, 1, 1]} : vector<9x4x4xbf16> to vector<1x4x4xbf16>
    %948 = vector.shape_cast %947 : vector<1x4x4xbf16> to vector<4x4xbf16>
    %949 = arith.truncf %946 : vector<4x256xf32> to vector<4x256xbf16>
    %cst_86 = arith.constant dense<0.000000e+00> : vector<4x256xf32>
    %950 = tpu.matmul %948, %949, %cst_86 {dimension_numbers = #tpu.dot_dimension_numbers<[1], [0], [0], [1], [0, 0, 1, 1], [], []>} : vector<4x4xbf16>, vector<4x256xbf16>, vector<4x256xf32> -> vector<4x256xf32>
    %951 = arith.addf %942, %950 : vector<4x256xf32>
    %c240_i32_87 = arith.constant 240 : i32
    %952 = tpu.dynamic_rotate %893 by %c240_i32_87 dim 1 : vector<4x256xf32>, i32 -> vector<4x256xf32>
    %953 = vector.extract_strided_slice %6 {offsets = [7, 0], sizes = [1, 256], strides = [1, 1]} : vector<9x256xf32> to vector<1x256xf32>
    %954 = vector.broadcast %953 : vector<1x256xf32> to vector<4x256xf32>
    %955 = arith.mulf %952, %954 : vector<4x256xf32>
    %956 = vector.extract_strided_slice %0 {offsets = [7, 0, 0], sizes = [1, 4, 4], strides = [1, 1, 1]} : vector<9x4x4xbf16> to vector<1x4x4xbf16>
    %957 = vector.shape_cast %956 : vector<1x4x4xbf16> to vector<4x4xbf16>
    %958 = arith.truncf %955 : vector<4x256xf32> to vector<4x256xbf16>
    %cst_88 = arith.constant dense<0.000000e+00> : vector<4x256xf32>
    %959 = tpu.matmul %957, %958, %cst_88 {dimension_numbers = #tpu.dot_dimension_numbers<[1], [0], [0], [1], [0, 0, 1, 1], [], []>} : vector<4x4xbf16>, vector<4x256xbf16>, vector<4x256xf32> -> vector<4x256xf32>
    %960 = arith.addf %951, %959 : vector<4x256xf32>
    %c239_i32_89 = arith.constant 239 : i32
    %961 = tpu.dynamic_rotate %893 by %c239_i32_89 dim 1 : vector<4x256xf32>, i32 -> vector<4x256xf32>
    %962 = vector.extract_strided_slice %6 {offsets = [8, 0], sizes = [1, 256], strides = [1, 1]} : vector<9x256xf32> to vector<1x256xf32>
    %963 = vector.broadcast %962 : vector<1x256xf32> to vector<4x256xf32>
    %964 = arith.mulf %961, %963 : vector<4x256xf32>
    %965 = vector.extract_strided_slice %0 {offsets = [8, 0, 0], sizes = [1, 4, 4], strides = [1, 1, 1]} : vector<9x4x4xbf16> to vector<1x4x4xbf16>
    %966 = vector.shape_cast %965 : vector<1x4x4xbf16> to vector<4x4xbf16>
    %967 = arith.truncf %964 : vector<4x256xf32> to vector<4x256xbf16>
    %cst_90 = arith.constant dense<0.000000e+00> : vector<4x256xf32>
    %968 = tpu.matmul %966, %967, %cst_90 {dimension_numbers = #tpu.dot_dimension_numbers<[1], [0], [0], [1], [0, 0, 1, 1], [], []>} : vector<4x4xbf16>, vector<4x256xbf16>, vector<4x256xf32> -> vector<4x256xf32>
    %969 = arith.addf %960, %968 : vector<4x256xf32>
    %970 = vector.broadcast %2 : vector<4x1xf32> to vector<4x256xf32>
    %971 = arith.addf %969, %970 : vector<4x256xf32>
    %cst_91 = arith.constant 0.000000e+00 : f32
    %972 = vector.broadcast %cst_91 : f32 to vector<4x256xf32>
    %973 = arith.maximumf %971, %972 : vector<4x256xf32>
    %c17_i32_92 = arith.constant 17 : i32
    %974 = tpu.dynamic_rotate %973 by %c17_i32_92 dim 1 : vector<4x256xf32>, i32 -> vector<4x256xf32>
    %975 = vector.extract_strided_slice %6 {offsets = [0, 0], sizes = [1, 256], strides = [1, 1]} : vector<9x256xf32> to vector<1x256xf32>
    %976 = vector.broadcast %975 : vector<1x256xf32> to vector<4x256xf32>
    %977 = arith.mulf %974, %976 : vector<4x256xf32>
    %978 = vector.extract_strided_slice %1 {offsets = [0, 0, 0], sizes = [1, 8, 4], strides = [1, 1, 1]} : vector<9x8x4xbf16> to vector<1x8x4xbf16>
    %979 = vector.shape_cast %978 : vector<1x8x4xbf16> to vector<8x4xbf16>
    %980 = arith.truncf %977 : vector<4x256xf32> to vector<4x256xbf16>
    %cst_93 = arith.constant dense<0.000000e+00> : vector<8x256xf32>
    %981 = tpu.matmul %979, %980, %cst_93 {dimension_numbers = #tpu.dot_dimension_numbers<[1], [0], [0], [1], [0, 0, 1, 1], [], []>} : vector<8x4xbf16>, vector<4x256xbf16>, vector<8x256xf32> -> vector<8x256xf32>
    %c16_i32_94 = arith.constant 16 : i32
    %982 = tpu.dynamic_rotate %973 by %c16_i32_94 dim 1 : vector<4x256xf32>, i32 -> vector<4x256xf32>
    %983 = vector.extract_strided_slice %6 {offsets = [1, 0], sizes = [1, 256], strides = [1, 1]} : vector<9x256xf32> to vector<1x256xf32>
    %984 = vector.broadcast %983 : vector<1x256xf32> to vector<4x256xf32>
    %985 = arith.mulf %982, %984 : vector<4x256xf32>
    %986 = vector.extract_strided_slice %1 {offsets = [1, 0, 0], sizes = [1, 8, 4], strides = [1, 1, 1]} : vector<9x8x4xbf16> to vector<1x8x4xbf16>
    %987 = vector.shape_cast %986 : vector<1x8x4xbf16> to vector<8x4xbf16>
    %988 = arith.truncf %985 : vector<4x256xf32> to vector<4x256xbf16>
    %cst_95 = arith.constant dense<0.000000e+00> : vector<8x256xf32>
    %989 = tpu.matmul %987, %988, %cst_95 {dimension_numbers = #tpu.dot_dimension_numbers<[1], [0], [0], [1], [0, 0, 1, 1], [], []>} : vector<8x4xbf16>, vector<4x256xbf16>, vector<8x256xf32> -> vector<8x256xf32>
    %990 = arith.addf %981, %989 : vector<8x256xf32>
    %c15_i32_96 = arith.constant 15 : i32
    %991 = tpu.dynamic_rotate %973 by %c15_i32_96 dim 1 : vector<4x256xf32>, i32 -> vector<4x256xf32>
    %992 = vector.extract_strided_slice %6 {offsets = [2, 0], sizes = [1, 256], strides = [1, 1]} : vector<9x256xf32> to vector<1x256xf32>
    %993 = vector.broadcast %992 : vector<1x256xf32> to vector<4x256xf32>
    %994 = arith.mulf %991, %993 : vector<4x256xf32>
    %995 = vector.extract_strided_slice %1 {offsets = [2, 0, 0], sizes = [1, 8, 4], strides = [1, 1, 1]} : vector<9x8x4xbf16> to vector<1x8x4xbf16>
    %996 = vector.shape_cast %995 : vector<1x8x4xbf16> to vector<8x4xbf16>
    %997 = arith.truncf %994 : vector<4x256xf32> to vector<4x256xbf16>
    %cst_97 = arith.constant dense<0.000000e+00> : vector<8x256xf32>
    %998 = tpu.matmul %996, %997, %cst_97 {dimension_numbers = #tpu.dot_dimension_numbers<[1], [0], [0], [1], [0, 0, 1, 1], [], []>} : vector<8x4xbf16>, vector<4x256xbf16>, vector<8x256xf32> -> vector<8x256xf32>
    %999 = arith.addf %990, %998 : vector<8x256xf32>
    %c1_i32_98 = arith.constant 1 : i32
    %1000 = tpu.dynamic_rotate %973 by %c1_i32_98 dim 1 : vector<4x256xf32>, i32 -> vector<4x256xf32>
    %1001 = vector.extract_strided_slice %6 {offsets = [3, 0], sizes = [1, 256], strides = [1, 1]} : vector<9x256xf32> to vector<1x256xf32>
    %1002 = vector.broadcast %1001 : vector<1x256xf32> to vector<4x256xf32>
    %1003 = arith.mulf %1000, %1002 : vector<4x256xf32>
    %1004 = vector.extract_strided_slice %1 {offsets = [3, 0, 0], sizes = [1, 8, 4], strides = [1, 1, 1]} : vector<9x8x4xbf16> to vector<1x8x4xbf16>
    %1005 = vector.shape_cast %1004 : vector<1x8x4xbf16> to vector<8x4xbf16>
    %1006 = arith.truncf %1003 : vector<4x256xf32> to vector<4x256xbf16>
    %cst_99 = arith.constant dense<0.000000e+00> : vector<8x256xf32>
    %1007 = tpu.matmul %1005, %1006, %cst_99 {dimension_numbers = #tpu.dot_dimension_numbers<[1], [0], [0], [1], [0, 0, 1, 1], [], []>} : vector<8x4xbf16>, vector<4x256xbf16>, vector<8x256xf32> -> vector<8x256xf32>
    %1008 = arith.addf %999, %1007 : vector<8x256xf32>
    %1009 = vector.extract_strided_slice %1 {offsets = [4, 0, 0], sizes = [1, 8, 4], strides = [1, 1, 1]} : vector<9x8x4xbf16> to vector<1x8x4xbf16>
    %1010 = vector.shape_cast %1009 : vector<1x8x4xbf16> to vector<8x4xbf16>
    %1011 = arith.truncf %973 : vector<4x256xf32> to vector<4x256xbf16>
    %cst_100 = arith.constant dense<0.000000e+00> : vector<8x256xf32>
    %1012 = tpu.matmul %1010, %1011, %cst_100 {dimension_numbers = #tpu.dot_dimension_numbers<[1], [0], [0], [1], [0, 0, 1, 1], [], []>} : vector<8x4xbf16>, vector<4x256xbf16>, vector<8x256xf32> -> vector<8x256xf32>
    %1013 = arith.addf %1008, %1012 : vector<8x256xf32>
    %c255_i32_101 = arith.constant 255 : i32
    %1014 = tpu.dynamic_rotate %973 by %c255_i32_101 dim 1 : vector<4x256xf32>, i32 -> vector<4x256xf32>
    %1015 = vector.extract_strided_slice %6 {offsets = [5, 0], sizes = [1, 256], strides = [1, 1]} : vector<9x256xf32> to vector<1x256xf32>
    %1016 = vector.broadcast %1015 : vector<1x256xf32> to vector<4x256xf32>
    %1017 = arith.mulf %1014, %1016 : vector<4x256xf32>
    %1018 = vector.extract_strided_slice %1 {offsets = [5, 0, 0], sizes = [1, 8, 4], strides = [1, 1, 1]} : vector<9x8x4xbf16> to vector<1x8x4xbf16>
    %1019 = vector.shape_cast %1018 : vector<1x8x4xbf16> to vector<8x4xbf16>
    %1020 = arith.truncf %1017 : vector<4x256xf32> to vector<4x256xbf16>
    %cst_102 = arith.constant dense<0.000000e+00> : vector<8x256xf32>
    %1021 = tpu.matmul %1019, %1020, %cst_102 {dimension_numbers = #tpu.dot_dimension_numbers<[1], [0], [0], [1], [0, 0, 1, 1], [], []>} : vector<8x4xbf16>, vector<4x256xbf16>, vector<8x256xf32> -> vector<8x256xf32>
    %1022 = arith.addf %1013, %1021 : vector<8x256xf32>
    %c241_i32_103 = arith.constant 241 : i32
    %1023 = tpu.dynamic_rotate %973 by %c241_i32_103 dim 1 : vector<4x256xf32>, i32 -> vector<4x256xf32>
    %1024 = vector.extract_strided_slice %6 {offsets = [6, 0], sizes = [1, 256], strides = [1, 1]} : vector<9x256xf32> to vector<1x256xf32>
    %1025 = vector.broadcast %1024 : vector<1x256xf32> to vector<4x256xf32>
    %1026 = arith.mulf %1023, %1025 : vector<4x256xf32>
    %1027 = vector.extract_strided_slice %1 {offsets = [6, 0, 0], sizes = [1, 8, 4], strides = [1, 1, 1]} : vector<9x8x4xbf16> to vector<1x8x4xbf16>
    %1028 = vector.shape_cast %1027 : vector<1x8x4xbf16> to vector<8x4xbf16>
    %1029 = arith.truncf %1026 : vector<4x256xf32> to vector<4x256xbf16>
    %cst_104 = arith.constant dense<0.000000e+00> : vector<8x256xf32>
    %1030 = tpu.matmul %1028, %1029, %cst_104 {dimension_numbers = #tpu.dot_dimension_numbers<[1], [0], [0], [1], [0, 0, 1, 1], [], []>} : vector<8x4xbf16>, vector<4x256xbf16>, vector<8x256xf32> -> vector<8x256xf32>
    %1031 = arith.addf %1022, %1030 : vector<8x256xf32>
    %c240_i32_105 = arith.constant 240 : i32
    %1032 = tpu.dynamic_rotate %973 by %c240_i32_105 dim 1 : vector<4x256xf32>, i32 -> vector<4x256xf32>
    %1033 = vector.extract_strided_slice %6 {offsets = [7, 0], sizes = [1, 256], strides = [1, 1]} : vector<9x256xf32> to vector<1x256xf32>
    %1034 = vector.broadcast %1033 : vector<1x256xf32> to vector<4x256xf32>
    %1035 = arith.mulf %1032, %1034 : vector<4x256xf32>
    %1036 = vector.extract_strided_slice %1 {offsets = [7, 0, 0], sizes = [1, 8, 4], strides = [1, 1, 1]} : vector<9x8x4xbf16> to vector<1x8x4xbf16>
    %1037 = vector.shape_cast %1036 : vector<1x8x4xbf16> to vector<8x4xbf16>
    %1038 = arith.truncf %1035 : vector<4x256xf32> to vector<4x256xbf16>
    %cst_106 = arith.constant dense<0.000000e+00> : vector<8x256xf32>
    %1039 = tpu.matmul %1037, %1038, %cst_106 {dimension_numbers = #tpu.dot_dimension_numbers<[1], [0], [0], [1], [0, 0, 1, 1], [], []>} : vector<8x4xbf16>, vector<4x256xbf16>, vector<8x256xf32> -> vector<8x256xf32>
    %1040 = arith.addf %1031, %1039 : vector<8x256xf32>
    %c239_i32_107 = arith.constant 239 : i32
    %1041 = tpu.dynamic_rotate %973 by %c239_i32_107 dim 1 : vector<4x256xf32>, i32 -> vector<4x256xf32>
    %1042 = vector.extract_strided_slice %6 {offsets = [8, 0], sizes = [1, 256], strides = [1, 1]} : vector<9x256xf32> to vector<1x256xf32>
    %1043 = vector.broadcast %1042 : vector<1x256xf32> to vector<4x256xf32>
    %1044 = arith.mulf %1041, %1043 : vector<4x256xf32>
    %1045 = vector.extract_strided_slice %1 {offsets = [8, 0, 0], sizes = [1, 8, 4], strides = [1, 1, 1]} : vector<9x8x4xbf16> to vector<1x8x4xbf16>
    %1046 = vector.shape_cast %1045 : vector<1x8x4xbf16> to vector<8x4xbf16>
    %1047 = arith.truncf %1044 : vector<4x256xf32> to vector<4x256xbf16>
    %cst_108 = arith.constant dense<0.000000e+00> : vector<8x256xf32>
    %1048 = tpu.matmul %1046, %1047, %cst_108 {dimension_numbers = #tpu.dot_dimension_numbers<[1], [0], [0], [1], [0, 0, 1, 1], [], []>} : vector<8x4xbf16>, vector<4x256xbf16>, vector<8x256xf32> -> vector<8x256xf32>
    %1049 = arith.addf %1040, %1048 : vector<8x256xf32>
    %1050 = vector.broadcast %3 : vector<8x1xf32> to vector<8x256xf32>
    %1051 = arith.addf %1049, %1050 : vector<8x256xf32>
    %cst_109 = arith.constant 0.000000e+00 : f32
    %1052 = vector.broadcast %cst_109 : f32 to vector<8x256xf32>
    %1053 = arith.maximumf %1051, %1052 : vector<8x256xf32>
    %cst_110 = arith.constant dense<0.000000e+00> : vector<8xf32>
    %1054 = vector.multi_reduction <add>, %1053, %cst_110 [1] : vector<8x256xf32> to vector<8xf32>
    %1055 = vector.shape_cast %1054 : vector<8xf32> to vector<8x1xf32>
    %cst_111 = arith.constant 2.560000e+02 : f32
    %1056 = vector.broadcast %cst_111 : f32 to vector<8x1xf32>
    %1057 = arith.divf %1055, %1056 : vector<8x1xf32>
    %cst_112 = arith.constant dense<0xFF800000> : vector<8xf32>
    %1058 = vector.multi_reduction <maximumf>, %1053, %cst_112 [1] : vector<8x256xf32> to vector<8xf32>
    %1059 = vector.shape_cast %1058 : vector<8xf32> to vector<8x1xf32>
    %1060 = tpu.concatenate %1057, %1059 in 1 : vector<8x1xf32>, vector<8x1xf32> -> vector<8x2xf32>
    %cst_113 = arith.constant dense<0.000000e+00> : vector<1x2xf32>
    %1061 = tpu.matmul %4, %1060, %cst_113 {dimension_numbers = #tpu.dot_dimension_numbers<[1], [0], [0], [1], [0, 0, 1, 1], [], []>} : vector<1x8xf32>, vector<8x2xf32>, vector<1x2xf32> -> vector<1x2xf32>
    %cst_114 = arith.constant 0.000000e+00 : f32
    %1062 = vector.broadcast %cst_114 : f32 to vector<1x2xf32>
    %1063 = arith.maximumf %1061, %1062 : vector<1x2xf32>
    %cst_115 = arith.constant dense<0.000000e+00> : vector<8x2xf32>
    %1064 = tpu.matmul %5, %1063, %cst_115 {dimension_numbers = #tpu.dot_dimension_numbers<[1], [0], [0], [1], [0, 0, 1, 1], [], []>} : vector<8x1xf32>, vector<1x2xf32>, vector<8x2xf32> -> vector<8x2xf32>
    %1065 = vector.extract_strided_slice %1064 {offsets = [0, 0], sizes = [8, 1], strides = [1, 1]} : vector<8x2xf32> to vector<8x1xf32>
    %1066 = vector.extract_strided_slice %1064 {offsets = [0, 1], sizes = [8, 1], strides = [1, 1]} : vector<8x2xf32> to vector<8x1xf32>
    %1067 = arith.addf %1065, %1066 : vector<8x1xf32>
    %1068 = arith.negf %1067 : vector<8x1xf32>
    %1069 = math.exp %1068 : vector<8x1xf32>
    %cst_116 = arith.constant 1.000000e+00 : f32
    %1070 = vector.broadcast %cst_116 : f32 to vector<8x1xf32>
    %1071 = arith.addf %1070, %1069 : vector<8x1xf32>
    %1072 = arith.divf %1070, %1071 : vector<8x1xf32>
    %1073 = vector.broadcast %1072 : vector<8x1xf32> to vector<8x256xf32>
    %1074 = arith.mulf %1053, %1073 : vector<8x256xf32>
    %cst_117 = arith.constant dense<0.000000e+00> : vector<256xf32>
    %1075 = vector.multi_reduction <add>, %1074, %cst_117 [0] : vector<8x256xf32> to vector<256xf32>
    %1076 = vector.shape_cast %1075 : vector<256xf32> to vector<1x256xf32>
    %cst_118 = arith.constant 8.000000e+00 : f32
    %1077 = vector.broadcast %cst_118 : f32 to vector<1x256xf32>
    %1078 = arith.divf %1076, %1077 : vector<1x256xf32>
    %cst_119 = arith.constant dense<0xFF800000> : vector<256xf32>
    %1079 = vector.multi_reduction <maximumf>, %1074, %cst_119 [0] : vector<8x256xf32> to vector<256xf32>
    %1080 = vector.shape_cast %1079 : vector<256xf32> to vector<1x256xf32>
    %1081 = tpu.concatenate %1078, %1080 in 0 : vector<1x256xf32>, vector<1x256xf32> -> vector<2x256xf32>
    %cst_120 = arith.constant 0.000000e+00 : f32
    %1082 = vector.broadcast %cst_120 : f32 to vector<1x256xf32>
    %c51_i32_121 = arith.constant 51 : i32
    %1083 = tpu.dynamic_rotate %1081 by %c51_i32_121 dim 1 : vector<2x256xf32>, i32 -> vector<2x256xf32>
    %1084 = vector.extract_strided_slice %7 {offsets = [0, 0], sizes = [1, 256], strides = [1, 1]} : vector<49x256xf32> to vector<1x256xf32>
    %1085 = vector.broadcast %1084 : vector<1x256xf32> to vector<2x256xf32>
    %1086 = arith.mulf %1083, %1085 : vector<2x256xf32>
    %c0_122 = arith.constant 0 : index
    %1087 = memref.load %arg8[%c0_122] : memref<98xf32, #tpu.memory_space<smem>>
    %1088 = vector.extract_strided_slice %1086 {offsets = [0, 0], sizes = [1, 256], strides = [1, 1]} : vector<2x256xf32> to vector<1x256xf32>
    %1089 = vector.broadcast %1087 : f32 to vector<1x256xf32>
    %1090 = arith.mulf %1089, %1088 : vector<1x256xf32>
    %1091 = arith.addf %1082, %1090 : vector<1x256xf32>
    %c1_123 = arith.constant 1 : index
    %1092 = memref.load %arg8[%c1_123] : memref<98xf32, #tpu.memory_space<smem>>
    %1093 = vector.extract_strided_slice %1086 {offsets = [1, 0], sizes = [1, 256], strides = [1, 1]} : vector<2x256xf32> to vector<1x256xf32>
    %1094 = vector.broadcast %1092 : f32 to vector<1x256xf32>
    %1095 = arith.mulf %1094, %1093 : vector<1x256xf32>
    %1096 = arith.addf %1091, %1095 : vector<1x256xf32>
    %c50_i32_124 = arith.constant 50 : i32
    %1097 = tpu.dynamic_rotate %1081 by %c50_i32_124 dim 1 : vector<2x256xf32>, i32 -> vector<2x256xf32>
    %1098 = vector.extract_strided_slice %7 {offsets = [1, 0], sizes = [1, 256], strides = [1, 1]} : vector<49x256xf32> to vector<1x256xf32>
    %1099 = vector.broadcast %1098 : vector<1x256xf32> to vector<2x256xf32>
    %1100 = arith.mulf %1097, %1099 : vector<2x256xf32>
    %c2_125 = arith.constant 2 : index
    %1101 = memref.load %arg8[%c2_125] : memref<98xf32, #tpu.memory_space<smem>>
    %1102 = vector.extract_strided_slice %1100 {offsets = [0, 0], sizes = [1, 256], strides = [1, 1]} : vector<2x256xf32> to vector<1x256xf32>
    %1103 = vector.broadcast %1101 : f32 to vector<1x256xf32>
    %1104 = arith.mulf %1103, %1102 : vector<1x256xf32>
    %1105 = arith.addf %1096, %1104 : vector<1x256xf32>
    %c3_126 = arith.constant 3 : index
    %1106 = memref.load %arg8[%c3_126] : memref<98xf32, #tpu.memory_space<smem>>
    %1107 = vector.extract_strided_slice %1100 {offsets = [1, 0], sizes = [1, 256], strides = [1, 1]} : vector<2x256xf32> to vector<1x256xf32>
    %1108 = vector.broadcast %1106 : f32 to vector<1x256xf32>
    %1109 = arith.mulf %1108, %1107 : vector<1x256xf32>
    %1110 = arith.addf %1105, %1109 : vector<1x256xf32>
    %c49_i32_127 = arith.constant 49 : i32
    %1111 = tpu.dynamic_rotate %1081 by %c49_i32_127 dim 1 : vector<2x256xf32>, i32 -> vector<2x256xf32>
    %1112 = vector.extract_strided_slice %7 {offsets = [2, 0], sizes = [1, 256], strides = [1, 1]} : vector<49x256xf32> to vector<1x256xf32>
    %1113 = vector.broadcast %1112 : vector<1x256xf32> to vector<2x256xf32>
    %1114 = arith.mulf %1111, %1113 : vector<2x256xf32>
    %c4_128 = arith.constant 4 : index
    %1115 = memref.load %arg8[%c4_128] : memref<98xf32, #tpu.memory_space<smem>>
    %1116 = vector.extract_strided_slice %1114 {offsets = [0, 0], sizes = [1, 256], strides = [1, 1]} : vector<2x256xf32> to vector<1x256xf32>
    %1117 = vector.broadcast %1115 : f32 to vector<1x256xf32>
    %1118 = arith.mulf %1117, %1116 : vector<1x256xf32>
    %1119 = arith.addf %1110, %1118 : vector<1x256xf32>
    %c5_129 = arith.constant 5 : index
    %1120 = memref.load %arg8[%c5_129] : memref<98xf32, #tpu.memory_space<smem>>
    %1121 = vector.extract_strided_slice %1114 {offsets = [1, 0], sizes = [1, 256], strides = [1, 1]} : vector<2x256xf32> to vector<1x256xf32>
    %1122 = vector.broadcast %1120 : f32 to vector<1x256xf32>
    %1123 = arith.mulf %1122, %1121 : vector<1x256xf32>
    %1124 = arith.addf %1119, %1123 : vector<1x256xf32>
    %c48_i32_130 = arith.constant 48 : i32
    %1125 = tpu.dynamic_rotate %1081 by %c48_i32_130 dim 1 : vector<2x256xf32>, i32 -> vector<2x256xf32>
    %1126 = vector.extract_strided_slice %7 {offsets = [3, 0], sizes = [1, 256], strides = [1, 1]} : vector<49x256xf32> to vector<1x256xf32>
    %1127 = vector.broadcast %1126 : vector<1x256xf32> to vector<2x256xf32>
    %1128 = arith.mulf %1125, %1127 : vector<2x256xf32>
    %c6_131 = arith.constant 6 : index
    %1129 = memref.load %arg8[%c6_131] : memref<98xf32, #tpu.memory_space<smem>>
    %1130 = vector.extract_strided_slice %1128 {offsets = [0, 0], sizes = [1, 256], strides = [1, 1]} : vector<2x256xf32> to vector<1x256xf32>
    %1131 = vector.broadcast %1129 : f32 to vector<1x256xf32>
    %1132 = arith.mulf %1131, %1130 : vector<1x256xf32>
    %1133 = arith.addf %1124, %1132 : vector<1x256xf32>
    %c7_132 = arith.constant 7 : index
    %1134 = memref.load %arg8[%c7_132] : memref<98xf32, #tpu.memory_space<smem>>
    %1135 = vector.extract_strided_slice %1128 {offsets = [1, 0], sizes = [1, 256], strides = [1, 1]} : vector<2x256xf32> to vector<1x256xf32>
    %1136 = vector.broadcast %1134 : f32 to vector<1x256xf32>
    %1137 = arith.mulf %1136, %1135 : vector<1x256xf32>
    %1138 = arith.addf %1133, %1137 : vector<1x256xf32>
    %c47_i32_133 = arith.constant 47 : i32
    %1139 = tpu.dynamic_rotate %1081 by %c47_i32_133 dim 1 : vector<2x256xf32>, i32 -> vector<2x256xf32>
    %1140 = vector.extract_strided_slice %7 {offsets = [4, 0], sizes = [1, 256], strides = [1, 1]} : vector<49x256xf32> to vector<1x256xf32>
    %1141 = vector.broadcast %1140 : vector<1x256xf32> to vector<2x256xf32>
    %1142 = arith.mulf %1139, %1141 : vector<2x256xf32>
    %c8_134 = arith.constant 8 : index
    %1143 = memref.load %arg8[%c8_134] : memref<98xf32, #tpu.memory_space<smem>>
    %1144 = vector.extract_strided_slice %1142 {offsets = [0, 0], sizes = [1, 256], strides = [1, 1]} : vector<2x256xf32> to vector<1x256xf32>
    %1145 = vector.broadcast %1143 : f32 to vector<1x256xf32>
    %1146 = arith.mulf %1145, %1144 : vector<1x256xf32>
    %1147 = arith.addf %1138, %1146 : vector<1x256xf32>
    %c9_135 = arith.constant 9 : index
    %1148 = memref.load %arg8[%c9_135] : memref<98xf32, #tpu.memory_space<smem>>
    %1149 = vector.extract_strided_slice %1142 {offsets = [1, 0], sizes = [1, 256], strides = [1, 1]} : vector<2x256xf32> to vector<1x256xf32>
    %1150 = vector.broadcast %1148 : f32 to vector<1x256xf32>
    %1151 = arith.mulf %1150, %1149 : vector<1x256xf32>
    %1152 = arith.addf %1147, %1151 : vector<1x256xf32>
    %c46_i32_136 = arith.constant 46 : i32
    %1153 = tpu.dynamic_rotate %1081 by %c46_i32_136 dim 1 : vector<2x256xf32>, i32 -> vector<2x256xf32>
    %1154 = vector.extract_strided_slice %7 {offsets = [5, 0], sizes = [1, 256], strides = [1, 1]} : vector<49x256xf32> to vector<1x256xf32>
    %1155 = vector.broadcast %1154 : vector<1x256xf32> to vector<2x256xf32>
    %1156 = arith.mulf %1153, %1155 : vector<2x256xf32>
    %c10_137 = arith.constant 10 : index
    %1157 = memref.load %arg8[%c10_137] : memref<98xf32, #tpu.memory_space<smem>>
    %1158 = vector.extract_strided_slice %1156 {offsets = [0, 0], sizes = [1, 256], strides = [1, 1]} : vector<2x256xf32> to vector<1x256xf32>
    %1159 = vector.broadcast %1157 : f32 to vector<1x256xf32>
    %1160 = arith.mulf %1159, %1158 : vector<1x256xf32>
    %1161 = arith.addf %1152, %1160 : vector<1x256xf32>
    %c11_138 = arith.constant 11 : index
    %1162 = memref.load %arg8[%c11_138] : memref<98xf32, #tpu.memory_space<smem>>
    %1163 = vector.extract_strided_slice %1156 {offsets = [1, 0], sizes = [1, 256], strides = [1, 1]} : vector<2x256xf32> to vector<1x256xf32>
    %1164 = vector.broadcast %1162 : f32 to vector<1x256xf32>
    %1165 = arith.mulf %1164, %1163 : vector<1x256xf32>
    %1166 = arith.addf %1161, %1165 : vector<1x256xf32>
    %c45_i32_139 = arith.constant 45 : i32
    %1167 = tpu.dynamic_rotate %1081 by %c45_i32_139 dim 1 : vector<2x256xf32>, i32 -> vector<2x256xf32>
    %1168 = vector.extract_strided_slice %7 {offsets = [6, 0], sizes = [1, 256], strides = [1, 1]} : vector<49x256xf32> to vector<1x256xf32>
    %1169 = vector.broadcast %1168 : vector<1x256xf32> to vector<2x256xf32>
    %1170 = arith.mulf %1167, %1169 : vector<2x256xf32>
    %c12_140 = arith.constant 12 : index
    %1171 = memref.load %arg8[%c12_140] : memref<98xf32, #tpu.memory_space<smem>>
    %1172 = vector.extract_strided_slice %1170 {offsets = [0, 0], sizes = [1, 256], strides = [1, 1]} : vector<2x256xf32> to vector<1x256xf32>
    %1173 = vector.broadcast %1171 : f32 to vector<1x256xf32>
    %1174 = arith.mulf %1173, %1172 : vector<1x256xf32>
    %1175 = arith.addf %1166, %1174 : vector<1x256xf32>
    %c13_141 = arith.constant 13 : index
    %1176 = memref.load %arg8[%c13_141] : memref<98xf32, #tpu.memory_space<smem>>
    %1177 = vector.extract_strided_slice %1170 {offsets = [1, 0], sizes = [1, 256], strides = [1, 1]} : vector<2x256xf32> to vector<1x256xf32>
    %1178 = vector.broadcast %1176 : f32 to vector<1x256xf32>
    %1179 = arith.mulf %1178, %1177 : vector<1x256xf32>
    %1180 = arith.addf %1175, %1179 : vector<1x256xf32>
    %c35_i32_142 = arith.constant 35 : i32
    %1181 = tpu.dynamic_rotate %1081 by %c35_i32_142 dim 1 : vector<2x256xf32>, i32 -> vector<2x256xf32>
    %1182 = vector.extract_strided_slice %7 {offsets = [7, 0], sizes = [1, 256], strides = [1, 1]} : vector<49x256xf32> to vector<1x256xf32>
    %1183 = vector.broadcast %1182 : vector<1x256xf32> to vector<2x256xf32>
    %1184 = arith.mulf %1181, %1183 : vector<2x256xf32>
    %c14_143 = arith.constant 14 : index
    %1185 = memref.load %arg8[%c14_143] : memref<98xf32, #tpu.memory_space<smem>>
    %1186 = vector.extract_strided_slice %1184 {offsets = [0, 0], sizes = [1, 256], strides = [1, 1]} : vector<2x256xf32> to vector<1x256xf32>
    %1187 = vector.broadcast %1185 : f32 to vector<1x256xf32>
    %1188 = arith.mulf %1187, %1186 : vector<1x256xf32>
    %1189 = arith.addf %1180, %1188 : vector<1x256xf32>
    %c15_144 = arith.constant 15 : index
    %1190 = memref.load %arg8[%c15_144] : memref<98xf32, #tpu.memory_space<smem>>
    %1191 = vector.extract_strided_slice %1184 {offsets = [1, 0], sizes = [1, 256], strides = [1, 1]} : vector<2x256xf32> to vector<1x256xf32>
    %1192 = vector.broadcast %1190 : f32 to vector<1x256xf32>
    %1193 = arith.mulf %1192, %1191 : vector<1x256xf32>
    %1194 = arith.addf %1189, %1193 : vector<1x256xf32>
    %c34_i32_145 = arith.constant 34 : i32
    %1195 = tpu.dynamic_rotate %1081 by %c34_i32_145 dim 1 : vector<2x256xf32>, i32 -> vector<2x256xf32>
    %1196 = vector.extract_strided_slice %7 {offsets = [8, 0], sizes = [1, 256], strides = [1, 1]} : vector<49x256xf32> to vector<1x256xf32>
    %1197 = vector.broadcast %1196 : vector<1x256xf32> to vector<2x256xf32>
    %1198 = arith.mulf %1195, %1197 : vector<2x256xf32>
    %c16_146 = arith.constant 16 : index
    %1199 = memref.load %arg8[%c16_146] : memref<98xf32, #tpu.memory_space<smem>>
    %1200 = vector.extract_strided_slice %1198 {offsets = [0, 0], sizes = [1, 256], strides = [1, 1]} : vector<2x256xf32> to vector<1x256xf32>
    %1201 = vector.broadcast %1199 : f32 to vector<1x256xf32>
    %1202 = arith.mulf %1201, %1200 : vector<1x256xf32>
    %1203 = arith.addf %1194, %1202 : vector<1x256xf32>
    %c17_147 = arith.constant 17 : index
    %1204 = memref.load %arg8[%c17_147] : memref<98xf32, #tpu.memory_space<smem>>
    %1205 = vector.extract_strided_slice %1198 {offsets = [1, 0], sizes = [1, 256], strides = [1, 1]} : vector<2x256xf32> to vector<1x256xf32>
    %1206 = vector.broadcast %1204 : f32 to vector<1x256xf32>
    %1207 = arith.mulf %1206, %1205 : vector<1x256xf32>
    %1208 = arith.addf %1203, %1207 : vector<1x256xf32>
    %c33_i32_148 = arith.constant 33 : i32
    %1209 = tpu.dynamic_rotate %1081 by %c33_i32_148 dim 1 : vector<2x256xf32>, i32 -> vector<2x256xf32>
    %1210 = vector.extract_strided_slice %7 {offsets = [9, 0], sizes = [1, 256], strides = [1, 1]} : vector<49x256xf32> to vector<1x256xf32>
    %1211 = vector.broadcast %1210 : vector<1x256xf32> to vector<2x256xf32>
    %1212 = arith.mulf %1209, %1211 : vector<2x256xf32>
    %c18_149 = arith.constant 18 : index
    %1213 = memref.load %arg8[%c18_149] : memref<98xf32, #tpu.memory_space<smem>>
    %1214 = vector.extract_strided_slice %1212 {offsets = [0, 0], sizes = [1, 256], strides = [1, 1]} : vector<2x256xf32> to vector<1x256xf32>
    %1215 = vector.broadcast %1213 : f32 to vector<1x256xf32>
    %1216 = arith.mulf %1215, %1214 : vector<1x256xf32>
    %1217 = arith.addf %1208, %1216 : vector<1x256xf32>
    %c19_150 = arith.constant 19 : index
    %1218 = memref.load %arg8[%c19_150] : memref<98xf32, #tpu.memory_space<smem>>
    %1219 = vector.extract_strided_slice %1212 {offsets = [1, 0], sizes = [1, 256], strides = [1, 1]} : vector<2x256xf32> to vector<1x256xf32>
    %1220 = vector.broadcast %1218 : f32 to vector<1x256xf32>
    %1221 = arith.mulf %1220, %1219 : vector<1x256xf32>
    %1222 = arith.addf %1217, %1221 : vector<1x256xf32>
    %c32_i32_151 = arith.constant 32 : i32
    %1223 = tpu.dynamic_rotate %1081 by %c32_i32_151 dim 1 : vector<2x256xf32>, i32 -> vector<2x256xf32>
    %1224 = vector.extract_strided_slice %7 {offsets = [10, 0], sizes = [1, 256], strides = [1, 1]} : vector<49x256xf32> to vector<1x256xf32>
    %1225 = vector.broadcast %1224 : vector<1x256xf32> to vector<2x256xf32>
    %1226 = arith.mulf %1223, %1225 : vector<2x256xf32>
    %c20_152 = arith.constant 20 : index
    %1227 = memref.load %arg8[%c20_152] : memref<98xf32, #tpu.memory_space<smem>>
    %1228 = vector.extract_strided_slice %1226 {offsets = [0, 0], sizes = [1, 256], strides = [1, 1]} : vector<2x256xf32> to vector<1x256xf32>
    %1229 = vector.broadcast %1227 : f32 to vector<1x256xf32>
    %1230 = arith.mulf %1229, %1228 : vector<1x256xf32>
    %1231 = arith.addf %1222, %1230 : vector<1x256xf32>
    %c21_153 = arith.constant 21 : index
    %1232 = memref.load %arg8[%c21_153] : memref<98xf32, #tpu.memory_space<smem>>
    %1233 = vector.extract_strided_slice %1226 {offsets = [1, 0], sizes = [1, 256], strides = [1, 1]} : vector<2x256xf32> to vector<1x256xf32>
    %1234 = vector.broadcast %1232 : f32 to vector<1x256xf32>
    %1235 = arith.mulf %1234, %1233 : vector<1x256xf32>
    %1236 = arith.addf %1231, %1235 : vector<1x256xf32>
    %c31_i32_154 = arith.constant 31 : i32
    %1237 = tpu.dynamic_rotate %1081 by %c31_i32_154 dim 1 : vector<2x256xf32>, i32 -> vector<2x256xf32>
    %1238 = vector.extract_strided_slice %7 {offsets = [11, 0], sizes = [1, 256], strides = [1, 1]} : vector<49x256xf32> to vector<1x256xf32>
    %1239 = vector.broadcast %1238 : vector<1x256xf32> to vector<2x256xf32>
    %1240 = arith.mulf %1237, %1239 : vector<2x256xf32>
    %c22_155 = arith.constant 22 : index
    %1241 = memref.load %arg8[%c22_155] : memref<98xf32, #tpu.memory_space<smem>>
    %1242 = vector.extract_strided_slice %1240 {offsets = [0, 0], sizes = [1, 256], strides = [1, 1]} : vector<2x256xf32> to vector<1x256xf32>
    %1243 = vector.broadcast %1241 : f32 to vector<1x256xf32>
    %1244 = arith.mulf %1243, %1242 : vector<1x256xf32>
    %1245 = arith.addf %1236, %1244 : vector<1x256xf32>
    %c23_156 = arith.constant 23 : index
    %1246 = memref.load %arg8[%c23_156] : memref<98xf32, #tpu.memory_space<smem>>
    %1247 = vector.extract_strided_slice %1240 {offsets = [1, 0], sizes = [1, 256], strides = [1, 1]} : vector<2x256xf32> to vector<1x256xf32>
    %1248 = vector.broadcast %1246 : f32 to vector<1x256xf32>
    %1249 = arith.mulf %1248, %1247 : vector<1x256xf32>
    %1250 = arith.addf %1245, %1249 : vector<1x256xf32>
    %c30_i32_157 = arith.constant 30 : i32
    %1251 = tpu.dynamic_rotate %1081 by %c30_i32_157 dim 1 : vector<2x256xf32>, i32 -> vector<2x256xf32>
    %1252 = vector.extract_strided_slice %7 {offsets = [12, 0], sizes = [1, 256], strides = [1, 1]} : vector<49x256xf32> to vector<1x256xf32>
    %1253 = vector.broadcast %1252 : vector<1x256xf32> to vector<2x256xf32>
    %1254 = arith.mulf %1251, %1253 : vector<2x256xf32>
    %c24_158 = arith.constant 24 : index
    %1255 = memref.load %arg8[%c24_158] : memref<98xf32, #tpu.memory_space<smem>>
    %1256 = vector.extract_strided_slice %1254 {offsets = [0, 0], sizes = [1, 256], strides = [1, 1]} : vector<2x256xf32> to vector<1x256xf32>
    %1257 = vector.broadcast %1255 : f32 to vector<1x256xf32>
    %1258 = arith.mulf %1257, %1256 : vector<1x256xf32>
    %1259 = arith.addf %1250, %1258 : vector<1x256xf32>
    %c25_159 = arith.constant 25 : index
    %1260 = memref.load %arg8[%c25_159] : memref<98xf32, #tpu.memory_space<smem>>
    %1261 = vector.extract_strided_slice %1254 {offsets = [1, 0], sizes = [1, 256], strides = [1, 1]} : vector<2x256xf32> to vector<1x256xf32>
    %1262 = vector.broadcast %1260 : f32 to vector<1x256xf32>
    %1263 = arith.mulf %1262, %1261 : vector<1x256xf32>
    %1264 = arith.addf %1259, %1263 : vector<1x256xf32>
    %c29_i32_160 = arith.constant 29 : i32
    %1265 = tpu.dynamic_rotate %1081 by %c29_i32_160 dim 1 : vector<2x256xf32>, i32 -> vector<2x256xf32>
    %1266 = vector.extract_strided_slice %7 {offsets = [13, 0], sizes = [1, 256], strides = [1, 1]} : vector<49x256xf32> to vector<1x256xf32>
    %1267 = vector.broadcast %1266 : vector<1x256xf32> to vector<2x256xf32>
    %1268 = arith.mulf %1265, %1267 : vector<2x256xf32>
    %c26_161 = arith.constant 26 : index
    %1269 = memref.load %arg8[%c26_161] : memref<98xf32, #tpu.memory_space<smem>>
    %1270 = vector.extract_strided_slice %1268 {offsets = [0, 0], sizes = [1, 256], strides = [1, 1]} : vector<2x256xf32> to vector<1x256xf32>
    %1271 = vector.broadcast %1269 : f32 to vector<1x256xf32>
    %1272 = arith.mulf %1271, %1270 : vector<1x256xf32>
    %1273 = arith.addf %1264, %1272 : vector<1x256xf32>
    %c27_162 = arith.constant 27 : index
    %1274 = memref.load %arg8[%c27_162] : memref<98xf32, #tpu.memory_space<smem>>
    %1275 = vector.extract_strided_slice %1268 {offsets = [1, 0], sizes = [1, 256], strides = [1, 1]} : vector<2x256xf32> to vector<1x256xf32>
    %1276 = vector.broadcast %1274 : f32 to vector<1x256xf32>
    %1277 = arith.mulf %1276, %1275 : vector<1x256xf32>
    %1278 = arith.addf %1273, %1277 : vector<1x256xf32>
    %c19_i32_163 = arith.constant 19 : i32
    %1279 = tpu.dynamic_rotate %1081 by %c19_i32_163 dim 1 : vector<2x256xf32>, i32 -> vector<2x256xf32>
    %1280 = vector.extract_strided_slice %7 {offsets = [14, 0], sizes = [1, 256], strides = [1, 1]} : vector<49x256xf32> to vector<1x256xf32>
    %1281 = vector.broadcast %1280 : vector<1x256xf32> to vector<2x256xf32>
    %1282 = arith.mulf %1279, %1281 : vector<2x256xf32>
    %c28_164 = arith.constant 28 : index
    %1283 = memref.load %arg8[%c28_164] : memref<98xf32, #tpu.memory_space<smem>>
    %1284 = vector.extract_strided_slice %1282 {offsets = [0, 0], sizes = [1, 256], strides = [1, 1]} : vector<2x256xf32> to vector<1x256xf32>
    %1285 = vector.broadcast %1283 : f32 to vector<1x256xf32>
    %1286 = arith.mulf %1285, %1284 : vector<1x256xf32>
    %1287 = arith.addf %1278, %1286 : vector<1x256xf32>
    %c29_165 = arith.constant 29 : index
    %1288 = memref.load %arg8[%c29_165] : memref<98xf32, #tpu.memory_space<smem>>
    %1289 = vector.extract_strided_slice %1282 {offsets = [1, 0], sizes = [1, 256], strides = [1, 1]} : vector<2x256xf32> to vector<1x256xf32>
    %1290 = vector.broadcast %1288 : f32 to vector<1x256xf32>
    %1291 = arith.mulf %1290, %1289 : vector<1x256xf32>
    %1292 = arith.addf %1287, %1291 : vector<1x256xf32>
    %c18_i32_166 = arith.constant 18 : i32
    %1293 = tpu.dynamic_rotate %1081 by %c18_i32_166 dim 1 : vector<2x256xf32>, i32 -> vector<2x256xf32>
    %1294 = vector.extract_strided_slice %7 {offsets = [15, 0], sizes = [1, 256], strides = [1, 1]} : vector<49x256xf32> to vector<1x256xf32>
    %1295 = vector.broadcast %1294 : vector<1x256xf32> to vector<2x256xf32>
    %1296 = arith.mulf %1293, %1295 : vector<2x256xf32>
    %c30_167 = arith.constant 30 : index
    %1297 = memref.load %arg8[%c30_167] : memref<98xf32, #tpu.memory_space<smem>>
    %1298 = vector.extract_strided_slice %1296 {offsets = [0, 0], sizes = [1, 256], strides = [1, 1]} : vector<2x256xf32> to vector<1x256xf32>
    %1299 = vector.broadcast %1297 : f32 to vector<1x256xf32>
    %1300 = arith.mulf %1299, %1298 : vector<1x256xf32>
    %1301 = arith.addf %1292, %1300 : vector<1x256xf32>
    %c31_168 = arith.constant 31 : index
    %1302 = memref.load %arg8[%c31_168] : memref<98xf32, #tpu.memory_space<smem>>
    %1303 = vector.extract_strided_slice %1296 {offsets = [1, 0], sizes = [1, 256], strides = [1, 1]} : vector<2x256xf32> to vector<1x256xf32>
    %1304 = vector.broadcast %1302 : f32 to vector<1x256xf32>
    %1305 = arith.mulf %1304, %1303 : vector<1x256xf32>
    %1306 = arith.addf %1301, %1305 : vector<1x256xf32>
    %c17_i32_169 = arith.constant 17 : i32
    %1307 = tpu.dynamic_rotate %1081 by %c17_i32_169 dim 1 : vector<2x256xf32>, i32 -> vector<2x256xf32>
    %1308 = vector.extract_strided_slice %7 {offsets = [16, 0], sizes = [1, 256], strides = [1, 1]} : vector<49x256xf32> to vector<1x256xf32>
    %1309 = vector.broadcast %1308 : vector<1x256xf32> to vector<2x256xf32>
    %1310 = arith.mulf %1307, %1309 : vector<2x256xf32>
    %c32_170 = arith.constant 32 : index
    %1311 = memref.load %arg8[%c32_170] : memref<98xf32, #tpu.memory_space<smem>>
    %1312 = vector.extract_strided_slice %1310 {offsets = [0, 0], sizes = [1, 256], strides = [1, 1]} : vector<2x256xf32> to vector<1x256xf32>
    %1313 = vector.broadcast %1311 : f32 to vector<1x256xf32>
    %1314 = arith.mulf %1313, %1312 : vector<1x256xf32>
    %1315 = arith.addf %1306, %1314 : vector<1x256xf32>
    %c33_171 = arith.constant 33 : index
    %1316 = memref.load %arg8[%c33_171] : memref<98xf32, #tpu.memory_space<smem>>
    %1317 = vector.extract_strided_slice %1310 {offsets = [1, 0], sizes = [1, 256], strides = [1, 1]} : vector<2x256xf32> to vector<1x256xf32>
    %1318 = vector.broadcast %1316 : f32 to vector<1x256xf32>
    %1319 = arith.mulf %1318, %1317 : vector<1x256xf32>
    %1320 = arith.addf %1315, %1319 : vector<1x256xf32>
    %c16_i32_172 = arith.constant 16 : i32
    %1321 = tpu.dynamic_rotate %1081 by %c16_i32_172 dim 1 : vector<2x256xf32>, i32 -> vector<2x256xf32>
    %1322 = vector.extract_strided_slice %7 {offsets = [17, 0], sizes = [1, 256], strides = [1, 1]} : vector<49x256xf32> to vector<1x256xf32>
    %1323 = vector.broadcast %1322 : vector<1x256xf32> to vector<2x256xf32>
    %1324 = arith.mulf %1321, %1323 : vector<2x256xf32>
    %c34_173 = arith.constant 34 : index
    %1325 = memref.load %arg8[%c34_173] : memref<98xf32, #tpu.memory_space<smem>>
    %1326 = vector.extract_strided_slice %1324 {offsets = [0, 0], sizes = [1, 256], strides = [1, 1]} : vector<2x256xf32> to vector<1x256xf32>
    %1327 = vector.broadcast %1325 : f32 to vector<1x256xf32>
    %1328 = arith.mulf %1327, %1326 : vector<1x256xf32>
    %1329 = arith.addf %1320, %1328 : vector<1x256xf32>
    %c35_174 = arith.constant 35 : index
    %1330 = memref.load %arg8[%c35_174] : memref<98xf32, #tpu.memory_space<smem>>
    %1331 = vector.extract_strided_slice %1324 {offsets = [1, 0], sizes = [1, 256], strides = [1, 1]} : vector<2x256xf32> to vector<1x256xf32>
    %1332 = vector.broadcast %1330 : f32 to vector<1x256xf32>
    %1333 = arith.mulf %1332, %1331 : vector<1x256xf32>
    %1334 = arith.addf %1329, %1333 : vector<1x256xf32>
    %c15_i32_175 = arith.constant 15 : i32
    %1335 = tpu.dynamic_rotate %1081 by %c15_i32_175 dim 1 : vector<2x256xf32>, i32 -> vector<2x256xf32>
    %1336 = vector.extract_strided_slice %7 {offsets = [18, 0], sizes = [1, 256], strides = [1, 1]} : vector<49x256xf32> to vector<1x256xf32>
    %1337 = vector.broadcast %1336 : vector<1x256xf32> to vector<2x256xf32>
    %1338 = arith.mulf %1335, %1337 : vector<2x256xf32>
    %c36_176 = arith.constant 36 : index
    %1339 = memref.load %arg8[%c36_176] : memref<98xf32, #tpu.memory_space<smem>>
    %1340 = vector.extract_strided_slice %1338 {offsets = [0, 0], sizes = [1, 256], strides = [1, 1]} : vector<2x256xf32> to vector<1x256xf32>
    %1341 = vector.broadcast %1339 : f32 to vector<1x256xf32>
    %1342 = arith.mulf %1341, %1340 : vector<1x256xf32>
    %1343 = arith.addf %1334, %1342 : vector<1x256xf32>
    %c37_177 = arith.constant 37 : index
    %1344 = memref.load %arg8[%c37_177] : memref<98xf32, #tpu.memory_space<smem>>
    %1345 = vector.extract_strided_slice %1338 {offsets = [1, 0], sizes = [1, 256], strides = [1, 1]} : vector<2x256xf32> to vector<1x256xf32>
    %1346 = vector.broadcast %1344 : f32 to vector<1x256xf32>
    %1347 = arith.mulf %1346, %1345 : vector<1x256xf32>
    %1348 = arith.addf %1343, %1347 : vector<1x256xf32>
    %c14_i32_178 = arith.constant 14 : i32
    %1349 = tpu.dynamic_rotate %1081 by %c14_i32_178 dim 1 : vector<2x256xf32>, i32 -> vector<2x256xf32>
    %1350 = vector.extract_strided_slice %7 {offsets = [19, 0], sizes = [1, 256], strides = [1, 1]} : vector<49x256xf32> to vector<1x256xf32>
    %1351 = vector.broadcast %1350 : vector<1x256xf32> to vector<2x256xf32>
    %1352 = arith.mulf %1349, %1351 : vector<2x256xf32>
    %c38_179 = arith.constant 38 : index
    %1353 = memref.load %arg8[%c38_179] : memref<98xf32, #tpu.memory_space<smem>>
    %1354 = vector.extract_strided_slice %1352 {offsets = [0, 0], sizes = [1, 256], strides = [1, 1]} : vector<2x256xf32> to vector<1x256xf32>
    %1355 = vector.broadcast %1353 : f32 to vector<1x256xf32>
    %1356 = arith.mulf %1355, %1354 : vector<1x256xf32>
    %1357 = arith.addf %1348, %1356 : vector<1x256xf32>
    %c39_180 = arith.constant 39 : index
    %1358 = memref.load %arg8[%c39_180] : memref<98xf32, #tpu.memory_space<smem>>
    %1359 = vector.extract_strided_slice %1352 {offsets = [1, 0], sizes = [1, 256], strides = [1, 1]} : vector<2x256xf32> to vector<1x256xf32>
    %1360 = vector.broadcast %1358 : f32 to vector<1x256xf32>
    %1361 = arith.mulf %1360, %1359 : vector<1x256xf32>
    %1362 = arith.addf %1357, %1361 : vector<1x256xf32>
    %c13_i32_181 = arith.constant 13 : i32
    %1363 = tpu.dynamic_rotate %1081 by %c13_i32_181 dim 1 : vector<2x256xf32>, i32 -> vector<2x256xf32>
    %1364 = vector.extract_strided_slice %7 {offsets = [20, 0], sizes = [1, 256], strides = [1, 1]} : vector<49x256xf32> to vector<1x256xf32>
    %1365 = vector.broadcast %1364 : vector<1x256xf32> to vector<2x256xf32>
    %1366 = arith.mulf %1363, %1365 : vector<2x256xf32>
    %c40_182 = arith.constant 40 : index
    %1367 = memref.load %arg8[%c40_182] : memref<98xf32, #tpu.memory_space<smem>>
    %1368 = vector.extract_strided_slice %1366 {offsets = [0, 0], sizes = [1, 256], strides = [1, 1]} : vector<2x256xf32> to vector<1x256xf32>
    %1369 = vector.broadcast %1367 : f32 to vector<1x256xf32>
    %1370 = arith.mulf %1369, %1368 : vector<1x256xf32>
    %1371 = arith.addf %1362, %1370 : vector<1x256xf32>
    %c41_183 = arith.constant 41 : index
    %1372 = memref.load %arg8[%c41_183] : memref<98xf32, #tpu.memory_space<smem>>
    %1373 = vector.extract_strided_slice %1366 {offsets = [1, 0], sizes = [1, 256], strides = [1, 1]} : vector<2x256xf32> to vector<1x256xf32>
    %1374 = vector.broadcast %1372 : f32 to vector<1x256xf32>
    %1375 = arith.mulf %1374, %1373 : vector<1x256xf32>
    %1376 = arith.addf %1371, %1375 : vector<1x256xf32>
    %c3_i32_184 = arith.constant 3 : i32
    %1377 = tpu.dynamic_rotate %1081 by %c3_i32_184 dim 1 : vector<2x256xf32>, i32 -> vector<2x256xf32>
    %1378 = vector.extract_strided_slice %7 {offsets = [21, 0], sizes = [1, 256], strides = [1, 1]} : vector<49x256xf32> to vector<1x256xf32>
    %1379 = vector.broadcast %1378 : vector<1x256xf32> to vector<2x256xf32>
    %1380 = arith.mulf %1377, %1379 : vector<2x256xf32>
    %c42_185 = arith.constant 42 : index
    %1381 = memref.load %arg8[%c42_185] : memref<98xf32, #tpu.memory_space<smem>>
    %1382 = vector.extract_strided_slice %1380 {offsets = [0, 0], sizes = [1, 256], strides = [1, 1]} : vector<2x256xf32> to vector<1x256xf32>
    %1383 = vector.broadcast %1381 : f32 to vector<1x256xf32>
    %1384 = arith.mulf %1383, %1382 : vector<1x256xf32>
    %1385 = arith.addf %1376, %1384 : vector<1x256xf32>
    %c43_186 = arith.constant 43 : index
    %1386 = memref.load %arg8[%c43_186] : memref<98xf32, #tpu.memory_space<smem>>
    %1387 = vector.extract_strided_slice %1380 {offsets = [1, 0], sizes = [1, 256], strides = [1, 1]} : vector<2x256xf32> to vector<1x256xf32>
    %1388 = vector.broadcast %1386 : f32 to vector<1x256xf32>
    %1389 = arith.mulf %1388, %1387 : vector<1x256xf32>
    %1390 = arith.addf %1385, %1389 : vector<1x256xf32>
    %c2_i32_187 = arith.constant 2 : i32
    %1391 = tpu.dynamic_rotate %1081 by %c2_i32_187 dim 1 : vector<2x256xf32>, i32 -> vector<2x256xf32>
    %1392 = vector.extract_strided_slice %7 {offsets = [22, 0], sizes = [1, 256], strides = [1, 1]} : vector<49x256xf32> to vector<1x256xf32>
    %1393 = vector.broadcast %1392 : vector<1x256xf32> to vector<2x256xf32>
    %1394 = arith.mulf %1391, %1393 : vector<2x256xf32>
    %c44_188 = arith.constant 44 : index
    %1395 = memref.load %arg8[%c44_188] : memref<98xf32, #tpu.memory_space<smem>>
    %1396 = vector.extract_strided_slice %1394 {offsets = [0, 0], sizes = [1, 256], strides = [1, 1]} : vector<2x256xf32> to vector<1x256xf32>
    %1397 = vector.broadcast %1395 : f32 to vector<1x256xf32>
    %1398 = arith.mulf %1397, %1396 : vector<1x256xf32>
    %1399 = arith.addf %1390, %1398 : vector<1x256xf32>
    %c45_189 = arith.constant 45 : index
    %1400 = memref.load %arg8[%c45_189] : memref<98xf32, #tpu.memory_space<smem>>
    %1401 = vector.extract_strided_slice %1394 {offsets = [1, 0], sizes = [1, 256], strides = [1, 1]} : vector<2x256xf32> to vector<1x256xf32>
    %1402 = vector.broadcast %1400 : f32 to vector<1x256xf32>
    %1403 = arith.mulf %1402, %1401 : vector<1x256xf32>
    %1404 = arith.addf %1399, %1403 : vector<1x256xf32>
    %c1_i32_190 = arith.constant 1 : i32
    %1405 = tpu.dynamic_rotate %1081 by %c1_i32_190 dim 1 : vector<2x256xf32>, i32 -> vector<2x256xf32>
    %1406 = vector.extract_strided_slice %7 {offsets = [23, 0], sizes = [1, 256], strides = [1, 1]} : vector<49x256xf32> to vector<1x256xf32>
    %1407 = vector.broadcast %1406 : vector<1x256xf32> to vector<2x256xf32>
    %1408 = arith.mulf %1405, %1407 : vector<2x256xf32>
    %c46_191 = arith.constant 46 : index
    %1409 = memref.load %arg8[%c46_191] : memref<98xf32, #tpu.memory_space<smem>>
    %1410 = vector.extract_strided_slice %1408 {offsets = [0, 0], sizes = [1, 256], strides = [1, 1]} : vector<2x256xf32> to vector<1x256xf32>
    %1411 = vector.broadcast %1409 : f32 to vector<1x256xf32>
    %1412 = arith.mulf %1411, %1410 : vector<1x256xf32>
    %1413 = arith.addf %1404, %1412 : vector<1x256xf32>
    %c47_192 = arith.constant 47 : index
    %1414 = memref.load %arg8[%c47_192] : memref<98xf32, #tpu.memory_space<smem>>
    %1415 = vector.extract_strided_slice %1408 {offsets = [1, 0], sizes = [1, 256], strides = [1, 1]} : vector<2x256xf32> to vector<1x256xf32>
    %1416 = vector.broadcast %1414 : f32 to vector<1x256xf32>
    %1417 = arith.mulf %1416, %1415 : vector<1x256xf32>
    %1418 = arith.addf %1413, %1417 : vector<1x256xf32>
    %c48_193 = arith.constant 48 : index
    %1419 = memref.load %arg8[%c48_193] : memref<98xf32, #tpu.memory_space<smem>>
    %1420 = vector.extract_strided_slice %1081 {offsets = [0, 0], sizes = [1, 256], strides = [1, 1]} : vector<2x256xf32> to vector<1x256xf32>
    %1421 = vector.broadcast %1419 : f32 to vector<1x256xf32>
    %1422 = arith.mulf %1421, %1420 : vector<1x256xf32>
    %1423 = arith.addf %1418, %1422 : vector<1x256xf32>
    %c49_194 = arith.constant 49 : index
    %1424 = memref.load %arg8[%c49_194] : memref<98xf32, #tpu.memory_space<smem>>
    %1425 = vector.extract_strided_slice %1081 {offsets = [1, 0], sizes = [1, 256], strides = [1, 1]} : vector<2x256xf32> to vector<1x256xf32>
    %1426 = vector.broadcast %1424 : f32 to vector<1x256xf32>
    %1427 = arith.mulf %1426, %1425 : vector<1x256xf32>
    %1428 = arith.addf %1423, %1427 : vector<1x256xf32>
    %c255_i32_195 = arith.constant 255 : i32
    %1429 = tpu.dynamic_rotate %1081 by %c255_i32_195 dim 1 : vector<2x256xf32>, i32 -> vector<2x256xf32>
    %1430 = vector.extract_strided_slice %7 {offsets = [25, 0], sizes = [1, 256], strides = [1, 1]} : vector<49x256xf32> to vector<1x256xf32>
    %1431 = vector.broadcast %1430 : vector<1x256xf32> to vector<2x256xf32>
    %1432 = arith.mulf %1429, %1431 : vector<2x256xf32>
    %c50_196 = arith.constant 50 : index
    %1433 = memref.load %arg8[%c50_196] : memref<98xf32, #tpu.memory_space<smem>>
    %1434 = vector.extract_strided_slice %1432 {offsets = [0, 0], sizes = [1, 256], strides = [1, 1]} : vector<2x256xf32> to vector<1x256xf32>
    %1435 = vector.broadcast %1433 : f32 to vector<1x256xf32>
    %1436 = arith.mulf %1435, %1434 : vector<1x256xf32>
    %1437 = arith.addf %1428, %1436 : vector<1x256xf32>
    %c51_197 = arith.constant 51 : index
    %1438 = memref.load %arg8[%c51_197] : memref<98xf32, #tpu.memory_space<smem>>
    %1439 = vector.extract_strided_slice %1432 {offsets = [1, 0], sizes = [1, 256], strides = [1, 1]} : vector<2x256xf32> to vector<1x256xf32>
    %1440 = vector.broadcast %1438 : f32 to vector<1x256xf32>
    %1441 = arith.mulf %1440, %1439 : vector<1x256xf32>
    %1442 = arith.addf %1437, %1441 : vector<1x256xf32>
    %c254_i32_198 = arith.constant 254 : i32
    %1443 = tpu.dynamic_rotate %1081 by %c254_i32_198 dim 1 : vector<2x256xf32>, i32 -> vector<2x256xf32>
    %1444 = vector.extract_strided_slice %7 {offsets = [26, 0], sizes = [1, 256], strides = [1, 1]} : vector<49x256xf32> to vector<1x256xf32>
    %1445 = vector.broadcast %1444 : vector<1x256xf32> to vector<2x256xf32>
    %1446 = arith.mulf %1443, %1445 : vector<2x256xf32>
    %c52_199 = arith.constant 52 : index
    %1447 = memref.load %arg8[%c52_199] : memref<98xf32, #tpu.memory_space<smem>>
    %1448 = vector.extract_strided_slice %1446 {offsets = [0, 0], sizes = [1, 256], strides = [1, 1]} : vector<2x256xf32> to vector<1x256xf32>
    %1449 = vector.broadcast %1447 : f32 to vector<1x256xf32>
    %1450 = arith.mulf %1449, %1448 : vector<1x256xf32>
    %1451 = arith.addf %1442, %1450 : vector<1x256xf32>
    %c53_200 = arith.constant 53 : index
    %1452 = memref.load %arg8[%c53_200] : memref<98xf32, #tpu.memory_space<smem>>
    %1453 = vector.extract_strided_slice %1446 {offsets = [1, 0], sizes = [1, 256], strides = [1, 1]} : vector<2x256xf32> to vector<1x256xf32>
    %1454 = vector.broadcast %1452 : f32 to vector<1x256xf32>
    %1455 = arith.mulf %1454, %1453 : vector<1x256xf32>
    %1456 = arith.addf %1451, %1455 : vector<1x256xf32>
    %c253_i32_201 = arith.constant 253 : i32
    %1457 = tpu.dynamic_rotate %1081 by %c253_i32_201 dim 1 : vector<2x256xf32>, i32 -> vector<2x256xf32>
    %1458 = vector.extract_strided_slice %7 {offsets = [27, 0], sizes = [1, 256], strides = [1, 1]} : vector<49x256xf32> to vector<1x256xf32>
    %1459 = vector.broadcast %1458 : vector<1x256xf32> to vector<2x256xf32>
    %1460 = arith.mulf %1457, %1459 : vector<2x256xf32>
    %c54_202 = arith.constant 54 : index
    %1461 = memref.load %arg8[%c54_202] : memref<98xf32, #tpu.memory_space<smem>>
    %1462 = vector.extract_strided_slice %1460 {offsets = [0, 0], sizes = [1, 256], strides = [1, 1]} : vector<2x256xf32> to vector<1x256xf32>
    %1463 = vector.broadcast %1461 : f32 to vector<1x256xf32>
    %1464 = arith.mulf %1463, %1462 : vector<1x256xf32>
    %1465 = arith.addf %1456, %1464 : vector<1x256xf32>
    %c55_203 = arith.constant 55 : index
    %1466 = memref.load %arg8[%c55_203] : memref<98xf32, #tpu.memory_space<smem>>
    %1467 = vector.extract_strided_slice %1460 {offsets = [1, 0], sizes = [1, 256], strides = [1, 1]} : vector<2x256xf32> to vector<1x256xf32>
    %1468 = vector.broadcast %1466 : f32 to vector<1x256xf32>
    %1469 = arith.mulf %1468, %1467 : vector<1x256xf32>
    %1470 = arith.addf %1465, %1469 : vector<1x256xf32>
    %c243_i32_204 = arith.constant 243 : i32
    %1471 = tpu.dynamic_rotate %1081 by %c243_i32_204 dim 1 : vector<2x256xf32>, i32 -> vector<2x256xf32>
    %1472 = vector.extract_strided_slice %7 {offsets = [28, 0], sizes = [1, 256], strides = [1, 1]} : vector<49x256xf32> to vector<1x256xf32>
    %1473 = vector.broadcast %1472 : vector<1x256xf32> to vector<2x256xf32>
    %1474 = arith.mulf %1471, %1473 : vector<2x256xf32>
    %c56_205 = arith.constant 56 : index
    %1475 = memref.load %arg8[%c56_205] : memref<98xf32, #tpu.memory_space<smem>>
    %1476 = vector.extract_strided_slice %1474 {offsets = [0, 0], sizes = [1, 256], strides = [1, 1]} : vector<2x256xf32> to vector<1x256xf32>
    %1477 = vector.broadcast %1475 : f32 to vector<1x256xf32>
    %1478 = arith.mulf %1477, %1476 : vector<1x256xf32>
    %1479 = arith.addf %1470, %1478 : vector<1x256xf32>
    %c57_206 = arith.constant 57 : index
    %1480 = memref.load %arg8[%c57_206] : memref<98xf32, #tpu.memory_space<smem>>
    %1481 = vector.extract_strided_slice %1474 {offsets = [1, 0], sizes = [1, 256], strides = [1, 1]} : vector<2x256xf32> to vector<1x256xf32>
    %1482 = vector.broadcast %1480 : f32 to vector<1x256xf32>
    %1483 = arith.mulf %1482, %1481 : vector<1x256xf32>
    %1484 = arith.addf %1479, %1483 : vector<1x256xf32>
    %c242_i32_207 = arith.constant 242 : i32
    %1485 = tpu.dynamic_rotate %1081 by %c242_i32_207 dim 1 : vector<2x256xf32>, i32 -> vector<2x256xf32>
    %1486 = vector.extract_strided_slice %7 {offsets = [29, 0], sizes = [1, 256], strides = [1, 1]} : vector<49x256xf32> to vector<1x256xf32>
    %1487 = vector.broadcast %1486 : vector<1x256xf32> to vector<2x256xf32>
    %1488 = arith.mulf %1485, %1487 : vector<2x256xf32>
    %c58_208 = arith.constant 58 : index
    %1489 = memref.load %arg8[%c58_208] : memref<98xf32, #tpu.memory_space<smem>>
    %1490 = vector.extract_strided_slice %1488 {offsets = [0, 0], sizes = [1, 256], strides = [1, 1]} : vector<2x256xf32> to vector<1x256xf32>
    %1491 = vector.broadcast %1489 : f32 to vector<1x256xf32>
    %1492 = arith.mulf %1491, %1490 : vector<1x256xf32>
    %1493 = arith.addf %1484, %1492 : vector<1x256xf32>
    %c59_209 = arith.constant 59 : index
    %1494 = memref.load %arg8[%c59_209] : memref<98xf32, #tpu.memory_space<smem>>
    %1495 = vector.extract_strided_slice %1488 {offsets = [1, 0], sizes = [1, 256], strides = [1, 1]} : vector<2x256xf32> to vector<1x256xf32>
    %1496 = vector.broadcast %1494 : f32 to vector<1x256xf32>
    %1497 = arith.mulf %1496, %1495 : vector<1x256xf32>
    %1498 = arith.addf %1493, %1497 : vector<1x256xf32>
    %c241_i32_210 = arith.constant 241 : i32
    %1499 = tpu.dynamic_rotate %1081 by %c241_i32_210 dim 1 : vector<2x256xf32>, i32 -> vector<2x256xf32>
    %1500 = vector.extract_strided_slice %7 {offsets = [30, 0], sizes = [1, 256], strides = [1, 1]} : vector<49x256xf32> to vector<1x256xf32>
    %1501 = vector.broadcast %1500 : vector<1x256xf32> to vector<2x256xf32>
    %1502 = arith.mulf %1499, %1501 : vector<2x256xf32>
    %c60_211 = arith.constant 60 : index
    %1503 = memref.load %arg8[%c60_211] : memref<98xf32, #tpu.memory_space<smem>>
    %1504 = vector.extract_strided_slice %1502 {offsets = [0, 0], sizes = [1, 256], strides = [1, 1]} : vector<2x256xf32> to vector<1x256xf32>
    %1505 = vector.broadcast %1503 : f32 to vector<1x256xf32>
    %1506 = arith.mulf %1505, %1504 : vector<1x256xf32>
    %1507 = arith.addf %1498, %1506 : vector<1x256xf32>
    %c61_212 = arith.constant 61 : index
    %1508 = memref.load %arg8[%c61_212] : memref<98xf32, #tpu.memory_space<smem>>
    %1509 = vector.extract_strided_slice %1502 {offsets = [1, 0], sizes = [1, 256], strides = [1, 1]} : vector<2x256xf32> to vector<1x256xf32>
    %1510 = vector.broadcast %1508 : f32 to vector<1x256xf32>
    %1511 = arith.mulf %1510, %1509 : vector<1x256xf32>
    %1512 = arith.addf %1507, %1511 : vector<1x256xf32>
    %c240_i32_213 = arith.constant 240 : i32
    %1513 = tpu.dynamic_rotate %1081 by %c240_i32_213 dim 1 : vector<2x256xf32>, i32 -> vector<2x256xf32>
    %1514 = vector.extract_strided_slice %7 {offsets = [31, 0], sizes = [1, 256], strides = [1, 1]} : vector<49x256xf32> to vector<1x256xf32>
    %1515 = vector.broadcast %1514 : vector<1x256xf32> to vector<2x256xf32>
    %1516 = arith.mulf %1513, %1515 : vector<2x256xf32>
    %c62_214 = arith.constant 62 : index
    %1517 = memref.load %arg8[%c62_214] : memref<98xf32, #tpu.memory_space<smem>>
    %1518 = vector.extract_strided_slice %1516 {offsets = [0, 0], sizes = [1, 256], strides = [1, 1]} : vector<2x256xf32> to vector<1x256xf32>
    %1519 = vector.broadcast %1517 : f32 to vector<1x256xf32>
    %1520 = arith.mulf %1519, %1518 : vector<1x256xf32>
    %1521 = arith.addf %1512, %1520 : vector<1x256xf32>
    %c63_215 = arith.constant 63 : index
    %1522 = memref.load %arg8[%c63_215] : memref<98xf32, #tpu.memory_space<smem>>
    %1523 = vector.extract_strided_slice %1516 {offsets = [1, 0], sizes = [1, 256], strides = [1, 1]} : vector<2x256xf32> to vector<1x256xf32>
    %1524 = vector.broadcast %1522 : f32 to vector<1x256xf32>
    %1525 = arith.mulf %1524, %1523 : vector<1x256xf32>
    %1526 = arith.addf %1521, %1525 : vector<1x256xf32>
    %c239_i32_216 = arith.constant 239 : i32
    %1527 = tpu.dynamic_rotate %1081 by %c239_i32_216 dim 1 : vector<2x256xf32>, i32 -> vector<2x256xf32>
    %1528 = vector.extract_strided_slice %7 {offsets = [32, 0], sizes = [1, 256], strides = [1, 1]} : vector<49x256xf32> to vector<1x256xf32>
    %1529 = vector.broadcast %1528 : vector<1x256xf32> to vector<2x256xf32>
    %1530 = arith.mulf %1527, %1529 : vector<2x256xf32>
    %c64_217 = arith.constant 64 : index
    %1531 = memref.load %arg8[%c64_217] : memref<98xf32, #tpu.memory_space<smem>>
    %1532 = vector.extract_strided_slice %1530 {offsets = [0, 0], sizes = [1, 256], strides = [1, 1]} : vector<2x256xf32> to vector<1x256xf32>
    %1533 = vector.broadcast %1531 : f32 to vector<1x256xf32>
    %1534 = arith.mulf %1533, %1532 : vector<1x256xf32>
    %1535 = arith.addf %1526, %1534 : vector<1x256xf32>
    %c65_218 = arith.constant 65 : index
    %1536 = memref.load %arg8[%c65_218] : memref<98xf32, #tpu.memory_space<smem>>
    %1537 = vector.extract_strided_slice %1530 {offsets = [1, 0], sizes = [1, 256], strides = [1, 1]} : vector<2x256xf32> to vector<1x256xf32>
    %1538 = vector.broadcast %1536 : f32 to vector<1x256xf32>
    %1539 = arith.mulf %1538, %1537 : vector<1x256xf32>
    %1540 = arith.addf %1535, %1539 : vector<1x256xf32>
    %c238_i32_219 = arith.constant 238 : i32
    %1541 = tpu.dynamic_rotate %1081 by %c238_i32_219 dim 1 : vector<2x256xf32>, i32 -> vector<2x256xf32>
    %1542 = vector.extract_strided_slice %7 {offsets = [33, 0], sizes = [1, 256], strides = [1, 1]} : vector<49x256xf32> to vector<1x256xf32>
    %1543 = vector.broadcast %1542 : vector<1x256xf32> to vector<2x256xf32>
    %1544 = arith.mulf %1541, %1543 : vector<2x256xf32>
    %c66_220 = arith.constant 66 : index
    %1545 = memref.load %arg8[%c66_220] : memref<98xf32, #tpu.memory_space<smem>>
    %1546 = vector.extract_strided_slice %1544 {offsets = [0, 0], sizes = [1, 256], strides = [1, 1]} : vector<2x256xf32> to vector<1x256xf32>
    %1547 = vector.broadcast %1545 : f32 to vector<1x256xf32>
    %1548 = arith.mulf %1547, %1546 : vector<1x256xf32>
    %1549 = arith.addf %1540, %1548 : vector<1x256xf32>
    %c67_221 = arith.constant 67 : index
    %1550 = memref.load %arg8[%c67_221] : memref<98xf32, #tpu.memory_space<smem>>
    %1551 = vector.extract_strided_slice %1544 {offsets = [1, 0], sizes = [1, 256], strides = [1, 1]} : vector<2x256xf32> to vector<1x256xf32>
    %1552 = vector.broadcast %1550 : f32 to vector<1x256xf32>
    %1553 = arith.mulf %1552, %1551 : vector<1x256xf32>
    %1554 = arith.addf %1549, %1553 : vector<1x256xf32>
    %c237_i32_222 = arith.constant 237 : i32
    %1555 = tpu.dynamic_rotate %1081 by %c237_i32_222 dim 1 : vector<2x256xf32>, i32 -> vector<2x256xf32>
    %1556 = vector.extract_strided_slice %7 {offsets = [34, 0], sizes = [1, 256], strides = [1, 1]} : vector<49x256xf32> to vector<1x256xf32>
    %1557 = vector.broadcast %1556 : vector<1x256xf32> to vector<2x256xf32>
    %1558 = arith.mulf %1555, %1557 : vector<2x256xf32>
    %c68_223 = arith.constant 68 : index
    %1559 = memref.load %arg8[%c68_223] : memref<98xf32, #tpu.memory_space<smem>>
    %1560 = vector.extract_strided_slice %1558 {offsets = [0, 0], sizes = [1, 256], strides = [1, 1]} : vector<2x256xf32> to vector<1x256xf32>
    %1561 = vector.broadcast %1559 : f32 to vector<1x256xf32>
    %1562 = arith.mulf %1561, %1560 : vector<1x256xf32>
    %1563 = arith.addf %1554, %1562 : vector<1x256xf32>
    %c69_224 = arith.constant 69 : index
    %1564 = memref.load %arg8[%c69_224] : memref<98xf32, #tpu.memory_space<smem>>
    %1565 = vector.extract_strided_slice %1558 {offsets = [1, 0], sizes = [1, 256], strides = [1, 1]} : vector<2x256xf32> to vector<1x256xf32>
    %1566 = vector.broadcast %1564 : f32 to vector<1x256xf32>
    %1567 = arith.mulf %1566, %1565 : vector<1x256xf32>
    %1568 = arith.addf %1563, %1567 : vector<1x256xf32>
    %c227_i32_225 = arith.constant 227 : i32
    %1569 = tpu.dynamic_rotate %1081 by %c227_i32_225 dim 1 : vector<2x256xf32>, i32 -> vector<2x256xf32>
    %1570 = vector.extract_strided_slice %7 {offsets = [35, 0], sizes = [1, 256], strides = [1, 1]} : vector<49x256xf32> to vector<1x256xf32>
    %1571 = vector.broadcast %1570 : vector<1x256xf32> to vector<2x256xf32>
    %1572 = arith.mulf %1569, %1571 : vector<2x256xf32>
    %c70_226 = arith.constant 70 : index
    %1573 = memref.load %arg8[%c70_226] : memref<98xf32, #tpu.memory_space<smem>>
    %1574 = vector.extract_strided_slice %1572 {offsets = [0, 0], sizes = [1, 256], strides = [1, 1]} : vector<2x256xf32> to vector<1x256xf32>
    %1575 = vector.broadcast %1573 : f32 to vector<1x256xf32>
    %1576 = arith.mulf %1575, %1574 : vector<1x256xf32>
    %1577 = arith.addf %1568, %1576 : vector<1x256xf32>
    %c71_227 = arith.constant 71 : index
    %1578 = memref.load %arg8[%c71_227] : memref<98xf32, #tpu.memory_space<smem>>
    %1579 = vector.extract_strided_slice %1572 {offsets = [1, 0], sizes = [1, 256], strides = [1, 1]} : vector<2x256xf32> to vector<1x256xf32>
    %1580 = vector.broadcast %1578 : f32 to vector<1x256xf32>
    %1581 = arith.mulf %1580, %1579 : vector<1x256xf32>
    %1582 = arith.addf %1577, %1581 : vector<1x256xf32>
    %c226_i32_228 = arith.constant 226 : i32
    %1583 = tpu.dynamic_rotate %1081 by %c226_i32_228 dim 1 : vector<2x256xf32>, i32 -> vector<2x256xf32>
    %1584 = vector.extract_strided_slice %7 {offsets = [36, 0], sizes = [1, 256], strides = [1, 1]} : vector<49x256xf32> to vector<1x256xf32>
    %1585 = vector.broadcast %1584 : vector<1x256xf32> to vector<2x256xf32>
    %1586 = arith.mulf %1583, %1585 : vector<2x256xf32>
    %c72_229 = arith.constant 72 : index
    %1587 = memref.load %arg8[%c72_229] : memref<98xf32, #tpu.memory_space<smem>>
    %1588 = vector.extract_strided_slice %1586 {offsets = [0, 0], sizes = [1, 256], strides = [1, 1]} : vector<2x256xf32> to vector<1x256xf32>
    %1589 = vector.broadcast %1587 : f32 to vector<1x256xf32>
    %1590 = arith.mulf %1589, %1588 : vector<1x256xf32>
    %1591 = arith.addf %1582, %1590 : vector<1x256xf32>
    %c73_230 = arith.constant 73 : index
    %1592 = memref.load %arg8[%c73_230] : memref<98xf32, #tpu.memory_space<smem>>
    %1593 = vector.extract_strided_slice %1586 {offsets = [1, 0], sizes = [1, 256], strides = [1, 1]} : vector<2x256xf32> to vector<1x256xf32>
    %1594 = vector.broadcast %1592 : f32 to vector<1x256xf32>
    %1595 = arith.mulf %1594, %1593 : vector<1x256xf32>
    %1596 = arith.addf %1591, %1595 : vector<1x256xf32>
    %c225_i32_231 = arith.constant 225 : i32
    %1597 = tpu.dynamic_rotate %1081 by %c225_i32_231 dim 1 : vector<2x256xf32>, i32 -> vector<2x256xf32>
    %1598 = vector.extract_strided_slice %7 {offsets = [37, 0], sizes = [1, 256], strides = [1, 1]} : vector<49x256xf32> to vector<1x256xf32>
    %1599 = vector.broadcast %1598 : vector<1x256xf32> to vector<2x256xf32>
    %1600 = arith.mulf %1597, %1599 : vector<2x256xf32>
    %c74_232 = arith.constant 74 : index
    %1601 = memref.load %arg8[%c74_232] : memref<98xf32, #tpu.memory_space<smem>>
    %1602 = vector.extract_strided_slice %1600 {offsets = [0, 0], sizes = [1, 256], strides = [1, 1]} : vector<2x256xf32> to vector<1x256xf32>
    %1603 = vector.broadcast %1601 : f32 to vector<1x256xf32>
    %1604 = arith.mulf %1603, %1602 : vector<1x256xf32>
    %1605 = arith.addf %1596, %1604 : vector<1x256xf32>
    %c75_233 = arith.constant 75 : index
    %1606 = memref.load %arg8[%c75_233] : memref<98xf32, #tpu.memory_space<smem>>
    %1607 = vector.extract_strided_slice %1600 {offsets = [1, 0], sizes = [1, 256], strides = [1, 1]} : vector<2x256xf32> to vector<1x256xf32>
    %1608 = vector.broadcast %1606 : f32 to vector<1x256xf32>
    %1609 = arith.mulf %1608, %1607 : vector<1x256xf32>
    %1610 = arith.addf %1605, %1609 : vector<1x256xf32>
    %c224_i32_234 = arith.constant 224 : i32
    %1611 = tpu.dynamic_rotate %1081 by %c224_i32_234 dim 1 : vector<2x256xf32>, i32 -> vector<2x256xf32>
    %1612 = vector.extract_strided_slice %7 {offsets = [38, 0], sizes = [1, 256], strides = [1, 1]} : vector<49x256xf32> to vector<1x256xf32>
    %1613 = vector.broadcast %1612 : vector<1x256xf32> to vector<2x256xf32>
    %1614 = arith.mulf %1611, %1613 : vector<2x256xf32>
    %c76_235 = arith.constant 76 : index
    %1615 = memref.load %arg8[%c76_235] : memref<98xf32, #tpu.memory_space<smem>>
    %1616 = vector.extract_strided_slice %1614 {offsets = [0, 0], sizes = [1, 256], strides = [1, 1]} : vector<2x256xf32> to vector<1x256xf32>
    %1617 = vector.broadcast %1615 : f32 to vector<1x256xf32>
    %1618 = arith.mulf %1617, %1616 : vector<1x256xf32>
    %1619 = arith.addf %1610, %1618 : vector<1x256xf32>
    %c77_236 = arith.constant 77 : index
    %1620 = memref.load %arg8[%c77_236] : memref<98xf32, #tpu.memory_space<smem>>
    %1621 = vector.extract_strided_slice %1614 {offsets = [1, 0], sizes = [1, 256], strides = [1, 1]} : vector<2x256xf32> to vector<1x256xf32>
    %1622 = vector.broadcast %1620 : f32 to vector<1x256xf32>
    %1623 = arith.mulf %1622, %1621 : vector<1x256xf32>
    %1624 = arith.addf %1619, %1623 : vector<1x256xf32>
    %c223_i32_237 = arith.constant 223 : i32
    %1625 = tpu.dynamic_rotate %1081 by %c223_i32_237 dim 1 : vector<2x256xf32>, i32 -> vector<2x256xf32>
    %1626 = vector.extract_strided_slice %7 {offsets = [39, 0], sizes = [1, 256], strides = [1, 1]} : vector<49x256xf32> to vector<1x256xf32>
    %1627 = vector.broadcast %1626 : vector<1x256xf32> to vector<2x256xf32>
    %1628 = arith.mulf %1625, %1627 : vector<2x256xf32>
    %c78_238 = arith.constant 78 : index
    %1629 = memref.load %arg8[%c78_238] : memref<98xf32, #tpu.memory_space<smem>>
    %1630 = vector.extract_strided_slice %1628 {offsets = [0, 0], sizes = [1, 256], strides = [1, 1]} : vector<2x256xf32> to vector<1x256xf32>
    %1631 = vector.broadcast %1629 : f32 to vector<1x256xf32>
    %1632 = arith.mulf %1631, %1630 : vector<1x256xf32>
    %1633 = arith.addf %1624, %1632 : vector<1x256xf32>
    %c79_239 = arith.constant 79 : index
    %1634 = memref.load %arg8[%c79_239] : memref<98xf32, #tpu.memory_space<smem>>
    %1635 = vector.extract_strided_slice %1628 {offsets = [1, 0], sizes = [1, 256], strides = [1, 1]} : vector<2x256xf32> to vector<1x256xf32>
    %1636 = vector.broadcast %1634 : f32 to vector<1x256xf32>
    %1637 = arith.mulf %1636, %1635 : vector<1x256xf32>
    %1638 = arith.addf %1633, %1637 : vector<1x256xf32>
    %c222_i32_240 = arith.constant 222 : i32
    %1639 = tpu.dynamic_rotate %1081 by %c222_i32_240 dim 1 : vector<2x256xf32>, i32 -> vector<2x256xf32>
    %1640 = vector.extract_strided_slice %7 {offsets = [40, 0], sizes = [1, 256], strides = [1, 1]} : vector<49x256xf32> to vector<1x256xf32>
    %1641 = vector.broadcast %1640 : vector<1x256xf32> to vector<2x256xf32>
    %1642 = arith.mulf %1639, %1641 : vector<2x256xf32>
    %c80_241 = arith.constant 80 : index
    %1643 = memref.load %arg8[%c80_241] : memref<98xf32, #tpu.memory_space<smem>>
    %1644 = vector.extract_strided_slice %1642 {offsets = [0, 0], sizes = [1, 256], strides = [1, 1]} : vector<2x256xf32> to vector<1x256xf32>
    %1645 = vector.broadcast %1643 : f32 to vector<1x256xf32>
    %1646 = arith.mulf %1645, %1644 : vector<1x256xf32>
    %1647 = arith.addf %1638, %1646 : vector<1x256xf32>
    %c81_242 = arith.constant 81 : index
    %1648 = memref.load %arg8[%c81_242] : memref<98xf32, #tpu.memory_space<smem>>
    %1649 = vector.extract_strided_slice %1642 {offsets = [1, 0], sizes = [1, 256], strides = [1, 1]} : vector<2x256xf32> to vector<1x256xf32>
    %1650 = vector.broadcast %1648 : f32 to vector<1x256xf32>
    %1651 = arith.mulf %1650, %1649 : vector<1x256xf32>
    %1652 = arith.addf %1647, %1651 : vector<1x256xf32>
    %c221_i32_243 = arith.constant 221 : i32
    %1653 = tpu.dynamic_rotate %1081 by %c221_i32_243 dim 1 : vector<2x256xf32>, i32 -> vector<2x256xf32>
    %1654 = vector.extract_strided_slice %7 {offsets = [41, 0], sizes = [1, 256], strides = [1, 1]} : vector<49x256xf32> to vector<1x256xf32>
    %1655 = vector.broadcast %1654 : vector<1x256xf32> to vector<2x256xf32>
    %1656 = arith.mulf %1653, %1655 : vector<2x256xf32>
    %c82_244 = arith.constant 82 : index
    %1657 = memref.load %arg8[%c82_244] : memref<98xf32, #tpu.memory_space<smem>>
    %1658 = vector.extract_strided_slice %1656 {offsets = [0, 0], sizes = [1, 256], strides = [1, 1]} : vector<2x256xf32> to vector<1x256xf32>
    %1659 = vector.broadcast %1657 : f32 to vector<1x256xf32>
    %1660 = arith.mulf %1659, %1658 : vector<1x256xf32>
    %1661 = arith.addf %1652, %1660 : vector<1x256xf32>
    %c83_245 = arith.constant 83 : index
    %1662 = memref.load %arg8[%c83_245] : memref<98xf32, #tpu.memory_space<smem>>
    %1663 = vector.extract_strided_slice %1656 {offsets = [1, 0], sizes = [1, 256], strides = [1, 1]} : vector<2x256xf32> to vector<1x256xf32>
    %1664 = vector.broadcast %1662 : f32 to vector<1x256xf32>
    %1665 = arith.mulf %1664, %1663 : vector<1x256xf32>
    %1666 = arith.addf %1661, %1665 : vector<1x256xf32>
    %c211_i32_246 = arith.constant 211 : i32
    %1667 = tpu.dynamic_rotate %1081 by %c211_i32_246 dim 1 : vector<2x256xf32>, i32 -> vector<2x256xf32>
    %1668 = vector.extract_strided_slice %7 {offsets = [42, 0], sizes = [1, 256], strides = [1, 1]} : vector<49x256xf32> to vector<1x256xf32>
    %1669 = vector.broadcast %1668 : vector<1x256xf32> to vector<2x256xf32>
    %1670 = arith.mulf %1667, %1669 : vector<2x256xf32>
    %c84_247 = arith.constant 84 : index
    %1671 = memref.load %arg8[%c84_247] : memref<98xf32, #tpu.memory_space<smem>>
    %1672 = vector.extract_strided_slice %1670 {offsets = [0, 0], sizes = [1, 256], strides = [1, 1]} : vector<2x256xf32> to vector<1x256xf32>
    %1673 = vector.broadcast %1671 : f32 to vector<1x256xf32>
    %1674 = arith.mulf %1673, %1672 : vector<1x256xf32>
    %1675 = arith.addf %1666, %1674 : vector<1x256xf32>
    %c85_248 = arith.constant 85 : index
    %1676 = memref.load %arg8[%c85_248] : memref<98xf32, #tpu.memory_space<smem>>
    %1677 = vector.extract_strided_slice %1670 {offsets = [1, 0], sizes = [1, 256], strides = [1, 1]} : vector<2x256xf32> to vector<1x256xf32>
    %1678 = vector.broadcast %1676 : f32 to vector<1x256xf32>
    %1679 = arith.mulf %1678, %1677 : vector<1x256xf32>
    %1680 = arith.addf %1675, %1679 : vector<1x256xf32>
    %c210_i32_249 = arith.constant 210 : i32
    %1681 = tpu.dynamic_rotate %1081 by %c210_i32_249 dim 1 : vector<2x256xf32>, i32 -> vector<2x256xf32>
    %1682 = vector.extract_strided_slice %7 {offsets = [43, 0], sizes = [1, 256], strides = [1, 1]} : vector<49x256xf32> to vector<1x256xf32>
    %1683 = vector.broadcast %1682 : vector<1x256xf32> to vector<2x256xf32>
    %1684 = arith.mulf %1681, %1683 : vector<2x256xf32>
    %c86_250 = arith.constant 86 : index
    %1685 = memref.load %arg8[%c86_250] : memref<98xf32, #tpu.memory_space<smem>>
    %1686 = vector.extract_strided_slice %1684 {offsets = [0, 0], sizes = [1, 256], strides = [1, 1]} : vector<2x256xf32> to vector<1x256xf32>
    %1687 = vector.broadcast %1685 : f32 to vector<1x256xf32>
    %1688 = arith.mulf %1687, %1686 : vector<1x256xf32>
    %1689 = arith.addf %1680, %1688 : vector<1x256xf32>
    %c87_251 = arith.constant 87 : index
    %1690 = memref.load %arg8[%c87_251] : memref<98xf32, #tpu.memory_space<smem>>
    %1691 = vector.extract_strided_slice %1684 {offsets = [1, 0], sizes = [1, 256], strides = [1, 1]} : vector<2x256xf32> to vector<1x256xf32>
    %1692 = vector.broadcast %1690 : f32 to vector<1x256xf32>
    %1693 = arith.mulf %1692, %1691 : vector<1x256xf32>
    %1694 = arith.addf %1689, %1693 : vector<1x256xf32>
    %c209_i32_252 = arith.constant 209 : i32
    %1695 = tpu.dynamic_rotate %1081 by %c209_i32_252 dim 1 : vector<2x256xf32>, i32 -> vector<2x256xf32>
    %1696 = vector.extract_strided_slice %7 {offsets = [44, 0], sizes = [1, 256], strides = [1, 1]} : vector<49x256xf32> to vector<1x256xf32>
    %1697 = vector.broadcast %1696 : vector<1x256xf32> to vector<2x256xf32>
    %1698 = arith.mulf %1695, %1697 : vector<2x256xf32>
    %c88_253 = arith.constant 88 : index
    %1699 = memref.load %arg8[%c88_253] : memref<98xf32, #tpu.memory_space<smem>>
    %1700 = vector.extract_strided_slice %1698 {offsets = [0, 0], sizes = [1, 256], strides = [1, 1]} : vector<2x256xf32> to vector<1x256xf32>
    %1701 = vector.broadcast %1699 : f32 to vector<1x256xf32>
    %1702 = arith.mulf %1701, %1700 : vector<1x256xf32>
    %1703 = arith.addf %1694, %1702 : vector<1x256xf32>
    %c89_254 = arith.constant 89 : index
    %1704 = memref.load %arg8[%c89_254] : memref<98xf32, #tpu.memory_space<smem>>
    %1705 = vector.extract_strided_slice %1698 {offsets = [1, 0], sizes = [1, 256], strides = [1, 1]} : vector<2x256xf32> to vector<1x256xf32>
    %1706 = vector.broadcast %1704 : f32 to vector<1x256xf32>
    %1707 = arith.mulf %1706, %1705 : vector<1x256xf32>
    %1708 = arith.addf %1703, %1707 : vector<1x256xf32>
    %c208_i32_255 = arith.constant 208 : i32
    %1709 = tpu.dynamic_rotate %1081 by %c208_i32_255 dim 1 : vector<2x256xf32>, i32 -> vector<2x256xf32>
    %1710 = vector.extract_strided_slice %7 {offsets = [45, 0], sizes = [1, 256], strides = [1, 1]} : vector<49x256xf32> to vector<1x256xf32>
    %1711 = vector.broadcast %1710 : vector<1x256xf32> to vector<2x256xf32>
    %1712 = arith.mulf %1709, %1711 : vector<2x256xf32>
    %c90_256 = arith.constant 90 : index
    %1713 = memref.load %arg8[%c90_256] : memref<98xf32, #tpu.memory_space<smem>>
    %1714 = vector.extract_strided_slice %1712 {offsets = [0, 0], sizes = [1, 256], strides = [1, 1]} : vector<2x256xf32> to vector<1x256xf32>
    %1715 = vector.broadcast %1713 : f32 to vector<1x256xf32>
    %1716 = arith.mulf %1715, %1714 : vector<1x256xf32>
    %1717 = arith.addf %1708, %1716 : vector<1x256xf32>
    %c91_257 = arith.constant 91 : index
    %1718 = memref.load %arg8[%c91_257] : memref<98xf32, #tpu.memory_space<smem>>
    %1719 = vector.extract_strided_slice %1712 {offsets = [1, 0], sizes = [1, 256], strides = [1, 1]} : vector<2x256xf32> to vector<1x256xf32>
    %1720 = vector.broadcast %1718 : f32 to vector<1x256xf32>
    %1721 = arith.mulf %1720, %1719 : vector<1x256xf32>
    %1722 = arith.addf %1717, %1721 : vector<1x256xf32>
    %c207_i32_258 = arith.constant 207 : i32
    %1723 = tpu.dynamic_rotate %1081 by %c207_i32_258 dim 1 : vector<2x256xf32>, i32 -> vector<2x256xf32>
    %1724 = vector.extract_strided_slice %7 {offsets = [46, 0], sizes = [1, 256], strides = [1, 1]} : vector<49x256xf32> to vector<1x256xf32>
    %1725 = vector.broadcast %1724 : vector<1x256xf32> to vector<2x256xf32>
    %1726 = arith.mulf %1723, %1725 : vector<2x256xf32>
    %c92_259 = arith.constant 92 : index
    %1727 = memref.load %arg8[%c92_259] : memref<98xf32, #tpu.memory_space<smem>>
    %1728 = vector.extract_strided_slice %1726 {offsets = [0, 0], sizes = [1, 256], strides = [1, 1]} : vector<2x256xf32> to vector<1x256xf32>
    %1729 = vector.broadcast %1727 : f32 to vector<1x256xf32>
    %1730 = arith.mulf %1729, %1728 : vector<1x256xf32>
    %1731 = arith.addf %1722, %1730 : vector<1x256xf32>
    %c93_260 = arith.constant 93 : index
    %1732 = memref.load %arg8[%c93_260] : memref<98xf32, #tpu.memory_space<smem>>
    %1733 = vector.extract_strided_slice %1726 {offsets = [1, 0], sizes = [1, 256], strides = [1, 1]} : vector<2x256xf32> to vector<1x256xf32>
    %1734 = vector.broadcast %1732 : f32 to vector<1x256xf32>
    %1735 = arith.mulf %1734, %1733 : vector<1x256xf32>
    %1736 = arith.addf %1731, %1735 : vector<1x256xf32>
    %c206_i32_261 = arith.constant 206 : i32
    %1737 = tpu.dynamic_rotate %1081 by %c206_i32_261 dim 1 : vector<2x256xf32>, i32 -> vector<2x256xf32>
    %1738 = vector.extract_strided_slice %7 {offsets = [47, 0], sizes = [1, 256], strides = [1, 1]} : vector<49x256xf32> to vector<1x256xf32>
    %1739 = vector.broadcast %1738 : vector<1x256xf32> to vector<2x256xf32>
    %1740 = arith.mulf %1737, %1739 : vector<2x256xf32>
    %c94_262 = arith.constant 94 : index
    %1741 = memref.load %arg8[%c94_262] : memref<98xf32, #tpu.memory_space<smem>>
    %1742 = vector.extract_strided_slice %1740 {offsets = [0, 0], sizes = [1, 256], strides = [1, 1]} : vector<2x256xf32> to vector<1x256xf32>
    %1743 = vector.broadcast %1741 : f32 to vector<1x256xf32>
    %1744 = arith.mulf %1743, %1742 : vector<1x256xf32>
    %1745 = arith.addf %1736, %1744 : vector<1x256xf32>
    %c95_263 = arith.constant 95 : index
    %1746 = memref.load %arg8[%c95_263] : memref<98xf32, #tpu.memory_space<smem>>
    %1747 = vector.extract_strided_slice %1740 {offsets = [1, 0], sizes = [1, 256], strides = [1, 1]} : vector<2x256xf32> to vector<1x256xf32>
    %1748 = vector.broadcast %1746 : f32 to vector<1x256xf32>
    %1749 = arith.mulf %1748, %1747 : vector<1x256xf32>
    %1750 = arith.addf %1745, %1749 : vector<1x256xf32>
    %c205_i32_264 = arith.constant 205 : i32
    %1751 = tpu.dynamic_rotate %1081 by %c205_i32_264 dim 1 : vector<2x256xf32>, i32 -> vector<2x256xf32>
    %1752 = vector.extract_strided_slice %7 {offsets = [48, 0], sizes = [1, 256], strides = [1, 1]} : vector<49x256xf32> to vector<1x256xf32>
    %1753 = vector.broadcast %1752 : vector<1x256xf32> to vector<2x256xf32>
    %1754 = arith.mulf %1751, %1753 : vector<2x256xf32>
    %c96_265 = arith.constant 96 : index
    %1755 = memref.load %arg8[%c96_265] : memref<98xf32, #tpu.memory_space<smem>>
    %1756 = vector.extract_strided_slice %1754 {offsets = [0, 0], sizes = [1, 256], strides = [1, 1]} : vector<2x256xf32> to vector<1x256xf32>
    %1757 = vector.broadcast %1755 : f32 to vector<1x256xf32>
    %1758 = arith.mulf %1757, %1756 : vector<1x256xf32>
    %1759 = arith.addf %1750, %1758 : vector<1x256xf32>
    %c97_266 = arith.constant 97 : index
    %1760 = memref.load %arg8[%c97_266] : memref<98xf32, #tpu.memory_space<smem>>
    %1761 = vector.extract_strided_slice %1754 {offsets = [1, 0], sizes = [1, 256], strides = [1, 1]} : vector<2x256xf32> to vector<1x256xf32>
    %1762 = vector.broadcast %1760 : f32 to vector<1x256xf32>
    %1763 = arith.mulf %1762, %1761 : vector<1x256xf32>
    %1764 = arith.addf %1759, %1763 : vector<1x256xf32>
    %1765 = arith.negf %1764 : vector<1x256xf32>
    %1766 = math.exp %1765 : vector<1x256xf32>
    %cst_267 = arith.constant 1.000000e+00 : f32
    %1767 = vector.broadcast %cst_267 : f32 to vector<1x256xf32>
    %1768 = arith.addf %1767, %1766 : vector<1x256xf32>
    %1769 = arith.divf %1767, %1768 : vector<1x256xf32>
    %1770 = vector.broadcast %1769 : vector<1x256xf32> to vector<8x256xf32>
    %1771 = arith.mulf %1074, %1770 : vector<8x256xf32>
    %1772 = arith.mulf %1771, %1053 : vector<8x256xf32>
    %c1_268 = arith.constant 1 : index
    %c0_269 = arith.constant 0 : index
    %c0_270 = arith.constant 0 : index
    %1773 = vector.load %arg11[%c1_268, %c0_269, %c0_270] : memref<2x8x256xf32, #tpu.memory_space<vmem>>, vector<1x8x256xf32>
    %1774 = vector.shape_cast %1773 : vector<1x8x256xf32> to vector<8x256xf32>
    %1775 = vector.shape_cast %1772 : vector<8x256xf32> to vector<1x8x256xf32>
    tpu.vector_store %arg11[%c1_268, %c0_269, %c0_270], %1775 {strides = array<i32>} : memref<2x8x256xf32, #tpu.memory_space<vmem>>, vector<1x8x256xf32>,
    return
  }
  func.func @transform_0(%arg0: i32) -> (i32, i32, i32) {
    %c0_i32 = arith.constant 0 : i32
    %c0_i32_0 = arith.constant 0 : i32
    %c0_i32_1 = arith.constant 0 : i32
    return %arg0, %c0_i32, %c0_i32_0 : i32, i32, i32
  }
  func.func @transform_1(%arg0: i32) -> (i32, i32, i32) {
    %c0_i32 = arith.constant 0 : i32
    %c0_i32_0 = arith.constant 0 : i32
    %c0_i32_1 = arith.constant 0 : i32
    %c0_i32_2 = arith.constant 0 : i32
    return %c0_i32, %c0_i32_0, %c0_i32_1 : i32, i32, i32
  }
  func.func @transform_2(%arg0: i32) -> (i32, i32) {
    %c0_i32 = arith.constant 0 : i32
    %c0_i32_0 = arith.constant 0 : i32
    %c0_i32_1 = arith.constant 0 : i32
    return %c0_i32, %c0_i32_0 : i32, i32
  }
  func.func @transform_3(%arg0: i32) -> (i32, i32, i32) {
    %c0_i32 = arith.constant 0 : i32
    %c0_i32_0 = arith.constant 0 : i32
    %c0_i32_1 = arith.constant 0 : i32
    %c0_i32_2 = arith.constant 0 : i32
    return %c0_i32, %c0_i32_0, %c0_i32_1 : i32, i32, i32
  }
  func.func @transform_4(%arg0: i32) -> (i32, i32) {
    %c0_i32 = arith.constant 0 : i32
    %c0_i32_0 = arith.constant 0 : i32
    %c0_i32_1 = arith.constant 0 : i32
    return %c0_i32, %c0_i32_0 : i32, i32
  }
  func.func @transform_5(%arg0: i32) -> (i32, i32) {
    %c0_i32 = arith.constant 0 : i32
    %c0_i32_0 = arith.constant 0 : i32
    %c0_i32_1 = arith.constant 0 : i32
    return %c0_i32, %c0_i32_0 : i32, i32
  }
  func.func @transform_6(%arg0: i32) -> (i32, i32) {
    %c0_i32 = arith.constant 0 : i32
    %c0_i32_0 = arith.constant 0 : i32
    %c0_i32_1 = arith.constant 0 : i32
    return %c0_i32, %c0_i32_0 : i32, i32
  }
  func.func @transform_7(%arg0: i32) -> i32 {
    %c0_i32 = arith.constant 0 : i32
    %c0_i32_0 = arith.constant 0 : i32
    return %c0_i32 : i32
  }
  func.func @transform_8(%arg0: i32) -> (i32, i32) {
    %c0_i32 = arith.constant 0 : i32
    %c0_i32_0 = arith.constant 0 : i32
    %c0_i32_1 = arith.constant 0 : i32
    return %c0_i32, %c0_i32_0 : i32, i32
  }
  func.func @transform_9(%arg0: i32) -> (i32, i32) {
    %c0_i32 = arith.constant 0 : i32
    %c0_i32_0 = arith.constant 0 : i32
    %c0_i32_1 = arith.constant 0 : i32
    return %c0_i32, %c0_i32_0 : i32, i32
  }
  func.func @transform_10(%arg0: i32) -> (i32, i32, i32) {
    %c0_i32 = arith.constant 0 : i32
    %c0_i32_0 = arith.constant 0 : i32
    %c0_i32_1 = arith.constant 0 : i32
    return %arg0, %c0_i32, %c0_i32_0 : i32, i32, i32
  }
}

</mosaic_0001>

<llo_original>
// kernel: tpu_custom_call.1
$region0: #{tpu_custom_call.1}
  #allocation0 [shape = 'u32[]', space=smem, size = 0x4, offset = 0x4, fixed_abs, tag = 'smem constant byte address 0x4 - core index']
  #allocation1 [shape = 'u32[144,128]{1,0:T(1,128)}', space=vmem, size = 0x12000, scoped, tag = 'internal scratch']
  %s0 = inlined_call_operand.vmem [shape: f32[2,4,256], index: 0, kind: input, shape index: {}]
  %s1 = inlined_call_operand.vmem [shape: bf16[9,4,4], index: 1, kind: input, shape index: {}]
  %s2 = inlined_call_operand.vmem [shape: f32[4,1], index: 2, kind: input, shape index: {}]
  %s3 = inlined_call_operand.vmem [shape: bf16[9,8,4], index: 3, kind: input, shape index: {}]
  %s4 = inlined_call_operand.vmem [shape: f32[8,1], index: 4, kind: input, shape index: {}]
  %s5 = inlined_call_operand.vmem [shape: f32[1,8], index: 5, kind: input, shape index: {}]
  %s6 = inlined_call_operand.vmem [shape: f32[8,1], index: 6, kind: input, shape index: {}]
  %s7 = inlined_call_operand.vmem [shape: f32[98], index: 7, kind: input, shape index: {}]
  %s8 = inlined_call_operand.hbm [shape: f32[9,256], index: 8, kind: input, shape index: {}]
  %s9 = inlined_call_operand.vmem [shape: f32[49,256], index: 9, kind: input, shape index: {}]
  %s10 = inlined_call_operand.hbm [shape: f32[2,8,256], index: 10, kind: output, shape index: {}]
  %s11 = sld [smem:[#allocation0]]
  $region58: #{tpu_custom_call.1} parent=0
    _
  %s13 = ssub.s32 1, %s11
  %s14 = scalar_select 0, %s13, %s11
  $region1: #{tpu_custom_call.1} parent=0
    #allocation2 [shape = 'u8[512]{0}', space=smem, size = 0x200, scoped, tag = 'input window, operand 7, single buffered']
    #allocation3 [shape = 's32[1]{0}', space=sflag, size = 0x4, scoped, tag = 'scoped memory for tpu_custom_call.1']
    #allocation4 [shape = 's32[1]{0}', space=sflag, size = 0x4, scoped, tag = 'scoped memory for tpu_custom_call.1']
    #allocation5 [shape = 's32[1]{0}', space=sflag, size = 0x4, scoped, tag = 'scoped memory for tpu_custom_call.1']
    #allocation6 [shape = 'u8[16384]{0}', space=vmem, size = 0x4000, scoped, tag = 'input window, operand 8, single buffered']
    #allocation7 [shape = 'u8[16384]{0}', space=vmem, size = 0x4000, scoped, tag = 'output window, operand 0, single buffered']
    %15 = vsyncpa [#allocation5], 0
    %16 = vsyncpa [#allocation3], 0
    %17 = vsyncpa [#allocation4], 0
    // Predicated region
    $region2: #{tpu_custom_call.1} parent=1 // pred_check
      _
    $region3: #{tpu_custom_call.1} parent=1 // pred_check_branch
      %19 = sbr.rel (0) target = $region5
    $region4: #{tpu_custom_call.1} parent=1 // pred_region
      _
    $region5: #{tpu_custom_call.1} parent=1 // pred_fallthru
      _
    // Predicated region
    $region6: #{tpu_custom_call.1} parent=1 // pred_check
      _
    $region7: #{tpu_custom_call.1} parent=1 // pred_check_branch
      %21 = sbr.rel (0) target = $region9
    $region8: #{tpu_custom_call.1} parent=1 // pred_region
      _
    $region9: #{tpu_custom_call.1} parent=1 // pred_fallthru
      _
    // Predicated region
    $region10: #{tpu_custom_call.1} parent=1 // pred_check
      _
    $region11: #{tpu_custom_call.1} parent=1 // pred_check_branch
      %23 = sbr.rel (0) target = $region13
    $region12: #{tpu_custom_call.1} parent=1 // pred_region
      _
    $region13: #{tpu_custom_call.1} parent=1 // pred_fallthru
      _
    // Predicated region
    $region14: #{tpu_custom_call.1} parent=1 // pred_check
      _
    $region15: #{tpu_custom_call.1} parent=1 // pred_check_branch
      %25 = sbr.rel (0) target = $region17
    $region16: #{tpu_custom_call.1} parent=1 // pred_region
      _
    $region17: #{tpu_custom_call.1} parent=1 // pred_fallthru
      _
    // Predicated region
    $region18: #{tpu_custom_call.1} parent=1 // pred_check
      _
    $region19: #{tpu_custom_call.1} parent=1 // pred_check_branch
      %27 = sbr.rel (0) target = $region21
    $region20: #{tpu_custom_call.1} parent=1 // pred_region
      _
    $region21: #{tpu_custom_call.1} parent=1 // pred_fallthru
      _
    // Predicated region
    $region22: #{tpu_custom_call.1} parent=1 // pred_check
      _
    $region23: #{tpu_custom_call.1} parent=1 // pred_check_branch
      %29 = sbr.rel (0) target = $region25
    $region24: #{tpu_custom_call.1} parent=1 // pred_region
      _
    $region25: #{tpu_custom_call.1} parent=1 // pred_fallthru
      _
    // Predicated region
    $region26: #{tpu_custom_call.1} parent=1 // pred_check
      _
    $region27: #{tpu_custom_call.1} parent=1 // pred_check_branch
      %31 = sbr.rel (0) target = $region29
    $region28: #{tpu_custom_call.1} parent=1 // pred_region
      _
    $region29: #{tpu_custom_call.1} parent=1 // pred_fallthru
      _
    // Predicated region
    $region30: #{tpu_custom_call.1} parent=1 // pred_check
      _
    $region31: #{tpu_custom_call.1} parent=1 // pred_check_branch
      %33 = sbr.rel (0) target = $region33
    $region32: #{tpu_custom_call.1} parent=1 // pred_region
      %s35 = ssub.s32 16, 16
      %36 = vsyncadd [#allocation5], %s35
      %s38 = sshll.u32 %s7, 4
      %s39 = int_to_ptr.vmem [resolvable:$true] %s38
      %41 = dma.vmem_to_smem %s39, 16, [#allocation2], [#allocation5]
    $region33: #{tpu_custom_call.1} parent=1 // pred_fallthru
      _
    // Predicated region
    $region34: #{tpu_custom_call.1} parent=1 // pred_check
      _
    $region35: #{tpu_custom_call.1} parent=1 // pred_check_branch
      %43 = sbr.rel (0) target = $region37
    $region36: #{tpu_custom_call.1} parent=1 // pred_region
      %s45 = ssub.s32 512, 512
      %46 = vsyncadd [#allocation3], %s45
      %s47 = sshll.u32 [#allocation6], 4
      %s48 = int_to_ptr.vmem [resolvable:$true] %s47
      %53 = dma.hbm_to_vmem [thread:$0]  %s8, 512, %s48, [#allocation3], 256, 256, 16
    $region37: #{tpu_custom_call.1} parent=1 // pred_fallthru
      _
    // Predicated region
    $region38: #{tpu_custom_call.1} parent=1 // pred_check
      _
    $region39: #{tpu_custom_call.1} parent=1 // pred_check_branch
      %55 = sbr.rel (0) target = $region41
    $region40: #{tpu_custom_call.1} parent=1 // pred_region
      _
    $region41: #{tpu_custom_call.1} parent=1 // pred_fallthru
      _
    // Predicated region
    $region42: #{tpu_custom_call.1} parent=1 // pred_check
      _
    $region43: #{tpu_custom_call.1} parent=1 // pred_check_branch
      %57 = sbr.rel (0) target = $region45
    $region44: #{tpu_custom_call.1} parent=1 // pred_region
      %58 = dma.done [#allocation5], 16
    $region45: #{tpu_custom_call.1} parent=1 // pred_fallthru
      _
    // Predicated region
    $region46: #{tpu_custom_call.1} parent=1 // pred_check
      _
    $region47: #{tpu_custom_call.1} parent=1 // pred_check_branch
      %60 = sbr.rel (0) target = $region49
    $region48: #{tpu_custom_call.1} parent=1 // pred_region
      %61 = dma.done [#allocation3], 512
    $region49: #{tpu_custom_call.1} parent=1 // pred_fallthru
      _
    %62 = sfence
    %v64 = vld [vmem:[%s1] sm:$0x3]
    %v65 = vld [vmem:[%s1 + $0x2] sm:$0x3]
    %v66 = vld [vmem:[%s1 + $0x4] sm:$0x3]
    %v67 = vld [vmem:[%s1 + $0x6] sm:$0x3]
    %v68 = vld [vmem:[%s1 + $0x8] sm:$0x3]
    %v69 = vld [vmem:[%s1 + $0xa] sm:$0x3]
    %v70 = vld [vmem:[%s1 + $0xc] sm:$0x3]
    %v71 = vld [vmem:[%s1 + $0xe] sm:$0x3]
    %v72 = vld [vmem:[%s1 + $0x10] sm:$0x3]
    %v73 = vld [vmem:[%s3] sm:$0xf]
    %v74 = vld [vmem:[%s3 + $0x4] sm:$0xf]
    %v75 = vld [vmem:[%s3 + $0x8] sm:$0xf]
    %v76 = vld [vmem:[%s3 + $0xc] sm:$0xf]
    %v77 = vld [vmem:[%s3 + $0x10] sm:$0xf]
    %v78 = vld [vmem:[%s3 + $0x14] sm:$0xf]
    %v79 = vld [vmem:[%s3 + $0x18] sm:$0xf]
    %v80 = vld [vmem:[%s3 + $0x1c] sm:$0xf]
    %v81 = vld [vmem:[%s3 + $0x20] sm:$0xf]
    %v82 = vld [vmem:[%s2] sm:$0xf]
    %v83 = vld [vmem:[%s4] sm:$0xff]
    %v84 = vld [vmem:[%s5] sm:$0x1]
    %v85 = vld [vmem:[%s6] sm:$0xff]
    %v86 = vld [vmem:[#allocation6] sm:$0xff]
    %v87 = vld [vmem:[#allocation6 + $0x8] sm:$0xff]
    %v88 = vld [vmem:[#allocation6 + $0x10] sm:$0x1]
    %v89 = vld [vmem:[#allocation6 + $0x18] sm:$0x1]
    %v90 = vld [vmem:[%s9] sm:$0xff]
    %v91 = vld [vmem:[%s9 + $0x8] sm:$0xff]
    %v92 = vld [vmem:[%s9 + $0x10] sm:$0xff]
    %v93 = vld [vmem:[%s9 + $0x18] sm:$0xff]
    %v94 = vld [vmem:[%s9 + $0x20] sm:$0xff]
    %v95 = vld [vmem:[%s9 + $0x28] sm:$0xff]
    %v96 = vld [vmem:[%s9 + $0x30] sm:$0xff]
    %v97 = vld [vmem:[%s9 + $0x38] sm:$0xff]
    %v98 = vld [vmem:[%s9 + $0x40] sm:$0xff]
    %v99 = vld [vmem:[%s9 + $0x48] sm:$0xff]
    %v100 = vld [vmem:[%s9 + $0x50] sm:$0xff]
    %v101 = vld [vmem:[%s9 + $0x58] sm:$0xff]
    %v102 = vld [vmem:[%s9 + $0x60] sm:$0x1]
    %v103 = vld [vmem:[%s9 + $0x68] sm:$0x1]
    %v104 = vld [vmem:[%s0] sm:$0xff]
    %v106 = vcombine.high %v104, %v104
    %108 = vrot.lane.b32.xlu0 %v104, 17
    %v109 = vpop.permute.xlu0 %108
    %110 = vrot.lane.b32.xlu0 %v106, 17
    %v111 = vpop.permute.xlu0 %110
    %v112 = vlaneseq
    %v113 = vand.u32 %v112, 127
    %vm114 = vcmp.lt.s32.totalorder %v113, 17
    %v115 = vsel %vm114, %v109, %v111
    %v116 = vsel %vm114, %v111, %v109
    %v117 = vlaneseq
    %v118 = vshrl.u32 %v117, 7
    %v119 = vsub.s32 0, %v118
    %v120 = vrot.slane %v86, %v119
    %v121 = vlaneseq
    %v122 = vshrl.u32 %v121, 7
    %v123 = vsub.s32 0, %v122
    %v124 = vrot.slane %v87, %v123
    %v125 = vmul.f32 %v116, %v120
    %v126 = vmul.f32 %v115, %v124
    %v127 = vpack.c.bf16 %v125, %v125
    %v128 = vpack.c.bf16 %v126, %v126
    %129 = vrot.lane.b32.xlu0 %v104, 16
    %v130 = vpop.permute.xlu0 %129
    %131 = vrot.lane.b32.xlu0 %v106, 16
    %v132 = vpop.permute.xlu0 %131
    %vm133 = vcmp.lt.s32.totalorder %v113, 16
    %v134 = vsel %vm133, %v130, %v132
    %v135 = vsel %vm133, %v132, %v130
    %v136 = vlaneseq
    %v137 = vshrl.u32 %v136, 7
    %v138 = vsub.s32 1, %v137
    %v139 = vrot.slane %v86, %v138
    %v140 = vlaneseq
    %v141 = vshrl.u32 %v140, 7
    %v142 = vsub.s32 1, %v141
    %v143 = vrot.slane %v87, %v142
    %v144 = vmul.f32 %v135, %v139
    %v145 = vmul.f32 %v134, %v143
    %v146 = vpack.c.bf16 %v144, %v144
    %v147 = vpack.c.bf16 %v145, %v145
    %vm148 = vcmask 31744
    %v150 = vsel %vm148, %v65, 0
    %vm152 = vcmask 1041408
    %v154 = vsel %vm152, %v146, 0
    %v157 = vsel %vm152, %v147, 0
    %159 = vmatprep.subr.bf16.mxu0 %v157
    %160 = vmatpush1.bf16.msra.mxu0 %v154
    %161 = vmatprep.subr.bf16.mxu0 0
    %162 = vmatpush1.bf16.msra.mxu0 0
    %163 = vmatprep.subr.bf16.mxu0 0
    %164 = vmatpush1.bf16.msra.mxu0 0
    %165 = vmatprep.subr.bf16.mxu0 0
    %166 = vmatpush1.bf16.msra.mxu0 0
    %167 = vmatprep.subr.bf16.mxu0 0
    %168 = vmatpush1.bf16.msra.mxu0 0
    %169 = vmatprep.subr.bf16.mxu0 0
    %170 = vmatpush1.bf16.msra.mxu0 0
    %171 = vmatprep.subr.bf16.mxu0 0
    %172 = vmatpush1.bf16.msra.mxu0 0
    %173 = vmatprep.subr.bf16.mxu0 0
    %174 = vmatpush1.bf16.msra.mxu0 0
    %175 = vmatprep.subr.bf16.mxu0 0
    %176 = vmatpush1.bf16.msra.mxu0 0
    %177 = vmatprep.subr.bf16.mxu0 0
    %178 = vmatpush1.bf16.msra.mxu0 0
    %179 = vmatprep.subr.bf16.mxu0 0
    %180 = vmatpush1.bf16.msra.mxu0 0
    %181 = vmatprep.subr.bf16.mxu0 0
    %182 = vmatpush1.bf16.msra.mxu0 0
    %183 = vmatprep.subr.bf16.mxu0 0
    %184 = vmatpush1.bf16.msra.mxu0 0
    %185 = vmatprep.subr.bf16.mxu0 0
    %186 = vmatpush1.bf16.msra.mxu0 0
    %187 = vmatprep.subr.bf16.mxu0 0
    %188 = vmatpush1.bf16.msra.mxu0 0
    %189 = vmatprep.subr.bf16.mxu0 0
    %190 = vmatpush1.bf16.msra.mxu0 0
    %191 = vmatprep.mubr.bf16.mxu0 0
    %192 = vmatmul.mubr.bf16.gmra.mrb[0].mxu0 %v150
    %v193 = vpop.f32.mrb[0].mxu0
    %v194 = vadd.f32 0.0, %v193
    %v195 = vpop.f32.mrb[0].mxu0
    %v196 = vadd.f32 0.0, %v195
    %v197 = vpop.f32.mrb[0].mxu0
    %v198 = vpop.f32.mrb[0].mxu0
    %199 = vdwg.mxu0
    %v201 = vsel %vm148, %v64, 0
    %v204 = vsel %vm152, %v127, 0
    %v207 = vsel %vm152, %v128, 0
    %209 = vmatprep.subr.bf16.mxu0 %v207
    %210 = vmatpush1.bf16.msra.mxu0 %v204
    %211 = vmatprep.subr.bf16.mxu0 0
    %212 = vmatpush1.bf16.msra.mxu0 0
    %213 = vmatprep.subr.bf16.mxu0 0
    %214 = vmatpush1.bf16.msra.mxu0 0
    %215 = vmatprep.subr.bf16.mxu0 0
    %216 = vmatpush1.bf16.msra.mxu0 0
    %217 = vmatprep.subr.bf16.mxu0 0
    %218 = vmatpush1.bf16.msra.mxu0 0
    %219 = vmatprep.subr.bf16.mxu0 0
    %220 = vmatpush1.bf16.msra.mxu0 0
    %221 = vmatprep.subr.bf16.mxu0 0
    %222 = vmatpush1.bf16.msra.mxu0 0
    %223 = vmatprep.subr.bf16.mxu0 0
    %224 = vmatpush1.bf16.msra.mxu0 0
    %225 = vmatprep.subr.bf16.mxu0 0
    %226 = vmatpush1.bf16.msra.mxu0 0
    %227 = vmatprep.subr.bf16.mxu0 0
    %228 = vmatpush1.bf16.msra.mxu0 0
    %229 = vmatprep.subr.bf16.mxu0 0
    %230 = vmatpush1.bf16.msra.mxu0 0
    %231 = vmatprep.subr.bf16.mxu0 0
    %232 = vmatpush1.bf16.msra.mxu0 0
    %233 = vmatprep.subr.bf16.mxu0 0
    %234 = vmatpush1.bf16.msra.mxu0 0
    %235 = vmatprep.subr.bf16.mxu0 0
    %236 = vmatpush1.bf16.msra.mxu0 0
    %237 = vmatprep.subr.bf16.mxu0 0
    %238 = vmatpush1.bf16.msra.mxu0 0
    %239 = vmatprep.subr.bf16.mxu0 0
    %240 = vmatpush1.bf16.msra.mxu0 0
    %241 = vmatprep.mubr.bf16.mxu0 0
    %242 = vmatmul.mubr.bf16.gmra.mrb[0].mxu0 %v201
    %v243 = vpop.f32.mrb[0].mxu0
    %v244 = vadd.f32 %v194, %v243
    %v245 = vpop.f32.mrb[0].mxu0
    %v246 = vadd.f32 %v196, %v245
    %v247 = vpop.f32.mrb[0].mxu0
    %v248 = vpop.f32.mrb[0].mxu0
    %249 = vdwg.mxu0
    %250 = vrot.lane.b32.xlu0 %v104, 15
    %v251 = vpop.permute.xlu0 %250
    %252 = vrot.lane.b32.xlu0 %v106, 15
    %v253 = vpop.permute.xlu0 %252
    %vm254 = vcmp.lt.s32.totalorder %v113, 15
    %v255 = vsel %vm254, %v251, %v253
    %v256 = vsel %vm254, %v253, %v251
    %v257 = vlaneseq
    %v258 = vshrl.u32 %v257, 7
    %v259 = vsub.s32 2, %v258
    %v260 = vrot.slane %v86, %v259
    %v261 = vlaneseq
    %v262 = vshrl.u32 %v261, 7
    %v263 = vsub.s32 2, %v262
    %v264 = vrot.slane %v87, %v263
    %v265 = vmul.f32 %v256, %v260
    %v266 = vmul.f32 %v255, %v264
    %v267 = vpack.c.bf16 %v265, %v265
    %v268 = vpack.c.bf16 %v266, %v266
    %v270 = vsel %vm148, %v66, 0
    %v273 = vsel %vm152, %v267, 0
    %v276 = vsel %vm152, %v268, 0
    %278 = vmatprep.subr.bf16.mxu0 %v276
    %279 = vmatpush1.bf16.msra.mxu0 %v273
    %280 = vmatprep.subr.bf16.mxu0 0
    %281 = vmatpush1.bf16.msra.mxu0 0
    %282 = vmatprep.subr.bf16.mxu0 0
    %283 = vmatpush1.bf16.msra.mxu0 0
    %284 = vmatprep.subr.bf16.mxu0 0
    %285 = vmatpush1.bf16.msra.mxu0 0
    %286 = vmatprep.subr.bf16.mxu0 0
    %287 = vmatpush1.bf16.msra.mxu0 0
    %288 = vmatprep.subr.bf16.mxu0 0
    %289 = vmatpush1.bf16.msra.mxu0 0
    %290 = vmatprep.subr.bf16.mxu0 0
    %291 = vmatpush1.bf16.msra.mxu0 0
    %292 = vmatprep.subr.bf16.mxu0 0
    %293 = vmatpush1.bf16.msra.mxu0 0
    %294 = vmatprep.subr.bf16.mxu0 0
    %295 = vmatpush1.bf16.msra.mxu0 0
    %296 = vmatprep.subr.bf16.mxu0 0
    %297 = vmatpush1.bf16.msra.mxu0 0
    %298 = vmatprep.subr.bf16.mxu0 0
    %299 = vmatpush1.bf16.msra.mxu0 0
    %300 = vmatprep.subr.bf16.mxu0 0
    %301 = vmatpush1.bf16.msra.mxu0 0
    %302 = vmatprep.subr.bf16.mxu0 0
    %303 = vmatpush1.bf16.msra.mxu0 0
    %304 = vmatprep.subr.bf16.mxu0 0
    %305 = vmatpush1.bf16.msra.mxu0 0
    %306 = vmatprep.subr.bf16.mxu0 0
    %307 = vmatpush1.bf16.msra.mxu0 0
    %308 = vmatprep.subr.bf16.mxu0 0
    %309 = vmatpush1.bf16.msra.mxu0 0
    %310 = vmatprep.mubr.bf16.mxu0 0
    %311 = vmatmul.mubr.bf16.gmra.mrb[0].mxu0 %v270
    %v312 = vpop.f32.mrb[0].mxu0
    %v313 = vadd.f32 0.0, %v312
    %v314 = vpop.f32.mrb[0].mxu0
    %v315 = vadd.f32 0.0, %v314
    %v316 = vpop.f32.mrb[0].mxu0
    %v317 = vpop.f32.mrb[0].mxu0
    %318 = vdwg.mxu0
    %v319 = vadd.f32 %v244, %v313
    %v320 = vadd.f32 %v246, %v315
    %321 = vrot.lane.b32.xlu0 %v104, 1
    %v322 = vpop.permute.xlu0 %321
    %323 = vrot.lane.b32.xlu0 %v106, 1
    %v324 = vpop.permute.xlu0 %323
    %vm325 = vcmp.lt.s32.totalorder %v113, 1
    %v326 = vsel %vm325, %v322, %v324
    %v327 = vsel %vm325, %v324, %v322
    %v328 = vlaneseq
    %v329 = vshrl.u32 %v328, 7
    %v330 = vsub.s32 3, %v329
    %v331 = vrot.slane %v86, %v330
    %v332 = vlaneseq
    %v333 = vshrl.u32 %v332, 7
    %v334 = vsub.s32 3, %v333
    %v335 = vrot.slane %v87, %v334
    %v336 = vmul.f32 %v327, %v331
    %v337 = vmul.f32 %v326, %v335
    %v338 = vpack.c.bf16 %v336, %v336
    %v339 = vpack.c.bf16 %v337, %v337
    %v341 = vsel %vm148, %v67, 0
    %v344 = vsel %vm152, %v338, 0
    %v347 = vsel %vm152, %v339, 0
    %349 = vmatprep.subr.bf16.mxu0 %v347
    %350 = vmatpush1.bf16.msra.mxu0 %v344
    %351 = vmatprep.subr.bf16.mxu0 0
    %352 = vmatpush1.bf16.msra.mxu0 0
    %353 = vmatprep.subr.bf16.mxu0 0
    %354 = vmatpush1.bf16.msra.mxu0 0
    %355 = vmatprep.subr.bf16.mxu0 0
    %356 = vmatpush1.bf16.msra.mxu0 0
    %357 = vmatprep.subr.bf16.mxu0 0
    %358 = vmatpush1.bf16.msra.mxu0 0
    %359 = vmatprep.subr.bf16.mxu0 0
    %360 = vmatpush1.bf16.msra.mxu0 0
    %361 = vmatprep.subr.bf16.mxu0 0
    %362 = vmatpush1.bf16.msra.mxu0 0
    %363 = vmatprep.subr.bf16.mxu0 0
    %364 = vmatpush1.bf16.msra.mxu0 0
    %365 = vmatprep.subr.bf16.mxu0 0
    %366 = vmatpush1.bf16.msra.mxu0 0
    %367 = vmatprep.subr.bf16.mxu0 0
    %368 = vmatpush1.bf16.msra.mxu0 0
    %369 = vmatprep.subr.bf16.mxu0 0
    %370 = vmatpush1.bf16.msra.mxu0 0
    %371 = vmatprep.subr.bf16.mxu0 0
    %372 = vmatpush1.bf16.msra.mxu0 0
    %373 = vmatprep.subr.bf16.mxu0 0
    %374 = vmatpush1.bf16.msra.mxu0 0
    %375 = vmatprep.subr.bf16.mxu0 0
    %376 = vmatpush1.bf16.msra.mxu0 0
    %377 = vmatprep.subr.bf16.mxu0 0
    %378 = vmatpush1.bf16.msra.mxu0 0
    %379 = vmatprep.subr.bf16.mxu0 0
    %380 = vmatpush1.bf16.msra.mxu0 0
    %381 = vmatprep.mubr.bf16.mxu0 0
    %382 = vmatmul.mubr.bf16.gmra.mrb[0].mxu0 %v341
    %v383 = vpop.f32.mrb[0].mxu0
    %v384 = vadd.f32 0.0, %v383
    %v385 = vpop.f32.mrb[0].mxu0
    %v386 = vadd.f32 0.0, %v385
    %v387 = vpop.f32.mrb[0].mxu0
    %v388 = vpop.f32.mrb[0].mxu0
    %389 = vdwg.mxu0
    %v390 = vadd.f32 %v319, %v384
    %v391 = vadd.f32 %v320, %v386
    %v392 = vpack.c.bf16 %v104, %v104
    %v393 = vpack.c.bf16 %v106, %v106
    %v395 = vsel %vm148, %v68, 0
    %v398 = vsel %vm152, %v392, 0
    %v401 = vsel %vm152, %v393, 0
    %403 = vmatprep.subr.bf16.mxu0 %v401
    %404 = vmatpush1.bf16.msra.mxu0 %v398
    %405 = vmatprep.subr.bf16.mxu0 0
    %406 = vmatpush1.bf16.msra.mxu0 0
    %407 = vmatprep.subr.bf16.mxu0 0
    %408 = vmatpush1.bf16.msra.mxu0 0
    %409 = vmatprep.subr.bf16.mxu0 0
    %410 = vmatpush1.bf16.msra.mxu0 0
    %411 = vmatprep.subr.bf16.mxu0 0
    %412 = vmatpush1.bf16.msra.mxu0 0
    %413 = vmatprep.subr.bf16.mxu0 0
    %414 = vmatpush1.bf16.msra.mxu0 0
    %415 = vmatprep.subr.bf16.mxu0 0
    %416 = vmatpush1.bf16.msra.mxu0 0
    %417 = vmatprep.subr.bf16.mxu0 0
    %418 = vmatpush1.bf16.msra.mxu0 0
    %419 = vmatprep.subr.bf16.mxu0 0
    %420 = vmatpush1.bf16.msra.mxu0 0
    %421 = vmatprep.subr.bf16.mxu0 0
    %422 = vmatpush1.bf16.msra.mxu0 0
    %423 = vmatprep.subr.bf16.mxu0 0
    %424 = vmatpush1.bf16.msra.mxu0 0
    %425 = vmatprep.subr.bf16.mxu0 0
    %426 = vmatpush1.bf16.msra.mxu0 0
    %427 = vmatprep.subr.bf16.mxu0 0
    %428 = vmatpush1.bf16.msra.mxu0 0
    %429 = vmatprep.subr.bf16.mxu0 0
    %430 = vmatpush1.bf16.msra.mxu0 0
    %431 = vmatprep.subr.bf16.mxu0 0
    %432 = vmatpush1.bf16.msra.mxu0 0
    %433 = vmatprep.subr.bf16.mxu0 0
    %434 = vmatpush1.bf16.msra.mxu0 0
    %435 = vmatprep.mubr.bf16.mxu0 0
    %436 = vmatmul.mubr.bf16.gmra.mrb[0].mxu0 %v395
    %v437 = vpop.f32.mrb[0].mxu0
    %v438 = vadd.f32 0.0, %v437
    %v439 = vpop.f32.mrb[0].mxu0
    %v440 = vadd.f32 0.0, %v439
    %v441 = vpop.f32.mrb[0].mxu0
    %v442 = vpop.f32.mrb[0].mxu0
    %443 = vdwg.mxu0
    %v444 = vadd.f32 %v390, %v438
    %v445 = vadd.f32 %v391, %v440
    %446 = vrot.lane.b32.xlu0 %v104, 127
    %v447 = vpop.permute.xlu0 %446
    %448 = vrot.lane.b32.xlu0 %v106, 127
    %v449 = vpop.permute.xlu0 %448
    %vm450 = vcmp.lt.s32.totalorder %v113, 127
    %v451 = vsel %vm450, %v447, %v449
    %v452 = vsel %vm450, %v449, %v447
    %v453 = vlaneseq
    %v454 = vshrl.u32 %v453, 7
    %v455 = vsub.s32 5, %v454
    %v456 = vrot.slane %v86, %v455
    %v457 = vlaneseq
    %v458 = vshrl.u32 %v457, 7
    %v459 = vsub.s32 5, %v458
    %v460 = vrot.slane %v87, %v459
    %v461 = vmul.f32 %v451, %v456
    %v462 = vmul.f32 %v452, %v460
    %v463 = vpack.c.bf16 %v461, %v461
    %v464 = vpack.c.bf16 %v462, %v462
    %v466 = vsel %vm148, %v69, 0
    %v469 = vsel %vm152, %v463, 0
    %v472 = vsel %vm152, %v464, 0
    %474 = vmatprep.subr.bf16.mxu0 %v472
    %475 = vmatpush1.bf16.msra.mxu0 %v469
    %476 = vmatprep.subr.bf16.mxu0 0
    %477 = vmatpush1.bf16.msra.mxu0 0
    %478 = vmatprep.subr.bf16.mxu0 0
    %479 = vmatpush1.bf16.msra.mxu0 0
    %480 = vmatprep.subr.bf16.mxu0 0
    %481 = vmatpush1.bf16.msra.mxu0 0
    %482 = vmatprep.subr.bf16.mxu0 0
    %483 = vmatpush1.bf16.msra.mxu0 0
    %484 = vmatprep.subr.bf16.mxu0 0
    %485 = vmatpush1.bf16.msra.mxu0 0
    %486 = vmatprep.subr.bf16.mxu0 0
    %487 = vmatpush1.bf16.msra.mxu0 0
    %488 = vmatprep.subr.bf16.mxu0 0
    %489 = vmatpush1.bf16.msra.mxu0 0
    %490 = vmatprep.subr.bf16.mxu0 0
    %491 = vmatpush1.bf16.msra.mxu0 0
    %492 = vmatprep.subr.bf16.mxu0 0
    %493 = vmatpush1.bf16.msra.mxu0 0
    %494 = vmatprep.subr.bf16.mxu0 0
    %495 = vmatpush1.bf16.msra.mxu0 0
    %496 = vmatprep.subr.bf16.mxu0 0
    %497 = vmatpush1.bf16.msra.mxu0 0
    %498 = vmatprep.subr.bf16.mxu0 0
    %499 = vmatpush1.bf16.msra.mxu0 0
    %500 = vmatprep.subr.bf16.mxu0 0
    %501 = vmatpush1.bf16.msra.mxu0 0
    %502 = vmatprep.subr.bf16.mxu0 0
    %503 = vmatpush1.bf16.msra.mxu0 0
    %504 = vmatprep.subr.bf16.mxu0 0
    %505 = vmatpush1.bf16.msra.mxu0 0
    %506 = vmatprep.mubr.bf16.mxu0 0
    %507 = vmatmul.mubr.bf16.gmra.mrb[0].mxu0 %v466
    %v508 = vpop.f32.mrb[0].mxu0
    %v509 = vadd.f32 0.0, %v508
    %v510 = vpop.f32.mrb[0].mxu0
    %v511 = vadd.f32 0.0, %v510
    %v512 = vpop.f32.mrb[0].mxu0
    %v513 = vpop.f32.mrb[0].mxu0
    %514 = vdwg.mxu0
    %v515 = vadd.f32 %v444, %v509
    %v516 = vadd.f32 %v445, %v511
    %517 = vrot.lane.b32.xlu0 %v104, 113
    %v518 = vpop.permute.xlu0 %517
    %519 = vrot.lane.b32.xlu0 %v106, 113
    %v520 = vpop.permute.xlu0 %519
    %vm521 = vcmp.lt.s32.totalorder %v113, 113
    %v522 = vsel %vm521, %v518, %v520
    %v523 = vsel %vm521, %v520, %v518
    %v524 = vlaneseq
    %v525 = vshrl.u32 %v524, 7
    %v526 = vsub.s32 6, %v525
    %v527 = vrot.slane %v86, %v526
    %v528 = vlaneseq
    %v529 = vshrl.u32 %v528, 7
    %v530 = vsub.s32 6, %v529
    %v531 = vrot.slane %v87, %v530
    %v532 = vmul.f32 %v522, %v527
    %v533 = vmul.f32 %v523, %v531
    %v534 = vpack.c.bf16 %v532, %v532
    %v535 = vpack.c.bf16 %v533, %v533
    %v537 = vsel %vm148, %v70, 0
    %v540 = vsel %vm152, %v534, 0
    %v543 = vsel %vm152, %v535, 0
    %545 = vmatprep.subr.bf16.mxu0 %v543
    %546 = vmatpush1.bf16.msra.mxu0 %v540
    %547 = vmatprep.subr.bf16.mxu0 0
    %548 = vmatpush1.bf16.msra.mxu0 0
    %549 = vmatprep.subr.bf16.mxu0 0
    %550 = vmatpush1.bf16.msra.mxu0 0
    %551 = vmatprep.subr.bf16.mxu0 0
    %552 = vmatpush1.bf16.msra.mxu0 0
    %553 = vmatprep.subr.bf16.mxu0 0
    %554 = vmatpush1.bf16.msra.mxu0 0
    %555 = vmatprep.subr.bf16.mxu0 0
    %556 = vmatpush1.bf16.msra.mxu0 0
    %557 = vmatprep.subr.bf16.mxu0 0
    %558 = vmatpush1.bf16.msra.mxu0 0
    %559 = vmatprep.subr.bf16.mxu0 0
    %560 = vmatpush1.bf16.msra.mxu0 0
    %561 = vmatprep.subr.bf16.mxu0 0
    %562 = vmatpush1.bf16.msra.mxu0 0
    %563 = vmatprep.subr.bf16.mxu0 0
    %564 = vmatpush1.bf16.msra.mxu0 0
    %565 = vmatprep.subr.bf16.mxu0 0
    %566 = vmatpush1.bf16.msra.mxu0 0
    %567 = vmatprep.subr.bf16.mxu0 0
    %568 = vmatpush1.bf16.msra.mxu0 0
    %569 = vmatprep.subr.bf16.mxu0 0
    %570 = vmatpush1.bf16.msra.mxu0 0
    %571 = vmatprep.subr.bf16.mxu0 0
    %572 = vmatpush1.bf16.msra.mxu0 0
    %573 = vmatprep.subr.bf16.mxu0 0
    %574 = vmatpush1.bf16.msra.mxu0 0
    %575 = vmatprep.subr.bf16.mxu0 0
    %576 = vmatpush1.bf16.msra.mxu0 0
    %577 = vmatprep.mubr.bf16.mxu0 0
    %578 = vmatmul.mubr.bf16.gmra.mrb[0].mxu0 %v537
    %v579 = vpop.f32.mrb[0].mxu0
    %v580 = vadd.f32 0.0, %v579
    %v581 = vpop.f32.mrb[0].mxu0
    %v582 = vadd.f32 0.0, %v581
    %v583 = vpop.f32.mrb[0].mxu0
    %v584 = vpop.f32.mrb[0].mxu0
    %585 = vdwg.mxu0
    %v586 = vadd.f32 %v515, %v580
    %v587 = vadd.f32 %v516, %v582
    %588 = vrot.lane.b32.xlu0 %v104, 112
    %v589 = vpop.permute.xlu0 %588
    %590 = vrot.lane.b32.xlu0 %v106, 112
    %v591 = vpop.permute.xlu0 %590
    %vm592 = vcmp.lt.s32.totalorder %v113, 112
    %v593 = vsel %vm592, %v589, %v591
    %v594 = vsel %vm592, %v591, %v589
    %v595 = vlaneseq
    %v596 = vshrl.u32 %v595, 7
    %v597 = vsub.s32 7, %v596
    %v598 = vrot.slane %v86, %v597
    %v599 = vlaneseq
    %v600 = vshrl.u32 %v599, 7
    %v601 = vsub.s32 7, %v600
    %v602 = vrot.slane %v87, %v601
    %v603 = vmul.f32 %v593, %v598
    %v604 = vmul.f32 %v594, %v602
    %v605 = vpack.c.bf16 %v603, %v603
    %v606 = vpack.c.bf16 %v604, %v604
    %v608 = vsel %vm148, %v71, 0
    %v611 = vsel %vm152, %v605, 0
    %v614 = vsel %vm152, %v606, 0
    %616 = vmatprep.subr.bf16.mxu0 %v614
    %617 = vmatpush1.bf16.msra.mxu0 %v611
    %618 = vmatprep.subr.bf16.mxu0 0
    %619 = vmatpush1.bf16.msra.mxu0 0
    %620 = vmatprep.subr.bf16.mxu0 0
    %621 = vmatpush1.bf16.msra.mxu0 0
    %622 = vmatprep.subr.bf16.mxu0 0
    %623 = vmatpush1.bf16.msra.mxu0 0
    %624 = vmatprep.subr.bf16.mxu0 0
    %625 = vmatpush1.bf16.msra.mxu0 0
    %626 = vmatprep.subr.bf16.mxu0 0
    %627 = vmatpush1.bf16.msra.mxu0 0
    %628 = vmatprep.subr.bf16.mxu0 0
    %629 = vmatpush1.bf16.msra.mxu0 0
    %630 = vmatprep.subr.bf16.mxu0 0
    %631 = vmatpush1.bf16.msra.mxu0 0
    %632 = vmatprep.subr.bf16.mxu0 0
    %633 = vmatpush1.bf16.msra.mxu0 0
    %634 = vmatprep.subr.bf16.mxu0 0
    %635 = vmatpush1.bf16.msra.mxu0 0
    %636 = vmatprep.subr.bf16.mxu0 0
    %637 = vmatpush1.bf16.msra.mxu0 0
    %638 = vmatprep.subr.bf16.mxu0 0
    %639 = vmatpush1.bf16.msra.mxu0 0
    %640 = vmatprep.subr.bf16.mxu0 0
    %641 = vmatpush1.bf16.msra.mxu0 0
    %642 = vmatprep.subr.bf16.mxu0 0
    %643 = vmatpush1.bf16.msra.mxu0 0
    %644 = vmatprep.subr.bf16.mxu0 0
    %645 = vmatpush1.bf16.msra.mxu0 0
    %646 = vmatprep.subr.bf16.mxu0 0
    %647 = vmatpush1.bf16.msra.mxu0 0
    %648 = vmatprep.mubr.bf16.mxu0 0
    %649 = vmatmul.mubr.bf16.gmra.mrb[0].mxu0 %v608
    %v650 = vpop.f32.mrb[0].mxu0
    %v651 = vadd.f32 0.0, %v650
    %v652 = vpop.f32.mrb[0].mxu0
    %v653 = vadd.f32 0.0, %v652
    %v654 = vpop.f32.mrb[0].mxu0
    %v655 = vpop.f32.mrb[0].mxu0
    %656 = vdwg.mxu0
    %v657 = vadd.f32 %v586, %v651
    %v658 = vadd.f32 %v587, %v653
    %659 = vrot.lane.b32.xlu0 %v104, 111
    %v660 = vpop.permute.xlu0 %659
    %661 = vrot.lane.b32.xlu0 %v106, 111
    %v662 = vpop.permute.xlu0 %661
    %vm663 = vcmp.lt.s32.totalorder %v113, 111
    %v664 = vsel %vm663, %v660, %v662
    %v665 = vsel %vm663, %v662, %v660
    %v666 = vlaneseq
    %v667 = vshrl.u32 %v666, 7
    %v668 = vsub.s32 0, %v667
    %v669 = vrot.slane %v88, %v668
    %v670 = vlaneseq
    %v671 = vshrl.u32 %v670, 7
    %v672 = vsub.s32 0, %v671
    %v673 = vrot.slane %v89, %v672
    %v674 = vmul.f32 %v664, %v669
    %v675 = vmul.f32 %v665, %v673
    %v676 = vpack.c.bf16 %v674, %v674
    %v677 = vpack.c.bf16 %v675, %v675
    %v679 = vsel %vm148, %v72, 0
    %v682 = vsel %vm152, %v676, 0
    %v685 = vsel %vm152, %v677, 0
    %687 = vmatprep.subr.bf16.mxu0 %v685
    %688 = vmatpush1.bf16.msra.mxu0 %v682
    %689 = vmatprep.subr.bf16.mxu0 0
    %690 = vmatpush1.bf16.msra.mxu0 0
    %691 = vmatprep.subr.bf16.mxu0 0
    %692 = vmatpush1.bf16.msra.mxu0 0
    %693 = vmatprep.subr.bf16.mxu0 0
    %694 = vmatpush1.bf16.msra.mxu0 0
    %695 = vmatprep.subr.bf16.mxu0 0
    %696 = vmatpush1.bf16.msra.mxu0 0
    %697 = vmatprep.subr.bf16.mxu0 0
    %698 = vmatpush1.bf16.msra.mxu0 0
    %699 = vmatprep.subr.bf16.mxu0 0
    %700 = vmatpush1.bf16.msra.mxu0 0
    %701 = vmatprep.subr.bf16.mxu0 0
    %702 = vmatpush1.bf16.msra.mxu0 0
    %703 = vmatprep.subr.bf16.mxu0 0
    %704 = vmatpush1.bf16.msra.mxu0 0
    %705 = vmatprep.subr.bf16.mxu0 0
    %706 = vmatpush1.bf16.msra.mxu0 0
    %707 = vmatprep.subr.bf16.mxu0 0
    %708 = vmatpush1.bf16.msra.mxu0 0
    %709 = vmatprep.subr.bf16.mxu0 0
    %710 = vmatpush1.bf16.msra.mxu0 0
    %711 = vmatprep.subr.bf16.mxu0 0
    %712 = vmatpush1.bf16.msra.mxu0 0
    %713 = vmatprep.subr.bf16.mxu0 0
    %714 = vmatpush1.bf16.msra.mxu0 0
    %715 = vmatprep.subr.bf16.mxu0 0
    %716 = vmatpush1.bf16.msra.mxu0 0
    %717 = vmatprep.subr.bf16.mxu0 0
    %718 = vmatpush1.bf16.msra.mxu0 0
    %719 = vmatprep.mubr.bf16.mxu0 0
    %720 = vmatmul.mubr.bf16.gmra.mrb[0].mxu0 %v679
    %v721 = vpop.f32.mrb[0].mxu0
    %v722 = vadd.f32 0.0, %v721
    %v723 = vpop.f32.mrb[0].mxu0
    %v724 = vadd.f32 0.0, %v723
    %v725 = vpop.f32.mrb[0].mxu0
    %v726 = vpop.f32.mrb[0].mxu0
    %727 = vdwg.mxu0
    %v728 = vadd.f32 %v657, %v722
    %v729 = vadd.f32 %v658, %v724
    %731 = vset.pattern.permute.xlu0 0
    %732 = vperm.xlu0 %731, %v82
    %v733 = vpop.permute.xlu0 %732
    %v735 = vadd.f32 %v728, %v733
    %v736 = vadd.f32 %v729, %v733
    %v737 = vmax.f32 %v735, 0.0
    %v738 = vmax.f32 %v736, 0.0
    %739 = vrot.lane.b32.xlu0 %v737, 17
    %v740 = vpop.permute.xlu0 %739
    %741 = vrot.lane.b32.xlu0 %v738, 17
    %v742 = vpop.permute.xlu0 %741
    %v743 = vsel %vm114, %v740, %v742
    %v744 = vsel %vm114, %v742, %v740
    %v745 = vmul.f32 %v744, %v120
    %v746 = vmul.f32 %v743, %v124
    %v747 = vpack.c.bf16 %v745, %v745
    %v748 = vpack.c.bf16 %v746, %v746
    %749 = vrot.lane.b32.xlu0 %v737, 16
    %v750 = vpop.permute.xlu0 %749
    %751 = vrot.lane.b32.xlu0 %v738, 16
    %v752 = vpop.permute.xlu0 %751
    %v753 = vsel %vm133, %v750, %v752
    %v754 = vsel %vm133, %v752, %v750
    %v755 = vmul.f32 %v754, %v139
    %v756 = vmul.f32 %v753, %v143
    %v757 = vpack.c.bf16 %v755, %v755
    %v758 = vpack.c.bf16 %v756, %v756
    %v760 = vsel %vm148, %v74, 0
    %v763 = vsel %vm152, %v757, 0
    %v766 = vsel %vm152, %v758, 0
    %768 = vmatprep.subr.bf16.mxu0 %v766
    %769 = vmatpush1.bf16.msra.mxu0 %v763
    %770 = vmatprep.subr.bf16.mxu0 0
    %771 = vmatpush1.bf16.msra.mxu0 0
    %772 = vmatprep.subr.bf16.mxu0 0
    %773 = vmatpush1.bf16.msra.mxu0 0
    %774 = vmatprep.subr.bf16.mxu0 0
    %775 = vmatpush1.bf16.msra.mxu0 0
    %776 = vmatprep.subr.bf16.mxu0 0
    %777 = vmatpush1.bf16.msra.mxu0 0
    %778 = vmatprep.subr.bf16.mxu0 0
    %779 = vmatpush1.bf16.msra.mxu0 0
    %780 = vmatprep.subr.bf16.mxu0 0
    %781 = vmatpush1.bf16.msra.mxu0 0
    %782 = vmatprep.subr.bf16.mxu0 0
    %783 = vmatpush1.bf16.msra.mxu0 0
    %784 = vmatprep.subr.bf16.mxu0 0
    %785 = vmatpush1.bf16.msra.mxu0 0
    %786 = vmatprep.subr.bf16.mxu0 0
    %787 = vmatpush1.bf16.msra.mxu0 0
    %788 = vmatprep.subr.bf16.mxu0 0
    %789 = vmatpush1.bf16.msra.mxu0 0
    %790 = vmatprep.subr.bf16.mxu0 0
    %791 = vmatpush1.bf16.msra.mxu0 0
    %792 = vmatprep.subr.bf16.mxu0 0
    %793 = vmatpush1.bf16.msra.mxu0 0
    %794 = vmatprep.subr.bf16.mxu0 0
    %795 = vmatpush1.bf16.msra.mxu0 0
    %796 = vmatprep.subr.bf16.mxu0 0
    %797 = vmatpush1.bf16.msra.mxu0 0
    %798 = vmatprep.subr.bf16.mxu0 0
    %799 = vmatpush1.bf16.msra.mxu0 0
    %800 = vmatprep.mubr.bf16.mxu0 0
    %801 = vmatmul.mubr.bf16.gmra.mrb[0].mxu0 %v760
    %v802 = vpop.f32.mrb[0].mxu0
    %v803 = vadd.f32 0.0, %v802
    %v804 = vpop.f32.mrb[0].mxu0
    %v805 = vadd.f32 0.0, %v804
    %v806 = vpop.f32.mrb[0].mxu0
    %v807 = vpop.f32.mrb[0].mxu0
    %808 = vdwg.mxu0
    %v810 = vsel %vm148, %v73, 0
    %v813 = vsel %vm152, %v747, 0
    %v816 = vsel %vm152, %v748, 0
    %818 = vmatprep.subr.bf16.mxu0 %v816
    %819 = vmatpush1.bf16.msra.mxu0 %v813
    %820 = vmatprep.subr.bf16.mxu0 0
    %821 = vmatpush1.bf16.msra.mxu0 0
    %822 = vmatprep.subr.bf16.mxu0 0
    %823 = vmatpush1.bf16.msra.mxu0 0
    %824 = vmatprep.subr.bf16.mxu0 0
    %825 = vmatpush1.bf16.msra.mxu0 0
    %826 = vmatprep.subr.bf16.mxu0 0
    %827 = vmatpush1.bf16.msra.mxu0 0
    %828 = vmatprep.subr.bf16.mxu0 0
    %829 = vmatpush1.bf16.msra.mxu0 0
    %830 = vmatprep.subr.bf16.mxu0 0
    %831 = vmatpush1.bf16.msra.mxu0 0
    %832 = vmatprep.subr.bf16.mxu0 0
    %833 = vmatpush1.bf16.msra.mxu0 0
    %834 = vmatprep.subr.bf16.mxu0 0
    %835 = vmatpush1.bf16.msra.mxu0 0
    %836 = vmatprep.subr.bf16.mxu0 0
    %837 = vmatpush1.bf16.msra.mxu0 0
    %838 = vmatprep.subr.bf16.mxu0 0
    %839 = vmatpush1.bf16.msra.mxu0 0
    %840 = vmatprep.subr.bf16.mxu0 0
    %841 = vmatpush1.bf16.msra.mxu0 0
    %842 = vmatprep.subr.bf16.mxu0 0
    %843 = vmatpush1.bf16.msra.mxu0 0
    %844 = vmatprep.subr.bf16.mxu0 0
    %845 = vmatpush1.bf16.msra.mxu0 0
    %846 = vmatprep.subr.bf16.mxu0 0
    %847 = vmatpush1.bf16.msra.mxu0 0
    %848 = vmatprep.subr.bf16.mxu0 0
    %849 = vmatpush1.bf16.msra.mxu0 0
    %850 = vmatprep.mubr.bf16.mxu0 0
    %851 = vmatmul.mubr.bf16.gmra.mrb[0].mxu0 %v810
    %v852 = vpop.f32.mrb[0].mxu0
    %v853 = vadd.f32 %v803, %v852
    %v854 = vpop.f32.mrb[0].mxu0
    %v855 = vadd.f32 %v805, %v854
    %v856 = vpop.f32.mrb[0].mxu0
    %v857 = vpop.f32.mrb[0].mxu0
    %858 = vdwg.mxu0
    %859 = vrot.lane.b32.xlu0 %v737, 15
    %v860 = vpop.permute.xlu0 %859
    %861 = vrot.lane.b32.xlu0 %v738, 15
    %v862 = vpop.permute.xlu0 %861
    %v863 = vsel %vm254, %v860, %v862
    %v864 = vsel %vm254, %v862, %v860
    %v865 = vmul.f32 %v864, %v260
    %v866 = vmul.f32 %v863, %v264
    %v867 = vpack.c.bf16 %v865, %v865
    %v868 = vpack.c.bf16 %v866, %v866
    %v870 = vsel %vm148, %v75, 0
    %v873 = vsel %vm152, %v867, 0
    %v876 = vsel %vm152, %v868, 0
    %878 = vmatprep.subr.bf16.mxu0 %v876
    %879 = vmatpush1.bf16.msra.mxu0 %v873
    %880 = vmatprep.subr.bf16.mxu0 0
    %881 = vmatpush1.bf16.msra.mxu0 0
    %882 = vmatprep.subr.bf16.mxu0 0
    %883 = vmatpush1.bf16.msra.mxu0 0
    %884 = vmatprep.subr.bf16.mxu0 0
    %885 = vmatpush1.bf16.msra.mxu0 0
    %886 = vmatprep.subr.bf16.mxu0 0
    %887 = vmatpush1.bf16.msra.mxu0 0
    %888 = vmatprep.subr.bf16.mxu0 0
    %889 = vmatpush1.bf16.msra.mxu0 0
    %890 = vmatprep.subr.bf16.mxu0 0
    %891 = vmatpush1.bf16.msra.mxu0 0
    %892 = vmatprep.subr.bf16.mxu0 0
    %893 = vmatpush1.bf16.msra.mxu0 0
    %894 = vmatprep.subr.bf16.mxu0 0
    %895 = vmatpush1.bf16.msra.mxu0 0
    %896 = vmatprep.subr.bf16.mxu0 0
    %897 = vmatpush1.bf16.msra.mxu0 0
    %898 = vmatprep.subr.bf16.mxu0 0
    %899 = vmatpush1.bf16.msra.mxu0 0
    %900 = vmatprep.subr.bf16.mxu0 0
    %901 = vmatpush1.bf16.msra.mxu0 0
    %902 = vmatprep.subr.bf16.mxu0 0
    %903 = vmatpush1.bf16.msra.mxu0 0
    %904 = vmatprep.subr.bf16.mxu0 0
    %905 = vmatpush1.bf16.msra.mxu0 0
    %906 = vmatprep.subr.bf16.mxu0 0
    %907 = vmatpush1.bf16.msra.mxu0 0
    %908 = vmatprep.subr.bf16.mxu0 0
    %909 = vmatpush1.bf16.msra.mxu0 0
    %910 = vmatprep.mubr.bf16.mxu0 0
    %911 = vmatmul.mubr.bf16.gmra.mrb[0].mxu0 %v870
    %v912 = vpop.f32.mrb[0].mxu0
    %v913 = vadd.f32 0.0, %v912
    %v914 = vpop.f32.mrb[0].mxu0
    %v915 = vadd.f32 0.0, %v914
    %v916 = vpop.f32.mrb[0].mxu0
    %v917 = vpop.f32.mrb[0].mxu0
    %918 = vdwg.mxu0
    %v919 = vadd.f32 %v853, %v913
    %v920 = vadd.f32 %v855, %v915
    %921 = vrot.lane.b32.xlu0 %v737, 1
    %v922 = vpop.permute.xlu0 %921
    %923 = vrot.lane.b32.xlu0 %v738, 1
    %v924 = vpop.permute.xlu0 %923
    %v925 = vsel %vm325, %v922, %v924
    %v926 = vsel %vm325, %v924, %v922
    %v927 = vmul.f32 %v926, %v331
    %v928 = vmul.f32 %v925, %v335
    %v929 = vpack.c.bf16 %v927, %v927
    %v930 = vpack.c.bf16 %v928, %v928
    %v932 = vsel %vm148, %v76, 0
    %v935 = vsel %vm152, %v929, 0
    %v938 = vsel %vm152, %v930, 0
    %940 = vmatprep.subr.bf16.mxu0 %v938
    %941 = vmatpush1.bf16.msra.mxu0 %v935
    %942 = vmatprep.subr.bf16.mxu0 0
    %943 = vmatpush1.bf16.msra.mxu0 0
    %944 = vmatprep.subr.bf16.mxu0 0
    %945 = vmatpush1.bf16.msra.mxu0 0
    %946 = vmatprep.subr.bf16.mxu0 0
    %947 = vmatpush1.bf16.msra.mxu0 0
    %948 = vmatprep.subr.bf16.mxu0 0
    %949 = vmatpush1.bf16.msra.mxu0 0
    %950 = vmatprep.subr.bf16.mxu0 0
    %951 = vmatpush1.bf16.msra.mxu0 0
    %952 = vmatprep.subr.bf16.mxu0 0
    %953 = vmatpush1.bf16.msra.mxu0 0
    %954 = vmatprep.subr.bf16.mxu0 0
    %955 = vmatpush1.bf16.msra.mxu0 0
    %956 = vmatprep.subr.bf16.mxu0 0
    %957 = vmatpush1.bf16.msra.mxu0 0
    %958 = vmatprep.subr.bf16.mxu0 0
    %959 = vmatpush1.bf16.msra.mxu0 0
    %960 = vmatprep.subr.bf16.mxu0 0
    %961 = vmatpush1.bf16.msra.mxu0 0
    %962 = vmatprep.subr.bf16.mxu0 0
    %963 = vmatpush1.bf16.msra.mxu0 0
    %964 = vmatprep.subr.bf16.mxu0 0
    %965 = vmatpush1.bf16.msra.mxu0 0
    %966 = vmatprep.subr.bf16.mxu0 0
    %967 = vmatpush1.bf16.msra.mxu0 0
    %968 = vmatprep.subr.bf16.mxu0 0
    %969 = vmatpush1.bf16.msra.mxu0 0
    %970 = vmatprep.subr.bf16.mxu0 0
    %971 = vmatpush1.bf16.msra.mxu0 0
    %972 = vmatprep.mubr.bf16.mxu0 0
    %973 = vmatmul.mubr.bf16.gmra.mrb[0].mxu0 %v932
    %v974 = vpop.f32.mrb[0].mxu0
    %v975 = vadd.f32 0.0, %v974
    %v976 = vpop.f32.mrb[0].mxu0
    %v977 = vadd.f32 0.0, %v976
    %v978 = vpop.f32.mrb[0].mxu0
    %v979 = vpop.f32.mrb[0].mxu0
    %980 = vdwg.mxu0
    %v981 = vadd.f32 %v919, %v975
    %v982 = vadd.f32 %v920, %v977
    %v983 = vpack.c.bf16 %v737, %v737
    %v984 = vpack.c.bf16 %v738, %v738
    %v986 = vsel %vm148, %v77, 0
    %v989 = vsel %vm152, %v983, 0
    %v992 = vsel %vm152, %v984, 0
    %994 = vmatprep.subr.bf16.mxu0 %v992
    %995 = vmatpush1.bf16.msra.mxu0 %v989
    %996 = vmatprep.subr.bf16.mxu0 0
    %997 = vmatpush1.bf16.msra.mxu0 0
    %998 = vmatprep.subr.bf16.mxu0 0
    %999 = vmatpush1.bf16.msra.mxu0 0
    %1000 = vmatprep.subr.bf16.mxu0 0
    %1001 = vmatpush1.bf16.msra.mxu0 0
    %1002 = vmatprep.subr.bf16.mxu0 0
    %1003 = vmatpush1.bf16.msra.mxu0 0
    %1004 = vmatprep.subr.bf16.mxu0 0
    %1005 = vmatpush1.bf16.msra.mxu0 0
    %1006 = vmatprep.subr.bf16.mxu0 0
    %1007 = vmatpush1.bf16.msra.mxu0 0
    %1008 = vmatprep.subr.bf16.mxu0 0
    %1009 = vmatpush1.bf16.msra.mxu0 0
    %1010 = vmatprep.subr.bf16.mxu0 0
    %1011 = vmatpush1.bf16.msra.mxu0 0
    %1012 = vmatprep.subr.bf16.mxu0 0
    %1013 = vmatpush1.bf16.msra.mxu0 0
    %1014 = vmatprep.subr.bf16.mxu0 0
    %1015 = vmatpush1.bf16.msra.mxu0 0
    %1016 = vmatprep.subr.bf16.mxu0 0
    %1017 = vmatpush1.bf16.msra.mxu0 0
    %1018 = vmatprep.subr.bf16.mxu0 0
    %1019 = vmatpush1.bf16.msra.mxu0 0
    %1020 = vmatprep.subr.bf16.mxu0 0
    %1021 = vmatpush1.bf16.msra.mxu0 0
    %1022 = vmatprep.subr.bf16.mxu0 0
    %1023 = vmatpush1.bf16.msra.mxu0 0
    %1024 = vmatprep.subr.bf16.mxu0 0
    %1025 = vmatpush1.bf16.msra.mxu0 0
    %1026 = vmatprep.mubr.bf16.mxu0 0
    %1027 = vmatmul.mubr.bf16.gmra.mrb[0].mxu0 %v986
    %v1028 = vpop.f32.mrb[0].mxu0
    %v1029 = vadd.f32 0.0, %v1028
    %v1030 = vpop.f32.mrb[0].mxu0
    %v1031 = vadd.f32 0.0, %v1030
    %v1032 = vpop.f32.mrb[0].mxu0
    %v1033 = vpop.f32.mrb[0].mxu0
    %1034 = vdwg.mxu0
    %v1035 = vadd.f32 %v981, %v1029
    %v1036 = vadd.f32 %v982, %v1031
    %1037 = vrot.lane.b32.xlu0 %v737, 127
    %v1038 = vpop.permute.xlu0 %1037
    %1039 = vrot.lane.b32.xlu0 %v738, 127
    %v1040 = vpop.permute.xlu0 %1039
    %v1041 = vsel %vm450, %v1038, %v1040
    %v1042 = vsel %vm450, %v1040, %v1038
    %v1043 = vmul.f32 %v1041, %v456
    %v1044 = vmul.f32 %v1042, %v460
    %v1045 = vpack.c.bf16 %v1043, %v1043
    %v1046 = vpack.c.bf16 %v1044, %v1044
    %v1048 = vsel %vm148, %v78, 0
    %v1051 = vsel %vm152, %v1045, 0
    %v1054 = vsel %vm152, %v1046, 0
    %1056 = vmatprep.subr.bf16.mxu0 %v1054
    %1057 = vmatpush1.bf16.msra.mxu0 %v1051
    %1058 = vmatprep.subr.bf16.mxu0 0
    %1059 = vmatpush1.bf16.msra.mxu0 0
    %1060 = vmatprep.subr.bf16.mxu0 0
    %1061 = vmatpush1.bf16.msra.mxu0 0
    %1062 = vmatprep.subr.bf16.mxu0 0
    %1063 = vmatpush1.bf16.msra.mxu0 0
    %1064 = vmatprep.subr.bf16.mxu0 0
    %1065 = vmatpush1.bf16.msra.mxu0 0
    %1066 = vmatprep.subr.bf16.mxu0 0
    %1067 = vmatpush1.bf16.msra.mxu0 0
    %1068 = vmatprep.subr.bf16.mxu0 0
    %1069 = vmatpush1.bf16.msra.mxu0 0
    %1070 = vmatprep.subr.bf16.mxu0 0
    %1071 = vmatpush1.bf16.msra.mxu0 0
    %1072 = vmatprep.subr.bf16.mxu0 0
    %1073 = vmatpush1.bf16.msra.mxu0 0
    %1074 = vmatprep.subr.bf16.mxu0 0
    %1075 = vmatpush1.bf16.msra.mxu0 0
    %1076 = vmatprep.subr.bf16.mxu0 0
    %1077 = vmatpush1.bf16.msra.mxu0 0
    %1078 = vmatprep.subr.bf16.mxu0 0
    %1079 = vmatpush1.bf16.msra.mxu0 0
    %1080 = vmatprep.subr.bf16.mxu0 0
    %1081 = vmatpush1.bf16.msra.mxu0 0
    %1082 = vmatprep.subr.bf16.mxu0 0
    %1083 = vmatpush1.bf16.msra.mxu0 0
    %1084 = vmatprep.subr.bf16.mxu0 0
    %1085 = vmatpush1.bf16.msra.mxu0 0
    %1086 = vmatprep.subr.bf16.mxu0 0
    %1087 = vmatpush1.bf16.msra.mxu0 0
    %1088 = vmatprep.mubr.bf16.mxu0 0
    %1089 = vmatmul.mubr.bf16.gmra.mrb[0].mxu0 %v1048
    %v1090 = vpop.f32.mrb[0].mxu0
    %v1091 = vadd.f32 0.0, %v1090
    %v1092 = vpop.f32.mrb[0].mxu0
    %v1093 = vadd.f32 0.0, %v1092
    %v1094 = vpop.f32.mrb[0].mxu0
    %v1095 = vpop.f32.mrb[0].mxu0
    %1096 = vdwg.mxu0
    %v1097 = vadd.f32 %v1035, %v1091
    %v1098 = vadd.f32 %v1036, %v1093
    %1099 = vrot.lane.b32.xlu0 %v737, 113
    %v1100 = vpop.permute.xlu0 %1099
    %1101 = vrot.lane.b32.xlu0 %v738, 113
    %v1102 = vpop.permute.xlu0 %1101
    %v1103 = vsel %vm521, %v1100, %v1102
    %v1104 = vsel %vm521, %v1102, %v1100
    %v1105 = vmul.f32 %v1103, %v527
    %v1106 = vmul.f32 %v1104, %v531
    %v1107 = vpack.c.bf16 %v1105, %v1105
    %v1108 = vpack.c.bf16 %v1106, %v1106
    %v1110 = vsel %vm148, %v79, 0
    %v1113 = vsel %vm152, %v1107, 0
    %v1116 = vsel %vm152, %v1108, 0
    %1118 = vmatprep.subr.bf16.mxu0 %v1116
    %1119 = vmatpush1.bf16.msra.mxu0 %v1113
    %1120 = vmatprep.subr.bf16.mxu0 0
    %1121 = vmatpush1.bf16.msra.mxu0 0
    %1122 = vmatprep.subr.bf16.mxu0 0
    %1123 = vmatpush1.bf16.msra.mxu0 0
    %1124 = vmatprep.subr.bf16.mxu0 0
    %1125 = vmatpush1.bf16.msra.mxu0 0
    %1126 = vmatprep.subr.bf16.mxu0 0
    %1127 = vmatpush1.bf16.msra.mxu0 0
    %1128 = vmatprep.subr.bf16.mxu0 0
    %1129 = vmatpush1.bf16.msra.mxu0 0
    %1130 = vmatprep.subr.bf16.mxu0 0
    %1131 = vmatpush1.bf16.msra.mxu0 0
    %1132 = vmatprep.subr.bf16.mxu0 0
    %1133 = vmatpush1.bf16.msra.mxu0 0
    %1134 = vmatprep.subr.bf16.mxu0 0
    %1135 = vmatpush1.bf16.msra.mxu0 0
    %1136 = vmatprep.subr.bf16.mxu0 0
    %1137 = vmatpush1.bf16.msra.mxu0 0
    %1138 = vmatprep.subr.bf16.mxu0 0
    %1139 = vmatpush1.bf16.msra.mxu0 0
    %1140 = vmatprep.subr.bf16.mxu0 0
    %1141 = vmatpush1.bf16.msra.mxu0 0
    %1142 = vmatprep.subr.bf16.mxu0 0
    %1143 = vmatpush1.bf16.msra.mxu0 0
    %1144 = vmatprep.subr.bf16.mxu0 0
    %1145 = vmatpush1.bf16.msra.mxu0 0
    %1146 = vmatprep.subr.bf16.mxu0 0
    %1147 = vmatpush1.bf16.msra.mxu0 0
    %1148 = vmatprep.subr.bf16.mxu0 0
    %1149 = vmatpush1.bf16.msra.mxu0 0
    %1150 = vmatprep.mubr.bf16.mxu0 0
    %1151 = vmatmul.mubr.bf16.gmra.mrb[0].mxu0 %v1110
    %v1152 = vpop.f32.mrb[0].mxu0
    %v1153 = vadd.f32 0.0, %v1152
    %v1154 = vpop.f32.mrb[0].mxu0
    %v1155 = vadd.f32 0.0, %v1154
    %v1156 = vpop.f32.mrb[0].mxu0
    %v1157 = vpop.f32.mrb[0].mxu0
    %1158 = vdwg.mxu0
    %v1159 = vadd.f32 %v1097, %v1153
    %v1160 = vadd.f32 %v1098, %v1155
    %1161 = vrot.lane.b32.xlu0 %v737, 112
    %v1162 = vpop.permute.xlu0 %1161
    %1163 = vrot.lane.b32.xlu0 %v738, 112
    %v1164 = vpop.permute.xlu0 %1163
    %v1165 = vsel %vm592, %v1162, %v1164
    %v1166 = vsel %vm592, %v1164, %v1162
    %v1167 = vmul.f32 %v1165, %v598
    %v1168 = vmul.f32 %v1166, %v602
    %v1169 = vpack.c.bf16 %v1167, %v1167
    %v1170 = vpack.c.bf16 %v1168, %v1168
    %v1172 = vsel %vm148, %v80, 0
    %v1175 = vsel %vm152, %v1169, 0
    %v1178 = vsel %vm152, %v1170, 0
    %1180 = vmatprep.subr.bf16.mxu0 %v1178
    %1181 = vmatpush1.bf16.msra.mxu0 %v1175
    %1182 = vmatprep.subr.bf16.mxu0 0
    %1183 = vmatpush1.bf16.msra.mxu0 0
    %1184 = vmatprep.subr.bf16.mxu0 0
    %1185 = vmatpush1.bf16.msra.mxu0 0
    %1186 = vmatprep.subr.bf16.mxu0 0
    %1187 = vmatpush1.bf16.msra.mxu0 0
    %1188 = vmatprep.subr.bf16.mxu0 0
    %1189 = vmatpush1.bf16.msra.mxu0 0
    %1190 = vmatprep.subr.bf16.mxu0 0
    %1191 = vmatpush1.bf16.msra.mxu0 0
    %1192 = vmatprep.subr.bf16.mxu0 0
    %1193 = vmatpush1.bf16.msra.mxu0 0
    %1194 = vmatprep.subr.bf16.mxu0 0
    %1195 = vmatpush1.bf16.msra.mxu0 0
    %1196 = vmatprep.subr.bf16.mxu0 0
    %1197 = vmatpush1.bf16.msra.mxu0 0
    %1198 = vmatprep.subr.bf16.mxu0 0
    %1199 = vmatpush1.bf16.msra.mxu0 0
    %1200 = vmatprep.subr.bf16.mxu0 0
    %1201 = vmatpush1.bf16.msra.mxu0 0
    %1202 = vmatprep.subr.bf16.mxu0 0
    %1203 = vmatpush1.bf16.msra.mxu0 0
    %1204 = vmatprep.subr.bf16.mxu0 0
    %1205 = vmatpush1.bf16.msra.mxu0 0
    %1206 = vmatprep.subr.bf16.mxu0 0
    %1207 = vmatpush1.bf16.msra.mxu0 0
    %1208 = vmatprep.subr.bf16.mxu0 0
    %1209 = vmatpush1.bf16.msra.mxu0 0
    %1210 = vmatprep.subr.bf16.mxu0 0
    %1211 = vmatpush1.bf16.msra.mxu0 0
    %1212 = vmatprep.mubr.bf16.mxu0 0
    %1213 = vmatmul.mubr.bf16.gmra.mrb[0].mxu0 %v1172
    %v1214 = vpop.f32.mrb[0].mxu0
    %v1215 = vadd.f32 0.0, %v1214
    %v1216 = vpop.f32.mrb[0].mxu0
    %v1217 = vadd.f32 0.0, %v1216
    %v1218 = vpop.f32.mrb[0].mxu0
    %v1219 = vpop.f32.mrb[0].mxu0
    %1220 = vdwg.mxu0
    %v1221 = vadd.f32 %v1159, %v1215
    %v1222 = vadd.f32 %v1160, %v1217
    %1223 = vrot.lane.b32.xlu0 %v737, 111
    %v1224 = vpop.permute.xlu0 %1223
    %1225 = vrot.lane.b32.xlu0 %v738, 111
    %v1226 = vpop.permute.xlu0 %1225
    %v1227 = vsel %vm663, %v1224, %v1226
    %v1228 = vsel %vm663, %v1226, %v1224
    %v1229 = vmul.f32 %v1227, %v669
    %v1230 = vmul.f32 %v1228, %v673
    %v1231 = vpack.c.bf16 %v1229, %v1229
    %v1232 = vpack.c.bf16 %v1230, %v1230
    %v1234 = vsel %vm148, %v81, 0
    %v1237 = vsel %vm152, %v1231, 0
    %v1240 = vsel %vm152, %v1232, 0
    %1242 = vmatprep.subr.bf16.mxu0 %v1240
    %1243 = vmatpush1.bf16.msra.mxu0 %v1237
    %1244 = vmatprep.subr.bf16.mxu0 0
    %1245 = vmatpush1.bf16.msra.mxu0 0
    %1246 = vmatprep.subr.bf16.mxu0 0
    %1247 = vmatpush1.bf16.msra.mxu0 0
    %1248 = vmatprep.subr.bf16.mxu0 0
    %1249 = vmatpush1.bf16.msra.mxu0 0
    %1250 = vmatprep.subr.bf16.mxu0 0
    %1251 = vmatpush1.bf16.msra.mxu0 0
    %1252 = vmatprep.subr.bf16.mxu0 0
    %1253 = vmatpush1.bf16.msra.mxu0 0
    %1254 = vmatprep.subr.bf16.mxu0 0
    %1255 = vmatpush1.bf16.msra.mxu0 0
    %1256 = vmatprep.subr.bf16.mxu0 0
    %1257 = vmatpush1.bf16.msra.mxu0 0
    %1258 = vmatprep.subr.bf16.mxu0 0
    %1259 = vmatpush1.bf16.msra.mxu0 0
    %1260 = vmatprep.subr.bf16.mxu0 0
    %1261 = vmatpush1.bf16.msra.mxu0 0
    %1262 = vmatprep.subr.bf16.mxu0 0
    %1263 = vmatpush1.bf16.msra.mxu0 0
    %1264 = vmatprep.subr.bf16.mxu0 0
    %1265 = vmatpush1.bf16.msra.mxu0 0
    %1266 = vmatprep.subr.bf16.mxu0 0
    %1267 = vmatpush1.bf16.msra.mxu0 0
    %1268 = vmatprep.subr.bf16.mxu0 0
    %1269 = vmatpush1.bf16.msra.mxu0 0
    %1270 = vmatprep.subr.bf16.mxu0 0
    %1271 = vmatpush1.bf16.msra.mxu0 0
    %1272 = vmatprep.subr.bf16.mxu0 0
    %1273 = vmatpush1.bf16.msra.mxu0 0
    %1274 = vmatprep.mubr.bf16.mxu0 0
    %1275 = vmatmul.mubr.bf16.gmra.mrb[0].mxu0 %v1234
    %v1276 = vpop.f32.mrb[0].mxu0
    %v1277 = vadd.f32 0.0, %v1276
    %v1278 = vpop.f32.mrb[0].mxu0
    %v1279 = vadd.f32 0.0, %v1278
    %v1280 = vpop.f32.mrb[0].mxu0
    %v1281 = vpop.f32.mrb[0].mxu0
    %1282 = vdwg.mxu0
    %v1283 = vadd.f32 %v1221, %v1277
    %v1284 = vadd.f32 %v1222, %v1279
    %1286 = vset.pattern.permute.xlu0 0
    %1287 = vperm.xlu0 %1286, %v83
    %v1288 = vpop.permute.xlu0 %1287
    %v1290 = vadd.f32 %v1283, %v1288
    %v1291 = vadd.f32 %v1284, %v1288
    %v1292 = vmax.f32 %v1290, 0.0
    %v1293 = vmax.f32 %v1291, 0.0
    %v1294 = vadd.f32 %v1292, %v1293
    %1295 = vadd.xlane.f32.xlu0 %v1294
    %v1296 = vpop.xlane.xlu0 %1295
    %v1297 = vrcp.pop 256.0
    %v1298 = vmul.f32 %v1296, %v1297
    %v1299 = vmax.f32 %v1292, %v1293
    %1300 = vmax.xlane.f32.xlu0 %v1299
    %v1301 = vpop.xlane.xlu0 %1300
    %vm1302 = vcmask 7168
    %v1303 = vsel %vm1302, %v1298, %v1301
    %vm1304 = vcmask 64512
    %v1306 = vsel %vm1304, %v84, 0
    %1308 = vmatprep.subr.mxu0 0.0
    %1309 = vmatpush1.msra.mxu0 %v1303
    %1310 = vmatprep.subr.mxu0 0.0
    %1311 = vmatpush1.msra.mxu0 0.0
    %1312 = vmatprep.subr.mxu0 0.0
    %1313 = vmatpush1.msra.mxu0 0.0
    %1314 = vmatprep.subr.mxu0 0.0
    %1315 = vmatpush1.msra.mxu0 0.0
    %1316 = vmatprep.subr.mxu0 0.0
    %1317 = vmatpush1.msra.mxu0 0.0
    %1318 = vmatprep.subr.mxu0 0.0
    %1319 = vmatpush1.msra.mxu0 0.0
    %1320 = vmatprep.subr.mxu0 0.0
    %1321 = vmatpush1.msra.mxu0 0.0
    %1322 = vmatprep.subr.mxu0 0.0
    %1323 = vmatpush1.msra.mxu0 0.0
    %1324 = vmatprep.subr.mxu0 0.0
    %1325 = vmatpush1.msra.mxu0 0.0
    %1326 = vmatprep.subr.mxu0 0.0
    %1327 = vmatpush1.msra.mxu0 0.0
    %1328 = vmatprep.subr.mxu0 0.0
    %1329 = vmatpush1.msra.mxu0 0.0
    %1330 = vmatprep.subr.mxu0 0.0
    %1331 = vmatpush1.msra.mxu0 0.0
    %1332 = vmatprep.subr.mxu0 0.0
    %1333 = vmatpush1.msra.mxu0 0.0
    %1334 = vmatprep.subr.mxu0 0.0
    %1335 = vmatpush1.msra.mxu0 0.0
    %1336 = vmatprep.subr.mxu0 0.0
    %1337 = vmatpush1.msra.mxu0 0.0
    %1338 = vmatprep.subr.mxu0 0.0
    %1339 = vmatpush1.msra.mxu0 0.0
    %1340 = vmatprep.subr.mxu0 0.0
    %1341 = vmatpush1.msra.mxu0 0.0
    %1342 = vmatprep.subr.mxu0 0.0
    %1343 = vmatpush1.msra.mxu0 0.0
    %1344 = vmatprep.subr.mxu0 0.0
    %1345 = vmatpush1.msra.mxu0 0.0
    %1346 = vmatprep.subr.mxu0 0.0
    %1347 = vmatpush1.msra.mxu0 0.0
    %1348 = vmatprep.subr.mxu0 0.0
    %1349 = vmatpush1.msra.mxu0 0.0
    %1350 = vmatprep.subr.mxu0 0.0
    %1351 = vmatpush1.msra.mxu0 0.0
    %1352 = vmatprep.subr.mxu0 0.0
    %1353 = vmatpush1.msra.mxu0 0.0
    %1354 = vmatprep.subr.mxu0 0.0
    %1355 = vmatpush1.msra.mxu0 0.0
    %1356 = vmatprep.subr.mxu0 0.0
    %1357 = vmatpush1.msra.mxu0 0.0
    %1358 = vmatprep.subr.mxu0 0.0
    %1359 = vmatpush1.msra.mxu0 0.0
    %1360 = vmatprep.subr.mxu0 0.0
    %1361 = vmatpush1.msra.mxu0 0.0
    %1362 = vmatprep.subr.mxu0 0.0
    %1363 = vmatpush1.msra.mxu0 0.0
    %1364 = vmatprep.subr.mxu0 0.0
    %1365 = vmatpush1.msra.mxu0 0.0
    %1366 = vmatprep.subr.mxu0 0.0
    %1367 = vmatpush1.msra.mxu0 0.0
    %1368 = vmatprep.subr.mxu0 0.0
    %1369 = vmatpush1.msra.mxu0 0.0
    %1370 = vmatprep.subr.mxu0 0.0
    %1371 = vmatpush1.msra.mxu0 0.0
    %1372 = vmatprep.mubr.f32.mxu0 0.0
    %1373 = vmatmul.mubr.f32.gmra.mrb[0].mxu0 %v1306
    %v1374 = vpop.f32.mrb[0].mxu0
    %v1375 = vadd.f32 0.0, %v1374
    %v1376 = vpop.f32.mrb[0].mxu0
    %1377 = vdwg.mxu0
    %v1378 = vmax.f32 %v1375, 0.0
    %v1380 = vsel %vm1302, %v85, 0
    %vm1382 = vcmask 1040384
    %v1384 = vsel %vm1382, %v1378, 0
    %1386 = vmatprep.subr.mxu0 0.0
    %1387 = vmatpush1.msra.mxu0 %v1384
    %1388 = vmatprep.subr.mxu0 0.0
    %1389 = vmatpush1.msra.mxu0 0.0
    %1390 = vmatprep.subr.mxu0 0.0
    %1391 = vmatpush1.msra.mxu0 0.0
    %1392 = vmatprep.subr.mxu0 0.0
    %1393 = vmatpush1.msra.mxu0 0.0
    %1394 = vmatprep.subr.mxu0 0.0
    %1395 = vmatpush1.msra.mxu0 0.0
    %1396 = vmatprep.subr.mxu0 0.0
    %1397 = vmatpush1.msra.mxu0 0.0
    %1398 = vmatprep.subr.mxu0 0.0
    %1399 = vmatpush1.msra.mxu0 0.0
    %1400 = vmatprep.subr.mxu0 0.0
    %1401 = vmatpush1.msra.mxu0 0.0
    %1402 = vmatprep.subr.mxu0 0.0
    %1403 = vmatpush1.msra.mxu0 0.0
    %1404 = vmatprep.subr.mxu0 0.0
    %1405 = vmatpush1.msra.mxu0 0.0
    %1406 = vmatprep.subr.mxu0 0.0
    %1407 = vmatpush1.msra.mxu0 0.0
    %1408 = vmatprep.subr.mxu0 0.0
    %1409 = vmatpush1.msra.mxu0 0.0
    %1410 = vmatprep.subr.mxu0 0.0
    %1411 = vmatpush1.msra.mxu0 0.0
    %1412 = vmatprep.subr.mxu0 0.0
    %1413 = vmatpush1.msra.mxu0 0.0
    %1414 = vmatprep.subr.mxu0 0.0
    %1415 = vmatpush1.msra.mxu0 0.0
    %1416 = vmatprep.subr.mxu0 0.0
    %1417 = vmatpush1.msra.mxu0 0.0
    %1418 = vmatprep.subr.mxu0 0.0
    %1419 = vmatpush1.msra.mxu0 0.0
    %1420 = vmatprep.subr.mxu0 0.0
    %1421 = vmatpush1.msra.mxu0 0.0
    %1422 = vmatprep.subr.mxu0 0.0
    %1423 = vmatpush1.msra.mxu0 0.0
    %1424 = vmatprep.subr.mxu0 0.0
    %1425 = vmatpush1.msra.mxu0 0.0
    %1426 = vmatprep.subr.mxu0 0.0
    %1427 = vmatpush1.msra.mxu0 0.0
    %1428 = vmatprep.subr.mxu0 0.0
    %1429 = vmatpush1.msra.mxu0 0.0
    %1430 = vmatprep.subr.mxu0 0.0
    %1431 = vmatpush1.msra.mxu0 0.0
    %1432 = vmatprep.subr.mxu0 0.0
    %1433 = vmatpush1.msra.mxu0 0.0
    %1434 = vmatprep.subr.mxu0 0.0
    %1435 = vmatpush1.msra.mxu0 0.0
    %1436 = vmatprep.subr.mxu0 0.0
    %1437 = vmatpush1.msra.mxu0 0.0
    %1438 = vmatprep.subr.mxu0 0.0
    %1439 = vmatpush1.msra.mxu0 0.0
    %1440 = vmatprep.subr.mxu0 0.0
    %1441 = vmatpush1.msra.mxu0 0.0
    %1442 = vmatprep.subr.mxu0 0.0
    %1443 = vmatpush1.msra.mxu0 0.0
    %1444 = vmatprep.subr.mxu0 0.0
    %1445 = vmatpush1.msra.mxu0 0.0
    %1446 = vmatprep.subr.mxu0 0.0
    %1447 = vmatpush1.msra.mxu0 0.0
    %1448 = vmatprep.subr.mxu0 0.0
    %1449 = vmatpush1.msra.mxu0 0.0
    %1450 = vmatprep.mubr.f32.mxu0 0.0
    %1451 = vmatmul.mubr.f32.gmra.mrb[0].mxu0 %v1380
    %v1452 = vpop.f32.mrb[0].mxu0
    %v1453 = vadd.f32 0.0, %v1452
    %v1454 = vpop.f32.mrb[0].mxu0
    %1455 = vdwg.mxu0
    %1457 = vrot.lane.b32.xlu0 %v1453, 127
    %v1458 = vpop.permute.xlu0 %1457
    %v1460 = vadd.f32 %v1453, %v1458
    %v1461 = vxor.u32 %v1460, 2147483648
    %v1462 = vmul.f32 %v1461, 1.442695
    %v1463 = vpow.pop %v1462
    %v1464 = vadd.f32 %v1463, 1.0
    %v1465 = vrcp.pop %v1464
    %v1466 = vmul.f32 1.0, %v1465
    %1468 = vset.pattern.permute.xlu0 0
    %1469 = vperm.xlu0 %1468, %v1466
    %v1470 = vpop.permute.xlu0 %1469
    %v1472 = vmul.f32 %v1292, %v1470
    %v1473 = vmul.f32 %v1293, %v1470
    %v1474 = vrot.slane %v1472, 4
    %v1475 = vadd.f32 %v1472, %v1474
    %v1476 = vrot.slane %v1475, 2
    %v1477 = vadd.f32 %v1475, %v1476
    %v1478 = vrot.slane %v1477, 1
    %v1479 = vadd.f32 %v1477, %v1478
    %v1480 = vrot.slane %v1473, 4
    %v1481 = vadd.f32 %v1473, %v1480
    %v1482 = vrot.slane %v1481, 2
    %v1483 = vadd.f32 %v1481, %v1482
    %v1484 = vrot.slane %v1483, 1
    %v1485 = vadd.f32 %v1483, %v1484
    %v1486 = vrcp.pop 8.0
    %v1487 = vmul.f32 %v1479, %v1486
    %v1488 = vmul.f32 %v1485, %v1486
    %v1489 = vrot.slane %v1472, 4
    %v1490 = vmax.f32 %v1472, %v1489
    %v1491 = vrot.slane %v1490, 2
    %v1492 = vmax.f32 %v1490, %v1491
    %v1493 = vrot.slane %v1492, 1
    %v1494 = vmax.f32 %v1492, %v1493
    %v1495 = vrot.slane %v1473, 4
    %v1496 = vmax.f32 %v1473, %v1495
    %v1497 = vrot.slane %v1496, 2
    %v1498 = vmax.f32 %v1496, %v1497
    %v1499 = vrot.slane %v1498, 1
    %v1500 = vmax.f32 %v1498, %v1499
    %v1501 = vsel %vm1382, %v1487, %v1494
    %v1502 = vsel %vm1382, %v1488, %v1500
    %1503 = vrot.lane.b32.xlu0 %v1501, 51
    %v1504 = vpop.permute.xlu0 %1503
    %1505 = vrot.lane.b32.xlu0 %v1502, 51
    %v1506 = vpop.permute.xlu0 %1505
    %vm1507 = vcmp.lt.s32.totalorder %v113, 51
    %v1508 = vsel %vm1507, %v1504, %v1506
    %v1509 = vsel %vm1507, %v1506, %v1504
    %v1510 = vlaneseq
    %v1511 = vshrl.u32 %v1510, 7
    %v1512 = vsub.s32 0, %v1511
    %v1513 = vrot.slane %v90, %v1512
    %v1514 = vlaneseq
    %v1515 = vshrl.u32 %v1514, 7
    %v1516 = vsub.s32 0, %v1515
    %v1517 = vrot.slane %v91, %v1516
    %v1518 = vmul.f32 %v1509, %v1513
    %v1519 = vmul.f32 %v1508, %v1517
    %s1520 = sld [smem:[#allocation2]]
    %v1521 = vstv %s1520
    %v1522 = vmul.f32 %v1521, %v1518
    %v1523 = vmul.f32 %v1521, %v1519
    %v1524 = vadd.f32 %v1522, 0.0
    %v1525 = vadd.f32 %v1523, 0.0
    %s1526 = sld [smem:[#allocation2 + $0x1]]
    %v1527 = vstv %s1526
    %v1528 = vmul.f32 %v1527, %v1518
    %v1529 = vmul.f32 %v1527, %v1519
    %v1532 = vrot.slane %v1528, 1
    %v1533 = vrot.slane %v1529, 1
    %v1536 = vadd.f32 %v1524, %v1532
    %v1537 = vadd.f32 %v1525, %v1533
    %1538 = vrot.lane.b32.xlu0 %v1501, 50
    %v1539 = vpop.permute.xlu0 %1538
    %1540 = vrot.lane.b32.xlu0 %v1502, 50
    %v1541 = vpop.permute.xlu0 %1540
    %vm1542 = vcmp.lt.s32.totalorder %v113, 50
    %v1543 = vsel %vm1542, %v1539, %v1541
    %v1544 = vsel %vm1542, %v1541, %v1539
    %v1545 = vlaneseq
    %v1546 = vshrl.u32 %v1545, 7
    %v1547 = vsub.s32 1, %v1546
    %v1548 = vrot.slane %v90, %v1547
    %v1549 = vlaneseq
    %v1550 = vshrl.u32 %v1549, 7
    %v1551 = vsub.s32 1, %v1550
    %v1552 = vrot.slane %v91, %v1551
    %v1553 = vmul.f32 %v1544, %v1548
    %v1554 = vmul.f32 %v1543, %v1552
    %s1555 = sld [smem:[#allocation2 + $0x2]]
    %v1556 = vstv %s1555
    %v1557 = vmul.f32 %v1556, %v1553
    %v1558 = vmul.f32 %v1556, %v1554
    %v1559 = vadd.f32 %v1536, %v1557
    %v1560 = vadd.f32 %v1537, %v1558
    %s1561 = sld [smem:[#allocation2 + $0x3]]
    %v1562 = vstv %s1561
    %v1563 = vmul.f32 %v1562, %v1553
    %v1564 = vmul.f32 %v1562, %v1554
    %v1567 = vrot.slane %v1563, 1
    %v1568 = vrot.slane %v1564, 1
    %v1571 = vadd.f32 %v1559, %v1567
    %v1572 = vadd.f32 %v1560, %v1568
    %1573 = vrot.lane.b32.xlu0 %v1501, 49
    %v1574 = vpop.permute.xlu0 %1573
    %1575 = vrot.lane.b32.xlu0 %v1502, 49
    %v1576 = vpop.permute.xlu0 %1575
    %vm1577 = vcmp.lt.s32.totalorder %v113, 49
    %v1578 = vsel %vm1577, %v1574, %v1576
    %v1579 = vsel %vm1577, %v1576, %v1574
    %v1580 = vlaneseq
    %v1581 = vshrl.u32 %v1580, 7
    %v1582 = vsub.s32 2, %v1581
    %v1583 = vrot.slane %v90, %v1582
    %v1584 = vlaneseq
    %v1585 = vshrl.u32 %v1584, 7
    %v1586 = vsub.s32 2, %v1585
    %v1587 = vrot.slane %v91, %v1586
    %v1588 = vmul.f32 %v1579, %v1583
    %v1589 = vmul.f32 %v1578, %v1587
    %s1590 = sld [smem:[#allocation2 + $0x4]]
    %v1591 = vstv %s1590
    %v1592 = vmul.f32 %v1591, %v1588
    %v1593 = vmul.f32 %v1591, %v1589
    %v1594 = vadd.f32 %v1571, %v1592
    %v1595 = vadd.f32 %v1572, %v1593
    %s1596 = sld [smem:[#allocation2 + $0x5]]
    %v1597 = vstv %s1596
    %v1598 = vmul.f32 %v1597, %v1588
    %v1599 = vmul.f32 %v1597, %v1589
    %v1602 = vrot.slane %v1598, 1
    %v1603 = vrot.slane %v1599, 1
    %v1606 = vadd.f32 %v1594, %v1602
    %v1607 = vadd.f32 %v1595, %v1603
    %1608 = vrot.lane.b32.xlu0 %v1501, 48
    %v1609 = vpop.permute.xlu0 %1608
    %1610 = vrot.lane.b32.xlu0 %v1502, 48
    %v1611 = vpop.permute.xlu0 %1610
    %vm1612 = vcmp.lt.s32.totalorder %v113, 48
    %v1613 = vsel %vm1612, %v1609, %v1611
    %v1614 = vsel %vm1612, %v1611, %v1609
    %v1615 = vlaneseq
    %v1616 = vshrl.u32 %v1615, 7
    %v1617 = vsub.s32 3, %v1616
    %v1618 = vrot.slane %v90, %v1617
    %v1619 = vlaneseq
    %v1620 = vshrl.u32 %v1619, 7
    %v1621 = vsub.s32 3, %v1620
    %v1622 = vrot.slane %v91, %v1621
    %v1623 = vmul.f32 %v1614, %v1618
    %v1624 = vmul.f32 %v1613, %v1622
    %s1625 = sld [smem:[#allocation2 + $0x6]]
    %v1626 = vstv %s1625
    %v1627 = vmul.f32 %v1626, %v1623
    %v1628 = vmul.f32 %v1626, %v1624
    %v1629 = vadd.f32 %v1606, %v1627
    %v1630 = vadd.f32 %v1607, %v1628
    %s1631 = sld [smem:[#allocation2 + $0x7]]
    %v1632 = vstv %s1631
    %v1633 = vmul.f32 %v1632, %v1623
    %v1634 = vmul.f32 %v1632, %v1624
    %v1637 = vrot.slane %v1633, 1
    %v1638 = vrot.slane %v1634, 1
    %v1641 = vadd.f32 %v1629, %v1637
    %v1642 = vadd.f32 %v1630, %v1638
    %1643 = vrot.lane.b32.xlu0 %v1501, 47
    %v1644 = vpop.permute.xlu0 %1643
    %1645 = vrot.lane.b32.xlu0 %v1502, 47
    %v1646 = vpop.permute.xlu0 %1645
    %vm1647 = vcmp.lt.s32.totalorder %v113, 47
    %v1648 = vsel %vm1647, %v1644, %v1646
    %v1649 = vsel %vm1647, %v1646, %v1644
    %v1650 = vlaneseq
    %v1651 = vshrl.u32 %v1650, 7
    %v1652 = vsub.s32 4, %v1651
    %v1653 = vrot.slane %v90, %v1652
    %v1654 = vlaneseq
    %v1655 = vshrl.u32 %v1654, 7
    %v1656 = vsub.s32 4, %v1655
    %v1657 = vrot.slane %v91, %v1656
    %v1658 = vmul.f32 %v1649, %v1653
    %v1659 = vmul.f32 %v1648, %v1657
    %s1660 = sld [smem:[#allocation2 + $0x8]]
    %v1661 = vstv %s1660
    %v1662 = vmul.f32 %v1661, %v1658
    %v1663 = vmul.f32 %v1661, %v1659
    %v1664 = vadd.f32 %v1641, %v1662
    %v1665 = vadd.f32 %v1642, %v1663
    %s1666 = sld [smem:[#allocation2 + $0x9]]
    %v1667 = vstv %s1666
    %v1668 = vmul.f32 %v1667, %v1658
    %v1669 = vmul.f32 %v1667, %v1659
    %v1672 = vrot.slane %v1668, 1
    %v1673 = vrot.slane %v1669, 1
    %v1676 = vadd.f32 %v1664, %v1672
    %v1677 = vadd.f32 %v1665, %v1673
    %1678 = vrot.lane.b32.xlu0 %v1501, 46
    %v1679 = vpop.permute.xlu0 %1678
    %1680 = vrot.lane.b32.xlu0 %v1502, 46
    %v1681 = vpop.permute.xlu0 %1680
    %vm1682 = vcmp.lt.s32.totalorder %v113, 46
    %v1683 = vsel %vm1682, %v1679, %v1681
    %v1684 = vsel %vm1682, %v1681, %v1679
    %v1685 = vlaneseq
    %v1686 = vshrl.u32 %v1685, 7
    %v1687 = vsub.s32 5, %v1686
    %v1688 = vrot.slane %v90, %v1687
    %v1689 = vlaneseq
    %v1690 = vshrl.u32 %v1689, 7
    %v1691 = vsub.s32 5, %v1690
    %v1692 = vrot.slane %v91, %v1691
    %v1693 = vmul.f32 %v1684, %v1688
    %v1694 = vmul.f32 %v1683, %v1692
    %s1695 = sld [smem:[#allocation2 + $0xa]]
    %v1696 = vstv %s1695
    %v1697 = vmul.f32 %v1696, %v1693
    %v1698 = vmul.f32 %v1696, %v1694
    %v1699 = vadd.f32 %v1676, %v1697
    %v1700 = vadd.f32 %v1677, %v1698
    %s1701 = sld [smem:[#allocation2 + $0xb]]
    %v1702 = vstv %s1701
    %v1703 = vmul.f32 %v1702, %v1693
    %v1704 = vmul.f32 %v1702, %v1694
    %v1707 = vrot.slane %v1703, 1
    %v1708 = vrot.slane %v1704, 1
    %v1711 = vadd.f32 %v1699, %v1707
    %v1712 = vadd.f32 %v1700, %v1708
    %1713 = vrot.lane.b32.xlu0 %v1501, 45
    %v1714 = vpop.permute.xlu0 %1713
    %1715 = vrot.lane.b32.xlu0 %v1502, 45
    %v1716 = vpop.permute.xlu0 %1715
    %vm1717 = vcmp.lt.s32.totalorder %v113, 45
    %v1718 = vsel %vm1717, %v1714, %v1716
    %v1719 = vsel %vm1717, %v1716, %v1714
    %v1720 = vlaneseq
    %v1721 = vshrl.u32 %v1720, 7
    %v1722 = vsub.s32 6, %v1721
    %v1723 = vrot.slane %v90, %v1722
    %v1724 = vlaneseq
    %v1725 = vshrl.u32 %v1724, 7
    %v1726 = vsub.s32 6, %v1725
    %v1727 = vrot.slane %v91, %v1726
    %v1728 = vmul.f32 %v1719, %v1723
    %v1729 = vmul.f32 %v1718, %v1727
    %s1730 = sld [smem:[#allocation2 + $0xc]]
    %v1731 = vstv %s1730
    %v1732 = vmul.f32 %v1731, %v1728
    %v1733 = vmul.f32 %v1731, %v1729
    %v1734 = vadd.f32 %v1711, %v1732
    %v1735 = vadd.f32 %v1712, %v1733
    %s1736 = sld [smem:[#allocation2 + $0xd]]
    %v1737 = vstv %s1736
    %v1738 = vmul.f32 %v1737, %v1728
    %v1739 = vmul.f32 %v1737, %v1729
    %v1742 = vrot.slane %v1738, 1
    %v1743 = vrot.slane %v1739, 1
    %v1746 = vadd.f32 %v1734, %v1742
    %v1747 = vadd.f32 %v1735, %v1743
    %1748 = vrot.lane.b32.xlu0 %v1501, 35
    %v1749 = vpop.permute.xlu0 %1748
    %1750 = vrot.lane.b32.xlu0 %v1502, 35
    %v1751 = vpop.permute.xlu0 %1750
    %vm1752 = vcmp.lt.s32.totalorder %v113, 35
    %v1753 = vsel %vm1752, %v1749, %v1751
    %v1754 = vsel %vm1752, %v1751, %v1749
    %v1755 = vlaneseq
    %v1756 = vshrl.u32 %v1755, 7
    %v1757 = vsub.s32 7, %v1756
    %v1758 = vrot.slane %v90, %v1757
    %v1759 = vlaneseq
    %v1760 = vshrl.u32 %v1759, 7
    %v1761 = vsub.s32 7, %v1760
    %v1762 = vrot.slane %v91, %v1761
    %v1763 = vmul.f32 %v1754, %v1758
    %v1764 = vmul.f32 %v1753, %v1762
    %s1765 = sld [smem:[#allocation2 + $0xe]]
    %v1766 = vstv %s1765
    %v1767 = vmul.f32 %v1766, %v1763
    %v1768 = vmul.f32 %v1766, %v1764
    %v1769 = vadd.f32 %v1746, %v1767
    %v1770 = vadd.f32 %v1747, %v1768
    %s1771 = sld [smem:[#allocation2 + $0xf]]
    %v1772 = vstv %s1771
    %v1773 = vmul.f32 %v1772, %v1763
    %v1774 = vmul.f32 %v1772, %v1764
    %v1777 = vrot.slane %v1773, 1
    %v1778 = vrot.slane %v1774, 1
    %v1781 = vadd.f32 %v1769, %v1777
    %v1782 = vadd.f32 %v1770, %v1778
    %1783 = vrot.lane.b32.xlu0 %v1501, 34
    %v1784 = vpop.permute.xlu0 %1783
    %1785 = vrot.lane.b32.xlu0 %v1502, 34
    %v1786 = vpop.permute.xlu0 %1785
    %vm1787 = vcmp.lt.s32.totalorder %v113, 34
    %v1788 = vsel %vm1787, %v1784, %v1786
    %v1789 = vsel %vm1787, %v1786, %v1784
    %v1790 = vlaneseq
    %v1791 = vshrl.u32 %v1790, 7
    %v1792 = vsub.s32 0, %v1791
    %v1793 = vrot.slane %v92, %v1792
    %v1794 = vlaneseq
    %v1795 = vshrl.u32 %v1794, 7
    %v1796 = vsub.s32 0, %v1795
    %v1797 = vrot.slane %v93, %v1796
    %v1798 = vmul.f32 %v1789, %v1793
    %v1799 = vmul.f32 %v1788, %v1797
    %s1800 = sld [smem:[#allocation2 + $0x10]]
    %v1801 = vstv %s1800
    %v1802 = vmul.f32 %v1801, %v1798
    %v1803 = vmul.f32 %v1801, %v1799
    %v1804 = vadd.f32 %v1781, %v1802
    %v1805 = vadd.f32 %v1782, %v1803
    %s1806 = sld [smem:[#allocation2 + $0x11]]
    %v1807 = vstv %s1806
    %v1808 = vmul.f32 %v1807, %v1798
    %v1809 = vmul.f32 %v1807, %v1799
    %v1812 = vrot.slane %v1808, 1
    %v1813 = vrot.slane %v1809, 1
    %v1816 = vadd.f32 %v1804, %v1812
    %v1817 = vadd.f32 %v1805, %v1813
    %1818 = vrot.lane.b32.xlu0 %v1501, 33
    %v1819 = vpop.permute.xlu0 %1818
    %1820 = vrot.lane.b32.xlu0 %v1502, 33
    %v1821 = vpop.permute.xlu0 %1820
    %vm1822 = vcmp.lt.s32.totalorder %v113, 33
    %v1823 = vsel %vm1822, %v1819, %v1821
    %v1824 = vsel %vm1822, %v1821, %v1819
    %v1825 = vlaneseq
    %v1826 = vshrl.u32 %v1825, 7
    %v1827 = vsub.s32 1, %v1826
    %v1828 = vrot.slane %v92, %v1827
    %v1829 = vlaneseq
    %v1830 = vshrl.u32 %v1829, 7
    %v1831 = vsub.s32 1, %v1830
    %v1832 = vrot.slane %v93, %v1831
    %v1833 = vmul.f32 %v1824, %v1828
    %v1834 = vmul.f32 %v1823, %v1832
    %s1835 = sld [smem:[#allocation2 + $0x12]]
    %v1836 = vstv %s1835
    %v1837 = vmul.f32 %v1836, %v1833
    %v1838 = vmul.f32 %v1836, %v1834
    %v1839 = vadd.f32 %v1816, %v1837
    %v1840 = vadd.f32 %v1817, %v1838
    %s1841 = sld [smem:[#allocation2 + $0x13]]
    %v1842 = vstv %s1841
    %v1843 = vmul.f32 %v1842, %v1833
    %v1844 = vmul.f32 %v1842, %v1834
    %v1847 = vrot.slane %v1843, 1
    %v1848 = vrot.slane %v1844, 1
    %v1851 = vadd.f32 %v1839, %v1847
    %v1852 = vadd.f32 %v1840, %v1848
    %1853 = vrot.lane.b32.xlu0 %v1501, 32
    %v1854 = vpop.permute.xlu0 %1853
    %1855 = vrot.lane.b32.xlu0 %v1502, 32
    %v1856 = vpop.permute.xlu0 %1855
    %vm1857 = vcmp.lt.s32.totalorder %v113, 32
    %v1858 = vsel %vm1857, %v1854, %v1856
    %v1859 = vsel %vm1857, %v1856, %v1854
    %v1860 = vlaneseq
    %v1861 = vshrl.u32 %v1860, 7
    %v1862 = vsub.s32 2, %v1861
    %v1863 = vrot.slane %v92, %v1862
    %v1864 = vlaneseq
    %v1865 = vshrl.u32 %v1864, 7
    %v1866 = vsub.s32 2, %v1865
    %v1867 = vrot.slane %v93, %v1866
    %v1868 = vmul.f32 %v1859, %v1863
    %v1869 = vmul.f32 %v1858, %v1867
    %s1870 = sld [smem:[#allocation2 + $0x14]]
    %v1871 = vstv %s1870
    %v1872 = vmul.f32 %v1871, %v1868
    %v1873 = vmul.f32 %v1871, %v1869
    %v1874 = vadd.f32 %v1851, %v1872
    %v1875 = vadd.f32 %v1852, %v1873
    %s1876 = sld [smem:[#allocation2 + $0x15]]
    %v1877 = vstv %s1876
    %v1878 = vmul.f32 %v1877, %v1868
    %v1879 = vmul.f32 %v1877, %v1869
    %v1882 = vrot.slane %v1878, 1
    %v1883 = vrot.slane %v1879, 1
    %v1886 = vadd.f32 %v1874, %v1882
    %v1887 = vadd.f32 %v1875, %v1883
    %1888 = vrot.lane.b32.xlu0 %v1501, 31
    %v1889 = vpop.permute.xlu0 %1888
    %1890 = vrot.lane.b32.xlu0 %v1502, 31
    %v1891 = vpop.permute.xlu0 %1890
    %vm1892 = vcmp.lt.s32.totalorder %v113, 31
    %v1893 = vsel %vm1892, %v1889, %v1891
    %v1894 = vsel %vm1892, %v1891, %v1889
    %v1895 = vlaneseq
    %v1896 = vshrl.u32 %v1895, 7
    %v1897 = vsub.s32 3, %v1896
    %v1898 = vrot.slane %v92, %v1897
    %v1899 = vlaneseq
    %v1900 = vshrl.u32 %v1899, 7
    %v1901 = vsub.s32 3, %v1900
    %v1902 = vrot.slane %v93, %v1901
    %v1903 = vmul.f32 %v1894, %v1898
    %v1904 = vmul.f32 %v1893, %v1902
    %s1905 = sld [smem:[#allocation2 + $0x16]]
    %v1906 = vstv %s1905
    %v1907 = vmul.f32 %v1906, %v1903
    %v1908 = vmul.f32 %v1906, %v1904
    %v1909 = vadd.f32 %v1886, %v1907
    %v1910 = vadd.f32 %v1887, %v1908
    %s1911 = sld [smem:[#allocation2 + $0x17]]
    %v1912 = vstv %s1911
    %v1913 = vmul.f32 %v1912, %v1903
    %v1914 = vmul.f32 %v1912, %v1904
    %v1917 = vrot.slane %v1913, 1
    %v1918 = vrot.slane %v1914, 1
    %v1921 = vadd.f32 %v1909, %v1917
    %v1922 = vadd.f32 %v1910, %v1918
    %1923 = vrot.lane.b32.xlu0 %v1501, 30
    %v1924 = vpop.permute.xlu0 %1923
    %1925 = vrot.lane.b32.xlu0 %v1502, 30
    %v1926 = vpop.permute.xlu0 %1925
    %vm1927 = vcmp.lt.s32.totalorder %v113, 30
    %v1928 = vsel %vm1927, %v1924, %v1926
    %v1929 = vsel %vm1927, %v1926, %v1924
    %v1930 = vlaneseq
    %v1931 = vshrl.u32 %v1930, 7
    %v1932 = vsub.s32 4, %v1931
    %v1933 = vrot.slane %v92, %v1932
    %v1934 = vlaneseq
    %v1935 = vshrl.u32 %v1934, 7
    %v1936 = vsub.s32 4, %v1935
    %v1937 = vrot.slane %v93, %v1936
    %v1938 = vmul.f32 %v1929, %v1933
    %v1939 = vmul.f32 %v1928, %v1937
    %s1940 = sld [smem:[#allocation2 + $0x18]]
    %v1941 = vstv %s1940
    %v1942 = vmul.f32 %v1941, %v1938
    %v1943 = vmul.f32 %v1941, %v1939
    %v1944 = vadd.f32 %v1921, %v1942
    %v1945 = vadd.f32 %v1922, %v1943
    %s1946 = sld [smem:[#allocation2 + $0x19]]
    %v1947 = vstv %s1946
    %v1948 = vmul.f32 %v1947, %v1938
    %v1949 = vmul.f32 %v1947, %v1939
    %v1952 = vrot.slane %v1948, 1
    %v1953 = vrot.slane %v1949, 1
    %v1956 = vadd.f32 %v1944, %v1952
    %v1957 = vadd.f32 %v1945, %v1953
    %1958 = vrot.lane.b32.xlu0 %v1501, 29
    %v1959 = vpop.permute.xlu0 %1958
    %1960 = vrot.lane.b32.xlu0 %v1502, 29
    %v1961 = vpop.permute.xlu0 %1960
    %vm1962 = vcmp.lt.s32.totalorder %v113, 29
    %v1963 = vsel %vm1962, %v1959, %v1961
    %v1964 = vsel %vm1962, %v1961, %v1959
    %v1965 = vlaneseq
    %v1966 = vshrl.u32 %v1965, 7
    %v1967 = vsub.s32 5, %v1966
    %v1968 = vrot.slane %v92, %v1967
    %v1969 = vlaneseq
    %v1970 = vshrl.u32 %v1969, 7
    %v1971 = vsub.s32 5, %v1970
    %v1972 = vrot.slane %v93, %v1971
    %v1973 = vmul.f32 %v1964, %v1968
    %v1974 = vmul.f32 %v1963, %v1972
    %s1975 = sld [smem:[#allocation2 + $0x1a]]
    %v1976 = vstv %s1975
    %v1977 = vmul.f32 %v1976, %v1973
    %v1978 = vmul.f32 %v1976, %v1974
    %v1979 = vadd.f32 %v1956, %v1977
    %v1980 = vadd.f32 %v1957, %v1978
    %s1981 = sld [smem:[#allocation2 + $0x1b]]
    %v1982 = vstv %s1981
    %v1983 = vmul.f32 %v1982, %v1973
    %v1984 = vmul.f32 %v1982, %v1974
    %v1987 = vrot.slane %v1983, 1
    %v1988 = vrot.slane %v1984, 1
    %v1991 = vadd.f32 %v1979, %v1987
    %v1992 = vadd.f32 %v1980, %v1988
    %1993 = vrot.lane.b32.xlu0 %v1501, 19
    %v1994 = vpop.permute.xlu0 %1993
    %1995 = vrot.lane.b32.xlu0 %v1502, 19
    %v1996 = vpop.permute.xlu0 %1995
    %vm1997 = vcmp.lt.s32.totalorder %v113, 19
    %v1998 = vsel %vm1997, %v1994, %v1996
    %v1999 = vsel %vm1997, %v1996, %v1994
    %v2000 = vlaneseq
    %v2001 = vshrl.u32 %v2000, 7
    %v2002 = vsub.s32 6, %v2001
    %v2003 = vrot.slane %v92, %v2002
    %v2004 = vlaneseq
    %v2005 = vshrl.u32 %v2004, 7
    %v2006 = vsub.s32 6, %v2005
    %v2007 = vrot.slane %v93, %v2006
    %v2008 = vmul.f32 %v1999, %v2003
    %v2009 = vmul.f32 %v1998, %v2007
    %s2010 = sld [smem:[#allocation2 + $0x1c]]
    %v2011 = vstv %s2010
    %v2012 = vmul.f32 %v2011, %v2008
    %v2013 = vmul.f32 %v2011, %v2009
    %v2014 = vadd.f32 %v1991, %v2012
    %v2015 = vadd.f32 %v1992, %v2013
    %s2016 = sld [smem:[#allocation2 + $0x1d]]
    %v2017 = vstv %s2016
    %v2018 = vmul.f32 %v2017, %v2008
    %v2019 = vmul.f32 %v2017, %v2009
    %v2022 = vrot.slane %v2018, 1
    %v2023 = vrot.slane %v2019, 1
    %v2026 = vadd.f32 %v2014, %v2022
    %v2027 = vadd.f32 %v2015, %v2023
    %2028 = vrot.lane.b32.xlu0 %v1501, 18
    %v2029 = vpop.permute.xlu0 %2028
    %2030 = vrot.lane.b32.xlu0 %v1502, 18
    %v2031 = vpop.permute.xlu0 %2030
    %vm2032 = vcmp.lt.s32.totalorder %v113, 18
    %v2033 = vsel %vm2032, %v2029, %v2031
    %v2034 = vsel %vm2032, %v2031, %v2029
    %v2035 = vlaneseq
    %v2036 = vshrl.u32 %v2035, 7
    %v2037 = vsub.s32 7, %v2036
    %v2038 = vrot.slane %v92, %v2037
    %v2039 = vlaneseq
    %v2040 = vshrl.u32 %v2039, 7
    %v2041 = vsub.s32 7, %v2040
    %v2042 = vrot.slane %v93, %v2041
    %v2043 = vmul.f32 %v2034, %v2038
    %v2044 = vmul.f32 %v2033, %v2042
    %s2045 = sld [smem:[#allocation2 + $0x1e]]
    %v2046 = vstv %s2045
    %v2047 = vmul.f32 %v2046, %v2043
    %v2048 = vmul.f32 %v2046, %v2044
    %v2049 = vadd.f32 %v2026, %v2047
    %v2050 = vadd.f32 %v2027, %v2048
    %s2051 = sld [smem:[#allocation2 + $0x1f]]
    %v2052 = vstv %s2051
    %v2053 = vmul.f32 %v2052, %v2043
    %v2054 = vmul.f32 %v2052, %v2044
    %v2057 = vrot.slane %v2053, 1
    %v2058 = vrot.slane %v2054, 1
    %v2061 = vadd.f32 %v2049, %v2057
    %v2062 = vadd.f32 %v2050, %v2058
    %2063 = vrot.lane.b32.xlu0 %v1501, 17
    %v2064 = vpop.permute.xlu0 %2063
    %2065 = vrot.lane.b32.xlu0 %v1502, 17
    %v2066 = vpop.permute.xlu0 %2065
    %v2067 = vsel %vm114, %v2064, %v2066
    %v2068 = vsel %vm114, %v2066, %v2064
    %v2069 = vlaneseq
    %v2070 = vshrl.u32 %v2069, 7
    %v2071 = vsub.s32 0, %v2070
    %v2072 = vrot.slane %v94, %v2071
    %v2073 = vlaneseq
    %v2074 = vshrl.u32 %v2073, 7
    %v2075 = vsub.s32 0, %v2074
    %v2076 = vrot.slane %v95, %v2075
    %v2077 = vmul.f32 %v2068, %v2072
    %v2078 = vmul.f32 %v2067, %v2076
    %s2079 = sld [smem:[#allocation2 + $0x20]]
    %v2080 = vstv %s2079
    %v2081 = vmul.f32 %v2080, %v2077
    %v2082 = vmul.f32 %v2080, %v2078
    %v2083 = vadd.f32 %v2061, %v2081
    %v2084 = vadd.f32 %v2062, %v2082
    %s2085 = sld [smem:[#allocation2 + $0x21]]
    %v2086 = vstv %s2085
    %v2087 = vmul.f32 %v2086, %v2077
    %v2088 = vmul.f32 %v2086, %v2078
    %v2091 = vrot.slane %v2087, 1
    %v2092 = vrot.slane %v2088, 1
    %v2095 = vadd.f32 %v2083, %v2091
    %v2096 = vadd.f32 %v2084, %v2092
    %2097 = vrot.lane.b32.xlu0 %v1501, 16
    %v2098 = vpop.permute.xlu0 %2097
    %2099 = vrot.lane.b32.xlu0 %v1502, 16
    %v2100 = vpop.permute.xlu0 %2099
    %v2101 = vsel %vm133, %v2098, %v2100
    %v2102 = vsel %vm133, %v2100, %v2098
    %v2103 = vlaneseq
    %v2104 = vshrl.u32 %v2103, 7
    %v2105 = vsub.s32 1, %v2104
    %v2106 = vrot.slane %v94, %v2105
    %v2107 = vlaneseq
    %v2108 = vshrl.u32 %v2107, 7
    %v2109 = vsub.s32 1, %v2108
    %v2110 = vrot.slane %v95, %v2109
    %v2111 = vmul.f32 %v2102, %v2106
    %v2112 = vmul.f32 %v2101, %v2110
    %s2113 = sld [smem:[#allocation2 + $0x22]]
    %v2114 = vstv %s2113
    %v2115 = vmul.f32 %v2114, %v2111
    %v2116 = vmul.f32 %v2114, %v2112
    %v2117 = vadd.f32 %v2095, %v2115
    %v2118 = vadd.f32 %v2096, %v2116
    %s2119 = sld [smem:[#allocation2 + $0x23]]
    %v2120 = vstv %s2119
    %v2121 = vmul.f32 %v2120, %v2111
    %v2122 = vmul.f32 %v2120, %v2112
    %v2125 = vrot.slane %v2121, 1
    %v2126 = vrot.slane %v2122, 1
    %v2129 = vadd.f32 %v2117, %v2125
    %v2130 = vadd.f32 %v2118, %v2126
    %2131 = vrot.lane.b32.xlu0 %v1501, 15
    %v2132 = vpop.permute.xlu0 %2131
    %2133 = vrot.lane.b32.xlu0 %v1502, 15
    %v2134 = vpop.permute.xlu0 %2133
    %v2135 = vsel %vm254, %v2132, %v2134
    %v2136 = vsel %vm254, %v2134, %v2132
    %v2137 = vlaneseq
    %v2138 = vshrl.u32 %v2137, 7
    %v2139 = vsub.s32 2, %v2138
    %v2140 = vrot.slane %v94, %v2139
    %v2141 = vlaneseq
    %v2142 = vshrl.u32 %v2141, 7
    %v2143 = vsub.s32 2, %v2142
    %v2144 = vrot.slane %v95, %v2143
    %v2145 = vmul.f32 %v2136, %v2140
    %v2146 = vmul.f32 %v2135, %v2144
    %s2147 = sld [smem:[#allocation2 + $0x24]]
    %v2148 = vstv %s2147
    %v2149 = vmul.f32 %v2148, %v2145
    %v2150 = vmul.f32 %v2148, %v2146
    %v2151 = vadd.f32 %v2129, %v2149
    %v2152 = vadd.f32 %v2130, %v2150
    %s2153 = sld [smem:[#allocation2 + $0x25]]
    %v2154 = vstv %s2153
    %v2155 = vmul.f32 %v2154, %v2145
    %v2156 = vmul.f32 %v2154, %v2146
    %v2159 = vrot.slane %v2155, 1
    %v2160 = vrot.slane %v2156, 1
    %v2163 = vadd.f32 %v2151, %v2159
    %v2164 = vadd.f32 %v2152, %v2160
    %2165 = vrot.lane.b32.xlu0 %v1501, 14
    %v2166 = vpop.permute.xlu0 %2165
    %2167 = vrot.lane.b32.xlu0 %v1502, 14
    %v2168 = vpop.permute.xlu0 %2167
    %vm2169 = vcmp.lt.s32.totalorder %v113, 14
    %v2170 = vsel %vm2169, %v2166, %v2168
    %v2171 = vsel %vm2169, %v2168, %v2166
    %v2172 = vlaneseq
    %v2173 = vshrl.u32 %v2172, 7
    %v2174 = vsub.s32 3, %v2173
    %v2175 = vrot.slane %v94, %v2174
    %v2176 = vlaneseq
    %v2177 = vshrl.u32 %v2176, 7
    %v2178 = vsub.s32 3, %v2177
    %v2179 = vrot.slane %v95, %v2178
    %v2180 = vmul.f32 %v2171, %v2175
    %v2181 = vmul.f32 %v2170, %v2179
    %s2182 = sld [smem:[#allocation2 + $0x26]]
    %v2183 = vstv %s2182
    %v2184 = vmul.f32 %v2183, %v2180
    %v2185 = vmul.f32 %v2183, %v2181
    %v2186 = vadd.f32 %v2163, %v2184
    %v2187 = vadd.f32 %v2164, %v2185
    %s2188 = sld [smem:[#allocation2 + $0x27]]
    %v2189 = vstv %s2188
    %v2190 = vmul.f32 %v2189, %v2180
    %v2191 = vmul.f32 %v2189, %v2181
    %v2194 = vrot.slane %v2190, 1
    %v2195 = vrot.slane %v2191, 1
    %v2198 = vadd.f32 %v2186, %v2194
    %v2199 = vadd.f32 %v2187, %v2195
    %2200 = vrot.lane.b32.xlu0 %v1501, 13
    %v2201 = vpop.permute.xlu0 %2200
    %2202 = vrot.lane.b32.xlu0 %v1502, 13
    %v2203 = vpop.permute.xlu0 %2202
    %vm2204 = vcmp.lt.s32.totalorder %v113, 13
    %v2205 = vsel %vm2204, %v2201, %v2203
    %v2206 = vsel %vm2204, %v2203, %v2201
    %v2207 = vlaneseq
    %v2208 = vshrl.u32 %v2207, 7
    %v2209 = vsub.s32 4, %v2208
    %v2210 = vrot.slane %v94, %v2209
    %v2211 = vlaneseq
    %v2212 = vshrl.u32 %v2211, 7
    %v2213 = vsub.s32 4, %v2212
    %v2214 = vrot.slane %v95, %v2213
    %v2215 = vmul.f32 %v2206, %v2210
    %v2216 = vmul.f32 %v2205, %v2214
    %s2217 = sld [smem:[#allocation2 + $0x28]]
    %v2218 = vstv %s2217
    %v2219 = vmul.f32 %v2218, %v2215
    %v2220 = vmul.f32 %v2218, %v2216
    %v2221 = vadd.f32 %v2198, %v2219
    %v2222 = vadd.f32 %v2199, %v2220
    %s2223 = sld [smem:[#allocation2 + $0x29]]
    %v2224 = vstv %s2223
    %v2225 = vmul.f32 %v2224, %v2215
    %v2226 = vmul.f32 %v2224, %v2216
    %v2229 = vrot.slane %v2225, 1
    %v2230 = vrot.slane %v2226, 1
    %v2233 = vadd.f32 %v2221, %v2229
    %v2234 = vadd.f32 %v2222, %v2230
    %2235 = vrot.lane.b32.xlu0 %v1501, 3
    %v2236 = vpop.permute.xlu0 %2235
    %2237 = vrot.lane.b32.xlu0 %v1502, 3
    %v2238 = vpop.permute.xlu0 %2237
    %vm2239 = vcmp.lt.s32.totalorder %v113, 3
    %v2240 = vsel %vm2239, %v2236, %v2238
    %v2241 = vsel %vm2239, %v2238, %v2236
    %v2242 = vlaneseq
    %v2243 = vshrl.u32 %v2242, 7
    %v2244 = vsub.s32 5, %v2243
    %v2245 = vrot.slane %v94, %v2244
    %v2246 = vlaneseq
    %v2247 = vshrl.u32 %v2246, 7
    %v2248 = vsub.s32 5, %v2247
    %v2249 = vrot.slane %v95, %v2248
    %v2250 = vmul.f32 %v2241, %v2245
    %v2251 = vmul.f32 %v2240, %v2249
    %s2252 = sld [smem:[#allocation2 + $0x2a]]
    %v2253 = vstv %s2252
    %v2254 = vmul.f32 %v2253, %v2250
    %v2255 = vmul.f32 %v2253, %v2251
    %v2256 = vadd.f32 %v2233, %v2254
    %v2257 = vadd.f32 %v2234, %v2255
    %s2258 = sld [smem:[#allocation2 + $0x2b]]
    %v2259 = vstv %s2258
    %v2260 = vmul.f32 %v2259, %v2250
    %v2261 = vmul.f32 %v2259, %v2251
    %v2264 = vrot.slane %v2260, 1
    %v2265 = vrot.slane %v2261, 1
    %v2268 = vadd.f32 %v2256, %v2264
    %v2269 = vadd.f32 %v2257, %v2265
    %2270 = vrot.lane.b32.xlu0 %v1501, 2
    %v2271 = vpop.permute.xlu0 %2270
    %2272 = vrot.lane.b32.xlu0 %v1502, 2
    %v2273 = vpop.permute.xlu0 %2272
    %vm2274 = vcmp.lt.s32.totalorder %v113, 2
    %v2275 = vsel %vm2274, %v2271, %v2273
    %v2276 = vsel %vm2274, %v2273, %v2271
    %v2277 = vlaneseq
    %v2278 = vshrl.u32 %v2277, 7
    %v2279 = vsub.s32 6, %v2278
    %v2280 = vrot.slane %v94, %v2279
    %v2281 = vlaneseq
    %v2282 = vshrl.u32 %v2281, 7
    %v2283 = vsub.s32 6, %v2282
    %v2284 = vrot.slane %v95, %v2283
    %v2285 = vmul.f32 %v2276, %v2280
    %v2286 = vmul.f32 %v2275, %v2284
    %s2287 = sld [smem:[#allocation2 + $0x2c]]
    %v2288 = vstv %s2287
    %v2289 = vmul.f32 %v2288, %v2285
    %v2290 = vmul.f32 %v2288, %v2286
    %v2291 = vadd.f32 %v2268, %v2289
    %v2292 = vadd.f32 %v2269, %v2290
    %s2293 = sld [smem:[#allocation2 + $0x2d]]
    %v2294 = vstv %s2293
    %v2295 = vmul.f32 %v2294, %v2285
    %v2296 = vmul.f32 %v2294, %v2286
    %v2299 = vrot.slane %v2295, 1
    %v2300 = vrot.slane %v2296, 1
    %v2303 = vadd.f32 %v2291, %v2299
    %v2304 = vadd.f32 %v2292, %v2300
    %2305 = vrot.lane.b32.xlu0 %v1501, 1
    %v2306 = vpop.permute.xlu0 %2305
    %2307 = vrot.lane.b32.xlu0 %v1502, 1
    %v2308 = vpop.permute.xlu0 %2307
    %v2309 = vsel %vm325, %v2306, %v2308
    %v2310 = vsel %vm325, %v2308, %v2306
    %v2311 = vlaneseq
    %v2312 = vshrl.u32 %v2311, 7
    %v2313 = vsub.s32 7, %v2312
    %v2314 = vrot.slane %v94, %v2313
    %v2315 = vlaneseq
    %v2316 = vshrl.u32 %v2315, 7
    %v2317 = vsub.s32 7, %v2316
    %v2318 = vrot.slane %v95, %v2317
    %v2319 = vmul.f32 %v2310, %v2314
    %v2320 = vmul.f32 %v2309, %v2318
    %s2321 = sld [smem:[#allocation2 + $0x2e]]
    %v2322 = vstv %s2321
    %v2323 = vmul.f32 %v2322, %v2319
    %v2324 = vmul.f32 %v2322, %v2320
    %v2325 = vadd.f32 %v2303, %v2323
    %v2326 = vadd.f32 %v2304, %v2324
    %s2327 = sld [smem:[#allocation2 + $0x2f]]
    %v2328 = vstv %s2327
    %v2329 = vmul.f32 %v2328, %v2319
    %v2330 = vmul.f32 %v2328, %v2320
    %v2333 = vrot.slane %v2329, 1
    %v2334 = vrot.slane %v2330, 1
    %v2337 = vadd.f32 %v2325, %v2333
    %v2338 = vadd.f32 %v2326, %v2334
    %s2339 = sld [smem:[#allocation2 + $0x30]]
    %v2340 = vstv %s2339
    %v2341 = vmul.f32 %v2340, %v1501
    %v2342 = vmul.f32 %v2340, %v1502
    %v2343 = vadd.f32 %v2337, %v2341
    %v2344 = vadd.f32 %v2338, %v2342
    %s2345 = sld [smem:[#allocation2 + $0x31]]
    %v2346 = vstv %s2345
    %v2347 = vmul.f32 %v2346, %v1501
    %v2348 = vmul.f32 %v2346, %v1502
    %v2351 = vrot.slane %v2347, 1
    %v2352 = vrot.slane %v2348, 1
    %v2355 = vadd.f32 %v2343, %v2351
    %v2356 = vadd.f32 %v2344, %v2352
    %2357 = vrot.lane.b32.xlu0 %v1501, 127
    %v2358 = vpop.permute.xlu0 %2357
    %2359 = vrot.lane.b32.xlu0 %v1502, 127
    %v2360 = vpop.permute.xlu0 %2359
    %v2361 = vsel %vm450, %v2358, %v2360
    %v2362 = vsel %vm450, %v2360, %v2358
    %v2363 = vlaneseq
    %v2364 = vshrl.u32 %v2363, 7
    %v2365 = vsub.s32 1, %v2364
    %v2366 = vrot.slane %v96, %v2365
    %v2367 = vlaneseq
    %v2368 = vshrl.u32 %v2367, 7
    %v2369 = vsub.s32 1, %v2368
    %v2370 = vrot.slane %v97, %v2369
    %v2371 = vmul.f32 %v2361, %v2366
    %v2372 = vmul.f32 %v2362, %v2370
    %s2373 = sld [smem:[#allocation2 + $0x32]]
    %v2374 = vstv %s2373
    %v2375 = vmul.f32 %v2374, %v2371
    %v2376 = vmul.f32 %v2374, %v2372
    %v2377 = vadd.f32 %v2355, %v2375
    %v2378 = vadd.f32 %v2356, %v2376
    %s2379 = sld [smem:[#allocation2 + $0x33]]
    %v2380 = vstv %s2379
    %v2381 = vmul.f32 %v2380, %v2371
    %v2382 = vmul.f32 %v2380, %v2372
    %v2385 = vrot.slane %v2381, 1
    %v2386 = vrot.slane %v2382, 1
    %v2389 = vadd.f32 %v2377, %v2385
    %v2390 = vadd.f32 %v2378, %v2386
    %2391 = vrot.lane.b32.xlu0 %v1501, 126
    %v2392 = vpop.permute.xlu0 %2391
    %2393 = vrot.lane.b32.xlu0 %v1502, 126
    %v2394 = vpop.permute.xlu0 %2393
    %vm2395 = vcmp.lt.s32.totalorder %v113, 126
    %v2396 = vsel %vm2395, %v2392, %v2394
    %v2397 = vsel %vm2395, %v2394, %v2392
    %v2398 = vlaneseq
    %v2399 = vshrl.u32 %v2398, 7
    %v2400 = vsub.s32 2, %v2399
    %v2401 = vrot.slane %v96, %v2400
    %v2402 = vlaneseq
    %v2403 = vshrl.u32 %v2402, 7
    %v2404 = vsub.s32 2, %v2403
    %v2405 = vrot.slane %v97, %v2404
    %v2406 = vmul.f32 %v2396, %v2401
    %v2407 = vmul.f32 %v2397, %v2405
    %s2408 = sld [smem:[#allocation2 + $0x34]]
    %v2409 = vstv %s2408
    %v2410 = vmul.f32 %v2409, %v2406
    %v2411 = vmul.f32 %v2409, %v2407
    %v2412 = vadd.f32 %v2389, %v2410
    %v2413 = vadd.f32 %v2390, %v2411
    %s2414 = sld [smem:[#allocation2 + $0x35]]
    %v2415 = vstv %s2414
    %v2416 = vmul.f32 %v2415, %v2406
    %v2417 = vmul.f32 %v2415, %v2407
    %v2420 = vrot.slane %v2416, 1
    %v2421 = vrot.slane %v2417, 1
    %v2424 = vadd.f32 %v2412, %v2420
    %v2425 = vadd.f32 %v2413, %v2421
    %2426 = vrot.lane.b32.xlu0 %v1501, 125
    %v2427 = vpop.permute.xlu0 %2426
    %2428 = vrot.lane.b32.xlu0 %v1502, 125
    %v2429 = vpop.permute.xlu0 %2428
    %vm2430 = vcmp.lt.s32.totalorder %v113, 125
    %v2431 = vsel %vm2430, %v2427, %v2429
    %v2432 = vsel %vm2430, %v2429, %v2427
    %v2433 = vlaneseq
    %v2434 = vshrl.u32 %v2433, 7
    %v2435 = vsub.s32 3, %v2434
    %v2436 = vrot.slane %v96, %v2435
    %v2437 = vlaneseq
    %v2438 = vshrl.u32 %v2437, 7
    %v2439 = vsub.s32 3, %v2438
    %v2440 = vrot.slane %v97, %v2439
    %v2441 = vmul.f32 %v2431, %v2436
    %v2442 = vmul.f32 %v2432, %v2440
    %s2443 = sld [smem:[#allocation2 + $0x36]]
    %v2444 = vstv %s2443
    %v2445 = vmul.f32 %v2444, %v2441
    %v2446 = vmul.f32 %v2444, %v2442
    %v2447 = vadd.f32 %v2424, %v2445
    %v2448 = vadd.f32 %v2425, %v2446
    %s2449 = sld [smem:[#allocation2 + $0x37]]
    %v2450 = vstv %s2449
    %v2451 = vmul.f32 %v2450, %v2441
    %v2452 = vmul.f32 %v2450, %v2442
    %v2455 = vrot.slane %v2451, 1
    %v2456 = vrot.slane %v2452, 1
    %v2459 = vadd.f32 %v2447, %v2455
    %v2460 = vadd.f32 %v2448, %v2456
    %2461 = vrot.lane.b32.xlu0 %v1501, 115
    %v2462 = vpop.permute.xlu0 %2461
    %2463 = vrot.lane.b32.xlu0 %v1502, 115
    %v2464 = vpop.permute.xlu0 %2463
    %vm2465 = vcmp.lt.s32.totalorder %v113, 115
    %v2466 = vsel %vm2465, %v2462, %v2464
    %v2467 = vsel %vm2465, %v2464, %v2462
    %v2468 = vlaneseq
    %v2469 = vshrl.u32 %v2468, 7
    %v2470 = vsub.s32 4, %v2469
    %v2471 = vrot.slane %v96, %v2470
    %v2472 = vlaneseq
    %v2473 = vshrl.u32 %v2472, 7
    %v2474 = vsub.s32 4, %v2473
    %v2475 = vrot.slane %v97, %v2474
    %v2476 = vmul.f32 %v2466, %v2471
    %v2477 = vmul.f32 %v2467, %v2475
    %s2478 = sld [smem:[#allocation2 + $0x38]]
    %v2479 = vstv %s2478
    %v2480 = vmul.f32 %v2479, %v2476
    %v2481 = vmul.f32 %v2479, %v2477
    %v2482 = vadd.f32 %v2459, %v2480
    %v2483 = vadd.f32 %v2460, %v2481
    %s2484 = sld [smem:[#allocation2 + $0x39]]
    %v2485 = vstv %s2484
    %v2486 = vmul.f32 %v2485, %v2476
    %v2487 = vmul.f32 %v2485, %v2477
    %v2490 = vrot.slane %v2486, 1
    %v2491 = vrot.slane %v2487, 1
    %v2494 = vadd.f32 %v2482, %v2490
    %v2495 = vadd.f32 %v2483, %v2491
    %2496 = vrot.lane.b32.xlu0 %v1501, 114
    %v2497 = vpop.permute.xlu0 %2496
    %2498 = vrot.lane.b32.xlu0 %v1502, 114
    %v2499 = vpop.permute.xlu0 %2498
    %vm2500 = vcmp.lt.s32.totalorder %v113, 114
    %v2501 = vsel %vm2500, %v2497, %v2499
    %v2502 = vsel %vm2500, %v2499, %v2497
    %v2503 = vlaneseq
    %v2504 = vshrl.u32 %v2503, 7
    %v2505 = vsub.s32 5, %v2504
    %v2506 = vrot.slane %v96, %v2505
    %v2507 = vlaneseq
    %v2508 = vshrl.u32 %v2507, 7
    %v2509 = vsub.s32 5, %v2508
    %v2510 = vrot.slane %v97, %v2509
    %v2511 = vmul.f32 %v2501, %v2506
    %v2512 = vmul.f32 %v2502, %v2510
    %s2513 = sld [smem:[#allocation2 + $0x3a]]
    %v2514 = vstv %s2513
    %v2515 = vmul.f32 %v2514, %v2511
    %v2516 = vmul.f32 %v2514, %v2512
    %v2517 = vadd.f32 %v2494, %v2515
    %v2518 = vadd.f32 %v2495, %v2516
    %s2519 = sld [smem:[#allocation2 + $0x3b]]
    %v2520 = vstv %s2519
    %v2521 = vmul.f32 %v2520, %v2511
    %v2522 = vmul.f32 %v2520, %v2512
    %v2525 = vrot.slane %v2521, 1
    %v2526 = vrot.slane %v2522, 1
    %v2529 = vadd.f32 %v2517, %v2525
    %v2530 = vadd.f32 %v2518, %v2526
    %2531 = vrot.lane.b32.xlu0 %v1501, 113
    %v2532 = vpop.permute.xlu0 %2531
    %2533 = vrot.lane.b32.xlu0 %v1502, 113
    %v2534 = vpop.permute.xlu0 %2533
    %v2535 = vsel %vm521, %v2532, %v2534
    %v2536 = vsel %vm521, %v2534, %v2532
    %v2537 = vlaneseq
    %v2538 = vshrl.u32 %v2537, 7
    %v2539 = vsub.s32 6, %v2538
    %v2540 = vrot.slane %v96, %v2539
    %v2541 = vlaneseq
    %v2542 = vshrl.u32 %v2541, 7
    %v2543 = vsub.s32 6, %v2542
    %v2544 = vrot.slane %v97, %v2543
    %v2545 = vmul.f32 %v2535, %v2540
    %v2546 = vmul.f32 %v2536, %v2544
    %s2547 = sld [smem:[#allocation2 + $0x3c]]
    %v2548 = vstv %s2547
    %v2549 = vmul.f32 %v2548, %v2545
    %v2550 = vmul.f32 %v2548, %v2546
    %v2551 = vadd.f32 %v2529, %v2549
    %v2552 = vadd.f32 %v2530, %v2550
    %s2553 = sld [smem:[#allocation2 + $0x3d]]
    %v2554 = vstv %s2553
    %v2555 = vmul.f32 %v2554, %v2545
    %v2556 = vmul.f32 %v2554, %v2546
    %v2559 = vrot.slane %v2555, 1
    %v2560 = vrot.slane %v2556, 1
    %v2563 = vadd.f32 %v2551, %v2559
    %v2564 = vadd.f32 %v2552, %v2560
    %2565 = vrot.lane.b32.xlu0 %v1501, 112
    %v2566 = vpop.permute.xlu0 %2565
    %2567 = vrot.lane.b32.xlu0 %v1502, 112
    %v2568 = vpop.permute.xlu0 %2567
    %v2569 = vsel %vm592, %v2566, %v2568
    %v2570 = vsel %vm592, %v2568, %v2566
    %v2571 = vlaneseq
    %v2572 = vshrl.u32 %v2571, 7
    %v2573 = vsub.s32 7, %v2572
    %v2574 = vrot.slane %v96, %v2573
    %v2575 = vlaneseq
    %v2576 = vshrl.u32 %v2575, 7
    %v2577 = vsub.s32 7, %v2576
    %v2578 = vrot.slane %v97, %v2577
    %v2579 = vmul.f32 %v2569, %v2574
    %v2580 = vmul.f32 %v2570, %v2578
    %s2581 = sld [smem:[#allocation2 + $0x3e]]
    %v2582 = vstv %s2581
    %v2583 = vmul.f32 %v2582, %v2579
    %v2584 = vmul.f32 %v2582, %v2580
    %v2585 = vadd.f32 %v2563, %v2583
    %v2586 = vadd.f32 %v2564, %v2584
    %s2587 = sld [smem:[#allocation2 + $0x3f]]
    %v2588 = vstv %s2587
    %v2589 = vmul.f32 %v2588, %v2579
    %v2590 = vmul.f32 %v2588, %v2580
    %v2593 = vrot.slane %v2589, 1
    %v2594 = vrot.slane %v2590, 1
    %v2597 = vadd.f32 %v2585, %v2593
    %v2598 = vadd.f32 %v2586, %v2594
    %2599 = vrot.lane.b32.xlu0 %v1501, 111
    %v2600 = vpop.permute.xlu0 %2599
    %2601 = vrot.lane.b32.xlu0 %v1502, 111
    %v2602 = vpop.permute.xlu0 %2601
    %v2603 = vsel %vm663, %v2600, %v2602
    %v2604 = vsel %vm663, %v2602, %v2600
    %v2605 = vlaneseq
    %v2606 = vshrl.u32 %v2605, 7
    %v2607 = vsub.s32 0, %v2606
    %v2608 = vrot.slane %v98, %v2607
    %v2609 = vlaneseq
    %v2610 = vshrl.u32 %v2609, 7
    %v2611 = vsub.s32 0, %v2610
    %v2612 = vrot.slane %v99, %v2611
    %v2613 = vmul.f32 %v2603, %v2608
    %v2614 = vmul.f32 %v2604, %v2612
    %s2615 = sld [smem:[#allocation2 + $0x40]]
    %v2616 = vstv %s2615
    %v2617 = vmul.f32 %v2616, %v2613
    %v2618 = vmul.f32 %v2616, %v2614
    %v2619 = vadd.f32 %v2597, %v2617
    %v2620 = vadd.f32 %v2598, %v2618
    %s2621 = sld [smem:[#allocation2 + $0x41]]
    %v2622 = vstv %s2621
    %v2623 = vmul.f32 %v2622, %v2613
    %v2624 = vmul.f32 %v2622, %v2614
    %v2627 = vrot.slane %v2623, 1
    %v2628 = vrot.slane %v2624, 1
    %v2631 = vadd.f32 %v2619, %v2627
    %v2632 = vadd.f32 %v2620, %v2628
    %2633 = vrot.lane.b32.xlu0 %v1501, 110
    %v2634 = vpop.permute.xlu0 %2633
    %2635 = vrot.lane.b32.xlu0 %v1502, 110
    %v2636 = vpop.permute.xlu0 %2635
    %vm2637 = vcmp.lt.s32.totalorder %v113, 110
    %v2638 = vsel %vm2637, %v2634, %v2636
    %v2639 = vsel %vm2637, %v2636, %v2634
    %v2640 = vlaneseq
    %v2641 = vshrl.u32 %v2640, 7
    %v2642 = vsub.s32 1, %v2641
    %v2643 = vrot.slane %v98, %v2642
    %v2644 = vlaneseq
    %v2645 = vshrl.u32 %v2644, 7
    %v2646 = vsub.s32 1, %v2645
    %v2647 = vrot.slane %v99, %v2646
    %v2648 = vmul.f32 %v2638, %v2643
    %v2649 = vmul.f32 %v2639, %v2647
    %s2650 = sld [smem:[#allocation2 + $0x42]]
    %v2651 = vstv %s2650
    %v2652 = vmul.f32 %v2651, %v2648
    %v2653 = vmul.f32 %v2651, %v2649
    %v2654 = vadd.f32 %v2631, %v2652
    %v2655 = vadd.f32 %v2632, %v2653
    %s2656 = sld [smem:[#allocation2 + $0x43]]
    %v2657 = vstv %s2656
    %v2658 = vmul.f32 %v2657, %v2648
    %v2659 = vmul.f32 %v2657, %v2649
    %v2662 = vrot.slane %v2658, 1
    %v2663 = vrot.slane %v2659, 1
    %v2666 = vadd.f32 %v2654, %v2662
    %v2667 = vadd.f32 %v2655, %v2663
    %2668 = vrot.lane.b32.xlu0 %v1501, 109
    %v2669 = vpop.permute.xlu0 %2668
    %2670 = vrot.lane.b32.xlu0 %v1502, 109
    %v2671 = vpop.permute.xlu0 %2670
    %vm2672 = vcmp.lt.s32.totalorder %v113, 109
    %v2673 = vsel %vm2672, %v2669, %v2671
    %v2674 = vsel %vm2672, %v2671, %v2669
    %v2675 = vlaneseq
    %v2676 = vshrl.u32 %v2675, 7
    %v2677 = vsub.s32 2, %v2676
    %v2678 = vrot.slane %v98, %v2677
    %v2679 = vlaneseq
    %v2680 = vshrl.u32 %v2679, 7
    %v2681 = vsub.s32 2, %v2680
    %v2682 = vrot.slane %v99, %v2681
    %v2683 = vmul.f32 %v2673, %v2678
    %v2684 = vmul.f32 %v2674, %v2682
    %s2685 = sld [smem:[#allocation2 + $0x44]]
    %v2686 = vstv %s2685
    %v2687 = vmul.f32 %v2686, %v2683
    %v2688 = vmul.f32 %v2686, %v2684
    %v2689 = vadd.f32 %v2666, %v2687
    %v2690 = vadd.f32 %v2667, %v2688
    %s2691 = sld [smem:[#allocation2 + $0x45]]
    %v2692 = vstv %s2691
    %v2693 = vmul.f32 %v2692, %v2683
    %v2694 = vmul.f32 %v2692, %v2684
    %v2697 = vrot.slane %v2693, 1
    %v2698 = vrot.slane %v2694, 1
    %v2701 = vadd.f32 %v2689, %v2697
    %v2702 = vadd.f32 %v2690, %v2698
    %2703 = vrot.lane.b32.xlu0 %v1501, 99
    %v2704 = vpop.permute.xlu0 %2703
    %2705 = vrot.lane.b32.xlu0 %v1502, 99
    %v2706 = vpop.permute.xlu0 %2705
    %vm2707 = vcmp.lt.s32.totalorder %v113, 99
    %v2708 = vsel %vm2707, %v2704, %v2706
    %v2709 = vsel %vm2707, %v2706, %v2704
    %v2710 = vlaneseq
    %v2711 = vshrl.u32 %v2710, 7
    %v2712 = vsub.s32 3, %v2711
    %v2713 = vrot.slane %v98, %v2712
    %v2714 = vlaneseq
    %v2715 = vshrl.u32 %v2714, 7
    %v2716 = vsub.s32 3, %v2715
    %v2717 = vrot.slane %v99, %v2716
    %v2718 = vmul.f32 %v2708, %v2713
    %v2719 = vmul.f32 %v2709, %v2717
    %s2720 = sld [smem:[#allocation2 + $0x46]]
    %v2721 = vstv %s2720
    %v2722 = vmul.f32 %v2721, %v2718
    %v2723 = vmul.f32 %v2721, %v2719
    %v2724 = vadd.f32 %v2701, %v2722
    %v2725 = vadd.f32 %v2702, %v2723
    %s2726 = sld [smem:[#allocation2 + $0x47]]
    %v2727 = vstv %s2726
    %v2728 = vmul.f32 %v2727, %v2718
    %v2729 = vmul.f32 %v2727, %v2719
    %v2732 = vrot.slane %v2728, 1
    %v2733 = vrot.slane %v2729, 1
    %v2736 = vadd.f32 %v2724, %v2732
    %v2737 = vadd.f32 %v2725, %v2733
    %2738 = vrot.lane.b32.xlu0 %v1501, 98
    %v2739 = vpop.permute.xlu0 %2738
    %2740 = vrot.lane.b32.xlu0 %v1502, 98
    %v2741 = vpop.permute.xlu0 %2740
    %vm2742 = vcmp.lt.s32.totalorder %v113, 98
    %v2743 = vsel %vm2742, %v2739, %v2741
    %v2744 = vsel %vm2742, %v2741, %v2739
    %v2745 = vlaneseq
    %v2746 = vshrl.u32 %v2745, 7
    %v2747 = vsub.s32 4, %v2746
    %v2748 = vrot.slane %v98, %v2747
    %v2749 = vlaneseq
    %v2750 = vshrl.u32 %v2749, 7
    %v2751 = vsub.s32 4, %v2750
    %v2752 = vrot.slane %v99, %v2751
    %v2753 = vmul.f32 %v2743, %v2748
    %v2754 = vmul.f32 %v2744, %v2752
    %s2755 = sld [smem:[#allocation2 + $0x48]]
    %v2756 = vstv %s2755
    %v2757 = vmul.f32 %v2756, %v2753
    %v2758 = vmul.f32 %v2756, %v2754
    %v2759 = vadd.f32 %v2736, %v2757
    %v2760 = vadd.f32 %v2737, %v2758
    %s2761 = sld [smem:[#allocation2 + $0x49]]
    %v2762 = vstv %s2761
    %v2763 = vmul.f32 %v2762, %v2753
    %v2764 = vmul.f32 %v2762, %v2754
    %v2767 = vrot.slane %v2763, 1
    %v2768 = vrot.slane %v2764, 1
    %v2771 = vadd.f32 %v2759, %v2767
    %v2772 = vadd.f32 %v2760, %v2768
    %2773 = vrot.lane.b32.xlu0 %v1501, 97
    %v2774 = vpop.permute.xlu0 %2773
    %2775 = vrot.lane.b32.xlu0 %v1502, 97
    %v2776 = vpop.permute.xlu0 %2775
    %vm2777 = vcmp.lt.s32.totalorder %v113, 97
    %v2778 = vsel %vm2777, %v2774, %v2776
    %v2779 = vsel %vm2777, %v2776, %v2774
    %v2780 = vlaneseq
    %v2781 = vshrl.u32 %v2780, 7
    %v2782 = vsub.s32 5, %v2781
    %v2783 = vrot.slane %v98, %v2782
    %v2784 = vlaneseq
    %v2785 = vshrl.u32 %v2784, 7
    %v2786 = vsub.s32 5, %v2785
    %v2787 = vrot.slane %v99, %v2786
    %v2788 = vmul.f32 %v2778, %v2783
    %v2789 = vmul.f32 %v2779, %v2787
    %s2790 = sld [smem:[#allocation2 + $0x4a]]
    %v2791 = vstv %s2790
    %v2792 = vmul.f32 %v2791, %v2788
    %v2793 = vmul.f32 %v2791, %v2789
    %v2794 = vadd.f32 %v2771, %v2792
    %v2795 = vadd.f32 %v2772, %v2793
    %s2796 = sld [smem:[#allocation2 + $0x4b]]
    %v2797 = vstv %s2796
    %v2798 = vmul.f32 %v2797, %v2788
    %v2799 = vmul.f32 %v2797, %v2789
    %v2802 = vrot.slane %v2798, 1
    %v2803 = vrot.slane %v2799, 1
    %v2806 = vadd.f32 %v2794, %v2802
    %v2807 = vadd.f32 %v2795, %v2803
    %2808 = vrot.lane.b32.xlu0 %v1501, 96
    %v2809 = vpop.permute.xlu0 %2808
    %2810 = vrot.lane.b32.xlu0 %v1502, 96
    %v2811 = vpop.permute.xlu0 %2810
    %vm2812 = vcmp.lt.s32.totalorder %v113, 96
    %v2813 = vsel %vm2812, %v2809, %v2811
    %v2814 = vsel %vm2812, %v2811, %v2809
    %v2815 = vlaneseq
    %v2816 = vshrl.u32 %v2815, 7
    %v2817 = vsub.s32 6, %v2816
    %v2818 = vrot.slane %v98, %v2817
    %v2819 = vlaneseq
    %v2820 = vshrl.u32 %v2819, 7
    %v2821 = vsub.s32 6, %v2820
    %v2822 = vrot.slane %v99, %v2821
    %v2823 = vmul.f32 %v2813, %v2818
    %v2824 = vmul.f32 %v2814, %v2822
    %s2825 = sld [smem:[#allocation2 + $0x4c]]
    %v2826 = vstv %s2825
    %v2827 = vmul.f32 %v2826, %v2823
    %v2828 = vmul.f32 %v2826, %v2824
    %v2829 = vadd.f32 %v2806, %v2827
    %v2830 = vadd.f32 %v2807, %v2828
    %s2831 = sld [smem:[#allocation2 + $0x4d]]
    %v2832 = vstv %s2831
    %v2833 = vmul.f32 %v2832, %v2823
    %v2834 = vmul.f32 %v2832, %v2824
    %v2837 = vrot.slane %v2833, 1
    %v2838 = vrot.slane %v2834, 1
    %v2841 = vadd.f32 %v2829, %v2837
    %v2842 = vadd.f32 %v2830, %v2838
    %2843 = vrot.lane.b32.xlu0 %v1501, 95
    %v2844 = vpop.permute.xlu0 %2843
    %2845 = vrot.lane.b32.xlu0 %v1502, 95
    %v2846 = vpop.permute.xlu0 %2845
    %vm2847 = vcmp.lt.s32.totalorder %v113, 95
    %v2848 = vsel %vm2847, %v2844, %v2846
    %v2849 = vsel %vm2847, %v2846, %v2844
    %v2850 = vlaneseq
    %v2851 = vshrl.u32 %v2850, 7
    %v2852 = vsub.s32 7, %v2851
    %v2853 = vrot.slane %v98, %v2852
    %v2854 = vlaneseq
    %v2855 = vshrl.u32 %v2854, 7
    %v2856 = vsub.s32 7, %v2855
    %v2857 = vrot.slane %v99, %v2856
    %v2858 = vmul.f32 %v2848, %v2853
    %v2859 = vmul.f32 %v2849, %v2857
    %s2860 = sld [smem:[#allocation2 + $0x4e]]
    %v2861 = vstv %s2860
    %v2862 = vmul.f32 %v2861, %v2858
    %v2863 = vmul.f32 %v2861, %v2859
    %v2864 = vadd.f32 %v2841, %v2862
    %v2865 = vadd.f32 %v2842, %v2863
    %s2866 = sld [smem:[#allocation2 + $0x4f]]
    %v2867 = vstv %s2866
    %v2868 = vmul.f32 %v2867, %v2858
    %v2869 = vmul.f32 %v2867, %v2859
    %v2872 = vrot.slane %v2868, 1
    %v2873 = vrot.slane %v2869, 1
    %v2876 = vadd.f32 %v2864, %v2872
    %v2877 = vadd.f32 %v2865, %v2873
    %2878 = vrot.lane.b32.xlu0 %v1501, 94
    %v2879 = vpop.permute.xlu0 %2878
    %2880 = vrot.lane.b32.xlu0 %v1502, 94
    %v2881 = vpop.permute.xlu0 %2880
    %vm2882 = vcmp.lt.s32.totalorder %v113, 94
    %v2883 = vsel %vm2882, %v2879, %v2881
    %v2884 = vsel %vm2882, %v2881, %v2879
    %v2885 = vlaneseq
    %v2886 = vshrl.u32 %v2885, 7
    %v2887 = vsub.s32 0, %v2886
    %v2888 = vrot.slane %v100, %v2887
    %v2889 = vlaneseq
    %v2890 = vshrl.u32 %v2889, 7
    %v2891 = vsub.s32 0, %v2890
    %v2892 = vrot.slane %v101, %v2891
    %v2893 = vmul.f32 %v2883, %v2888
    %v2894 = vmul.f32 %v2884, %v2892
    %s2895 = sld [smem:[#allocation2 + $0x50]]
    %v2896 = vstv %s2895
    %v2897 = vmul.f32 %v2896, %v2893
    %v2898 = vmul.f32 %v2896, %v2894
    %v2899 = vadd.f32 %v2876, %v2897
    %v2900 = vadd.f32 %v2877, %v2898
    %s2901 = sld [smem:[#allocation2 + $0x51]]
    %v2902 = vstv %s2901
    %v2903 = vmul.f32 %v2902, %v2893
    %v2904 = vmul.f32 %v2902, %v2894
    %v2907 = vrot.slane %v2903, 1
    %v2908 = vrot.slane %v2904, 1
    %v2911 = vadd.f32 %v2899, %v2907
    %v2912 = vadd.f32 %v2900, %v2908
    %2913 = vrot.lane.b32.xlu0 %v1501, 93
    %v2914 = vpop.permute.xlu0 %2913
    %2915 = vrot.lane.b32.xlu0 %v1502, 93
    %v2916 = vpop.permute.xlu0 %2915
    %vm2917 = vcmp.lt.s32.totalorder %v113, 93
    %v2918 = vsel %vm2917, %v2914, %v2916
    %v2919 = vsel %vm2917, %v2916, %v2914
    %v2920 = vlaneseq
    %v2921 = vshrl.u32 %v2920, 7
    %v2922 = vsub.s32 1, %v2921
    %v2923 = vrot.slane %v100, %v2922
    %v2924 = vlaneseq
    %v2925 = vshrl.u32 %v2924, 7
    %v2926 = vsub.s32 1, %v2925
    %v2927 = vrot.slane %v101, %v2926
    %v2928 = vmul.f32 %v2918, %v2923
    %v2929 = vmul.f32 %v2919, %v2927
    %s2930 = sld [smem:[#allocation2 + $0x52]]
    %v2931 = vstv %s2930
    %v2932 = vmul.f32 %v2931, %v2928
    %v2933 = vmul.f32 %v2931, %v2929
    %v2934 = vadd.f32 %v2911, %v2932
    %v2935 = vadd.f32 %v2912, %v2933
    %s2936 = sld [smem:[#allocation2 + $0x53]]
    %v2937 = vstv %s2936
    %v2938 = vmul.f32 %v2937, %v2928
    %v2939 = vmul.f32 %v2937, %v2929
    %v2942 = vrot.slane %v2938, 1
    %v2943 = vrot.slane %v2939, 1
    %v2946 = vadd.f32 %v2934, %v2942
    %v2947 = vadd.f32 %v2935, %v2943
    %2948 = vrot.lane.b32.xlu0 %v1501, 83
    %v2949 = vpop.permute.xlu0 %2948
    %2950 = vrot.lane.b32.xlu0 %v1502, 83
    %v2951 = vpop.permute.xlu0 %2950
    %vm2952 = vcmp.lt.s32.totalorder %v113, 83
    %v2953 = vsel %vm2952, %v2949, %v2951
    %v2954 = vsel %vm2952, %v2951, %v2949
    %v2955 = vlaneseq
    %v2956 = vshrl.u32 %v2955, 7
    %v2957 = vsub.s32 2, %v2956
    %v2958 = vrot.slane %v100, %v2957
    %v2959 = vlaneseq
    %v2960 = vshrl.u32 %v2959, 7
    %v2961 = vsub.s32 2, %v2960
    %v2962 = vrot.slane %v101, %v2961
    %v2963 = vmul.f32 %v2953, %v2958
    %v2964 = vmul.f32 %v2954, %v2962
    %s2965 = sld [smem:[#allocation2 + $0x54]]
    %v2966 = vstv %s2965
    %v2967 = vmul.f32 %v2966, %v2963
    %v2968 = vmul.f32 %v2966, %v2964
    %v2969 = vadd.f32 %v2946, %v2967
    %v2970 = vadd.f32 %v2947, %v2968
    %s2971 = sld [smem:[#allocation2 + $0x55]]
    %v2972 = vstv %s2971
    %v2973 = vmul.f32 %v2972, %v2963
    %v2974 = vmul.f32 %v2972, %v2964
    %v2977 = vrot.slane %v2973, 1
    %v2978 = vrot.slane %v2974, 1
    %v2981 = vadd.f32 %v2969, %v2977
    %v2982 = vadd.f32 %v2970, %v2978
    %2983 = vrot.lane.b32.xlu0 %v1501, 82
    %v2984 = vpop.permute.xlu0 %2983
    %2985 = vrot.lane.b32.xlu0 %v1502, 82
    %v2986 = vpop.permute.xlu0 %2985
    %vm2987 = vcmp.lt.s32.totalorder %v113, 82
    %v2988 = vsel %vm2987, %v2984, %v2986
    %v2989 = vsel %vm2987, %v2986, %v2984
    %v2990 = vlaneseq
    %v2991 = vshrl.u32 %v2990, 7
    %v2992 = vsub.s32 3, %v2991
    %v2993 = vrot.slane %v100, %v2992
    %v2994 = vlaneseq
    %v2995 = vshrl.u32 %v2994, 7
    %v2996 = vsub.s32 3, %v2995
    %v2997 = vrot.slane %v101, %v2996
    %v2998 = vmul.f32 %v2988, %v2993
    %v2999 = vmul.f32 %v2989, %v2997
    %s3000 = sld [smem:[#allocation2 + $0x56]]
    %v3001 = vstv %s3000
    %v3002 = vmul.f32 %v3001, %v2998
    %v3003 = vmul.f32 %v3001, %v2999
    %v3004 = vadd.f32 %v2981, %v3002
    %v3005 = vadd.f32 %v2982, %v3003
    %s3006 = sld [smem:[#allocation2 + $0x57]]
    %v3007 = vstv %s3006
    %v3008 = vmul.f32 %v3007, %v2998
    %v3009 = vmul.f32 %v3007, %v2999
    %v3012 = vrot.slane %v3008, 1
    %v3013 = vrot.slane %v3009, 1
    %v3016 = vadd.f32 %v3004, %v3012
    %v3017 = vadd.f32 %v3005, %v3013
    %3018 = vrot.lane.b32.xlu0 %v1501, 81
    %v3019 = vpop.permute.xlu0 %3018
    %3020 = vrot.lane.b32.xlu0 %v1502, 81
    %v3021 = vpop.permute.xlu0 %3020
    %vm3022 = vcmp.lt.s32.totalorder %v113, 81
    %v3023 = vsel %vm3022, %v3019, %v3021
    %v3024 = vsel %vm3022, %v3021, %v3019
    %v3025 = vlaneseq
    %v3026 = vshrl.u32 %v3025, 7
    %v3027 = vsub.s32 4, %v3026
    %v3028 = vrot.slane %v100, %v3027
    %v3029 = vlaneseq
    %v3030 = vshrl.u32 %v3029, 7
    %v3031 = vsub.s32 4, %v3030
    %v3032 = vrot.slane %v101, %v3031
    %v3033 = vmul.f32 %v3023, %v3028
    %v3034 = vmul.f32 %v3024, %v3032
    %s3035 = sld [smem:[#allocation2 + $0x58]]
    %v3036 = vstv %s3035
    %v3037 = vmul.f32 %v3036, %v3033
    %v3038 = vmul.f32 %v3036, %v3034
    %v3039 = vadd.f32 %v3016, %v3037
    %v3040 = vadd.f32 %v3017, %v3038
    %s3041 = sld [smem:[#allocation2 + $0x59]]
    %v3042 = vstv %s3041
    %v3043 = vmul.f32 %v3042, %v3033
    %v3044 = vmul.f32 %v3042, %v3034
    %v3047 = vrot.slane %v3043, 1
    %v3048 = vrot.slane %v3044, 1
    %v3051 = vadd.f32 %v3039, %v3047
    %v3052 = vadd.f32 %v3040, %v3048
    %3053 = vrot.lane.b32.xlu0 %v1501, 80
    %v3054 = vpop.permute.xlu0 %3053
    %3055 = vrot.lane.b32.xlu0 %v1502, 80
    %v3056 = vpop.permute.xlu0 %3055
    %vm3057 = vcmp.lt.s32.totalorder %v113, 80
    %v3058 = vsel %vm3057, %v3054, %v3056
    %v3059 = vsel %vm3057, %v3056, %v3054
    %v3060 = vlaneseq
    %v3061 = vshrl.u32 %v3060, 7
    %v3062 = vsub.s32 5, %v3061
    %v3063 = vrot.slane %v100, %v3062
    %v3064 = vlaneseq
    %v3065 = vshrl.u32 %v3064, 7
    %v3066 = vsub.s32 5, %v3065
    %v3067 = vrot.slane %v101, %v3066
    %v3068 = vmul.f32 %v3058, %v3063
    %v3069 = vmul.f32 %v3059, %v3067
    %s3070 = sld [smem:[#allocation2 + $0x5a]]
    %v3071 = vstv %s3070
    %v3072 = vmul.f32 %v3071, %v3068
    %v3073 = vmul.f32 %v3071, %v3069
    %v3074 = vadd.f32 %v3051, %v3072
    %v3075 = vadd.f32 %v3052, %v3073
    %s3076 = sld [smem:[#allocation2 + $0x5b]]
    %v3077 = vstv %s3076
    %v3078 = vmul.f32 %v3077, %v3068
    %v3079 = vmul.f32 %v3077, %v3069
    %v3082 = vrot.slane %v3078, 1
    %v3083 = vrot.slane %v3079, 1
    %v3086 = vadd.f32 %v3074, %v3082
    %v3087 = vadd.f32 %v3075, %v3083
    %3088 = vrot.lane.b32.xlu0 %v1501, 79
    %v3089 = vpop.permute.xlu0 %3088
    %3090 = vrot.lane.b32.xlu0 %v1502, 79
    %v3091 = vpop.permute.xlu0 %3090
    %vm3092 = vcmp.lt.s32.totalorder %v113, 79
    %v3093 = vsel %vm3092, %v3089, %v3091
    %v3094 = vsel %vm3092, %v3091, %v3089
    %v3095 = vlaneseq
    %v3096 = vshrl.u32 %v3095, 7
    %v3097 = vsub.s32 6, %v3096
    %v3098 = vrot.slane %v100, %v3097
    %v3099 = vlaneseq
    %v3100 = vshrl.u32 %v3099, 7
    %v3101 = vsub.s32 6, %v3100
    %v3102 = vrot.slane %v101, %v3101
    %v3103 = vmul.f32 %v3093, %v3098
    %v3104 = vmul.f32 %v3094, %v3102
    %s3105 = sld [smem:[#allocation2 + $0x5c]]
    %v3106 = vstv %s3105
    %v3107 = vmul.f32 %v3106, %v3103
    %v3108 = vmul.f32 %v3106, %v3104
    %v3109 = vadd.f32 %v3086, %v3107
    %v3110 = vadd.f32 %v3087, %v3108
    %s3111 = sld [smem:[#allocation2 + $0x5d]]
    %v3112 = vstv %s3111
    %v3113 = vmul.f32 %v3112, %v3103
    %v3114 = vmul.f32 %v3112, %v3104
    %v3117 = vrot.slane %v3113, 1
    %v3118 = vrot.slane %v3114, 1
    %v3121 = vadd.f32 %v3109, %v3117
    %v3122 = vadd.f32 %v3110, %v3118
    %3123 = vrot.lane.b32.xlu0 %v1501, 78
    %v3124 = vpop.permute.xlu0 %3123
    %3125 = vrot.lane.b32.xlu0 %v1502, 78
    %v3126 = vpop.permute.xlu0 %3125
    %vm3127 = vcmp.lt.s32.totalorder %v113, 78
    %v3128 = vsel %vm3127, %v3124, %v3126
    %v3129 = vsel %vm3127, %v3126, %v3124
    %v3130 = vlaneseq
    %v3131 = vshrl.u32 %v3130, 7
    %v3132 = vsub.s32 7, %v3131
    %v3133 = vrot.slane %v100, %v3132
    %v3134 = vlaneseq
    %v3135 = vshrl.u32 %v3134, 7
    %v3136 = vsub.s32 7, %v3135
    %v3137 = vrot.slane %v101, %v3136
    %v3138 = vmul.f32 %v3128, %v3133
    %v3139 = vmul.f32 %v3129, %v3137
    %s3140 = sld [smem:[#allocation2 + $0x5e]]
    %v3141 = vstv %s3140
    %v3142 = vmul.f32 %v3141, %v3138
    %v3143 = vmul.f32 %v3141, %v3139
    %v3144 = vadd.f32 %v3121, %v3142
    %v3145 = vadd.f32 %v3122, %v3143
    %s3146 = sld [smem:[#allocation2 + $0x5f]]
    %v3147 = vstv %s3146
    %v3148 = vmul.f32 %v3147, %v3138
    %v3149 = vmul.f32 %v3147, %v3139
    %v3152 = vrot.slane %v3148, 1
    %v3153 = vrot.slane %v3149, 1
    %v3156 = vadd.f32 %v3144, %v3152
    %v3157 = vadd.f32 %v3145, %v3153
    %3158 = vrot.lane.b32.xlu0 %v1501, 77
    %v3159 = vpop.permute.xlu0 %3158
    %3160 = vrot.lane.b32.xlu0 %v1502, 77
    %v3161 = vpop.permute.xlu0 %3160
    %vm3162 = vcmp.lt.s32.totalorder %v113, 77
    %v3163 = vsel %vm3162, %v3159, %v3161
    %v3164 = vsel %vm3162, %v3161, %v3159
    %v3165 = vlaneseq
    %v3166 = vshrl.u32 %v3165, 7
    %v3167 = vsub.s32 0, %v3166
    %v3168 = vrot.slane %v102, %v3167
    %v3169 = vlaneseq
    %v3170 = vshrl.u32 %v3169, 7
    %v3171 = vsub.s32 0, %v3170
    %v3172 = vrot.slane %v103, %v3171
    %v3173 = vmul.f32 %v3163, %v3168
    %v3174 = vmul.f32 %v3164, %v3172
    %s3175 = sld [smem:[#allocation2 + $0x60]]
    %v3176 = vstv %s3175
    %v3177 = vmul.f32 %v3176, %v3173
    %v3178 = vmul.f32 %v3176, %v3174
    %v3179 = vadd.f32 %v3156, %v3177
    %v3180 = vadd.f32 %v3157, %v3178
    %s3181 = sld [smem:[#allocation2 + $0x61]]
    %v3182 = vstv %s3181
    %v3183 = vmul.f32 %v3182, %v3173
    %v3184 = vmul.f32 %v3182, %v3174
    %v3187 = vrot.slane %v3183, 1
    %v3188 = vrot.slane %v3184, 1
    %v3191 = vadd.f32 %v3179, %v3187
    %v3192 = vadd.f32 %v3180, %v3188
    %v3193 = vxor.u32 %v3191, 2147483648
    %v3194 = vxor.u32 %v3192, 2147483648
    %v3195 = vmul.f32 %v3193, 1.442695
    %v3196 = vpow.pop %v3195
    %v3197 = vmul.f32 %v3194, 1.442695
    %v3198 = vpow.pop %v3197
    %v3199 = vadd.f32 %v3196, 1.0
    %v3200 = vadd.f32 %v3198, 1.0
    %v3201 = vrcp.pop %v3199
    %v3202 = vmul.f32 1.0, %v3201
    %v3203 = vrcp.pop %v3200
    %v3204 = vmul.f32 1.0, %v3203
    %v3205 = vlaneseq
    %v3206 = vshrl.u32 %v3205, 7
    %v3207 = vsub.s32 0, %v3206
    %v3208 = vrot.slane %v3202, %v3207
    %v3209 = vlaneseq
    %v3210 = vshrl.u32 %v3209, 7
    %v3211 = vsub.s32 0, %v3210
    %v3212 = vrot.slane %v3204, %v3211
    %v3213 = vmul.f32 %v1472, %v3208
    %v3214 = vmul.f32 %v1473, %v3212
    %v3215 = vmul.f32 %v3213, %v1292
    %v3216 = vmul.f32 %v3214, %v1293
    %3217 = vst [vmem:[#allocation7] sm:$0xff] %v3215
    %3218 = vst [vmem:[#allocation7 + $0x8] sm:$0xff] %v3216
    %s3219 = scalar_lea.vmem %s0, 8
    %v3220 = vld [vmem:[%s3219] sm:$0xff]
    %v3222 = vcombine.high %v3220, %v3220
    %3224 = vrot.lane.b32.xlu0 %v3220, 17
    %v3225 = vpop.permute.xlu0 %3224
    %3226 = vrot.lane.b32.xlu0 %v3222, 17
    %v3227 = vpop.permute.xlu0 %3226
    %v3228 = vsel %vm114, %v3225, %v3227
    %v3229 = vsel %vm114, %v3227, %v3225
    %v3230 = vmul.f32 %v3229, %v120
    %v3231 = vmul.f32 %v3228, %v124
    %v3232 = vpack.c.bf16 %v3230, %v3230
    %v3233 = vpack.c.bf16 %v3231, %v3231
    %3234 = vrot.lane.b32.xlu0 %v3220, 16
    %v3235 = vpop.permute.xlu0 %3234
    %3236 = vrot.lane.b32.xlu0 %v3222, 16
    %v3237 = vpop.permute.xlu0 %3236
    %v3238 = vsel %vm133, %v3235, %v3237
    %v3239 = vsel %vm133, %v3237, %v3235
    %v3240 = vmul.f32 %v3239, %v139
    %v3241 = vmul.f32 %v3238, %v143
    %v3242 = vpack.c.bf16 %v3240, %v3240
    %v3243 = vpack.c.bf16 %v3241, %v3241
    %v3245 = vsel %vm152, %v3242, 0
    %v3248 = vsel %vm152, %v3243, 0
    %3250 = vmatprep.subr.bf16.mxu0 %v3248
    %3251 = vmatpush1.bf16.msra.mxu0 %v3245
    %3252 = vmatprep.subr.bf16.mxu0 0
    %3253 = vmatpush1.bf16.msra.mxu0 0
    %3254 = vmatprep.subr.bf16.mxu0 0
    %3255 = vmatpush1.bf16.msra.mxu0 0
    %3256 = vmatprep.subr.bf16.mxu0 0
    %3257 = vmatpush1.bf16.msra.mxu0 0
    %3258 = vmatprep.subr.bf16.mxu0 0
    %3259 = vmatpush1.bf16.msra.mxu0 0
    %3260 = vmatprep.subr.bf16.mxu0 0
    %3261 = vmatpush1.bf16.msra.mxu0 0
    %3262 = vmatprep.subr.bf16.mxu0 0
    %3263 = vmatpush1.bf16.msra.mxu0 0
    %3264 = vmatprep.subr.bf16.mxu0 0
    %3265 = vmatpush1.bf16.msra.mxu0 0
    %3266 = vmatprep.subr.bf16.mxu0 0
    %3267 = vmatpush1.bf16.msra.mxu0 0
    %3268 = vmatprep.subr.bf16.mxu0 0
    %3269 = vmatpush1.bf16.msra.mxu0 0
    %3270 = vmatprep.subr.bf16.mxu0 0
    %3271 = vmatpush1.bf16.msra.mxu0 0
    %3272 = vmatprep.subr.bf16.mxu0 0
    %3273 = vmatpush1.bf16.msra.mxu0 0
    %3274 = vmatprep.subr.bf16.mxu0 0
    %3275 = vmatpush1.bf16.msra.mxu0 0
    %3276 = vmatprep.subr.bf16.mxu0 0
    %3277 = vmatpush1.bf16.msra.mxu0 0
    %3278 = vmatprep.subr.bf16.mxu0 0
    %3279 = vmatpush1.bf16.msra.mxu0 0
    %3280 = vmatprep.subr.bf16.mxu0 0
    %3281 = vmatpush1.bf16.msra.mxu0 0
    %3282 = vmatprep.mubr.bf16.mxu0 0
    %3283 = vmatmul.mubr.bf16.gmra.mrb[0].mxu0 %v150
    %v3284 = vpop.f32.mrb[0].mxu0
    %v3285 = vadd.f32 0.0, %v3284
    %v3286 = vpop.f32.mrb[0].mxu0
    %v3287 = vadd.f32 0.0, %v3286
    %v3288 = vpop.f32.mrb[0].mxu0
    %v3289 = vpop.f32.mrb[0].mxu0
    %3290 = vdwg.mxu0
    %v3292 = vsel %vm152, %v3232, 0
    %v3295 = vsel %vm152, %v3233, 0
    %3297 = vmatprep.subr.bf16.mxu0 %v3295
    %3298 = vmatpush1.bf16.msra.mxu0 %v3292
    %3299 = vmatprep.subr.bf16.mxu0 0
    %3300 = vmatpush1.bf16.msra.mxu0 0
    %3301 = vmatprep.subr.bf16.mxu0 0
    %3302 = vmatpush1.bf16.msra.mxu0 0
    %3303 = vmatprep.subr.bf16.mxu0 0
    %3304 = vmatpush1.bf16.msra.mxu0 0
    %3305 = vmatprep.subr.bf16.mxu0 0
    %3306 = vmatpush1.bf16.msra.mxu0 0
    %3307 = vmatprep.subr.bf16.mxu0 0
    %3308 = vmatpush1.bf16.msra.mxu0 0
    %3309 = vmatprep.subr.bf16.mxu0 0
    %3310 = vmatpush1.bf16.msra.mxu0 0
    %3311 = vmatprep.subr.bf16.mxu0 0
    %3312 = vmatpush1.bf16.msra.mxu0 0
    %3313 = vmatprep.subr.bf16.mxu0 0
    %3314 = vmatpush1.bf16.msra.mxu0 0
    %3315 = vmatprep.subr.bf16.mxu0 0
    %3316 = vmatpush1.bf16.msra.mxu0 0
    %3317 = vmatprep.subr.bf16.mxu0 0
    %3318 = vmatpush1.bf16.msra.mxu0 0
    %3319 = vmatprep.subr.bf16.mxu0 0
    %3320 = vmatpush1.bf16.msra.mxu0 0
    %3321 = vmatprep.subr.bf16.mxu0 0
    %3322 = vmatpush1.bf16.msra.mxu0 0
    %3323 = vmatprep.subr.bf16.mxu0 0
    %3324 = vmatpush1.bf16.msra.mxu0 0
    %3325 = vmatprep.subr.bf16.mxu0 0
    %3326 = vmatpush1.bf16.msra.mxu0 0
    %3327 = vmatprep.subr.bf16.mxu0 0
    %3328 = vmatpush1.bf16.msra.mxu0 0
    %3329 = vmatprep.mubr.bf16.mxu0 0
    %3330 = vmatmul.mubr.bf16.gmra.mrb[0].mxu0 %v201
    %v3331 = vpop.f32.mrb[0].mxu0
    %v3332 = vadd.f32 %v3285, %v3331
    %v3333 = vpop.f32.mrb[0].mxu0
    %v3334 = vadd.f32 %v3287, %v3333
    %v3335 = vpop.f32.mrb[0].mxu0
    %v3336 = vpop.f32.mrb[0].mxu0
    %3337 = vdwg.mxu0
    %3338 = vrot.lane.b32.xlu0 %v3220, 15
    %v3339 = vpop.permute.xlu0 %3338
    %3340 = vrot.lane.b32.xlu0 %v3222, 15
    %v3341 = vpop.permute.xlu0 %3340
    %v3342 = vsel %vm254, %v3339, %v3341
    %v3343 = vsel %vm254, %v3341, %v3339
    %v3344 = vmul.f32 %v3343, %v260
    %v3345 = vmul.f32 %v3342, %v264
    %v3346 = vpack.c.bf16 %v3344, %v3344
    %v3347 = vpack.c.bf16 %v3345, %v3345
    %v3349 = vsel %vm152, %v3346, 0
    %v3352 = vsel %vm152, %v3347, 0
    %3354 = vmatprep.subr.bf16.mxu0 %v3352
    %3355 = vmatpush1.bf16.msra.mxu0 %v3349
    %3356 = vmatprep.subr.bf16.mxu0 0
    %3357 = vmatpush1.bf16.msra.mxu0 0
    %3358 = vmatprep.subr.bf16.mxu0 0
    %3359 = vmatpush1.bf16.msra.mxu0 0
    %3360 = vmatprep.subr.bf16.mxu0 0
    %3361 = vmatpush1.bf16.msra.mxu0 0
    %3362 = vmatprep.subr.bf16.mxu0 0
    %3363 = vmatpush1.bf16.msra.mxu0 0
    %3364 = vmatprep.subr.bf16.mxu0 0
    %3365 = vmatpush1.bf16.msra.mxu0 0
    %3366 = vmatprep.subr.bf16.mxu0 0
    %3367 = vmatpush1.bf16.msra.mxu0 0
    %3368 = vmatprep.subr.bf16.mxu0 0
    %3369 = vmatpush1.bf16.msra.mxu0 0
    %3370 = vmatprep.subr.bf16.mxu0 0
    %3371 = vmatpush1.bf16.msra.mxu0 0
    %3372 = vmatprep.subr.bf16.mxu0 0
    %3373 = vmatpush1.bf16.msra.mxu0 0
    %3374 = vmatprep.subr.bf16.mxu0 0
    %3375 = vmatpush1.bf16.msra.mxu0 0
    %3376 = vmatprep.subr.bf16.mxu0 0
    %3377 = vmatpush1.bf16.msra.mxu0 0
    %3378 = vmatprep.subr.bf16.mxu0 0
    %3379 = vmatpush1.bf16.msra.mxu0 0
    %3380 = vmatprep.subr.bf16.mxu0 0
    %3381 = vmatpush1.bf16.msra.mxu0 0
    %3382 = vmatprep.subr.bf16.mxu0 0
    %3383 = vmatpush1.bf16.msra.mxu0 0
    %3384 = vmatprep.subr.bf16.mxu0 0
    %3385 = vmatpush1.bf16.msra.mxu0 0
    %3386 = vmatprep.mubr.bf16.mxu0 0
    %3387 = vmatmul.mubr.bf16.gmra.mrb[0].mxu0 %v270
    %v3388 = vpop.f32.mrb[0].mxu0
    %v3389 = vadd.f32 0.0, %v3388
    %v3390 = vpop.f32.mrb[0].mxu0
    %v3391 = vadd.f32 0.0, %v3390
    %v3392 = vpop.f32.mrb[0].mxu0
    %v3393 = vpop.f32.mrb[0].mxu0
    %3394 = vdwg.mxu0
    %v3395 = vadd.f32 %v3332, %v3389
    %v3396 = vadd.f32 %v3334, %v3391
    %3397 = vrot.lane.b32.xlu0 %v3220, 1
    %v3398 = vpop.permute.xlu0 %3397
    %3399 = vrot.lane.b32.xlu0 %v3222, 1
    %v3400 = vpop.permute.xlu0 %3399
    %v3401 = vsel %vm325, %v3398, %v3400
    %v3402 = vsel %vm325, %v3400, %v3398
    %v3403 = vmul.f32 %v3402, %v331
    %v3404 = vmul.f32 %v3401, %v335
    %v3405 = vpack.c.bf16 %v3403, %v3403
    %v3406 = vpack.c.bf16 %v3404, %v3404
    %v3408 = vsel %vm152, %v3405, 0
    %v3411 = vsel %vm152, %v3406, 0
    %3413 = vmatprep.subr.bf16.mxu0 %v3411
    %3414 = vmatpush1.bf16.msra.mxu0 %v3408
    %3415 = vmatprep.subr.bf16.mxu0 0
    %3416 = vmatpush1.bf16.msra.mxu0 0
    %3417 = vmatprep.subr.bf16.mxu0 0
    %3418 = vmatpush1.bf16.msra.mxu0 0
    %3419 = vmatprep.subr.bf16.mxu0 0
    %3420 = vmatpush1.bf16.msra.mxu0 0
    %3421 = vmatprep.subr.bf16.mxu0 0
    %3422 = vmatpush1.bf16.msra.mxu0 0
    %3423 = vmatprep.subr.bf16.mxu0 0
    %3424 = vmatpush1.bf16.msra.mxu0 0
    %3425 = vmatprep.subr.bf16.mxu0 0
    %3426 = vmatpush1.bf16.msra.mxu0 0
    %3427 = vmatprep.subr.bf16.mxu0 0
    %3428 = vmatpush1.bf16.msra.mxu0 0
    %3429 = vmatprep.subr.bf16.mxu0 0
    %3430 = vmatpush1.bf16.msra.mxu0 0
    %3431 = vmatprep.subr.bf16.mxu0 0
    %3432 = vmatpush1.bf16.msra.mxu0 0
    %3433 = vmatprep.subr.bf16.mxu0 0
    %3434 = vmatpush1.bf16.msra.mxu0 0
    %3435 = vmatprep.subr.bf16.mxu0 0
    %3436 = vmatpush1.bf16.msra.mxu0 0
    %3437 = vmatprep.subr.bf16.mxu0 0
    %3438 = vmatpush1.bf16.msra.mxu0 0
    %3439 = vmatprep.subr.bf16.mxu0 0
    %3440 = vmatpush1.bf16.msra.mxu0 0
    %3441 = vmatprep.subr.bf16.mxu0 0
    %3442 = vmatpush1.bf16.msra.mxu0 0
    %3443 = vmatprep.subr.bf16.mxu0 0
    %3444 = vmatpush1.bf16.msra.mxu0 0
    %3445 = vmatprep.mubr.bf16.mxu0 0
    %3446 = vmatmul.mubr.bf16.gmra.mrb[0].mxu0 %v341
    %v3447 = vpop.f32.mrb[0].mxu0
    %v3448 = vadd.f32 0.0, %v3447
    %v3449 = vpop.f32.mrb[0].mxu0
    %v3450 = vadd.f32 0.0, %v3449
    %v3451 = vpop.f32.mrb[0].mxu0
    %v3452 = vpop.f32.mrb[0].mxu0
    %3453 = vdwg.mxu0
    %v3454 = vadd.f32 %v3395, %v3448
    %v3455 = vadd.f32 %v3396, %v3450
    %v3456 = vpack.c.bf16 %v3220, %v3220
    %v3457 = vpack.c.bf16 %v3222, %v3222
    %v3459 = vsel %vm152, %v3456, 0
    %v3462 = vsel %vm152, %v3457, 0
    %3464 = vmatprep.subr.bf16.mxu0 %v3462
    %3465 = vmatpush1.bf16.msra.mxu0 %v3459
    %3466 = vmatprep.subr.bf16.mxu0 0
    %3467 = vmatpush1.bf16.msra.mxu0 0
    %3468 = vmatprep.subr.bf16.mxu0 0
    %3469 = vmatpush1.bf16.msra.mxu0 0
    %3470 = vmatprep.subr.bf16.mxu0 0
    %3471 = vmatpush1.bf16.msra.mxu0 0
    %3472 = vmatprep.subr.bf16.mxu0 0
    %3473 = vmatpush1.bf16.msra.mxu0 0
    %3474 = vmatprep.subr.bf16.mxu0 0
    %3475 = vmatpush1.bf16.msra.mxu0 0
    %3476 = vmatprep.subr.bf16.mxu0 0
    %3477 = vmatpush1.bf16.msra.mxu0 0
    %3478 = vmatprep.subr.bf16.mxu0 0
    %3479 = vmatpush1.bf16.msra.mxu0 0
    %3480 = vmatprep.subr.bf16.mxu0 0
    %3481 = vmatpush1.bf16.msra.mxu0 0
    %3482 = vmatprep.subr.bf16.mxu0 0
    %3483 = vmatpush1.bf16.msra.mxu0 0
    %3484 = vmatprep.subr.bf16.mxu0 0
    %3485 = vmatpush1.bf16.msra.mxu0 0
    %3486 = vmatprep.subr.bf16.mxu0 0
    %3487 = vmatpush1.bf16.msra.mxu0 0
    %3488 = vmatprep.subr.bf16.mxu0 0
    %3489 = vmatpush1.bf16.msra.mxu0 0
    %3490 = vmatprep.subr.bf16.mxu0 0
    %3491 = vmatpush1.bf16.msra.mxu0 0
    %3492 = vmatprep.subr.bf16.mxu0 0
    %3493 = vmatpush1.bf16.msra.mxu0 0
    %3494 = vmatprep.subr.bf16.mxu0 0
    %3495 = vmatpush1.bf16.msra.mxu0 0
    %3496 = vmatprep.mubr.bf16.mxu0 0
    %3497 = vmatmul.mubr.bf16.gmra.mrb[0].mxu0 %v395
    %v3498 = vpop.f32.mrb[0].mxu0
    %v3499 = vadd.f32 0.0, %v3498
    %v3500 = vpop.f32.mrb[0].mxu0
    %v3501 = vadd.f32 0.0, %v3500
    %v3502 = vpop.f32.mrb[0].mxu0
    %v3503 = vpop.f32.mrb[0].mxu0
    %3504 = vdwg.mxu0
    %v3505 = vadd.f32 %v3454, %v3499
    %v3506 = vadd.f32 %v3455, %v3501
    %3507 = vrot.lane.b32.xlu0 %v3220, 127
    %v3508 = vpop.permute.xlu0 %3507
    %3509 = vrot.lane.b32.xlu0 %v3222, 127
    %v3510 = vpop.permute.xlu0 %3509
    %v3511 = vsel %vm450, %v3508, %v3510
    %v3512 = vsel %vm450, %v3510, %v3508
    %v3513 = vmul.f32 %v3511, %v456
    %v3514 = vmul.f32 %v3512, %v460
    %v3515 = vpack.c.bf16 %v3513, %v3513
    %v3516 = vpack.c.bf16 %v3514, %v3514
    %v3518 = vsel %vm152, %v3515, 0
    %v3521 = vsel %vm152, %v3516, 0
    %3523 = vmatprep.subr.bf16.mxu0 %v3521
    %3524 = vmatpush1.bf16.msra.mxu0 %v3518
    %3525 = vmatprep.subr.bf16.mxu0 0
    %3526 = vmatpush1.bf16.msra.mxu0 0
    %3527 = vmatprep.subr.bf16.mxu0 0
    %3528 = vmatpush1.bf16.msra.mxu0 0
    %3529 = vmatprep.subr.bf16.mxu0 0
    %3530 = vmatpush1.bf16.msra.mxu0 0
    %3531 = vmatprep.subr.bf16.mxu0 0
    %3532 = vmatpush1.bf16.msra.mxu0 0
    %3533 = vmatprep.subr.bf16.mxu0 0
    %3534 = vmatpush1.bf16.msra.mxu0 0
    %3535 = vmatprep.subr.bf16.mxu0 0
    %3536 = vmatpush1.bf16.msra.mxu0 0
    %3537 = vmatprep.subr.bf16.mxu0 0
    %3538 = vmatpush1.bf16.msra.mxu0 0
    %3539 = vmatprep.subr.bf16.mxu0 0
    %3540 = vmatpush1.bf16.msra.mxu0 0
    %3541 = vmatprep.subr.bf16.mxu0 0
    %3542 = vmatpush1.bf16.msra.mxu0 0
    %3543 = vmatprep.subr.bf16.mxu0 0
    %3544 = vmatpush1.bf16.msra.mxu0 0
    %3545 = vmatprep.subr.bf16.mxu0 0
    %3546 = vmatpush1.bf16.msra.mxu0 0
    %3547 = vmatprep.subr.bf16.mxu0 0
    %3548 = vmatpush1.bf16.msra.mxu0 0
    %3549 = vmatprep.subr.bf16.mxu0 0
    %3550 = vmatpush1.bf16.msra.mxu0 0
    %3551 = vmatprep.subr.bf16.mxu0 0
    %3552 = vmatpush1.bf16.msra.mxu0 0
    %3553 = vmatprep.subr.bf16.mxu0 0
    %3554 = vmatpush1.bf16.msra.mxu0 0
    %3555 = vmatprep.mubr.bf16.mxu0 0
    %3556 = vmatmul.mubr.bf16.gmra.mrb[0].mxu0 %v466
    %v3557 = vpop.f32.mrb[0].mxu0
    %v3558 = vadd.f32 0.0, %v3557
    %v3559 = vpop.f32.mrb[0].mxu0
    %v3560 = vadd.f32 0.0, %v3559
    %v3561 = vpop.f32.mrb[0].mxu0
    %v3562 = vpop.f32.mrb[0].mxu0
    %3563 = vdwg.mxu0
    %v3564 = vadd.f32 %v3505, %v3558
    %v3565 = vadd.f32 %v3506, %v3560
    %3566 = vrot.lane.b32.xlu0 %v3220, 113
    %v3567 = vpop.permute.xlu0 %3566
    %3568 = vrot.lane.b32.xlu0 %v3222, 113
    %v3569 = vpop.permute.xlu0 %3568
    %v3570 = vsel %vm521, %v3567, %v3569
    %v3571 = vsel %vm521, %v3569, %v3567
    %v3572 = vmul.f32 %v3570, %v527
    %v3573 = vmul.f32 %v3571, %v531
    %v3574 = vpack.c.bf16 %v3572, %v3572
    %v3575 = vpack.c.bf16 %v3573, %v3573
    %v3577 = vsel %vm152, %v3574, 0
    %v3580 = vsel %vm152, %v3575, 0
    %3582 = vmatprep.subr.bf16.mxu0 %v3580
    %3583 = vmatpush1.bf16.msra.mxu0 %v3577
    %3584 = vmatprep.subr.bf16.mxu0 0
    %3585 = vmatpush1.bf16.msra.mxu0 0
    %3586 = vmatprep.subr.bf16.mxu0 0
    %3587 = vmatpush1.bf16.msra.mxu0 0
    %3588 = vmatprep.subr.bf16.mxu0 0
    %3589 = vmatpush1.bf16.msra.mxu0 0
    %3590 = vmatprep.subr.bf16.mxu0 0
    %3591 = vmatpush1.bf16.msra.mxu0 0
    %3592 = vmatprep.subr.bf16.mxu0 0
    %3593 = vmatpush1.bf16.msra.mxu0 0
    %3594 = vmatprep.subr.bf16.mxu0 0
    %3595 = vmatpush1.bf16.msra.mxu0 0
    %3596 = vmatprep.subr.bf16.mxu0 0
    %3597 = vmatpush1.bf16.msra.mxu0 0
    %3598 = vmatprep.subr.bf16.mxu0 0
    %3599 = vmatpush1.bf16.msra.mxu0 0
    %3600 = vmatprep.subr.bf16.mxu0 0
    %3601 = vmatpush1.bf16.msra.mxu0 0
    %3602 = vmatprep.subr.bf16.mxu0 0
    %3603 = vmatpush1.bf16.msra.mxu0 0
    %3604 = vmatprep.subr.bf16.mxu0 0
    %3605 = vmatpush1.bf16.msra.mxu0 0
    %3606 = vmatprep.subr.bf16.mxu0 0
    %3607 = vmatpush1.bf16.msra.mxu0 0
    %3608 = vmatprep.subr.bf16.mxu0 0
    %3609 = vmatpush1.bf16.msra.mxu0 0
    %3610 = vmatprep.subr.bf16.mxu0 0
    %3611 = vmatpush1.bf16.msra.mxu0 0
    %3612 = vmatprep.subr.bf16.mxu0 0
    %3613 = vmatpush1.bf16.msra.mxu0 0
    %3614 = vmatprep.mubr.bf16.mxu0 0
    %3615 = vmatmul.mubr.bf16.gmra.mrb[0].mxu0 %v537
    %v3616 = vpop.f32.mrb[0].mxu0
    %v3617 = vadd.f32 0.0, %v3616
    %v3618 = vpop.f32.mrb[0].mxu0
    %v3619 = vadd.f32 0.0, %v3618
    %v3620 = vpop.f32.mrb[0].mxu0
    %v3621 = vpop.f32.mrb[0].mxu0
    %3622 = vdwg.mxu0
    %v3623 = vadd.f32 %v3564, %v3617
    %v3624 = vadd.f32 %v3565, %v3619
    %3625 = vrot.lane.b32.xlu0 %v3220, 112
    %v3626 = vpop.permute.xlu0 %3625
    %3627 = vrot.lane.b32.xlu0 %v3222, 112
    %v3628 = vpop.permute.xlu0 %3627
    %v3629 = vsel %vm592, %v3626, %v3628
    %v3630 = vsel %vm592, %v3628, %v3626
    %v3631 = vmul.f32 %v3629, %v598
    %v3632 = vmul.f32 %v3630, %v602
    %v3633 = vpack.c.bf16 %v3631, %v3631
    %v3634 = vpack.c.bf16 %v3632, %v3632
    %v3636 = vsel %vm152, %v3633, 0
    %v3639 = vsel %vm152, %v3634, 0
    %3641 = vmatprep.subr.bf16.mxu0 %v3639
    %3642 = vmatpush1.bf16.msra.mxu0 %v3636
    %3643 = vmatprep.subr.bf16.mxu0 0
    %3644 = vmatpush1.bf16.msra.mxu0 0
    %3645 = vmatprep.subr.bf16.mxu0 0
    %3646 = vmatpush1.bf16.msra.mxu0 0
    %3647 = vmatprep.subr.bf16.mxu0 0
    %3648 = vmatpush1.bf16.msra.mxu0 0
    %3649 = vmatprep.subr.bf16.mxu0 0
    %3650 = vmatpush1.bf16.msra.mxu0 0
    %3651 = vmatprep.subr.bf16.mxu0 0
    %3652 = vmatpush1.bf16.msra.mxu0 0
    %3653 = vmatprep.subr.bf16.mxu0 0
    %3654 = vmatpush1.bf16.msra.mxu0 0
    %3655 = vmatprep.subr.bf16.mxu0 0
    %3656 = vmatpush1.bf16.msra.mxu0 0
    %3657 = vmatprep.subr.bf16.mxu0 0
    %3658 = vmatpush1.bf16.msra.mxu0 0
    %3659 = vmatprep.subr.bf16.mxu0 0
    %3660 = vmatpush1.bf16.msra.mxu0 0
    %3661 = vmatprep.subr.bf16.mxu0 0
    %3662 = vmatpush1.bf16.msra.mxu0 0
    %3663 = vmatprep.subr.bf16.mxu0 0
    %3664 = vmatpush1.bf16.msra.mxu0 0
    %3665 = vmatprep.subr.bf16.mxu0 0
    %3666 = vmatpush1.bf16.msra.mxu0 0
    %3667 = vmatprep.subr.bf16.mxu0 0
    %3668 = vmatpush1.bf16.msra.mxu0 0
    %3669 = vmatprep.subr.bf16.mxu0 0
    %3670 = vmatpush1.bf16.msra.mxu0 0
    %3671 = vmatprep.subr.bf16.mxu0 0
    %3672 = vmatpush1.bf16.msra.mxu0 0
    %3673 = vmatprep.mubr.bf16.mxu0 0
    %3674 = vmatmul.mubr.bf16.gmra.mrb[0].mxu0 %v608
    %v3675 = vpop.f32.mrb[0].mxu0
    %v3676 = vadd.f32 0.0, %v3675
    %v3677 = vpop.f32.mrb[0].mxu0
    %v3678 = vadd.f32 0.0, %v3677
    %v3679 = vpop.f32.mrb[0].mxu0
    %v3680 = vpop.f32.mrb[0].mxu0
    %3681 = vdwg.mxu0
    %v3682 = vadd.f32 %v3623, %v3676
    %v3683 = vadd.f32 %v3624, %v3678
    %3684 = vrot.lane.b32.xlu0 %v3220, 111
    %v3685 = vpop.permute.xlu0 %3684
    %3686 = vrot.lane.b32.xlu0 %v3222, 111
    %v3687 = vpop.permute.xlu0 %3686
    %v3688 = vsel %vm663, %v3685, %v3687
    %v3689 = vsel %vm663, %v3687, %v3685
    %v3690 = vmul.f32 %v3688, %v669
    %v3691 = vmul.f32 %v3689, %v673
    %v3692 = vpack.c.bf16 %v3690, %v3690
    %v3693 = vpack.c.bf16 %v3691, %v3691
    %v3695 = vsel %vm152, %v3692, 0
    %v3698 = vsel %vm152, %v3693, 0
    %3700 = vmatprep.subr.bf16.mxu0 %v3698
    %3701 = vmatpush1.bf16.msra.mxu0 %v3695
    %3702 = vmatprep.subr.bf16.mxu0 0
    %3703 = vmatpush1.bf16.msra.mxu0 0
    %3704 = vmatprep.subr.bf16.mxu0 0
    %3705 = vmatpush1.bf16.msra.mxu0 0
    %3706 = vmatprep.subr.bf16.mxu0 0
    %3707 = vmatpush1.bf16.msra.mxu0 0
    %3708 = vmatprep.subr.bf16.mxu0 0
    %3709 = vmatpush1.bf16.msra.mxu0 0
    %3710 = vmatprep.subr.bf16.mxu0 0
    %3711 = vmatpush1.bf16.msra.mxu0 0
    %3712 = vmatprep.subr.bf16.mxu0 0
    %3713 = vmatpush1.bf16.msra.mxu0 0
    %3714 = vmatprep.subr.bf16.mxu0 0
    %3715 = vmatpush1.bf16.msra.mxu0 0
    %3716 = vmatprep.subr.bf16.mxu0 0
    %3717 = vmatpush1.bf16.msra.mxu0 0
    %3718 = vmatprep.subr.bf16.mxu0 0
    %3719 = vmatpush1.bf16.msra.mxu0 0
    %3720 = vmatprep.subr.bf16.mxu0 0
    %3721 = vmatpush1.bf16.msra.mxu0 0
    %3722 = vmatprep.subr.bf16.mxu0 0
    %3723 = vmatpush1.bf16.msra.mxu0 0
    %3724 = vmatprep.subr.bf16.mxu0 0
    %3725 = vmatpush1.bf16.msra.mxu0 0
    %3726 = vmatprep.subr.bf16.mxu0 0
    %3727 = vmatpush1.bf16.msra.mxu0 0
    %3728 = vmatprep.subr.bf16.mxu0 0
    %3729 = vmatpush1.bf16.msra.mxu0 0
    %3730 = vmatprep.subr.bf16.mxu0 0
    %3731 = vmatpush1.bf16.msra.mxu0 0
    %3732 = vmatprep.mubr.bf16.mxu0 0
    %3733 = vmatmul.mubr.bf16.gmra.mrb[0].mxu0 %v679
    %v3734 = vpop.f32.mrb[0].mxu0
    %v3735 = vadd.f32 0.0, %v3734
    %v3736 = vpop.f32.mrb[0].mxu0
    %v3737 = vadd.f32 0.0, %v3736
    %v3738 = vpop.f32.mrb[0].mxu0
    %v3739 = vpop.f32.mrb[0].mxu0
    %3740 = vdwg.mxu0
    %v3741 = vadd.f32 %v3682, %v3735
    %v3742 = vadd.f32 %v3683, %v3737
    %v3743 = vadd.f32 %v3741, %v733
    %v3744 = vadd.f32 %v3742, %v733
    %v3745 = vmax.f32 %v3743, 0.0
    %v3746 = vmax.f32 %v3744, 0.0
    %3747 = vrot.lane.b32.xlu0 %v3745, 17
    %v3748 = vpop.permute.xlu0 %3747
    %3749 = vrot.lane.b32.xlu0 %v3746, 17
    %v3750 = vpop.permute.xlu0 %3749
    %v3751 = vsel %vm114, %v3748, %v3750
    %v3752 = vsel %vm114, %v3750, %v3748
    %v3753 = vmul.f32 %v3752, %v120
    %v3754 = vmul.f32 %v3751, %v124
    %v3755 = vpack.c.bf16 %v3753, %v3753
    %v3756 = vpack.c.bf16 %v3754, %v3754
    %3757 = vrot.lane.b32.xlu0 %v3745, 16
    %v3758 = vpop.permute.xlu0 %3757
    %3759 = vrot.lane.b32.xlu0 %v3746, 16
    %v3760 = vpop.permute.xlu0 %3759
    %v3761 = vsel %vm133, %v3758, %v3760
    %v3762 = vsel %vm133, %v3760, %v3758
    %v3763 = vmul.f32 %v3762, %v139
    %v3764 = vmul.f32 %v3761, %v143
    %v3765 = vpack.c.bf16 %v3763, %v3763
    %v3766 = vpack.c.bf16 %v3764, %v3764
    %v3768 = vsel %vm152, %v3765, 0
    %v3771 = vsel %vm152, %v3766, 0
    %3773 = vmatprep.subr.bf16.mxu0 %v3771
    %3774 = vmatpush1.bf16.msra.mxu0 %v3768
    %3775 = vmatprep.subr.bf16.mxu0 0
    %3776 = vmatpush1.bf16.msra.mxu0 0
    %3777 = vmatprep.subr.bf16.mxu0 0
    %3778 = vmatpush1.bf16.msra.mxu0 0
    %3779 = vmatprep.subr.bf16.mxu0 0
    %3780 = vmatpush1.bf16.msra.mxu0 0
    %3781 = vmatprep.subr.bf16.mxu0 0
    %3782 = vmatpush1.bf16.msra.mxu0 0
    %3783 = vmatprep.subr.bf16.mxu0 0
    %3784 = vmatpush1.bf16.msra.mxu0 0
    %3785 = vmatprep.subr.bf16.mxu0 0
    %3786 = vmatpush1.bf16.msra.mxu0 0
    %3787 = vmatprep.subr.bf16.mxu0 0
    %3788 = vmatpush1.bf16.msra.mxu0 0
    %3789 = vmatprep.subr.bf16.mxu0 0
    %3790 = vmatpush1.bf16.msra.mxu0 0
    %3791 = vmatprep.subr.bf16.mxu0 0
    %3792 = vmatpush1.bf16.msra.mxu0 0
    %3793 = vmatprep.subr.bf16.mxu0 0
    %3794 = vmatpush1.bf16.msra.mxu0 0
    %3795 = vmatprep.subr.bf16.mxu0 0
    %3796 = vmatpush1.bf16.msra.mxu0 0
    %3797 = vmatprep.subr.bf16.mxu0 0
    %3798 = vmatpush1.bf16.msra.mxu0 0
    %3799 = vmatprep.subr.bf16.mxu0 0
    %3800 = vmatpush1.bf16.msra.mxu0 0
    %3801 = vmatprep.subr.bf16.mxu0 0
    %3802 = vmatpush1.bf16.msra.mxu0 0
    %3803 = vmatprep.subr.bf16.mxu0 0
    %3804 = vmatpush1.bf16.msra.mxu0 0
    %3805 = vmatprep.mubr.bf16.mxu0 0
    %3806 = vmatmul.mubr.bf16.gmra.mrb[0].mxu0 %v760
    %v3807 = vpop.f32.mrb[0].mxu0
    %v3808 = vadd.f32 0.0, %v3807
    %v3809 = vpop.f32.mrb[0].mxu0
    %v3810 = vadd.f32 0.0, %v3809
    %v3811 = vpop.f32.mrb[0].mxu0
    %v3812 = vpop.f32.mrb[0].mxu0
    %3813 = vdwg.mxu0
    %v3815 = vsel %vm152, %v3755, 0
    %v3818 = vsel %vm152, %v3756, 0
    %3820 = vmatprep.subr.bf16.mxu0 %v3818
    %3821 = vmatpush1.bf16.msra.mxu0 %v3815
    %3822 = vmatprep.subr.bf16.mxu0 0
    %3823 = vmatpush1.bf16.msra.mxu0 0
    %3824 = vmatprep.subr.bf16.mxu0 0
    %3825 = vmatpush1.bf16.msra.mxu0 0
    %3826 = vmatprep.subr.bf16.mxu0 0
    %3827 = vmatpush1.bf16.msra.mxu0 0
    %3828 = vmatprep.subr.bf16.mxu0 0
    %3829 = vmatpush1.bf16.msra.mxu0 0
    %3830 = vmatprep.subr.bf16.mxu0 0
    %3831 = vmatpush1.bf16.msra.mxu0 0
    %3832 = vmatprep.subr.bf16.mxu0 0
    %3833 = vmatpush1.bf16.msra.mxu0 0
    %3834 = vmatprep.subr.bf16.mxu0 0
    %3835 = vmatpush1.bf16.msra.mxu0 0
    %3836 = vmatprep.subr.bf16.mxu0 0
    %3837 = vmatpush1.bf16.msra.mxu0 0
    %3838 = vmatprep.subr.bf16.mxu0 0
    %3839 = vmatpush1.bf16.msra.mxu0 0
    %3840 = vmatprep.subr.bf16.mxu0 0
    %3841 = vmatpush1.bf16.msra.mxu0 0
    %3842 = vmatprep.subr.bf16.mxu0 0
    %3843 = vmatpush1.bf16.msra.mxu0 0
    %3844 = vmatprep.subr.bf16.mxu0 0
    %3845 = vmatpush1.bf16.msra.mxu0 0
    %3846 = vmatprep.subr.bf16.mxu0 0
    %3847 = vmatpush1.bf16.msra.mxu0 0
    %3848 = vmatprep.subr.bf16.mxu0 0
    %3849 = vmatpush1.bf16.msra.mxu0 0
    %3850 = vmatprep.subr.bf16.mxu0 0
    %3851 = vmatpush1.bf16.msra.mxu0 0
    %3852 = vmatprep.mubr.bf16.mxu0 0
    %3853 = vmatmul.mubr.bf16.gmra.mrb[0].mxu0 %v810
    %v3854 = vpop.f32.mrb[0].mxu0
    %v3855 = vadd.f32 %v3808, %v3854
    %v3856 = vpop.f32.mrb[0].mxu0
    %v3857 = vadd.f32 %v3810, %v3856
    %v3858 = vpop.f32.mrb[0].mxu0
    %v3859 = vpop.f32.mrb[0].mxu0
    %3860 = vdwg.mxu0
    %3861 = vrot.lane.b32.xlu0 %v3745, 15
    %v3862 = vpop.permute.xlu0 %3861
    %3863 = vrot.lane.b32.xlu0 %v3746, 15
    %v3864 = vpop.permute.xlu0 %3863
    %v3865 = vsel %vm254, %v3862, %v3864
    %v3866 = vsel %vm254, %v3864, %v3862
    %v3867 = vmul.f32 %v3866, %v260
    %v3868 = vmul.f32 %v3865, %v264
    %v3869 = vpack.c.bf16 %v3867, %v3867
    %v3870 = vpack.c.bf16 %v3868, %v3868
    %v3872 = vsel %vm152, %v3869, 0
    %v3875 = vsel %vm152, %v3870, 0
    %3877 = vmatprep.subr.bf16.mxu0 %v3875
    %3878 = vmatpush1.bf16.msra.mxu0 %v3872
    %3879 = vmatprep.subr.bf16.mxu0 0
    %3880 = vmatpush1.bf16.msra.mxu0 0
    %3881 = vmatprep.subr.bf16.mxu0 0
    %3882 = vmatpush1.bf16.msra.mxu0 0
    %3883 = vmatprep.subr.bf16.mxu0 0
    %3884 = vmatpush1.bf16.msra.mxu0 0
    %3885 = vmatprep.subr.bf16.mxu0 0
    %3886 = vmatpush1.bf16.msra.mxu0 0
    %3887 = vmatprep.subr.bf16.mxu0 0
    %3888 = vmatpush1.bf16.msra.mxu0 0
    %3889 = vmatprep.subr.bf16.mxu0 0
    %3890 = vmatpush1.bf16.msra.mxu0 0
    %3891 = vmatprep.subr.bf16.mxu0 0
    %3892 = vmatpush1.bf16.msra.mxu0 0
    %3893 = vmatprep.subr.bf16.mxu0 0
    %3894 = vmatpush1.bf16.msra.mxu0 0
    %3895 = vmatprep.subr.bf16.mxu0 0
    %3896 = vmatpush1.bf16.msra.mxu0 0
    %3897 = vmatprep.subr.bf16.mxu0 0
    %3898 = vmatpush1.bf16.msra.mxu0 0
    %3899 = vmatprep.subr.bf16.mxu0 0
    %3900 = vmatpush1.bf16.msra.mxu0 0
    %3901 = vmatprep.subr.bf16.mxu0 0
    %3902 = vmatpush1.bf16.msra.mxu0 0
    %3903 = vmatprep.subr.bf16.mxu0 0
    %3904 = vmatpush1.bf16.msra.mxu0 0
    %3905 = vmatprep.subr.bf16.mxu0 0
    %3906 = vmatpush1.bf16.msra.mxu0 0
    %3907 = vmatprep.subr.bf16.mxu0 0
    %3908 = vmatpush1.bf16.msra.mxu0 0
    %3909 = vmatprep.mubr.bf16.mxu0 0
    %3910 = vmatmul.mubr.bf16.gmra.mrb[0].mxu0 %v870
    %v3911 = vpop.f32.mrb[0].mxu0
    %v3912 = vadd.f32 0.0, %v3911
    %v3913 = vpop.f32.mrb[0].mxu0
    %v3914 = vadd.f32 0.0, %v3913
    %v3915 = vpop.f32.mrb[0].mxu0
    %v3916 = vpop.f32.mrb[0].mxu0
    %3917 = vdwg.mxu0
    %v3918 = vadd.f32 %v3855, %v3912
    %v3919 = vadd.f32 %v3857, %v3914
    %3920 = vrot.lane.b32.xlu0 %v3745, 1
    %v3921 = vpop.permute.xlu0 %3920
    %3922 = vrot.lane.b32.xlu0 %v3746, 1
    %v3923 = vpop.permute.xlu0 %3922
    %v3924 = vsel %vm325, %v3921, %v3923
    %v3925 = vsel %vm325, %v3923, %v3921
    %v3926 = vmul.f32 %v3925, %v331
    %v3927 = vmul.f32 %v3924, %v335
    %v3928 = vpack.c.bf16 %v3926, %v3926
    %v3929 = vpack.c.bf16 %v3927, %v3927
    %v3931 = vsel %vm152, %v3928, 0
    %v3934 = vsel %vm152, %v3929, 0
    %3936 = vmatprep.subr.bf16.mxu0 %v3934
    %3937 = vmatpush1.bf16.msra.mxu0 %v3931
    %3938 = vmatprep.subr.bf16.mxu0 0
    %3939 = vmatpush1.bf16.msra.mxu0 0
    %3940 = vmatprep.subr.bf16.mxu0 0
    %3941 = vmatpush1.bf16.msra.mxu0 0
    %3942 = vmatprep.subr.bf16.mxu0 0
    %3943 = vmatpush1.bf16.msra.mxu0 0
    %3944 = vmatprep.subr.bf16.mxu0 0
    %3945 = vmatpush1.bf16.msra.mxu0 0
    %3946 = vmatprep.subr.bf16.mxu0 0
    %3947 = vmatpush1.bf16.msra.mxu0 0
    %3948 = vmatprep.subr.bf16.mxu0 0
    %3949 = vmatpush1.bf16.msra.mxu0 0
    %3950 = vmatprep.subr.bf16.mxu0 0
    %3951 = vmatpush1.bf16.msra.mxu0 0
    %3952 = vmatprep.subr.bf16.mxu0 0
    %3953 = vmatpush1.bf16.msra.mxu0 0
    %3954 = vmatprep.subr.bf16.mxu0 0
    %3955 = vmatpush1.bf16.msra.mxu0 0
    %3956 = vmatprep.subr.bf16.mxu0 0
    %3957 = vmatpush1.bf16.msra.mxu0 0
    %3958 = vmatprep.subr.bf16.mxu0 0
    %3959 = vmatpush1.bf16.msra.mxu0 0
    %3960 = vmatprep.subr.bf16.mxu0 0
    %3961 = vmatpush1.bf16.msra.mxu0 0
    %3962 = vmatprep.subr.bf16.mxu0 0
    %3963 = vmatpush1.bf16.msra.mxu0 0
    %3964 = vmatprep.subr.bf16.mxu0 0
    %3965 = vmatpush1.bf16.msra.mxu0 0
    %3966 = vmatprep.subr.bf16.mxu0 0
    %3967 = vmatpush1.bf16.msra.mxu0 0
    %3968 = vmatprep.mubr.bf16.mxu0 0
    %3969 = vmatmul.mubr.bf16.gmra.mrb[0].mxu0 %v932
    %v3970 = vpop.f32.mrb[0].mxu0
    %v3971 = vadd.f32 0.0, %v3970
    %v3972 = vpop.f32.mrb[0].mxu0
    %v3973 = vadd.f32 0.0, %v3972
    %v3974 = vpop.f32.mrb[0].mxu0
    %v3975 = vpop.f32.mrb[0].mxu0
    %3976 = vdwg.mxu0
    %v3977 = vadd.f32 %v3918, %v3971
    %v3978 = vadd.f32 %v3919, %v3973
    %v3979 = vpack.c.bf16 %v3745, %v3745
    %v3980 = vpack.c.bf16 %v3746, %v3746
    %v3982 = vsel %vm152, %v3979, 0
    %v3985 = vsel %vm152, %v3980, 0
    %3987 = vmatprep.subr.bf16.mxu0 %v3985
    %3988 = vmatpush1.bf16.msra.mxu0 %v3982
    %3989 = vmatprep.subr.bf16.mxu0 0
    %3990 = vmatpush1.bf16.msra.mxu0 0
    %3991 = vmatprep.subr.bf16.mxu0 0
    %3992 = vmatpush1.bf16.msra.mxu0 0
    %3993 = vmatprep.subr.bf16.mxu0 0
    %3994 = vmatpush1.bf16.msra.mxu0 0
    %3995 = vmatprep.subr.bf16.mxu0 0
    %3996 = vmatpush1.bf16.msra.mxu0 0
    %3997 = vmatprep.subr.bf16.mxu0 0
    %3998 = vmatpush1.bf16.msra.mxu0 0
    %3999 = vmatprep.subr.bf16.mxu0 0
    %4000 = vmatpush1.bf16.msra.mxu0 0
    %4001 = vmatprep.subr.bf16.mxu0 0
    %4002 = vmatpush1.bf16.msra.mxu0 0
    %4003 = vmatprep.subr.bf16.mxu0 0
    %4004 = vmatpush1.bf16.msra.mxu0 0
    %4005 = vmatprep.subr.bf16.mxu0 0
    %4006 = vmatpush1.bf16.msra.mxu0 0
    %4007 = vmatprep.subr.bf16.mxu0 0
    %4008 = vmatpush1.bf16.msra.mxu0 0
    %4009 = vmatprep.subr.bf16.mxu0 0
    %4010 = vmatpush1.bf16.msra.mxu0 0
    %4011 = vmatprep.subr.bf16.mxu0 0
    %4012 = vmatpush1.bf16.msra.mxu0 0
    %4013 = vmatprep.subr.bf16.mxu0 0
    %4014 = vmatpush1.bf16.msra.mxu0 0
    %4015 = vmatprep.subr.bf16.mxu0 0
    %4016 = vmatpush1.bf16.msra.mxu0 0
    %4017 = vmatprep.subr.bf16.mxu0 0
    %4018 = vmatpush1.bf16.msra.mxu0 0
    %4019 = vmatprep.mubr.bf16.mxu0 0
    %4020 = vmatmul.mubr.bf16.gmra.mrb[0].mxu0 %v986
    %v4021 = vpop.f32.mrb[0].mxu0
    %v4022 = vadd.f32 0.0, %v4021
    %v4023 = vpop.f32.mrb[0].mxu0
    %v4024 = vadd.f32 0.0, %v4023
    %v4025 = vpop.f32.mrb[0].mxu0
    %v4026 = vpop.f32.mrb[0].mxu0
    %4027 = vdwg.mxu0
    %v4028 = vadd.f32 %v3977, %v4022
    %v4029 = vadd.f32 %v3978, %v4024
    %4030 = vrot.lane.b32.xlu0 %v3745, 127
    %v4031 = vpop.permute.xlu0 %4030
    %4032 = vrot.lane.b32.xlu0 %v3746, 127
    %v4033 = vpop.permute.xlu0 %4032
    %v4034 = vsel %vm450, %v4031, %v4033
    %v4035 = vsel %vm450, %v4033, %v4031
    %v4036 = vmul.f32 %v4034, %v456
    %v4037 = vmul.f32 %v4035, %v460
    %v4038 = vpack.c.bf16 %v4036, %v4036
    %v4039 = vpack.c.bf16 %v4037, %v4037
    %v4041 = vsel %vm152, %v4038, 0
    %v4044 = vsel %vm152, %v4039, 0
    %4046 = vmatprep.subr.bf16.mxu0 %v4044
    %4047 = vmatpush1.bf16.msra.mxu0 %v4041
    %4048 = vmatprep.subr.bf16.mxu0 0
    %4049 = vmatpush1.bf16.msra.mxu0 0
    %4050 = vmatprep.subr.bf16.mxu0 0
    %4051 = vmatpush1.bf16.msra.mxu0 0
    %4052 = vmatprep.subr.bf16.mxu0 0
    %4053 = vmatpush1.bf16.msra.mxu0 0
    %4054 = vmatprep.subr.bf16.mxu0 0
    %4055 = vmatpush1.bf16.msra.mxu0 0
    %4056 = vmatprep.subr.bf16.mxu0 0
    %4057 = vmatpush1.bf16.msra.mxu0 0
    %4058 = vmatprep.subr.bf16.mxu0 0
    %4059 = vmatpush1.bf16.msra.mxu0 0
    %4060 = vmatprep.subr.bf16.mxu0 0
    %4061 = vmatpush1.bf16.msra.mxu0 0
    %4062 = vmatprep.subr.bf16.mxu0 0
    %4063 = vmatpush1.bf16.msra.mxu0 0
    %4064 = vmatprep.subr.bf16.mxu0 0
    %4065 = vmatpush1.bf16.msra.mxu0 0
    %4066 = vmatprep.subr.bf16.mxu0 0
    %4067 = vmatpush1.bf16.msra.mxu0 0
    %4068 = vmatprep.subr.bf16.mxu0 0
    %4069 = vmatpush1.bf16.msra.mxu0 0
    %4070 = vmatprep.subr.bf16.mxu0 0
    %4071 = vmatpush1.bf16.msra.mxu0 0
    %4072 = vmatprep.subr.bf16.mxu0 0
    %4073 = vmatpush1.bf16.msra.mxu0 0
    %4074 = vmatprep.subr.bf16.mxu0 0
    %4075 = vmatpush1.bf16.msra.mxu0 0
    %4076 = vmatprep.subr.bf16.mxu0 0
    %4077 = vmatpush1.bf16.msra.mxu0 0
    %4078 = vmatprep.mubr.bf16.mxu0 0
    %4079 = vmatmul.mubr.bf16.gmra.mrb[0].mxu0 %v1048
    %v4080 = vpop.f32.mrb[0].mxu0
    %v4081 = vadd.f32 0.0, %v4080
    %v4082 = vpop.f32.mrb[0].mxu0
    %v4083 = vadd.f32 0.0, %v4082
    %v4084 = vpop.f32.mrb[0].mxu0
    %v4085 = vpop.f32.mrb[0].mxu0
    %4086 = vdwg.mxu0
    %v4087 = vadd.f32 %v4028, %v4081
    %v4088 = vadd.f32 %v4029, %v4083
    %4089 = vrot.lane.b32.xlu0 %v3745, 113
    %v4090 = vpop.permute.xlu0 %4089
    %4091 = vrot.lane.b32.xlu0 %v3746, 113
    %v4092 = vpop.permute.xlu0 %4091
    %v4093 = vsel %vm521, %v4090, %v4092
    %v4094 = vsel %vm521, %v4092, %v4090
    %v4095 = vmul.f32 %v4093, %v527
    %v4096 = vmul.f32 %v4094, %v531
    %v4097 = vpack.c.bf16 %v4095, %v4095
    %v4098 = vpack.c.bf16 %v4096, %v4096
    %v4100 = vsel %vm152, %v4097, 0
    %v4103 = vsel %vm152, %v4098, 0
    %4105 = vmatprep.subr.bf16.mxu0 %v4103
    %4106 = vmatpush1.bf16.msra.mxu0 %v4100
    %4107 = vmatprep.subr.bf16.mxu0 0
    %4108 = vmatpush1.bf16.msra.mxu0 0
    %4109 = vmatprep.subr.bf16.mxu0 0
    %4110 = vmatpush1.bf16.msra.mxu0 0
    %4111 = vmatprep.subr.bf16.mxu0 0
    %4112 = vmatpush1.bf16.msra.mxu0 0
    %4113 = vmatprep.subr.bf16.mxu0 0
    %4114 = vmatpush1.bf16.msra.mxu0 0
    %4115 = vmatprep.subr.bf16.mxu0 0
    %4116 = vmatpush1.bf16.msra.mxu0 0
    %4117 = vmatprep.subr.bf16.mxu0 0
    %4118 = vmatpush1.bf16.msra.mxu0 0
    %4119 = vmatprep.subr.bf16.mxu0 0
    %4120 = vmatpush1.bf16.msra.mxu0 0
    %4121 = vmatprep.subr.bf16.mxu0 0
    %4122 = vmatpush1.bf16.msra.mxu0 0
    %4123 = vmatprep.subr.bf16.mxu0 0
    %4124 = vmatpush1.bf16.msra.mxu0 0
    %4125 = vmatprep.subr.bf16.mxu0 0
    %4126 = vmatpush1.bf16.msra.mxu0 0
    %4127 = vmatprep.subr.bf16.mxu0 0
    %4128 = vmatpush1.bf16.msra.mxu0 0
    %4129 = vmatprep.subr.bf16.mxu0 0
    %4130 = vmatpush1.bf16.msra.mxu0 0
    %4131 = vmatprep.subr.bf16.mxu0 0
    %4132 = vmatpush1.bf16.msra.mxu0 0
    %4133 = vmatprep.subr.bf16.mxu0 0
    %4134 = vmatpush1.bf16.msra.mxu0 0
    %4135 = vmatprep.subr.bf16.mxu0 0
    %4136 = vmatpush1.bf16.msra.mxu0 0
    %4137 = vmatprep.mubr.bf16.mxu0 0
    %4138 = vmatmul.mubr.bf16.gmra.mrb[0].mxu0 %v1110
    %v4139 = vpop.f32.mrb[0].mxu0
    %v4140 = vadd.f32 0.0, %v4139
    %v4141 = vpop.f32.mrb[0].mxu0
    %v4142 = vadd.f32 0.0, %v4141
    %v4143 = vpop.f32.mrb[0].mxu0
    %v4144 = vpop.f32.mrb[0].mxu0
    %4145 = vdwg.mxu0
    %v4146 = vadd.f32 %v4087, %v4140
    %v4147 = vadd.f32 %v4088, %v4142
    %4148 = vrot.lane.b32.xlu0 %v3745, 112
    %v4149 = vpop.permute.xlu0 %4148
    %4150 = vrot.lane.b32.xlu0 %v3746, 112
    %v4151 = vpop.permute.xlu0 %4150
    %v4152 = vsel %vm592, %v4149, %v4151
    %v4153 = vsel %vm592, %v4151, %v4149
    %v4154 = vmul.f32 %v4152, %v598
    %v4155 = vmul.f32 %v4153, %v602
    %v4156 = vpack.c.bf16 %v4154, %v4154
    %v4157 = vpack.c.bf16 %v4155, %v4155
    %v4159 = vsel %vm152, %v4156, 0
    %v4162 = vsel %vm152, %v4157, 0
    %4164 = vmatprep.subr.bf16.mxu0 %v4162
    %4165 = vmatpush1.bf16.msra.mxu0 %v4159
    %4166 = vmatprep.subr.bf16.mxu0 0
    %4167 = vmatpush1.bf16.msra.mxu0 0
    %4168 = vmatprep.subr.bf16.mxu0 0
    %4169 = vmatpush1.bf16.msra.mxu0 0
    %4170 = vmatprep.subr.bf16.mxu0 0
    %4171 = vmatpush1.bf16.msra.mxu0 0
    %4172 = vmatprep.subr.bf16.mxu0 0
    %4173 = vmatpush1.bf16.msra.mxu0 0
    %4174 = vmatprep.subr.bf16.mxu0 0
    %4175 = vmatpush1.bf16.msra.mxu0 0
    %4176 = vmatprep.subr.bf16.mxu0 0
    %4177 = vmatpush1.bf16.msra.mxu0 0
    %4178 = vmatprep.subr.bf16.mxu0 0
    %4179 = vmatpush1.bf16.msra.mxu0 0
    %4180 = vmatprep.subr.bf16.mxu0 0
    %4181 = vmatpush1.bf16.msra.mxu0 0
    %4182 = vmatprep.subr.bf16.mxu0 0
    %4183 = vmatpush1.bf16.msra.mxu0 0
    %4184 = vmatprep.subr.bf16.mxu0 0
    %4185 = vmatpush1.bf16.msra.mxu0 0
    %4186 = vmatprep.subr.bf16.mxu0 0
    %4187 = vmatpush1.bf16.msra.mxu0 0
    %4188 = vmatprep.subr.bf16.mxu0 0
    %4189 = vmatpush1.bf16.msra.mxu0 0
    %4190 = vmatprep.subr.bf16.mxu0 0
    %4191 = vmatpush1.bf16.msra.mxu0 0
    %4192 = vmatprep.subr.bf16.mxu0 0
    %4193 = vmatpush1.bf16.msra.mxu0 0
    %4194 = vmatprep.subr.bf16.mxu0 0
    %4195 = vmatpush1.bf16.msra.mxu0 0
    %4196 = vmatprep.mubr.bf16.mxu0 0
    %4197 = vmatmul.mubr.bf16.gmra.mrb[0].mxu0 %v1172
    %v4198 = vpop.f32.mrb[0].mxu0
    %v4199 = vadd.f32 0.0, %v4198
    %v4200 = vpop.f32.mrb[0].mxu0
    %v4201 = vadd.f32 0.0, %v4200
    %v4202 = vpop.f32.mrb[0].mxu0
    %v4203 = vpop.f32.mrb[0].mxu0
    %4204 = vdwg.mxu0
    %v4205 = vadd.f32 %v4146, %v4199
    %v4206 = vadd.f32 %v4147, %v4201
    %4207 = vrot.lane.b32.xlu0 %v3745, 111
    %v4208 = vpop.permute.xlu0 %4207
    %4209 = vrot.lane.b32.xlu0 %v3746, 111
    %v4210 = vpop.permute.xlu0 %4209
    %v4211 = vsel %vm663, %v4208, %v4210
    %v4212 = vsel %vm663, %v4210, %v4208
    %v4213 = vmul.f32 %v4211, %v669
    %v4214 = vmul.f32 %v4212, %v673
    %v4215 = vpack.c.bf16 %v4213, %v4213
    %v4216 = vpack.c.bf16 %v4214, %v4214
    %v4218 = vsel %vm152, %v4215, 0
    %v4221 = vsel %vm152, %v4216, 0
    %4223 = vmatprep.subr.bf16.mxu0 %v4221
    %4224 = vmatpush1.bf16.msra.mxu0 %v4218
    %4225 = vmatprep.subr.bf16.mxu0 0
    %4226 = vmatpush1.bf16.msra.mxu0 0
    %4227 = vmatprep.subr.bf16.mxu0 0
    %4228 = vmatpush1.bf16.msra.mxu0 0
    %4229 = vmatprep.subr.bf16.mxu0 0
    %4230 = vmatpush1.bf16.msra.mxu0 0
    %4231 = vmatprep.subr.bf16.mxu0 0
    %4232 = vmatpush1.bf16.msra.mxu0 0
    %4233 = vmatprep.subr.bf16.mxu0 0
    %4234 = vmatpush1.bf16.msra.mxu0 0
    %4235 = vmatprep.subr.bf16.mxu0 0
    %4236 = vmatpush1.bf16.msra.mxu0 0
    %4237 = vmatprep.subr.bf16.mxu0 0
    %4238 = vmatpush1.bf16.msra.mxu0 0
    %4239 = vmatprep.subr.bf16.mxu0 0
    %4240 = vmatpush1.bf16.msra.mxu0 0
    %4241 = vmatprep.subr.bf16.mxu0 0
    %4242 = vmatpush1.bf16.msra.mxu0 0
    %4243 = vmatprep.subr.bf16.mxu0 0
    %4244 = vmatpush1.bf16.msra.mxu0 0
    %4245 = vmatprep.subr.bf16.mxu0 0
    %4246 = vmatpush1.bf16.msra.mxu0 0
    %4247 = vmatprep.subr.bf16.mxu0 0
    %4248 = vmatpush1.bf16.msra.mxu0 0
    %4249 = vmatprep.subr.bf16.mxu0 0
    %4250 = vmatpush1.bf16.msra.mxu0 0
    %4251 = vmatprep.subr.bf16.mxu0 0
    %4252 = vmatpush1.bf16.msra.mxu0 0
    %4253 = vmatprep.subr.bf16.mxu0 0
    %4254 = vmatpush1.bf16.msra.mxu0 0
    %4255 = vmatprep.mubr.bf16.mxu0 0
    %4256 = vmatmul.mubr.bf16.gmra.mrb[0].mxu0 %v1234
    %v4257 = vpop.f32.mrb[0].mxu0
    %v4258 = vadd.f32 0.0, %v4257
    %v4259 = vpop.f32.mrb[0].mxu0
    %v4260 = vadd.f32 0.0, %v4259
    %v4261 = vpop.f32.mrb[0].mxu0
    %v4262 = vpop.f32.mrb[0].mxu0
    %4263 = vdwg.mxu0
    %v4264 = vadd.f32 %v4205, %v4258
    %v4265 = vadd.f32 %v4206, %v4260
    %v4266 = vadd.f32 %v4264, %v1288
    %v4267 = vadd.f32 %v4265, %v1288
    %v4268 = vmax.f32 %v4266, 0.0
    %v4269 = vmax.f32 %v4267, 0.0
    %v4270 = vadd.f32 %v4268, %v4269
    %4271 = vadd.xlane.f32.xlu0 %v4270
    %v4272 = vpop.xlane.xlu0 %4271
    %v4273 = vmul.f32 %v4272, %v1297
    %v4274 = vmax.f32 %v4268, %v4269
    %4275 = vmax.xlane.f32.xlu0 %v4274
    %v4276 = vpop.xlane.xlu0 %4275
    %v4277 = vsel %vm1302, %v4273, %v4276
    %4278 = vmatprep.subr.mxu0 0.0
    %4279 = vmatpush1.msra.mxu0 %v4277
    %4280 = vmatprep.subr.mxu0 0.0
    %4281 = vmatpush1.msra.mxu0 0.0
    %4282 = vmatprep.subr.mxu0 0.0
    %4283 = vmatpush1.msra.mxu0 0.0
    %4284 = vmatprep.subr.mxu0 0.0
    %4285 = vmatpush1.msra.mxu0 0.0
    %4286 = vmatprep.subr.mxu0 0.0
    %4287 = vmatpush1.msra.mxu0 0.0
    %4288 = vmatprep.subr.mxu0 0.0
    %4289 = vmatpush1.msra.mxu0 0.0
    %4290 = vmatprep.subr.mxu0 0.0
    %4291 = vmatpush1.msra.mxu0 0.0
    %4292 = vmatprep.subr.mxu0 0.0
    %4293 = vmatpush1.msra.mxu0 0.0
    %4294 = vmatprep.subr.mxu0 0.0
    %4295 = vmatpush1.msra.mxu0 0.0
    %4296 = vmatprep.subr.mxu0 0.0
    %4297 = vmatpush1.msra.mxu0 0.0
    %4298 = vmatprep.subr.mxu0 0.0
    %4299 = vmatpush1.msra.mxu0 0.0
    %4300 = vmatprep.subr.mxu0 0.0
    %4301 = vmatpush1.msra.mxu0 0.0
    %4302 = vmatprep.subr.mxu0 0.0
    %4303 = vmatpush1.msra.mxu0 0.0
    %4304 = vmatprep.subr.mxu0 0.0
    %4305 = vmatpush1.msra.mxu0 0.0
    %4306 = vmatprep.subr.mxu0 0.0
    %4307 = vmatpush1.msra.mxu0 0.0
    %4308 = vmatprep.subr.mxu0 0.0
    %4309 = vmatpush1.msra.mxu0 0.0
    %4310 = vmatprep.subr.mxu0 0.0
    %4311 = vmatpush1.msra.mxu0 0.0
    %4312 = vmatprep.subr.mxu0 0.0
    %4313 = vmatpush1.msra.mxu0 0.0
    %4314 = vmatprep.subr.mxu0 0.0
    %4315 = vmatpush1.msra.mxu0 0.0
    %4316 = vmatprep.subr.mxu0 0.0
    %4317 = vmatpush1.msra.mxu0 0.0
    %4318 = vmatprep.subr.mxu0 0.0
    %4319 = vmatpush1.msra.mxu0 0.0
    %4320 = vmatprep.subr.mxu0 0.0
    %4321 = vmatpush1.msra.mxu0 0.0
    %4322 = vmatprep.subr.mxu0 0.0
    %4323 = vmatpush1.msra.mxu0 0.0
    %4324 = vmatprep.subr.mxu0 0.0
    %4325 = vmatpush1.msra.mxu0 0.0
    %4326 = vmatprep.subr.mxu0 0.0
    %4327 = vmatpush1.msra.mxu0 0.0
    %4328 = vmatprep.subr.mxu0 0.0
    %4329 = vmatpush1.msra.mxu0 0.0
    %4330 = vmatprep.subr.mxu0 0.0
    %4331 = vmatpush1.msra.mxu0 0.0
    %4332 = vmatprep.subr.mxu0 0.0
    %4333 = vmatpush1.msra.mxu0 0.0
    %4334 = vmatprep.subr.mxu0 0.0
    %4335 = vmatpush1.msra.mxu0 0.0
    %4336 = vmatprep.subr.mxu0 0.0
    %4337 = vmatpush1.msra.mxu0 0.0
    %4338 = vmatprep.subr.mxu0 0.0
    %4339 = vmatpush1.msra.mxu0 0.0
    %4340 = vmatprep.subr.mxu0 0.0
    %4341 = vmatpush1.msra.mxu0 0.0
    %4342 = vmatprep.mubr.f32.mxu0 0.0
    %4343 = vmatmul.mubr.f32.gmra.mrb[0].mxu0 %v1306
    %v4344 = vpop.f32.mrb[0].mxu0
    %v4345 = vadd.f32 0.0, %v4344
    %v4346 = vpop.f32.mrb[0].mxu0
    %4347 = vdwg.mxu0
    %v4348 = vmax.f32 %v4345, 0.0
    %v4350 = vsel %vm1382, %v4348, 0
    %4352 = vmatprep.subr.mxu0 0.0
    %4353 = vmatpush1.msra.mxu0 %v4350
    %4354 = vmatprep.subr.mxu0 0.0
    %4355 = vmatpush1.msra.mxu0 0.0
    %4356 = vmatprep.subr.mxu0 0.0
    %4357 = vmatpush1.msra.mxu0 0.0
    %4358 = vmatprep.subr.mxu0 0.0
    %4359 = vmatpush1.msra.mxu0 0.0
    %4360 = vmatprep.subr.mxu0 0.0
    %4361 = vmatpush1.msra.mxu0 0.0
    %4362 = vmatprep.subr.mxu0 0.0
    %4363 = vmatpush1.msra.mxu0 0.0
    %4364 = vmatprep.subr.mxu0 0.0
    %4365 = vmatpush1.msra.mxu0 0.0
    %4366 = vmatprep.subr.mxu0 0.0
    %4367 = vmatpush1.msra.mxu0 0.0
    %4368 = vmatprep.subr.mxu0 0.0
    %4369 = vmatpush1.msra.mxu0 0.0
    %4370 = vmatprep.subr.mxu0 0.0
    %4371 = vmatpush1.msra.mxu0 0.0
    %4372 = vmatprep.subr.mxu0 0.0
    %4373 = vmatpush1.msra.mxu0 0.0
    %4374 = vmatprep.subr.mxu0 0.0
    %4375 = vmatpush1.msra.mxu0 0.0
    %4376 = vmatprep.subr.mxu0 0.0
    %4377 = vmatpush1.msra.mxu0 0.0
    %4378 = vmatprep.subr.mxu0 0.0
    %4379 = vmatpush1.msra.mxu0 0.0
    %4380 = vmatprep.subr.mxu0 0.0
    %4381 = vmatpush1.msra.mxu0 0.0
    %4382 = vmatprep.subr.mxu0 0.0
    %4383 = vmatpush1.msra.mxu0 0.0
    %4384 = vmatprep.subr.mxu0 0.0
    %4385 = vmatpush1.msra.mxu0 0.0
    %4386 = vmatprep.subr.mxu0 0.0
    %4387 = vmatpush1.msra.mxu0 0.0
    %4388 = vmatprep.subr.mxu0 0.0
    %4389 = vmatpush1.msra.mxu0 0.0
    %4390 = vmatprep.subr.mxu0 0.0
    %4391 = vmatpush1.msra.mxu0 0.0
    %4392 = vmatprep.subr.mxu0 0.0
    %4393 = vmatpush1.msra.mxu0 0.0
    %4394 = vmatprep.subr.mxu0 0.0
    %4395 = vmatpush1.msra.mxu0 0.0
    %4396 = vmatprep.subr.mxu0 0.0
    %4397 = vmatpush1.msra.mxu0 0.0
    %4398 = vmatprep.subr.mxu0 0.0
    %4399 = vmatpush1.msra.mxu0 0.0
    %4400 = vmatprep.subr.mxu0 0.0
    %4401 = vmatpush1.msra.mxu0 0.0
    %4402 = vmatprep.subr.mxu0 0.0
    %4403 = vmatpush1.msra.mxu0 0.0
    %4404 = vmatprep.subr.mxu0 0.0
    %4405 = vmatpush1.msra.mxu0 0.0
    %4406 = vmatprep.subr.mxu0 0.0
    %4407 = vmatpush1.msra.mxu0 0.0
    %4408 = vmatprep.subr.mxu0 0.0
    %4409 = vmatpush1.msra.mxu0 0.0
    %4410 = vmatprep.subr.mxu0 0.0
    %4411 = vmatpush1.msra.mxu0 0.0
    %4412 = vmatprep.subr.mxu0 0.0
    %4413 = vmatpush1.msra.mxu0 0.0
    %4414 = vmatprep.subr.mxu0 0.0
    %4415 = vmatpush1.msra.mxu0 0.0
    %4416 = vmatprep.mubr.f32.mxu0 0.0
    %4417 = vmatmul.mubr.f32.gmra.mrb[0].mxu0 %v1380
    %v4418 = vpop.f32.mrb[0].mxu0
    %v4419 = vadd.f32 0.0, %v4418
    %v4420 = vpop.f32.mrb[0].mxu0
    %4421 = vdwg.mxu0
    %4423 = vrot.lane.b32.xlu0 %v4419, 127
    %v4424 = vpop.permute.xlu0 %4423
    %v4426 = vadd.f32 %v4419, %v4424
    %v4427 = vxor.u32 %v4426, 2147483648
    %v4428 = vmul.f32 %v4427, 1.442695
    %v4429 = vpow.pop %v4428
    %v4430 = vadd.f32 %v4429, 1.0
    %v4431 = vrcp.pop %v4430
    %v4432 = vmul.f32 1.0, %v4431
    %4434 = vset.pattern.permute.xlu0 0
    %4435 = vperm.xlu0 %4434, %v4432
    %v4436 = vpop.permute.xlu0 %4435
    %v4438 = vmul.f32 %v4268, %v4436
    %v4439 = vmul.f32 %v4269, %v4436
    %v4440 = vrot.slane %v4438, 4
    %v4441 = vadd.f32 %v4438, %v4440
    %v4442 = vrot.slane %v4441, 2
    %v4443 = vadd.f32 %v4441, %v4442
    %v4444 = vrot.slane %v4443, 1
    %v4445 = vadd.f32 %v4443, %v4444
    %v4446 = vrot.slane %v4439, 4
    %v4447 = vadd.f32 %v4439, %v4446
    %v4448 = vrot.slane %v4447, 2
    %v4449 = vadd.f32 %v4447, %v4448
    %v4450 = vrot.slane %v4449, 1
    %v4451 = vadd.f32 %v4449, %v4450
    %v4452 = vmul.f32 %v4445, %v1486
    %v4453 = vmul.f32 %v4451, %v1486
    %v4454 = vrot.slane %v4438, 4
    %v4455 = vmax.f32 %v4438, %v4454
    %v4456 = vrot.slane %v4455, 2
    %v4457 = vmax.f32 %v4455, %v4456
    %v4458 = vrot.slane %v4457, 1
    %v4459 = vmax.f32 %v4457, %v4458
    %v4460 = vrot.slane %v4439, 4
    %v4461 = vmax.f32 %v4439, %v4460
    %v4462 = vrot.slane %v4461, 2
    %v4463 = vmax.f32 %v4461, %v4462
    %v4464 = vrot.slane %v4463, 1
    %v4465 = vmax.f32 %v4463, %v4464
    %v4466 = vsel %vm1382, %v4452, %v4459
    %v4467 = vsel %vm1382, %v4453, %v4465
    %4468 = vrot.lane.b32.xlu0 %v4466, 51
    %v4469 = vpop.permute.xlu0 %4468
    %4470 = vrot.lane.b32.xlu0 %v4467, 51
    %v4471 = vpop.permute.xlu0 %4470
    %v4472 = vsel %vm1507, %v4469, %v4471
    %v4473 = vsel %vm1507, %v4471, %v4469
    %v4474 = vmul.f32 %v4473, %v1513
    %v4475 = vmul.f32 %v4472, %v1517
    %s4476 = sld [smem:[#allocation2]]
    %v4477 = vstv %s4476
    %v4478 = vmul.f32 %v4477, %v4474
    %v4479 = vmul.f32 %v4477, %v4475
    %v4480 = vadd.f32 %v4478, 0.0
    %v4481 = vadd.f32 %v4479, 0.0
    %s4482 = sld [smem:[#allocation2 + $0x1]]
    %v4483 = vstv %s4482
    %v4484 = vmul.f32 %v4483, %v4474
    %v4485 = vmul.f32 %v4483, %v4475
    %v4488 = vrot.slane %v4484, 1
    %v4489 = vrot.slane %v4485, 1
    %v4492 = vadd.f32 %v4480, %v4488
    %v4493 = vadd.f32 %v4481, %v4489
    %4494 = vrot.lane.b32.xlu0 %v4466, 50
    %v4495 = vpop.permute.xlu0 %4494
    %4496 = vrot.lane.b32.xlu0 %v4467, 50
    %v4497 = vpop.permute.xlu0 %4496
    %v4498 = vsel %vm1542, %v4495, %v4497
    %v4499 = vsel %vm1542, %v4497, %v4495
    %v4500 = vmul.f32 %v4499, %v1548
    %v4501 = vmul.f32 %v4498, %v1552
    %s4502 = sld [smem:[#allocation2 + $0x2]]
    %v4503 = vstv %s4502
    %v4504 = vmul.f32 %v4503, %v4500
    %v4505 = vmul.f32 %v4503, %v4501
    %v4506 = vadd.f32 %v4492, %v4504
    %v4507 = vadd.f32 %v4493, %v4505
    %s4508 = sld [smem:[#allocation2 + $0x3]]
    %v4509 = vstv %s4508
    %v4510 = vmul.f32 %v4509, %v4500
    %v4511 = vmul.f32 %v4509, %v4501
    %v4514 = vrot.slane %v4510, 1
    %v4515 = vrot.slane %v4511, 1
    %v4518 = vadd.f32 %v4506, %v4514
    %v4519 = vadd.f32 %v4507, %v4515
    %4520 = vrot.lane.b32.xlu0 %v4466, 49
    %v4521 = vpop.permute.xlu0 %4520
    %4522 = vrot.lane.b32.xlu0 %v4467, 49
    %v4523 = vpop.permute.xlu0 %4522
    %v4524 = vsel %vm1577, %v4521, %v4523
    %v4525 = vsel %vm1577, %v4523, %v4521
    %v4526 = vmul.f32 %v4525, %v1583
    %v4527 = vmul.f32 %v4524, %v1587
    %s4528 = sld [smem:[#allocation2 + $0x4]]
    %v4529 = vstv %s4528
    %v4530 = vmul.f32 %v4529, %v4526
    %v4531 = vmul.f32 %v4529, %v4527
    %v4532 = vadd.f32 %v4518, %v4530
    %v4533 = vadd.f32 %v4519, %v4531
    %s4534 = sld [smem:[#allocation2 + $0x5]]
    %v4535 = vstv %s4534
    %v4536 = vmul.f32 %v4535, %v4526
    %v4537 = vmul.f32 %v4535, %v4527
    %v4540 = vrot.slane %v4536, 1
    %v4541 = vrot.slane %v4537, 1
    %v4544 = vadd.f32 %v4532, %v4540
    %v4545 = vadd.f32 %v4533, %v4541
    %4546 = vrot.lane.b32.xlu0 %v4466, 48
    %v4547 = vpop.permute.xlu0 %4546
    %4548 = vrot.lane.b32.xlu0 %v4467, 48
    %v4549 = vpop.permute.xlu0 %4548
    %v4550 = vsel %vm1612, %v4547, %v4549
    %v4551 = vsel %vm1612, %v4549, %v4547
    %v4552 = vmul.f32 %v4551, %v1618
    %v4553 = vmul.f32 %v4550, %v1622
    %s4554 = sld [smem:[#allocation2 + $0x6]]
    %v4555 = vstv %s4554
    %v4556 = vmul.f32 %v4555, %v4552
    %v4557 = vmul.f32 %v4555, %v4553
    %v4558 = vadd.f32 %v4544, %v4556
    %v4559 = vadd.f32 %v4545, %v4557
    %s4560 = sld [smem:[#allocation2 + $0x7]]
    %v4561 = vstv %s4560
    %v4562 = vmul.f32 %v4561, %v4552
    %v4563 = vmul.f32 %v4561, %v4553
    %v4566 = vrot.slane %v4562, 1
    %v4567 = vrot.slane %v4563, 1
    %v4570 = vadd.f32 %v4558, %v4566
    %v4571 = vadd.f32 %v4559, %v4567
    %4572 = vrot.lane.b32.xlu0 %v4466, 47
    %v4573 = vpop.permute.xlu0 %4572
    %4574 = vrot.lane.b32.xlu0 %v4467, 47
    %v4575 = vpop.permute.xlu0 %4574
    %v4576 = vsel %vm1647, %v4573, %v4575
    %v4577 = vsel %vm1647, %v4575, %v4573
    %v4578 = vmul.f32 %v4577, %v1653
    %v4579 = vmul.f32 %v4576, %v1657
    %s4580 = sld [smem:[#allocation2 + $0x8]]
    %v4581 = vstv %s4580
    %v4582 = vmul.f32 %v4581, %v4578
    %v4583 = vmul.f32 %v4581, %v4579
    %v4584 = vadd.f32 %v4570, %v4582
    %v4585 = vadd.f32 %v4571, %v4583
    %s4586 = sld [smem:[#allocation2 + $0x9]]
    %v4587 = vstv %s4586
    %v4588 = vmul.f32 %v4587, %v4578
    %v4589 = vmul.f32 %v4587, %v4579
    %v4592 = vrot.slane %v4588, 1
    %v4593 = vrot.slane %v4589, 1
    %v4596 = vadd.f32 %v4584, %v4592
    %v4597 = vadd.f32 %v4585, %v4593
    %4598 = vrot.lane.b32.xlu0 %v4466, 46
    %v4599 = vpop.permute.xlu0 %4598
    %4600 = vrot.lane.b32.xlu0 %v4467, 46
    %v4601 = vpop.permute.xlu0 %4600
    %v4602 = vsel %vm1682, %v4599, %v4601
    %v4603 = vsel %vm1682, %v4601, %v4599
    %v4604 = vmul.f32 %v4603, %v1688
    %v4605 = vmul.f32 %v4602, %v1692
    %s4606 = sld [smem:[#allocation2 + $0xa]]
    %v4607 = vstv %s4606
    %v4608 = vmul.f32 %v4607, %v4604
    %v4609 = vmul.f32 %v4607, %v4605
    %v4610 = vadd.f32 %v4596, %v4608
    %v4611 = vadd.f32 %v4597, %v4609
    %s4612 = sld [smem:[#allocation2 + $0xb]]
    %v4613 = vstv %s4612
    %v4614 = vmul.f32 %v4613, %v4604
    %v4615 = vmul.f32 %v4613, %v4605
    %v4618 = vrot.slane %v4614, 1
    %v4619 = vrot.slane %v4615, 1
    %v4622 = vadd.f32 %v4610, %v4618
    %v4623 = vadd.f32 %v4611, %v4619
    %4624 = vrot.lane.b32.xlu0 %v4466, 45
    %v4625 = vpop.permute.xlu0 %4624
    %4626 = vrot.lane.b32.xlu0 %v4467, 45
    %v4627 = vpop.permute.xlu0 %4626
    %v4628 = vsel %vm1717, %v4625, %v4627
    %v4629 = vsel %vm1717, %v4627, %v4625
    %v4630 = vmul.f32 %v4629, %v1723
    %v4631 = vmul.f32 %v4628, %v1727
    %s4632 = sld [smem:[#allocation2 + $0xc]]
    %v4633 = vstv %s4632
    %v4634 = vmul.f32 %v4633, %v4630
    %v4635 = vmul.f32 %v4633, %v4631
    %v4636 = vadd.f32 %v4622, %v4634
    %v4637 = vadd.f32 %v4623, %v4635
    %s4638 = sld [smem:[#allocation2 + $0xd]]
    %v4639 = vstv %s4638
    %v4640 = vmul.f32 %v4639, %v4630
    %v4641 = vmul.f32 %v4639, %v4631
    %v4644 = vrot.slane %v4640, 1
    %v4645 = vrot.slane %v4641, 1
    %v4648 = vadd.f32 %v4636, %v4644
    %v4649 = vadd.f32 %v4637, %v4645
    %4650 = vrot.lane.b32.xlu0 %v4466, 35
    %v4651 = vpop.permute.xlu0 %4650
    %4652 = vrot.lane.b32.xlu0 %v4467, 35
    %v4653 = vpop.permute.xlu0 %4652
    %v4654 = vsel %vm1752, %v4651, %v4653
    %v4655 = vsel %vm1752, %v4653, %v4651
    %v4656 = vmul.f32 %v4655, %v1758
    %v4657 = vmul.f32 %v4654, %v1762
    %s4658 = sld [smem:[#allocation2 + $0xe]]
    %v4659 = vstv %s4658
    %v4660 = vmul.f32 %v4659, %v4656
    %v4661 = vmul.f32 %v4659, %v4657
    %v4662 = vadd.f32 %v4648, %v4660
    %v4663 = vadd.f32 %v4649, %v4661
    %s4664 = sld [smem:[#allocation2 + $0xf]]
    %v4665 = vstv %s4664
    %v4666 = vmul.f32 %v4665, %v4656
    %v4667 = vmul.f32 %v4665, %v4657
    %v4670 = vrot.slane %v4666, 1
    %v4671 = vrot.slane %v4667, 1
    %v4674 = vadd.f32 %v4662, %v4670
    %v4675 = vadd.f32 %v4663, %v4671
    %4676 = vrot.lane.b32.xlu0 %v4466, 34
    %v4677 = vpop.permute.xlu0 %4676
    %4678 = vrot.lane.b32.xlu0 %v4467, 34
    %v4679 = vpop.permute.xlu0 %4678
    %v4680 = vsel %vm1787, %v4677, %v4679
    %v4681 = vsel %vm1787, %v4679, %v4677
    %v4682 = vmul.f32 %v4681, %v1793
    %v4683 = vmul.f32 %v4680, %v1797
    %s4684 = sld [smem:[#allocation2 + $0x10]]
    %v4685 = vstv %s4684
    %v4686 = vmul.f32 %v4685, %v4682
    %v4687 = vmul.f32 %v4685, %v4683
    %v4688 = vadd.f32 %v4674, %v4686
    %v4689 = vadd.f32 %v4675, %v4687
    %s4690 = sld [smem:[#allocation2 + $0x11]]
    %v4691 = vstv %s4690
    %v4692 = vmul.f32 %v4691, %v4682
    %v4693 = vmul.f32 %v4691, %v4683
    %v4696 = vrot.slane %v4692, 1
    %v4697 = vrot.slane %v4693, 1
    %v4700 = vadd.f32 %v4688, %v4696
    %v4701 = vadd.f32 %v4689, %v4697
    %4702 = vrot.lane.b32.xlu0 %v4466, 33
    %v4703 = vpop.permute.xlu0 %4702
    %4704 = vrot.lane.b32.xlu0 %v4467, 33
    %v4705 = vpop.permute.xlu0 %4704
    %v4706 = vsel %vm1822, %v4703, %v4705
    %v4707 = vsel %vm1822, %v4705, %v4703
    %v4708 = vmul.f32 %v4707, %v1828
    %v4709 = vmul.f32 %v4706, %v1832
    %s4710 = sld [smem:[#allocation2 + $0x12]]
    %v4711 = vstv %s4710
    %v4712 = vmul.f32 %v4711, %v4708
    %v4713 = vmul.f32 %v4711, %v4709
    %v4714 = vadd.f32 %v4700, %v4712
    %v4715 = vadd.f32 %v4701, %v4713
    %s4716 = sld [smem:[#allocation2 + $0x13]]
    %v4717 = vstv %s4716
    %v4718 = vmul.f32 %v4717, %v4708
    %v4719 = vmul.f32 %v4717, %v4709
    %v4722 = vrot.slane %v4718, 1
    %v4723 = vrot.slane %v4719, 1
    %v4726 = vadd.f32 %v4714, %v4722
    %v4727 = vadd.f32 %v4715, %v4723
    %4728 = vrot.lane.b32.xlu0 %v4466, 32
    %v4729 = vpop.permute.xlu0 %4728
    %4730 = vrot.lane.b32.xlu0 %v4467, 32
    %v4731 = vpop.permute.xlu0 %4730
    %v4732 = vsel %vm1857, %v4729, %v4731
    %v4733 = vsel %vm1857, %v4731, %v4729
    %v4734 = vmul.f32 %v4733, %v1863
    %v4735 = vmul.f32 %v4732, %v1867
    %s4736 = sld [smem:[#allocation2 + $0x14]]
    %v4737 = vstv %s4736
    %v4738 = vmul.f32 %v4737, %v4734
    %v4739 = vmul.f32 %v4737, %v4735
    %v4740 = vadd.f32 %v4726, %v4738
    %v4741 = vadd.f32 %v4727, %v4739
    %s4742 = sld [smem:[#allocation2 + $0x15]]
    %v4743 = vstv %s4742
    %v4744 = vmul.f32 %v4743, %v4734
    %v4745 = vmul.f32 %v4743, %v4735
    %v4748 = vrot.slane %v4744, 1
    %v4749 = vrot.slane %v4745, 1
    %v4752 = vadd.f32 %v4740, %v4748
    %v4753 = vadd.f32 %v4741, %v4749
    %4754 = vrot.lane.b32.xlu0 %v4466, 31
    %v4755 = vpop.permute.xlu0 %4754
    %4756 = vrot.lane.b32.xlu0 %v4467, 31
    %v4757 = vpop.permute.xlu0 %4756
    %v4758 = vsel %vm1892, %v4755, %v4757
    %v4759 = vsel %vm1892, %v4757, %v4755
    %v4760 = vmul.f32 %v4759, %v1898
    %v4761 = vmul.f32 %v4758, %v1902
    %s4762 = sld [smem:[#allocation2 + $0x16]]
    %v4763 = vstv %s4762
    %v4764 = vmul.f32 %v4763, %v4760
    %v4765 = vmul.f32 %v4763, %v4761
    %v4766 = vadd.f32 %v4752, %v4764
    %v4767 = vadd.f32 %v4753, %v4765
    %s4768 = sld [smem:[#allocation2 + $0x17]]
    %v4769 = vstv %s4768
    %v4770 = vmul.f32 %v4769, %v4760
    %v4771 = vmul.f32 %v4769, %v4761
    %v4774 = vrot.slane %v4770, 1
    %v4775 = vrot.slane %v4771, 1
    %v4778 = vadd.f32 %v4766, %v4774
    %v4779 = vadd.f32 %v4767, %v4775
    %4780 = vrot.lane.b32.xlu0 %v4466, 30
    %v4781 = vpop.permute.xlu0 %4780
    %4782 = vrot.lane.b32.xlu0 %v4467, 30
    %v4783 = vpop.permute.xlu0 %4782
    %v4784 = vsel %vm1927, %v4781, %v4783
    %v4785 = vsel %vm1927, %v4783, %v4781
    %v4786 = vmul.f32 %v4785, %v1933
    %v4787 = vmul.f32 %v4784, %v1937
    %s4788 = sld [smem:[#allocation2 + $0x18]]
    %v4789 = vstv %s4788
    %v4790 = vmul.f32 %v4789, %v4786
    %v4791 = vmul.f32 %v4789, %v4787
    %v4792 = vadd.f32 %v4778, %v4790
    %v4793 = vadd.f32 %v4779, %v4791
    %s4794 = sld [smem:[#allocation2 + $0x19]]
    %v4795 = vstv %s4794
    %v4796 = vmul.f32 %v4795, %v4786
    %v4797 = vmul.f32 %v4795, %v4787
    %v4800 = vrot.slane %v4796, 1
    %v4801 = vrot.slane %v4797, 1
    %v4804 = vadd.f32 %v4792, %v4800
    %v4805 = vadd.f32 %v4793, %v4801
    %4806 = vrot.lane.b32.xlu0 %v4466, 29
    %v4807 = vpop.permute.xlu0 %4806
    %4808 = vrot.lane.b32.xlu0 %v4467, 29
    %v4809 = vpop.permute.xlu0 %4808
    %v4810 = vsel %vm1962, %v4807, %v4809
    %v4811 = vsel %vm1962, %v4809, %v4807
    %v4812 = vmul.f32 %v4811, %v1968
    %v4813 = vmul.f32 %v4810, %v1972
    %s4814 = sld [smem:[#allocation2 + $0x1a]]
    %v4815 = vstv %s4814
    %v4816 = vmul.f32 %v4815, %v4812
    %v4817 = vmul.f32 %v4815, %v4813
    %v4818 = vadd.f32 %v4804, %v4816
    %v4819 = vadd.f32 %v4805, %v4817
    %s4820 = sld [smem:[#allocation2 + $0x1b]]
    %v4821 = vstv %s4820
    %v4822 = vmul.f32 %v4821, %v4812
    %v4823 = vmul.f32 %v4821, %v4813
    %v4826 = vrot.slane %v4822, 1
    %v4827 = vrot.slane %v4823, 1
    %v4830 = vadd.f32 %v4818, %v4826
    %v4831 = vadd.f32 %v4819, %v4827
    %4832 = vrot.lane.b32.xlu0 %v4466, 19
    %v4833 = vpop.permute.xlu0 %4832
    %4834 = vrot.lane.b32.xlu0 %v4467, 19
    %v4835 = vpop.permute.xlu0 %4834
    %v4836 = vsel %vm1997, %v4833, %v4835
    %v4837 = vsel %vm1997, %v4835, %v4833
    %v4838 = vmul.f32 %v4837, %v2003
    %v4839 = vmul.f32 %v4836, %v2007
    %s4840 = sld [smem:[#allocation2 + $0x1c]]
    %v4841 = vstv %s4840
    %v4842 = vmul.f32 %v4841, %v4838
    %v4843 = vmul.f32 %v4841, %v4839
    %v4844 = vadd.f32 %v4830, %v4842
    %v4845 = vadd.f32 %v4831, %v4843
    %s4846 = sld [smem:[#allocation2 + $0x1d]]
    %v4847 = vstv %s4846
    %v4848 = vmul.f32 %v4847, %v4838
    %v4849 = vmul.f32 %v4847, %v4839
    %v4852 = vrot.slane %v4848, 1
    %v4853 = vrot.slane %v4849, 1
    %v4856 = vadd.f32 %v4844, %v4852
    %v4857 = vadd.f32 %v4845, %v4853
    %4858 = vrot.lane.b32.xlu0 %v4466, 18
    %v4859 = vpop.permute.xlu0 %4858
    %4860 = vrot.lane.b32.xlu0 %v4467, 18
    %v4861 = vpop.permute.xlu0 %4860
    %v4862 = vsel %vm2032, %v4859, %v4861
    %v4863 = vsel %vm2032, %v4861, %v4859
    %v4864 = vmul.f32 %v4863, %v2038
    %v4865 = vmul.f32 %v4862, %v2042
    %s4866 = sld [smem:[#allocation2 + $0x1e]]
    %v4867 = vstv %s4866
    %v4868 = vmul.f32 %v4867, %v4864
    %v4869 = vmul.f32 %v4867, %v4865
    %v4870 = vadd.f32 %v4856, %v4868
    %v4871 = vadd.f32 %v4857, %v4869
    %s4872 = sld [smem:[#allocation2 + $0x1f]]
    %v4873 = vstv %s4872
    %v4874 = vmul.f32 %v4873, %v4864
    %v4875 = vmul.f32 %v4873, %v4865
    %v4878 = vrot.slane %v4874, 1
    %v4879 = vrot.slane %v4875, 1
    %v4882 = vadd.f32 %v4870, %v4878
    %v4883 = vadd.f32 %v4871, %v4879
    %4884 = vrot.lane.b32.xlu0 %v4466, 17
    %v4885 = vpop.permute.xlu0 %4884
    %4886 = vrot.lane.b32.xlu0 %v4467, 17
    %v4887 = vpop.permute.xlu0 %4886
    %v4888 = vsel %vm114, %v4885, %v4887
    %v4889 = vsel %vm114, %v4887, %v4885
    %v4890 = vmul.f32 %v4889, %v2072
    %v4891 = vmul.f32 %v4888, %v2076
    %s4892 = sld [smem:[#allocation2 + $0x20]]
    %v4893 = vstv %s4892
    %v4894 = vmul.f32 %v4893, %v4890
    %v4895 = vmul.f32 %v4893, %v4891
    %v4896 = vadd.f32 %v4882, %v4894
    %v4897 = vadd.f32 %v4883, %v4895
    %s4898 = sld [smem:[#allocation2 + $0x21]]
    %v4899 = vstv %s4898
    %v4900 = vmul.f32 %v4899, %v4890
    %v4901 = vmul.f32 %v4899, %v4891
    %v4904 = vrot.slane %v4900, 1
    %v4905 = vrot.slane %v4901, 1
    %v4908 = vadd.f32 %v4896, %v4904
    %v4909 = vadd.f32 %v4897, %v4905
    %4910 = vrot.lane.b32.xlu0 %v4466, 16
    %v4911 = vpop.permute.xlu0 %4910
    %4912 = vrot.lane.b32.xlu0 %v4467, 16
    %v4913 = vpop.permute.xlu0 %4912
    %v4914 = vsel %vm133, %v4911, %v4913
    %v4915 = vsel %vm133, %v4913, %v4911
    %v4916 = vmul.f32 %v4915, %v2106
    %v4917 = vmul.f32 %v4914, %v2110
    %s4918 = sld [smem:[#allocation2 + $0x22]]
    %v4919 = vstv %s4918
    %v4920 = vmul.f32 %v4919, %v4916
    %v4921 = vmul.f32 %v4919, %v4917
    %v4922 = vadd.f32 %v4908, %v4920
    %v4923 = vadd.f32 %v4909, %v4921
    %s4924 = sld [smem:[#allocation2 + $0x23]]
    %v4925 = vstv %s4924
    %v4926 = vmul.f32 %v4925, %v4916
    %v4927 = vmul.f32 %v4925, %v4917
    %v4930 = vrot.slane %v4926, 1
    %v4931 = vrot.slane %v4927, 1
    %v4934 = vadd.f32 %v4922, %v4930
    %v4935 = vadd.f32 %v4923, %v4931
    %4936 = vrot.lane.b32.xlu0 %v4466, 15
    %v4937 = vpop.permute.xlu0 %4936
    %4938 = vrot.lane.b32.xlu0 %v4467, 15
    %v4939 = vpop.permute.xlu0 %4938
    %v4940 = vsel %vm254, %v4937, %v4939
    %v4941 = vsel %vm254, %v4939, %v4937
    %v4942 = vmul.f32 %v4941, %v2140
    %v4943 = vmul.f32 %v4940, %v2144
    %s4944 = sld [smem:[#allocation2 + $0x24]]
    %v4945 = vstv %s4944
    %v4946 = vmul.f32 %v4945, %v4942
    %v4947 = vmul.f32 %v4945, %v4943
    %v4948 = vadd.f32 %v4934, %v4946
    %v4949 = vadd.f32 %v4935, %v4947
    %s4950 = sld [smem:[#allocation2 + $0x25]]
    %v4951 = vstv %s4950
    %v4952 = vmul.f32 %v4951, %v4942
    %v4953 = vmul.f32 %v4951, %v4943
    %v4956 = vrot.slane %v4952, 1
    %v4957 = vrot.slane %v4953, 1
    %v4960 = vadd.f32 %v4948, %v4956
    %v4961 = vadd.f32 %v4949, %v4957
    %4962 = vrot.lane.b32.xlu0 %v4466, 14
    %v4963 = vpop.permute.xlu0 %4962
    %4964 = vrot.lane.b32.xlu0 %v4467, 14
    %v4965 = vpop.permute.xlu0 %4964
    %v4966 = vsel %vm2169, %v4963, %v4965
    %v4967 = vsel %vm2169, %v4965, %v4963
    %v4968 = vmul.f32 %v4967, %v2175
    %v4969 = vmul.f32 %v4966, %v2179
    %s4970 = sld [smem:[#allocation2 + $0x26]]
    %v4971 = vstv %s4970
    %v4972 = vmul.f32 %v4971, %v4968
    %v4973 = vmul.f32 %v4971, %v4969
    %v4974 = vadd.f32 %v4960, %v4972
    %v4975 = vadd.f32 %v4961, %v4973
    %s4976 = sld [smem:[#allocation2 + $0x27]]
    %v4977 = vstv %s4976
    %v4978 = vmul.f32 %v4977, %v4968
    %v4979 = vmul.f32 %v4977, %v4969
    %v4982 = vrot.slane %v4978, 1
    %v4983 = vrot.slane %v4979, 1
    %v4986 = vadd.f32 %v4974, %v4982
    %v4987 = vadd.f32 %v4975, %v4983
    %4988 = vrot.lane.b32.xlu0 %v4466, 13
    %v4989 = vpop.permute.xlu0 %4988
    %4990 = vrot.lane.b32.xlu0 %v4467, 13
    %v4991 = vpop.permute.xlu0 %4990
    %v4992 = vsel %vm2204, %v4989, %v4991
    %v4993 = vsel %vm2204, %v4991, %v4989
    %v4994 = vmul.f32 %v4993, %v2210
    %v4995 = vmul.f32 %v4992, %v2214
    %s4996 = sld [smem:[#allocation2 + $0x28]]
    %v4997 = vstv %s4996
    %v4998 = vmul.f32 %v4997, %v4994
    %v4999 = vmul.f32 %v4997, %v4995
    %v5000 = vadd.f32 %v4986, %v4998
    %v5001 = vadd.f32 %v4987, %v4999
    %s5002 = sld [smem:[#allocation2 + $0x29]]
    %v5003 = vstv %s5002
    %v5004 = vmul.f32 %v5003, %v4994
    %v5005 = vmul.f32 %v5003, %v4995
    %v5008 = vrot.slane %v5004, 1
    %v5009 = vrot.slane %v5005, 1
    %v5012 = vadd.f32 %v5000, %v5008
    %v5013 = vadd.f32 %v5001, %v5009
    %5014 = vrot.lane.b32.xlu0 %v4466, 3
    %v5015 = vpop.permute.xlu0 %5014
    %5016 = vrot.lane.b32.xlu0 %v4467, 3
    %v5017 = vpop.permute.xlu0 %5016
    %v5018 = vsel %vm2239, %v5015, %v5017
    %v5019 = vsel %vm2239, %v5017, %v5015
    %v5020 = vmul.f32 %v5019, %v2245
    %v5021 = vmul.f32 %v5018, %v2249
    %s5022 = sld [smem:[#allocation2 + $0x2a]]
    %v5023 = vstv %s5022
    %v5024 = vmul.f32 %v5023, %v5020
    %v5025 = vmul.f32 %v5023, %v5021
    %v5026 = vadd.f32 %v5012, %v5024
    %v5027 = vadd.f32 %v5013, %v5025
    %s5028 = sld [smem:[#allocation2 + $0x2b]]
    %v5029 = vstv %s5028
    %v5030 = vmul.f32 %v5029, %v5020
    %v5031 = vmul.f32 %v5029, %v5021
    %v5034 = vrot.slane %v5030, 1
    %v5035 = vrot.slane %v5031, 1
    %v5038 = vadd.f32 %v5026, %v5034
    %v5039 = vadd.f32 %v5027, %v5035
    %5040 = vrot.lane.b32.xlu0 %v4466, 2
    %v5041 = vpop.permute.xlu0 %5040
    %5042 = vrot.lane.b32.xlu0 %v4467, 2
    %v5043 = vpop.permute.xlu0 %5042
    %v5044 = vsel %vm2274, %v5041, %v5043
    %v5045 = vsel %vm2274, %v5043, %v5041
    %v5046 = vmul.f32 %v5045, %v2280
    %v5047 = vmul.f32 %v5044, %v2284
    %s5048 = sld [smem:[#allocation2 + $0x2c]]
    %v5049 = vstv %s5048
    %v5050 = vmul.f32 %v5049, %v5046
    %v5051 = vmul.f32 %v5049, %v5047
    %v5052 = vadd.f32 %v5038, %v5050
    %v5053 = vadd.f32 %v5039, %v5051
    %s5054 = sld [smem:[#allocation2 + $0x2d]]
    %v5055 = vstv %s5054
    %v5056 = vmul.f32 %v5055, %v5046
    %v5057 = vmul.f32 %v5055, %v5047
    %v5060 = vrot.slane %v5056, 1
    %v5061 = vrot.slane %v5057, 1
    %v5064 = vadd.f32 %v5052, %v5060
    %v5065 = vadd.f32 %v5053, %v5061
    %5066 = vrot.lane.b32.xlu0 %v4466, 1
    %v5067 = vpop.permute.xlu0 %5066
    %5068 = vrot.lane.b32.xlu0 %v4467, 1
    %v5069 = vpop.permute.xlu0 %5068
    %v5070 = vsel %vm325, %v5067, %v5069
    %v5071 = vsel %vm325, %v5069, %v5067
    %v5072 = vmul.f32 %v5071, %v2314
    %v5073 = vmul.f32 %v5070, %v2318
    %s5074 = sld [smem:[#allocation2 + $0x2e]]
    %v5075 = vstv %s5074
    %v5076 = vmul.f32 %v5075, %v5072
    %v5077 = vmul.f32 %v5075, %v5073
    %v5078 = vadd.f32 %v5064, %v5076
    %v5079 = vadd.f32 %v5065, %v5077
    %s5080 = sld [smem:[#allocation2 + $0x2f]]
    %v5081 = vstv %s5080
    %v5082 = vmul.f32 %v5081, %v5072
    %v5083 = vmul.f32 %v5081, %v5073
    %v5086 = vrot.slane %v5082, 1
    %v5087 = vrot.slane %v5083, 1
    %v5090 = vadd.f32 %v5078, %v5086
    %v5091 = vadd.f32 %v5079, %v5087
    %s5092 = sld [smem:[#allocation2 + $0x30]]
    %v5093 = vstv %s5092
    %v5094 = vmul.f32 %v5093, %v4466
    %v5095 = vmul.f32 %v5093, %v4467
    %v5096 = vadd.f32 %v5090, %v5094
    %v5097 = vadd.f32 %v5091, %v5095
    %s5098 = sld [smem:[#allocation2 + $0x31]]
    %v5099 = vstv %s5098
    %v5100 = vmul.f32 %v5099, %v4466
    %v5101 = vmul.f32 %v5099, %v4467
    %v5104 = vrot.slane %v5100, 1
    %v5105 = vrot.slane %v5101, 1
    %v5108 = vadd.f32 %v5096, %v5104
    %v5109 = vadd.f32 %v5097, %v5105
    %5110 = vrot.lane.b32.xlu0 %v4466, 127
    %v5111 = vpop.permute.xlu0 %5110
    %5112 = vrot.lane.b32.xlu0 %v4467, 127
    %v5113 = vpop.permute.xlu0 %5112
    %v5114 = vsel %vm450, %v5111, %v5113
    %v5115 = vsel %vm450, %v5113, %v5111
    %v5116 = vmul.f32 %v5114, %v2366
    %v5117 = vmul.f32 %v5115, %v2370
    %s5118 = sld [smem:[#allocation2 + $0x32]]
    %v5119 = vstv %s5118
    %v5120 = vmul.f32 %v5119, %v5116
    %v5121 = vmul.f32 %v5119, %v5117
    %v5122 = vadd.f32 %v5108, %v5120
    %v5123 = vadd.f32 %v5109, %v5121
    %s5124 = sld [smem:[#allocation2 + $0x33]]
    %v5125 = vstv %s5124
    %v5126 = vmul.f32 %v5125, %v5116
    %v5127 = vmul.f32 %v5125, %v5117
    %v5130 = vrot.slane %v5126, 1
    %v5131 = vrot.slane %v5127, 1
    %v5134 = vadd.f32 %v5122, %v5130
    %v5135 = vadd.f32 %v5123, %v5131
    %5136 = vrot.lane.b32.xlu0 %v4466, 126
    %v5137 = vpop.permute.xlu0 %5136
    %5138 = vrot.lane.b32.xlu0 %v4467, 126
    %v5139 = vpop.permute.xlu0 %5138
    %v5140 = vsel %vm2395, %v5137, %v5139
    %v5141 = vsel %vm2395, %v5139, %v5137
    %v5142 = vmul.f32 %v5140, %v2401
    %v5143 = vmul.f32 %v5141, %v2405
    %s5144 = sld [smem:[#allocation2 + $0x34]]
    %v5145 = vstv %s5144
    %v5146 = vmul.f32 %v5145, %v5142
    %v5147 = vmul.f32 %v5145, %v5143
    %v5148 = vadd.f32 %v5134, %v5146
    %v5149 = vadd.f32 %v5135, %v5147
    %s5150 = sld [smem:[#allocation2 + $0x35]]
    %v5151 = vstv %s5150
    %v5152 = vmul.f32 %v5151, %v5142
    %v5153 = vmul.f32 %v5151, %v5143
    %v5156 = vrot.slane %v5152, 1
    %v5157 = vrot.slane %v5153, 1
    %v5160 = vadd.f32 %v5148, %v5156
    %v5161 = vadd.f32 %v5149, %v5157
    %5162 = vrot.lane.b32.xlu0 %v4466, 125
    %v5163 = vpop.permute.xlu0 %5162
    %5164 = vrot.lane.b32.xlu0 %v4467, 125
    %v5165 = vpop.permute.xlu0 %5164
    %v5166 = vsel %vm2430, %v5163, %v5165
    %v5167 = vsel %vm2430, %v5165, %v5163
    %v5168 = vmul.f32 %v5166, %v2436
    %v5169 = vmul.f32 %v5167, %v2440
    %s5170 = sld [smem:[#allocation2 + $0x36]]
    %v5171 = vstv %s5170
    %v5172 = vmul.f32 %v5171, %v5168
    %v5173 = vmul.f32 %v5171, %v5169
    %v5174 = vadd.f32 %v5160, %v5172
    %v5175 = vadd.f32 %v5161, %v5173
    %s5176 = sld [smem:[#allocation2 + $0x37]]
    %v5177 = vstv %s5176
    %v5178 = vmul.f32 %v5177, %v5168
    %v5179 = vmul.f32 %v5177, %v5169
    %v5182 = vrot.slane %v5178, 1
    %v5183 = vrot.slane %v5179, 1
    %v5186 = vadd.f32 %v5174, %v5182
    %v5187 = vadd.f32 %v5175, %v5183
    %5188 = vrot.lane.b32.xlu0 %v4466, 115
    %v5189 = vpop.permute.xlu0 %5188
    %5190 = vrot.lane.b32.xlu0 %v4467, 115
    %v5191 = vpop.permute.xlu0 %5190
    %v5192 = vsel %vm2465, %v5189, %v5191
    %v5193 = vsel %vm2465, %v5191, %v5189
    %v5194 = vmul.f32 %v5192, %v2471
    %v5195 = vmul.f32 %v5193, %v2475
    %s5196 = sld [smem:[#allocation2 + $0x38]]
    %v5197 = vstv %s5196
    %v5198 = vmul.f32 %v5197, %v5194
    %v5199 = vmul.f32 %v5197, %v5195
    %v5200 = vadd.f32 %v5186, %v5198
    %v5201 = vadd.f32 %v5187, %v5199
    %s5202 = sld [smem:[#allocation2 + $0x39]]
    %v5203 = vstv %s5202
    %v5204 = vmul.f32 %v5203, %v5194
    %v5205 = vmul.f32 %v5203, %v5195
    %v5208 = vrot.slane %v5204, 1
    %v5209 = vrot.slane %v5205, 1
    %v5212 = vadd.f32 %v5200, %v5208
    %v5213 = vadd.f32 %v5201, %v5209
    %5214 = vrot.lane.b32.xlu0 %v4466, 114
    %v5215 = vpop.permute.xlu0 %5214
    %5216 = vrot.lane.b32.xlu0 %v4467, 114
    %v5217 = vpop.permute.xlu0 %5216
    %v5218 = vsel %vm2500, %v5215, %v5217
    %v5219 = vsel %vm2500, %v5217, %v5215
    %v5220 = vmul.f32 %v5218, %v2506
    %v5221 = vmul.f32 %v5219, %v2510
    %s5222 = sld [smem:[#allocation2 + $0x3a]]
    %v5223 = vstv %s5222
    %v5224 = vmul.f32 %v5223, %v5220
    %v5225 = vmul.f32 %v5223, %v5221
    %v5226 = vadd.f32 %v5212, %v5224
    %v5227 = vadd.f32 %v5213, %v5225
    %s5228 = sld [smem:[#allocation2 + $0x3b]]
    %v5229 = vstv %s5228
    %v5230 = vmul.f32 %v5229, %v5220
    %v5231 = vmul.f32 %v5229, %v5221
    %v5234 = vrot.slane %v5230, 1
    %v5235 = vrot.slane %v5231, 1
    %v5238 = vadd.f32 %v5226, %v5234
    %v5239 = vadd.f32 %v5227, %v5235
    %5240 = vrot.lane.b32.xlu0 %v4466, 113
    %v5241 = vpop.permute.xlu0 %5240
    %5242 = vrot.lane.b32.xlu0 %v4467, 113
    %v5243 = vpop.permute.xlu0 %5242
    %v5244 = vsel %vm521, %v5241, %v5243
    %v5245 = vsel %vm521, %v5243, %v5241
    %v5246 = vmul.f32 %v5244, %v2540
    %v5247 = vmul.f32 %v5245, %v2544
    %s5248 = sld [smem:[#allocation2 + $0x3c]]
    %v5249 = vstv %s5248
    %v5250 = vmul.f32 %v5249, %v5246
    %v5251 = vmul.f32 %v5249, %v5247
    %v5252 = vadd.f32 %v5238, %v5250
    %v5253 = vadd.f32 %v5239, %v5251
    %s5254 = sld [smem:[#allocation2 + $0x3d]]
    %v5255 = vstv %s5254
    %v5256 = vmul.f32 %v5255, %v5246
    %v5257 = vmul.f32 %v5255, %v5247
    %v5260 = vrot.slane %v5256, 1
    %v5261 = vrot.slane %v5257, 1
    %v5264 = vadd.f32 %v5252, %v5260
    %v5265 = vadd.f32 %v5253, %v5261
    %5266 = vrot.lane.b32.xlu0 %v4466, 112
    %v5267 = vpop.permute.xlu0 %5266
    %5268 = vrot.lane.b32.xlu0 %v4467, 112
    %v5269 = vpop.permute.xlu0 %5268
    %v5270 = vsel %vm592, %v5267, %v5269
    %v5271 = vsel %vm592, %v5269, %v5267
    %v5272 = vmul.f32 %v5270, %v2574
    %v5273 = vmul.f32 %v5271, %v2578
    %s5274 = sld [smem:[#allocation2 + $0x3e]]
    %v5275 = vstv %s5274
    %v5276 = vmul.f32 %v5275, %v5272
    %v5277 = vmul.f32 %v5275, %v5273
    %v5278 = vadd.f32 %v5264, %v5276
    %v5279 = vadd.f32 %v5265, %v5277
    %s5280 = sld [smem:[#allocation2 + $0x3f]]
    %v5281 = vstv %s5280
    %v5282 = vmul.f32 %v5281, %v5272
    %v5283 = vmul.f32 %v5281, %v5273
    %v5286 = vrot.slane %v5282, 1
    %v5287 = vrot.slane %v5283, 1
    %v5290 = vadd.f32 %v5278, %v5286
    %v5291 = vadd.f32 %v5279, %v5287
    %5292 = vrot.lane.b32.xlu0 %v4466, 111
    %v5293 = vpop.permute.xlu0 %5292
    %5294 = vrot.lane.b32.xlu0 %v4467, 111
    %v5295 = vpop.permute.xlu0 %5294
    %v5296 = vsel %vm663, %v5293, %v5295
    %v5297 = vsel %vm663, %v5295, %v5293
    %v5298 = vmul.f32 %v5296, %v2608
    %v5299 = vmul.f32 %v5297, %v2612
    %s5300 = sld [smem:[#allocation2 + $0x40]]
    %v5301 = vstv %s5300
    %v5302 = vmul.f32 %v5301, %v5298
    %v5303 = vmul.f32 %v5301, %v5299
    %v5304 = vadd.f32 %v5290, %v5302
    %v5305 = vadd.f32 %v5291, %v5303
    %s5306 = sld [smem:[#allocation2 + $0x41]]
    %v5307 = vstv %s5306
    %v5308 = vmul.f32 %v5307, %v5298
    %v5309 = vmul.f32 %v5307, %v5299
    %v5312 = vrot.slane %v5308, 1
    %v5313 = vrot.slane %v5309, 1
    %v5316 = vadd.f32 %v5304, %v5312
    %v5317 = vadd.f32 %v5305, %v5313
    %5318 = vrot.lane.b32.xlu0 %v4466, 110
    %v5319 = vpop.permute.xlu0 %5318
    %5320 = vrot.lane.b32.xlu0 %v4467, 110
    %v5321 = vpop.permute.xlu0 %5320
    %v5322 = vsel %vm2637, %v5319, %v5321
    %v5323 = vsel %vm2637, %v5321, %v5319
    %v5324 = vmul.f32 %v5322, %v2643
    %v5325 = vmul.f32 %v5323, %v2647
    %s5326 = sld [smem:[#allocation2 + $0x42]]
    %v5327 = vstv %s5326
    %v5328 = vmul.f32 %v5327, %v5324
    %v5329 = vmul.f32 %v5327, %v5325
    %v5330 = vadd.f32 %v5316, %v5328
    %v5331 = vadd.f32 %v5317, %v5329
    %s5332 = sld [smem:[#allocation2 + $0x43]]
    %v5333 = vstv %s5332
    %v5334 = vmul.f32 %v5333, %v5324
    %v5335 = vmul.f32 %v5333, %v5325
    %v5338 = vrot.slane %v5334, 1
    %v5339 = vrot.slane %v5335, 1
    %v5342 = vadd.f32 %v5330, %v5338
    %v5343 = vadd.f32 %v5331, %v5339
    %5344 = vrot.lane.b32.xlu0 %v4466, 109
    %v5345 = vpop.permute.xlu0 %5344
    %5346 = vrot.lane.b32.xlu0 %v4467, 109
    %v5347 = vpop.permute.xlu0 %5346
    %v5348 = vsel %vm2672, %v5345, %v5347
    %v5349 = vsel %vm2672, %v5347, %v5345
    %v5350 = vmul.f32 %v5348, %v2678
    %v5351 = vmul.f32 %v5349, %v2682
    %s5352 = sld [smem:[#allocation2 + $0x44]]
    %v5353 = vstv %s5352
    %v5354 = vmul.f32 %v5353, %v5350
    %v5355 = vmul.f32 %v5353, %v5351
    %v5356 = vadd.f32 %v5342, %v5354
    %v5357 = vadd.f32 %v5343, %v5355
    %s5358 = sld [smem:[#allocation2 + $0x45]]
    %v5359 = vstv %s5358
    %v5360 = vmul.f32 %v5359, %v5350
    %v5361 = vmul.f32 %v5359, %v5351
    %v5364 = vrot.slane %v5360, 1
    %v5365 = vrot.slane %v5361, 1
    %v5368 = vadd.f32 %v5356, %v5364
    %v5369 = vadd.f32 %v5357, %v5365
    %5370 = vrot.lane.b32.xlu0 %v4466, 99
    %v5371 = vpop.permute.xlu0 %5370
    %5372 = vrot.lane.b32.xlu0 %v4467, 99
    %v5373 = vpop.permute.xlu0 %5372
    %v5374 = vsel %vm2707, %v5371, %v5373
    %v5375 = vsel %vm2707, %v5373, %v5371
    %v5376 = vmul.f32 %v5374, %v2713
    %v5377 = vmul.f32 %v5375, %v2717
    %s5378 = sld [smem:[#allocation2 + $0x46]]
    %v5379 = vstv %s5378
    %v5380 = vmul.f32 %v5379, %v5376
    %v5381 = vmul.f32 %v5379, %v5377
    %v5382 = vadd.f32 %v5368, %v5380
    %v5383 = vadd.f32 %v5369, %v5381
    %s5384 = sld [smem:[#allocation2 + $0x47]]
    %v5385 = vstv %s5384
    %v5386 = vmul.f32 %v5385, %v5376
    %v5387 = vmul.f32 %v5385, %v5377
    %v5390 = vrot.slane %v5386, 1
    %v5391 = vrot.slane %v5387, 1
    %v5394 = vadd.f32 %v5382, %v5390
    %v5395 = vadd.f32 %v5383, %v5391
    %5396 = vrot.lane.b32.xlu0 %v4466, 98
    %v5397 = vpop.permute.xlu0 %5396
    %5398 = vrot.lane.b32.xlu0 %v4467, 98
    %v5399 = vpop.permute.xlu0 %5398
    %v5400 = vsel %vm2742, %v5397, %v5399
    %v5401 = vsel %vm2742, %v5399, %v5397
    %v5402 = vmul.f32 %v5400, %v2748
    %v5403 = vmul.f32 %v5401, %v2752
    %s5404 = sld [smem:[#allocation2 + $0x48]]
    %v5405 = vstv %s5404
    %v5406 = vmul.f32 %v5405, %v5402
    %v5407 = vmul.f32 %v5405, %v5403
    %v5408 = vadd.f32 %v5394, %v5406
    %v5409 = vadd.f32 %v5395, %v5407
    %s5410 = sld [smem:[#allocation2 + $0x49]]
    %v5411 = vstv %s5410
    %v5412 = vmul.f32 %v5411, %v5402
    %v5413 = vmul.f32 %v5411, %v5403
    %v5416 = vrot.slane %v5412, 1
    %v5417 = vrot.slane %v5413, 1
    %v5420 = vadd.f32 %v5408, %v5416
    %v5421 = vadd.f32 %v5409, %v5417
    %5422 = vrot.lane.b32.xlu0 %v4466, 97
    %v5423 = vpop.permute.xlu0 %5422
    %5424 = vrot.lane.b32.xlu0 %v4467, 97
    %v5425 = vpop.permute.xlu0 %5424
    %v5426 = vsel %vm2777, %v5423, %v5425
    %v5427 = vsel %vm2777, %v5425, %v5423
    %v5428 = vmul.f32 %v5426, %v2783
    %v5429 = vmul.f32 %v5427, %v2787
    %s5430 = sld [smem:[#allocation2 + $0x4a]]
    %v5431 = vstv %s5430
    %v5432 = vmul.f32 %v5431, %v5428
    %v5433 = vmul.f32 %v5431, %v5429
    %v5434 = vadd.f32 %v5420, %v5432
    %v5435 = vadd.f32 %v5421, %v5433
    %s5436 = sld [smem:[#allocation2 + $0x4b]]
    %v5437 = vstv %s5436
    %v5438 = vmul.f32 %v5437, %v5428
    %v5439 = vmul.f32 %v5437, %v5429
    %v5442 = vrot.slane %v5438, 1
    %v5443 = vrot.slane %v5439, 1
    %v5446 = vadd.f32 %v5434, %v5442
    %v5447 = vadd.f32 %v5435, %v5443
    %5448 = vrot.lane.b32.xlu0 %v4466, 96
    %v5449 = vpop.permute.xlu0 %5448
    %5450 = vrot.lane.b32.xlu0 %v4467, 96
    %v5451 = vpop.permute.xlu0 %5450
    %v5452 = vsel %vm2812, %v5449, %v5451
    %v5453 = vsel %vm2812, %v5451, %v5449
    %v5454 = vmul.f32 %v5452, %v2818
    %v5455 = vmul.f32 %v5453, %v2822
    %s5456 = sld [smem:[#allocation2 + $0x4c]]
    %v5457 = vstv %s5456
    %v5458 = vmul.f32 %v5457, %v5454
    %v5459 = vmul.f32 %v5457, %v5455
    %v5460 = vadd.f32 %v5446, %v5458
    %v5461 = vadd.f32 %v5447, %v5459
    %s5462 = sld [smem:[#allocation2 + $0x4d]]
    %v5463 = vstv %s5462
    %v5464 = vmul.f32 %v5463, %v5454
    %v5465 = vmul.f32 %v5463, %v5455
    %v5468 = vrot.slane %v5464, 1
    %v5469 = vrot.slane %v5465, 1
    %v5472 = vadd.f32 %v5460, %v5468
    %v5473 = vadd.f32 %v5461, %v5469
    %5474 = vrot.lane.b32.xlu0 %v4466, 95
    %v5475 = vpop.permute.xlu0 %5474
    %5476 = vrot.lane.b32.xlu0 %v4467, 95
    %v5477 = vpop.permute.xlu0 %5476
    %v5478 = vsel %vm2847, %v5475, %v5477
    %v5479 = vsel %vm2847, %v5477, %v5475
    %v5480 = vmul.f32 %v5478, %v2853
    %v5481 = vmul.f32 %v5479, %v2857
    %s5482 = sld [smem:[#allocation2 + $0x4e]]
    %v5483 = vstv %s5482
    %v5484 = vmul.f32 %v5483, %v5480
    %v5485 = vmul.f32 %v5483, %v5481
    %v5486 = vadd.f32 %v5472, %v5484
    %v5487 = vadd.f32 %v5473, %v5485
    %s5488 = sld [smem:[#allocation2 + $0x4f]]
    %v5489 = vstv %s5488
    %v5490 = vmul.f32 %v5489, %v5480
    %v5491 = vmul.f32 %v5489, %v5481
    %v5494 = vrot.slane %v5490, 1
    %v5495 = vrot.slane %v5491, 1
    %v5498 = vadd.f32 %v5486, %v5494
    %v5499 = vadd.f32 %v5487, %v5495
    %5500 = vrot.lane.b32.xlu0 %v4466, 94
    %v5501 = vpop.permute.xlu0 %5500
    %5502 = vrot.lane.b32.xlu0 %v4467, 94
    %v5503 = vpop.permute.xlu0 %5502
    %v5504 = vsel %vm2882, %v5501, %v5503
    %v5505 = vsel %vm2882, %v5503, %v5501
    %v5506 = vmul.f32 %v5504, %v2888
    %v5507 = vmul.f32 %v5505, %v2892
    %s5508 = sld [smem:[#allocation2 + $0x50]]
    %v5509 = vstv %s5508
    %v5510 = vmul.f32 %v5509, %v5506
    %v5511 = vmul.f32 %v5509, %v5507
    %v5512 = vadd.f32 %v5498, %v5510
    %v5513 = vadd.f32 %v5499, %v5511
    %s5514 = sld [smem:[#allocation2 + $0x51]]
    %v5515 = vstv %s5514
    %v5516 = vmul.f32 %v5515, %v5506
    %v5517 = vmul.f32 %v5515, %v5507
    %v5520 = vrot.slane %v5516, 1
    %v5521 = vrot.slane %v5517, 1
    %v5524 = vadd.f32 %v5512, %v5520
    %v5525 = vadd.f32 %v5513, %v5521
    %5526 = vrot.lane.b32.xlu0 %v4466, 93
    %v5527 = vpop.permute.xlu0 %5526
    %5528 = vrot.lane.b32.xlu0 %v4467, 93
    %v5529 = vpop.permute.xlu0 %5528
    %v5530 = vsel %vm2917, %v5527, %v5529
    %v5531 = vsel %vm2917, %v5529, %v5527
    %v5532 = vmul.f32 %v5530, %v2923
    %v5533 = vmul.f32 %v5531, %v2927
    %s5534 = sld [smem:[#allocation2 + $0x52]]
    %v5535 = vstv %s5534
    %v5536 = vmul.f32 %v5535, %v5532
    %v5537 = vmul.f32 %v5535, %v5533
    %v5538 = vadd.f32 %v5524, %v5536
    %v5539 = vadd.f32 %v5525, %v5537
    %s5540 = sld [smem:[#allocation2 + $0x53]]
    %v5541 = vstv %s5540
    %v5542 = vmul.f32 %v5541, %v5532
    %v5543 = vmul.f32 %v5541, %v5533
    %v5546 = vrot.slane %v5542, 1
    %v5547 = vrot.slane %v5543, 1
    %v5550 = vadd.f32 %v5538, %v5546
    %v5551 = vadd.f32 %v5539, %v5547
    %5552 = vrot.lane.b32.xlu0 %v4466, 83
    %v5553 = vpop.permute.xlu0 %5552
    %5554 = vrot.lane.b32.xlu0 %v4467, 83
    %v5555 = vpop.permute.xlu0 %5554
    %v5556 = vsel %vm2952, %v5553, %v5555
    %v5557 = vsel %vm2952, %v5555, %v5553
    %v5558 = vmul.f32 %v5556, %v2958
    %v5559 = vmul.f32 %v5557, %v2962
    %s5560 = sld [smem:[#allocation2 + $0x54]]
    %v5561 = vstv %s5560
    %v5562 = vmul.f32 %v5561, %v5558
    %v5563 = vmul.f32 %v5561, %v5559
    %v5564 = vadd.f32 %v5550, %v5562
    %v5565 = vadd.f32 %v5551, %v5563
    %s5566 = sld [smem:[#allocation2 + $0x55]]
    %v5567 = vstv %s5566
    %v5568 = vmul.f32 %v5567, %v5558
    %v5569 = vmul.f32 %v5567, %v5559
    %v5572 = vrot.slane %v5568, 1
    %v5573 = vrot.slane %v5569, 1
    %v5576 = vadd.f32 %v5564, %v5572
    %v5577 = vadd.f32 %v5565, %v5573
    %5578 = vrot.lane.b32.xlu0 %v4466, 82
    %v5579 = vpop.permute.xlu0 %5578
    %5580 = vrot.lane.b32.xlu0 %v4467, 82
    %v5581 = vpop.permute.xlu0 %5580
    %v5582 = vsel %vm2987, %v5579, %v5581
    %v5583 = vsel %vm2987, %v5581, %v5579
    %v5584 = vmul.f32 %v5582, %v2993
    %v5585 = vmul.f32 %v5583, %v2997
    %s5586 = sld [smem:[#allocation2 + $0x56]]
    %v5587 = vstv %s5586
    %v5588 = vmul.f32 %v5587, %v5584
    %v5589 = vmul.f32 %v5587, %v5585
    %v5590 = vadd.f32 %v5576, %v5588
    %v5591 = vadd.f32 %v5577, %v5589
    %s5592 = sld [smem:[#allocation2 + $0x57]]
    %v5593 = vstv %s5592
    %v5594 = vmul.f32 %v5593, %v5584
    %v5595 = vmul.f32 %v5593, %v5585
    %v5598 = vrot.slane %v5594, 1
    %v5599 = vrot.slane %v5595, 1
    %v5602 = vadd.f32 %v5590, %v5598
    %v5603 = vadd.f32 %v5591, %v5599
    %5604 = vrot.lane.b32.xlu0 %v4466, 81
    %v5605 = vpop.permute.xlu0 %5604
    %5606 = vrot.lane.b32.xlu0 %v4467, 81
    %v5607 = vpop.permute.xlu0 %5606
    %v5608 = vsel %vm3022, %v5605, %v5607
    %v5609 = vsel %vm3022, %v5607, %v5605
    %v5610 = vmul.f32 %v5608, %v3028
    %v5611 = vmul.f32 %v5609, %v3032
    %s5612 = sld [smem:[#allocation2 + $0x58]]
    %v5613 = vstv %s5612
    %v5614 = vmul.f32 %v5613, %v5610
    %v5615 = vmul.f32 %v5613, %v5611
    %v5616 = vadd.f32 %v5602, %v5614
    %v5617 = vadd.f32 %v5603, %v5615
    %s5618 = sld [smem:[#allocation2 + $0x59]]
    %v5619 = vstv %s5618
    %v5620 = vmul.f32 %v5619, %v5610
    %v5621 = vmul.f32 %v5619, %v5611
    %v5624 = vrot.slane %v5620, 1
    %v5625 = vrot.slane %v5621, 1
    %v5628 = vadd.f32 %v5616, %v5624
    %v5629 = vadd.f32 %v5617, %v5625
    %5630 = vrot.lane.b32.xlu0 %v4466, 80
    %v5631 = vpop.permute.xlu0 %5630
    %5632 = vrot.lane.b32.xlu0 %v4467, 80
    %v5633 = vpop.permute.xlu0 %5632
    %v5634 = vsel %vm3057, %v5631, %v5633
    %v5635 = vsel %vm3057, %v5633, %v5631
    %v5636 = vmul.f32 %v5634, %v3063
    %v5637 = vmul.f32 %v5635, %v3067
    %s5638 = sld [smem:[#allocation2 + $0x5a]]
    %v5639 = vstv %s5638
    %v5640 = vmul.f32 %v5639, %v5636
    %v5641 = vmul.f32 %v5639, %v5637
    %v5642 = vadd.f32 %v5628, %v5640
    %v5643 = vadd.f32 %v5629, %v5641
    %s5644 = sld [smem:[#allocation2 + $0x5b]]
    %v5645 = vstv %s5644
    %v5646 = vmul.f32 %v5645, %v5636
    %v5647 = vmul.f32 %v5645, %v5637
    %v5650 = vrot.slane %v5646, 1
    %v5651 = vrot.slane %v5647, 1
    %v5654 = vadd.f32 %v5642, %v5650
    %v5655 = vadd.f32 %v5643, %v5651
    %5656 = vrot.lane.b32.xlu0 %v4466, 79
    %v5657 = vpop.permute.xlu0 %5656
    %5658 = vrot.lane.b32.xlu0 %v4467, 79
    %v5659 = vpop.permute.xlu0 %5658
    %v5660 = vsel %vm3092, %v5657, %v5659
    %v5661 = vsel %vm3092, %v5659, %v5657
    %v5662 = vmul.f32 %v5660, %v3098
    %v5663 = vmul.f32 %v5661, %v3102
    %s5664 = sld [smem:[#allocation2 + $0x5c]]
    %v5665 = vstv %s5664
    %v5666 = vmul.f32 %v5665, %v5662
    %v5667 = vmul.f32 %v5665, %v5663
    %v5668 = vadd.f32 %v5654, %v5666
    %v5669 = vadd.f32 %v5655, %v5667
    %s5670 = sld [smem:[#allocation2 + $0x5d]]
    %v5671 = vstv %s5670
    %v5672 = vmul.f32 %v5671, %v5662
    %v5673 = vmul.f32 %v5671, %v5663
    %v5676 = vrot.slane %v5672, 1
    %v5677 = vrot.slane %v5673, 1
    %v5680 = vadd.f32 %v5668, %v5676
    %v5681 = vadd.f32 %v5669, %v5677
    %5682 = vrot.lane.b32.xlu0 %v4466, 78
    %v5683 = vpop.permute.xlu0 %5682
    %5684 = vrot.lane.b32.xlu0 %v4467, 78
    %v5685 = vpop.permute.xlu0 %5684
    %v5686 = vsel %vm3127, %v5683, %v5685
    %v5687 = vsel %vm3127, %v5685, %v5683
    %v5688 = vmul.f32 %v5686, %v3133
    %v5689 = vmul.f32 %v5687, %v3137
    %s5690 = sld [smem:[#allocation2 + $0x5e]]
    %v5691 = vstv %s5690
    %v5692 = vmul.f32 %v5691, %v5688
    %v5693 = vmul.f32 %v5691, %v5689
    %v5694 = vadd.f32 %v5680, %v5692
    %v5695 = vadd.f32 %v5681, %v5693
    %s5696 = sld [smem:[#allocation2 + $0x5f]]
    %v5697 = vstv %s5696
    %v5698 = vmul.f32 %v5697, %v5688
    %v5699 = vmul.f32 %v5697, %v5689
    %v5702 = vrot.slane %v5698, 1
    %v5703 = vrot.slane %v5699, 1
    %v5706 = vadd.f32 %v5694, %v5702
    %v5707 = vadd.f32 %v5695, %v5703
    %5708 = vrot.lane.b32.xlu0 %v4466, 77
    %v5709 = vpop.permute.xlu0 %5708
    %5710 = vrot.lane.b32.xlu0 %v4467, 77
    %v5711 = vpop.permute.xlu0 %5710
    %v5712 = vsel %vm3162, %v5709, %v5711
    %v5713 = vsel %vm3162, %v5711, %v5709
    %v5714 = vmul.f32 %v5712, %v3168
    %v5715 = vmul.f32 %v5713, %v3172
    %s5716 = sld [smem:[#allocation2 + $0x60]]
    %v5717 = vstv %s5716
    %v5718 = vmul.f32 %v5717, %v5714
    %v5719 = vmul.f32 %v5717, %v5715
    %v5720 = vadd.f32 %v5706, %v5718
    %v5721 = vadd.f32 %v5707, %v5719
    %s5722 = sld [smem:[#allocation2 + $0x61]]
    %v5723 = vstv %s5722
    %v5724 = vmul.f32 %v5723, %v5714
    %v5725 = vmul.f32 %v5723, %v5715
    %v5728 = vrot.slane %v5724, 1
    %v5729 = vrot.slane %v5725, 1
    %v5732 = vadd.f32 %v5720, %v5728
    %v5733 = vadd.f32 %v5721, %v5729
    %v5734 = vxor.u32 %v5732, 2147483648
    %v5735 = vxor.u32 %v5733, 2147483648
    %v5736 = vmul.f32 %v5734, 1.442695
    %v5737 = vpow.pop %v5736
    %v5738 = vmul.f32 %v5735, 1.442695
    %v5739 = vpow.pop %v5738
    %v5740 = vadd.f32 %v5737, 1.0
    %v5741 = vadd.f32 %v5739, 1.0
    %v5742 = vrcp.pop %v5740
    %v5743 = vmul.f32 1.0, %v5742
    %v5744 = vrcp.pop %v5741
    %v5745 = vmul.f32 1.0, %v5744
    %v5746 = vlaneseq
    %v5747 = vshrl.u32 %v5746, 7
    %v5748 = vsub.s32 0, %v5747
    %v5749 = vrot.slane %v5743, %v5748
    %v5750 = vlaneseq
    %v5751 = vshrl.u32 %v5750, 7
    %v5752 = vsub.s32 0, %v5751
    %v5753 = vrot.slane %v5745, %v5752
    %v5754 = vmul.f32 %v4438, %v5749
    %v5755 = vmul.f32 %v4439, %v5753
    %v5756 = vmul.f32 %v5754, %v4268
    %v5757 = vmul.f32 %v5755, %v4269
    %s5758 = scalar_lea.vmem [#allocation7], 16
    %5759 = vst [vmem:[%s5758] sm:$0xff] %v5756
    %5760 = vst [vmem:[%s5758 + $0x8] sm:$0xff] %v5757
    // Predicated region
    $region50: #{tpu_custom_call.1} parent=1 // pred_check
      _
    $region51: #{tpu_custom_call.1} parent=1 // pred_check_branch
      %5762 = sbr.rel (0) target = $region53
    $region52: #{tpu_custom_call.1} parent=1 // pred_region
      %s5764 = ssub.s32 512, 512
      %5765 = vsyncadd [#allocation4], %s5764
      %s5766 = sshll.u32 [#allocation7], 4
      %s5767 = int_to_ptr.vmem [resolvable:$true] %s5766
      %5772 = dma.vmem_to_hbm [thread:$0]  %s5767, 512, %s10, [#allocation4], 256, 256, 16
    $region53: #{tpu_custom_call.1} parent=1 // pred_fallthru
      _
    // Predicated region
    $region54: #{tpu_custom_call.1} parent=1 // pred_check
      _
    $region55: #{tpu_custom_call.1} parent=1 // pred_check_branch
      %5774 = sbr.rel (0) target = $region57
    $region56: #{tpu_custom_call.1} parent=1 // pred_region
      %5775 = dma.done [#allocation4], 512
    $region57: #{tpu_custom_call.1} parent=1 // pred_fallthru
      _
    %5776 = vsyncpa [#allocation3], 1
    %5777 = vsyncpa [#allocation4], 1
    %5778 = vsyncpa [#allocation5], 1

</llo_original>
